<compile_context>
chip_gen: v7x
topology: tpu7x:2x2x1
jax: 0.10.0
libtpu: 0.0.40
codegen_flags: <defaults>
</compile_context>

<pallas_src>
import functools

import jax
import jax.numpy as jnp
from jax.experimental import pallas as pl
from jax.experimental.pallas import tpu as pltpu

DIMS = 32
HEADS = 8
RATIO = 4
LN_EPS = 1e-5


# ------------------------------ Fused layer kernel ----------------------------
def _fused_kernel(a_ref, b_ref, t_ref, pe_ref,
                  lng_ref, lnb_ref,
                  wq12_ref, bq12_ref, wkv12_ref, bkv12_ref, wm12_ref, bm12_ref,
                  wq34_ref, bq34_ref, wkv34_ref, bkv34_ref, wm34_ref, bm34_ref,
                  w1_ref, b1_ref, w2_ref, b2_ref,
                  ao_ref, bo_ref, to_ref, *, heads):
    D = a_ref.shape[-1]
    hd = D // heads
    scale = 1.0 / float(hd) ** 0.5

    a = a_ref[0].astype(jnp.float32)      # (Nab, D)
    b = b_ref[0].astype(jnp.float32)      # (Nab, D)
    t = t_ref[0].astype(jnp.float32)      # (Nt,  D)
    pe = pe_ref[0].astype(jnp.float32)    # (Nab, D)

    def ln(x, i):
        mu = jnp.mean(x, axis=-1, keepdims=True)
        xc = x - mu
        var = jnp.mean(xc * xc, axis=-1, keepdims=True)
        return xc * jax.lax.rsqrt(var + LN_EPS) * lng_ref[i:i + 1, :] + lnb_ref[i:i + 1, :]

    def attend(q, k, v):
        # Per-head softmax attention; returns list of (Nq, hd) context slabs.
        # Static head loop (hd=4); kept 2-D to avoid 3-D relayouts — with the full
        # layer fused this is no longer the dominant cost.
        outs = []
        for h in range(heads):
            sl = slice(h * hd, (h + 1) * hd)
            s = jax.lax.dot_general(q[:, sl], k[:, sl], (((1,), (1,)), ((), ())),
                                    preferred_element_type=jnp.float32) * scale
            s = s - jnp.max(s, axis=-1, keepdims=True)
            p = jnp.exp(s)
            p = p * pl.reciprocal(jnp.sum(p, axis=-1, keepdims=True), approx=True)
            outs.append(jnp.dot(p, v[:, sl], preferred_element_type=jnp.float32))
        return outs

    # ---- norms on the raw inputs ---------------------------------------------
    da = ln(a, 0)
    db = ln(b, 1)
    dt = ln(t, 2)
    dape = da + pe            # == ka == qa in the reference graph
    dbpe = db + pe            # == kb == qb

    # ---- att1(dt, ka, da) + att2(dt, kb, db): fused Q and output projections --
    q12 = jnp.dot(dt, wq12_ref[...], preferred_element_type=jnp.float32) + bq12_ref[...]
    k1 = jnp.dot(dape, wkv12_ref[0], preferred_element_type=jnp.float32) + bkv12_ref[0:1, :]
    v1 = jnp.dot(da, wkv12_ref[1], preferred_element_type=jnp.float32) + bkv12_ref[1:2, :]
    k2 = jnp.dot(dbpe, wkv12_ref[2], preferred_element_type=jnp.float32) + bkv12_ref[2:3, :]
    v2 = jnp.dot(db, wkv12_ref[3], preferred_element_type=jnp.float32) + bkv12_ref[3:4, :]
    ctx12 = jnp.concatenate(attend(q12[:, :D], k1, v1) + attend(q12[:, D:], k2, v2),
                            axis=-1)                                      # (Nt, 2D)
    # t + at + bt : output projections of att1/att2 fused into one (2D, D) matmul
    t = t + jnp.dot(ctx12, wm12_ref[...], preferred_element_type=jnp.float32) + bm12_ref[...]

    # ---- att3(qa, dt2, dt2) + att4(qb, dt2, dt2): fused K/V projection --------
    dt2 = ln(t, 3)
    kv34 = jnp.dot(dt2, wkv34_ref[...], preferred_element_type=jnp.float32) + bkv34_ref[...]
    q3 = jnp.dot(dape, wq34_ref[0], preferred_element_type=jnp.float32) + bq34_ref[0:1, :]
    q4 = jnp.dot(dbpe, wq34_ref[1], preferred_element_type=jnp.float32) + bq34_ref[1:2, :]
    ctx3 = jnp.concatenate(attend(q3, kv34[:, 0:D], kv34[:, D:2 * D]), axis=-1)
    ctx4 = jnp.concatenate(attend(q4, kv34[:, 2 * D:3 * D], kv34[:, 3 * D:]), axis=-1)
    a = a + jnp.dot(ctx3, wm34_ref[0], preferred_element_type=jnp.float32) + bm34_ref[0:1, :]
    b = b + jnp.dot(ctx4, wm34_ref[1], preferred_element_type=jnp.float32) + bm34_ref[1:2, :]

    # ---- FFNs ------------------------------------------------------------------
    da2 = ln(a, 4)
    db2 = ln(b, 5)
    h1 = jnp.maximum(jnp.dot(da2, w1_ref[0], preferred_element_type=jnp.float32)
                     + b1_ref[0:1, :], 0.0)
    a = a + jnp.dot(h1, w2_ref[0], preferred_element_type=jnp.float32) + b2_ref[0:1, :]
    h2 = jnp.maximum(jnp.dot(db2, w1_ref[1], preferred_element_type=jnp.float32)
                     + b1_ref[1:2, :], 0.0)
    b = b + jnp.dot(h2, w2_ref[1], preferred_element_type=jnp.float32) + b2_ref[1:2, :]

    ao_ref[0] = a.astype(ao_ref.dtype)
    bo_ref[0] = b.astype(bo_ref.dtype)
    to_ref[0] = t.astype(to_ref.dtype)


# ------------------------------ Param packing ----------------------------------
def pack_params(p):
    """Repack per-module params into fused/stacked tensors consumed by the kernel."""
    a1, a2, a3, a4 = p['att1'], p['att2'], p['att3'], p['att4']
    f1, f2 = p['ffn1'], p['ffn2']
    return dict(
        ln_g=jnp.concatenate([p[f'norm{i}']['g'] for i in range(1, 7)], axis=0),   # (6, D)
        ln_b=jnp.concatenate([p[f'norm{i}']['b'] for i in range(1, 7)], axis=0),   # (6, D)
        wq12=jnp.concatenate([a1['wq'], a2['wq']], axis=1),                        # (D, 2D)
        bq12=jnp.concatenate([a1['bq'], a2['bq']], axis=1),                        # (1, 2D)
        wkv12=jnp.stack([a1['wk'], a1['wv'], a2['wk'], a2['wv']], axis=0),         # (4, D, D)
        bkv12=jnp.concatenate([a1['bk'], a1['bv'], a2['bk'], a2['bv']], axis=0),   # (4, D)
        wm12=jnp.concatenate([a1['wm'], a2['wm']], axis=0),                        # (2D, D)
        bm12=a1['bm'] + a2['bm'],                                                  # (1, D)
        wq34=jnp.stack([a3['wq'], a4['wq']], axis=0),                              # (2, D, D)
        bq34=jnp.concatenate([a3['bq'], a4['bq']], axis=0),                        # (2, D)
        wkv34=jnp.concatenate([a3['wk'], a3['wv'], a4['wk'], a4['wv']], axis=1),   # (D, 4D)
        bkv34=jnp.concatenate([a3['bk'], a3['bv'], a4['bk'], a4['bv']], axis=1),   # (1, 4D)
        wm34=jnp.stack([a3['wm'], a4['wm']], axis=0),                              # (2, D, D)
        bm34=jnp.concatenate([a3['bm'], a4['bm']], axis=0),                        # (2, D)
        w1=jnp.stack([f1['w1'], f2['w1']], axis=0),                                # (2, D, H)
        b1=jnp.concatenate([f1['b1'], f2['b1']], axis=0),                          # (2, H)
        w2=jnp.stack([f1['w2'], f2['w2']], axis=0),                                # (2, H, D)
        b2=jnp.concatenate([f1['b2'], f2['b2']], axis=0),                          # (2, D)
    )


# ------------------------------ Layer forward -----------------------------------
def bottleneck_transformer_layer(params, a, b, t, pe=None, mask=None, heads=HEADS):
    # mirrors BottleneckTransformerLayer.forward (eval mode: dropout = identity)
    # TODO(synk): attention-mask (masked_fill -inf) path not implemented.
    assert mask is None, "mask path not implemented"
    pp = pack_params(params)
    B, Nab, D = a.shape
    Nt = t.shape[1]
    if pe is None:
        pe = jnp.zeros((1, Nab, D), a.dtype)

    def rep(shape):                       # whole-array, replicated over the batch grid
        n = len(shape)
        return pl.BlockSpec(shape, lambda i, _n=n: (0,) * _n)

    param_order = ('ln_g', 'ln_b', 'wq12', 'bq12', 'wkv12', 'bkv12', 'wm12', 'bm12',
                   'wq34', 'bq34', 'wkv34', 'bkv34', 'wm34', 'bm34',
                   'w1', 'b1', 'w2', 'b2')
    param_args = [pp[k] for k in param_order]
    param_specs = [rep(pp[k].shape) for k in param_order]

    pe_map = (lambda i: (0, 0, 0)) if pe.shape[0] == 1 else (lambda i: (i, 0, 0))
    in_specs = [
        pl.BlockSpec((1, Nab, D), lambda i: (i, 0, 0)),   # a
        pl.BlockSpec((1, Nab, D), lambda i: (i, 0, 0)),   # b
        pl.BlockSpec((1, Nt, D), lambda i: (i, 0, 0)),    # t
        pl.BlockSpec((1, Nab, D), pe_map),                # pe
    ] + param_specs

    out_shape = (jax.ShapeDtypeStruct((B, Nab, D), a.dtype),
                 jax.ShapeDtypeStruct((B, Nab, D), b.dtype),
                 jax.ShapeDtypeStruct((B, Nt, D), t.dtype))
    out_specs = (pl.BlockSpec((1, Nab, D), lambda i: (i, 0, 0)),
                 pl.BlockSpec((1, Nab, D), lambda i: (i, 0, 0)),
                 pl.BlockSpec((1, Nt, D), lambda i: (i, 0, 0)))

    kernel = functools.partial(_fused_kernel, heads=heads)
    a_out, b_out, t_out = pl.pallas_call(
        kernel,
        out_shape=out_shape,
        grid=(B,),
        in_specs=in_specs,
        out_specs=out_specs,
        compiler_params=pltpu.CompilerParams(dimension_semantics=("parallel",)),
    )(a, b, t, pe, *param_args)
    return a_out, b_out, t_out


# --------------------------- Deterministic params -------------------------------
def init_params(key, dims=DIMS, ratio=RATIO):
    def dense(k, din, dout, scale=0.05):
        k1, k2 = jax.random.split(k)
        return (jax.random.normal(k1, (din, dout), jnp.float32) * scale,
                jax.random.normal(k2, (1, dout), jnp.float32) * 0.02)

    def attn(k):
        ks = jax.random.split(k, 4)
        wq, bq = dense(ks[0], dims, dims)
        wk, bk = dense(ks[1], dims, dims)
        wv, bv = dense(ks[2], dims, dims)
        wm, bm = dense(ks[3], dims, dims)
        return dict(wq=wq, bq=bq, wk=wk, bk=bk, wv=wv, bv=bv, wm=wm, bm=bm)

    def ffn(k):
        k1, k2 = jax.random.split(k)
        w1, b1 = dense(k1, dims, dims * ratio)
        w2, b2 = dense(k2, dims * ratio, dims)
        return dict(w1=w1, b1=b1, w2=w2, b2=b2)

    def norm(k):
        k1, k2 = jax.random.split(k)
        return dict(g=1.0 + 0.05 * jax.random.normal(k1, (1, dims), jnp.float32),
                    b=0.05 * jax.random.normal(k2, (1, dims), jnp.float32))

    ks = jax.random.split(key, 12)
    return dict(att1=attn(ks[0]), att2=attn(ks[1]), att3=attn(ks[2]), att4=attn(ks[3]),
                ffn1=ffn(ks[4]), ffn2=ffn(ks[5]),
                norm1=norm(ks[6]), norm2=norm(ks[7]), norm3=norm(ks[8]),
                norm4=norm(ks[9]), norm5=norm(ks[10]), norm6=norm(ks[11]))


# ------------------------------ Pure-JAX reference -------------------------------
def _ref_ln(x, g, b):
    mu = x.mean(-1, keepdims=True)
    var = ((x - mu) ** 2).mean(-1, keepdims=True)
    return (x - mu) / jnp.sqrt(var + LN_EPS) * g + b


def _ref_mha(q, k, v, p, heads=HEADS):
    B, Nq, D = q.shape
    Nk = k.shape[1]
    hd = D // heads
    qp = (q @ p['wq'] + p['bq']).reshape(B, Nq, heads, hd).transpose(0, 2, 1, 3)
    kp = (k @ p['wk'] + p['bk']).reshape(B, Nk, heads, hd).transpose(0, 2, 1, 3)
    vp = (v @ p['wv'] + p['bv']).reshape(B, Nk, heads, hd).transpose(0, 2, 1, 3)
    s = jnp.einsum('bhqd,bhkd->bhqk', qp, kp) / (hd ** 0.5)
    pr = jax.nn.softmax(s, axis=-1)
    ctx = jnp.einsum('bhqk,bhkd->bhqd', pr, vp).transpose(0, 2, 1, 3).reshape(B, Nq, D)
    return ctx @ p['wm'] + p['bm']


def _ref_ffn(x, p):
    return jax.nn.relu(x @ p['w1'] + p['b1']) @ p['w2'] + p['b2']


def _ref_forward(params, a, b, t, pe=None):
    da = _ref_ln(a, params['norm1']['g'], params['norm1']['b'])
    db = _ref_ln(b, params['norm2']['g'], params['norm2']['b'])
    dt = _ref_ln(t, params['norm3']['g'], params['norm3']['b'])
    ka = da if pe is None else da + pe
    kb = db if pe is None else db + pe
    t = t + _ref_mha(dt, ka, da, params['att1']) + _ref_mha(dt, kb, db, params['att2'])
    dt = _ref_ln(t, params['norm4']['g'], params['norm4']['b'])
    qa = da if pe is None else da + pe
    qb = db if pe is None else db + pe
    a = a + _ref_mha(qa, dt, dt, params['att3'])
    b = b + _ref_mha(qb, dt, dt, params['att4'])
    da = _ref_ln(a, params['norm5']['g'], params['norm5']['b'])
    db = _ref_ln(b, params['norm6']['g'], params['norm6']['b'])
    a = a + _ref_ffn(da, params['ffn1'])
    b = b + _ref_ffn(db, params['ffn2'])
    return a, b, t


# ----------------------------------- Main -----------------------------------------
if __name__ == "__main__":
    key = jax.random.PRNGKey(0)
    kp, ka_, kb_, kt_, kpe = jax.random.split(key, 5)
    B, Nab, Nt, D = 2, 16, 8, DIMS
    a = jax.random.normal(ka_, (B, Nab, D), jnp.float32)
    b = jax.random.normal(kb_, (B, Nab, D), jnp.float32)
    t = jax.random.normal(kt_, (B, Nt, D), jnp.float32)
    pe = 0.1 * jax.random.normal(kpe, (1, Nab, D), jnp.float32)
    params = init_params(kp)

    fwd = jax.jit(functools.partial(bottleneck_transformer_layer, heads=HEADS))
    out = fwd(params, a, b, t, pe)
    out = jax.block_until_ready(out)

    ref = _ref_forward(params, a, b, t, pe=pe)
    for o, r in zip(out, ref):
        err = float(jnp.max(jnp.abs(o - r)))
        # tolerance 1e-3: approx reciprocal in the softmax denominator (EUP vrcp)
        assert jnp.allclose(o, r, atol=1e-3, rtol=1e-3), f"max abs err {err}"

    print("KERNEL_OK")
</pallas_src>

<mosaic_0001>
module attributes {stable_mosaic.version = 11 : i64} {
  func.func @_fused_kernel(%arg0: i32, %arg1: memref<1x16x32xf32, #tpu.memory_space<vmem>>, %arg2: memref<1x16x32xf32, #tpu.memory_space<vmem>>, %arg3: memref<1x8x32xf32, #tpu.memory_space<vmem>>, %arg4: memref<1x16x32xf32, #tpu.memory_space<vmem>>, %arg5: memref<6x32xf32, #tpu.memory_space<vmem>>, %arg6: memref<6x32xf32, #tpu.memory_space<vmem>>, %arg7: memref<32x64xf32, #tpu.memory_space<vmem>>, %arg8: memref<1x64xf32, #tpu.memory_space<vmem>>, %arg9: memref<4x32x32xf32, #tpu.memory_space<vmem>>, %arg10: memref<4x32xf32, #tpu.memory_space<vmem>>, %arg11: memref<64x32xf32, #tpu.memory_space<vmem>>, %arg12: memref<1x32xf32, #tpu.memory_space<vmem>>, %arg13: memref<2x32x32xf32, #tpu.memory_space<vmem>>, %arg14: memref<2x32xf32, #tpu.memory_space<vmem>>, %arg15: memref<32x128xf32, #tpu.memory_space<vmem>>, %arg16: memref<1x128xf32, #tpu.memory_space<vmem>>, %arg17: memref<2x32x32xf32, #tpu.memory_space<vmem>>, %arg18: memref<2x32xf32, #tpu.memory_space<vmem>>, %arg19: memref<2x32x128xf32, #tpu.memory_space<vmem>>, %arg20: memref<2x128xf32, #tpu.memory_space<vmem>>, %arg21: memref<2x128x32xf32, #tpu.memory_space<vmem>>, %arg22: memref<2x32xf32, #tpu.memory_space<vmem>>, %arg23: memref<1x16x32xf32, #tpu.memory_space<vmem>>, %arg24: memref<1x16x32xf32, #tpu.memory_space<vmem>>, %arg25: memref<1x8x32xf32, #tpu.memory_space<vmem>>) attributes {dimension_semantics = [#tpu.dimension_semantics<parallel>], iteration_bounds = array<i64: 2>, scalar_prefetch = 0 : i64, scratch_operands = 0 : i64, tpu.core_type = #tpu.core_type<tc>, window_params = [{transform_indices = @transform_0, window_bounds = array<i64: 1, 16, 32>}, {transform_indices = @transform_1, window_bounds = array<i64: 1, 16, 32>}, {transform_indices = @transform_2, window_bounds = array<i64: 1, 8, 32>}, {pipeline_mode = #tpu.pipeline_mode<synchronous>, transform_indices = @transform_3, window_bounds = array<i64: 1, 16, 32>}, {pipeline_mode = #tpu.pipeline_mode<synchronous>, transform_indices = @transform_4, window_bounds = array<i64: 6, 32>}, {pipeline_mode = #tpu.pipeline_mode<synchronous>, transform_indices = @transform_5, window_bounds = array<i64: 6, 32>}, {pipeline_mode = #tpu.pipeline_mode<synchronous>, transform_indices = @transform_6, window_bounds = array<i64: 32, 64>}, {pipeline_mode = #tpu.pipeline_mode<synchronous>, transform_indices = @transform_7, window_bounds = array<i64: 1, 64>}, {pipeline_mode = #tpu.pipeline_mode<synchronous>, transform_indices = @transform_8, window_bounds = array<i64: 4, 32, 32>}, {pipeline_mode = #tpu.pipeline_mode<synchronous>, transform_indices = @transform_9, window_bounds = array<i64: 4, 32>}, {pipeline_mode = #tpu.pipeline_mode<synchronous>, transform_indices = @transform_10, window_bounds = array<i64: 64, 32>}, {pipeline_mode = #tpu.pipeline_mode<synchronous>, transform_indices = @transform_11, window_bounds = array<i64: 1, 32>}, {pipeline_mode = #tpu.pipeline_mode<synchronous>, transform_indices = @transform_12, window_bounds = array<i64: 2, 32, 32>}, {pipeline_mode = #tpu.pipeline_mode<synchronous>, transform_indices = @transform_13, window_bounds = array<i64: 2, 32>}, {pipeline_mode = #tpu.pipeline_mode<synchronous>, transform_indices = @transform_14, window_bounds = array<i64: 32, 128>}, {pipeline_mode = #tpu.pipeline_mode<synchronous>, transform_indices = @transform_15, window_bounds = array<i64: 1, 128>}, {pipeline_mode = #tpu.pipeline_mode<synchronous>, transform_indices = @transform_16, window_bounds = array<i64: 2, 32, 32>}, {pipeline_mode = #tpu.pipeline_mode<synchronous>, transform_indices = @transform_17, window_bounds = array<i64: 2, 32>}, {pipeline_mode = #tpu.pipeline_mode<synchronous>, transform_indices = @transform_18, window_bounds = array<i64: 2, 32, 128>}, {pipeline_mode = #tpu.pipeline_mode<synchronous>, transform_indices = @transform_19, window_bounds = array<i64: 2, 128>}, {pipeline_mode = #tpu.pipeline_mode<synchronous>, transform_indices = @transform_20, window_bounds = array<i64: 2, 128, 32>}, {pipeline_mode = #tpu.pipeline_mode<synchronous>, transform_indices = @transform_21, window_bounds = array<i64: 2, 32>}, {transform_indices = @transform_22, window_bounds = array<i64: 1, 16, 32>}, {transform_indices = @transform_23, window_bounds = array<i64: 1, 16, 32>}, {transform_indices = @transform_24, window_bounds = array<i64: 1, 8, 32>}]} {
    %c0 = arith.constant 0 : index
    %c0_0 = arith.constant 0 : index
    %c0_1 = arith.constant 0 : index
    %0 = vector.load %arg1[%c0, %c0_0, %c0_1] : memref<1x16x32xf32, #tpu.memory_space<vmem>>, vector<1x16x32xf32>
    %1 = vector.shape_cast %0 : vector<1x16x32xf32> to vector<16x32xf32>
    %c0_2 = arith.constant 0 : index
    %c0_3 = arith.constant 0 : index
    %c0_4 = arith.constant 0 : index
    %2 = vector.load %arg2[%c0_2, %c0_3, %c0_4] : memref<1x16x32xf32, #tpu.memory_space<vmem>>, vector<1x16x32xf32>
    %3 = vector.shape_cast %2 : vector<1x16x32xf32> to vector<16x32xf32>
    %c0_5 = arith.constant 0 : index
    %c0_6 = arith.constant 0 : index
    %c0_7 = arith.constant 0 : index
    %4 = vector.load %arg3[%c0_5, %c0_6, %c0_7] : memref<1x8x32xf32, #tpu.memory_space<vmem>>, vector<1x8x32xf32>
    %5 = vector.shape_cast %4 : vector<1x8x32xf32> to vector<8x32xf32>
    %c0_8 = arith.constant 0 : index
    %c0_9 = arith.constant 0 : index
    %c0_10 = arith.constant 0 : index
    %6 = vector.load %arg4[%c0_8, %c0_9, %c0_10] : memref<1x16x32xf32, #tpu.memory_space<vmem>>, vector<1x16x32xf32>
    %7 = vector.shape_cast %6 : vector<1x16x32xf32> to vector<16x32xf32>
    %cst = arith.constant dense<0.000000e+00> : vector<16xf32>
    %8 = vector.multi_reduction <add>, %1, %cst [1] : vector<16x32xf32> to vector<16xf32>
    %9 = vector.shape_cast %8 : vector<16xf32> to vector<16x1xf32>
    %cst_11 = arith.constant 3.200000e+01 : f32
    %10 = vector.broadcast %cst_11 : f32 to vector<16x1xf32>
    %11 = arith.divf %9, %10 : vector<16x1xf32>
    %12 = vector.broadcast %11 : vector<16x1xf32> to vector<16x32xf32>
    %13 = arith.subf %1, %12 : vector<16x32xf32>
    %14 = arith.mulf %13, %13 : vector<16x32xf32>
    %cst_12 = arith.constant dense<0.000000e+00> : vector<16xf32>
    %15 = vector.multi_reduction <add>, %14, %cst_12 [1] : vector<16x32xf32> to vector<16xf32>
    %16 = vector.shape_cast %15 : vector<16xf32> to vector<16x1xf32>
    %cst_13 = arith.constant 3.200000e+01 : f32
    %17 = vector.broadcast %cst_13 : f32 to vector<16x1xf32>
    %18 = arith.divf %16, %17 : vector<16x1xf32>
    %cst_14 = arith.constant 9.99999974E-6 : f32
    %19 = vector.broadcast %cst_14 : f32 to vector<16x1xf32>
    %20 = arith.addf %18, %19 : vector<16x1xf32>
    %21 = math.rsqrt %20 : vector<16x1xf32>
    %22 = vector.broadcast %21 : vector<16x1xf32> to vector<16x32xf32>
    %23 = arith.mulf %13, %22 : vector<16x32xf32>
    %c0_15 = arith.constant 0 : index
    %c0_16 = arith.constant 0 : index
    %24 = vector.load %arg5[%c0_15, %c0_16] : memref<6x32xf32, #tpu.memory_space<vmem>>, vector<1x32xf32>
    %25 = vector.broadcast %24 : vector<1x32xf32> to vector<16x32xf32>
    %26 = arith.mulf %23, %25 : vector<16x32xf32>
    %c0_17 = arith.constant 0 : index
    %c0_18 = arith.constant 0 : index
    %27 = vector.load %arg6[%c0_17, %c0_18] : memref<6x32xf32, #tpu.memory_space<vmem>>, vector<1x32xf32>
    %28 = vector.broadcast %27 : vector<1x32xf32> to vector<16x32xf32>
    %29 = arith.addf %26, %28 : vector<16x32xf32>
    %cst_19 = arith.constant dense<0.000000e+00> : vector<16xf32>
    %30 = vector.multi_reduction <add>, %3, %cst_19 [1] : vector<16x32xf32> to vector<16xf32>
    %31 = vector.shape_cast %30 : vector<16xf32> to vector<16x1xf32>
    %cst_20 = arith.constant 3.200000e+01 : f32
    %32 = vector.broadcast %cst_20 : f32 to vector<16x1xf32>
    %33 = arith.divf %31, %32 : vector<16x1xf32>
    %34 = vector.broadcast %33 : vector<16x1xf32> to vector<16x32xf32>
    %35 = arith.subf %3, %34 : vector<16x32xf32>
    %36 = arith.mulf %35, %35 : vector<16x32xf32>
    %cst_21 = arith.constant dense<0.000000e+00> : vector<16xf32>
    %37 = vector.multi_reduction <add>, %36, %cst_21 [1] : vector<16x32xf32> to vector<16xf32>
    %38 = vector.shape_cast %37 : vector<16xf32> to vector<16x1xf32>
    %cst_22 = arith.constant 3.200000e+01 : f32
    %39 = vector.broadcast %cst_22 : f32 to vector<16x1xf32>
    %40 = arith.divf %38, %39 : vector<16x1xf32>
    %cst_23 = arith.constant 9.99999974E-6 : f32
    %41 = vector.broadcast %cst_23 : f32 to vector<16x1xf32>
    %42 = arith.addf %40, %41 : vector<16x1xf32>
    %43 = math.rsqrt %42 : vector<16x1xf32>
    %44 = vector.broadcast %43 : vector<16x1xf32> to vector<16x32xf32>
    %45 = arith.mulf %35, %44 : vector<16x32xf32>
    %c1 = arith.constant 1 : index
    %c0_24 = arith.constant 0 : index
    %46 = vector.load %arg5[%c1, %c0_24] : memref<6x32xf32, #tpu.memory_space<vmem>>, vector<1x32xf32>
    %47 = vector.broadcast %46 : vector<1x32xf32> to vector<16x32xf32>
    %48 = arith.mulf %45, %47 : vector<16x32xf32>
    %c1_25 = arith.constant 1 : index
    %c0_26 = arith.constant 0 : index
    %49 = vector.load %arg6[%c1_25, %c0_26] : memref<6x32xf32, #tpu.memory_space<vmem>>, vector<1x32xf32>
    %50 = vector.broadcast %49 : vector<1x32xf32> to vector<16x32xf32>
    %51 = arith.addf %48, %50 : vector<16x32xf32>
    %cst_27 = arith.constant dense<0.000000e+00> : vector<8xf32>
    %52 = vector.multi_reduction <add>, %5, %cst_27 [1] : vector<8x32xf32> to vector<8xf32>
    %53 = vector.shape_cast %52 : vector<8xf32> to vector<8x1xf32>
    %cst_28 = arith.constant 3.200000e+01 : f32
    %54 = vector.broadcast %cst_28 : f32 to vector<8x1xf32>
    %55 = arith.divf %53, %54 : vector<8x1xf32>
    %56 = vector.broadcast %55 : vector<8x1xf32> to vector<8x32xf32>
    %57 = arith.subf %5, %56 : vector<8x32xf32>
    %58 = arith.mulf %57, %57 : vector<8x32xf32>
    %cst_29 = arith.constant dense<0.000000e+00> : vector<8xf32>
    %59 = vector.multi_reduction <add>, %58, %cst_29 [1] : vector<8x32xf32> to vector<8xf32>
    %60 = vector.shape_cast %59 : vector<8xf32> to vector<8x1xf32>
    %cst_30 = arith.constant 3.200000e+01 : f32
    %61 = vector.broadcast %cst_30 : f32 to vector<8x1xf32>
    %62 = arith.divf %60, %61 : vector<8x1xf32>
    %cst_31 = arith.constant 9.99999974E-6 : f32
    %63 = vector.broadcast %cst_31 : f32 to vector<8x1xf32>
    %64 = arith.addf %62, %63 : vector<8x1xf32>
    %65 = math.rsqrt %64 : vector<8x1xf32>
    %66 = vector.broadcast %65 : vector<8x1xf32> to vector<8x32xf32>
    %67 = arith.mulf %57, %66 : vector<8x32xf32>
    %c2 = arith.constant 2 : index
    %c0_32 = arith.constant 0 : index
    %68 = vector.load %arg5[%c2, %c0_32] : memref<6x32xf32, #tpu.memory_space<vmem>>, vector<1x32xf32>
    %69 = vector.broadcast %68 : vector<1x32xf32> to vector<8x32xf32>
    %70 = arith.mulf %67, %69 : vector<8x32xf32>
    %c2_33 = arith.constant 2 : index
    %c0_34 = arith.constant 0 : index
    %71 = vector.load %arg6[%c2_33, %c0_34] : memref<6x32xf32, #tpu.memory_space<vmem>>, vector<1x32xf32>
    %72 = vector.broadcast %71 : vector<1x32xf32> to vector<8x32xf32>
    %73 = arith.addf %70, %72 : vector<8x32xf32>
    %74 = arith.addf %29, %7 : vector<16x32xf32>
    %75 = arith.addf %51, %7 : vector<16x32xf32>
    %c0_35 = arith.constant 0 : index
    %c0_36 = arith.constant 0 : index
    %76 = vector.load %arg7[%c0_35, %c0_36] : memref<32x64xf32, #tpu.memory_space<vmem>>, vector<32x64xf32>
    %cst_37 = arith.constant dense<0.000000e+00> : vector<8x64xf32>
    %77 = tpu.matmul %73, %76, %cst_37 {dimension_numbers = #tpu.dot_dimension_numbers<[1], [0], [0], [1], [0, 0, 1, 1], [], []>} : vector<8x32xf32>, vector<32x64xf32>, vector<8x64xf32> -> vector<8x64xf32>
    %c0_38 = arith.constant 0 : index
    %c0_39 = arith.constant 0 : index
    %78 = vector.load %arg8[%c0_38, %c0_39] : memref<1x64xf32, #tpu.memory_space<vmem>>, vector<1x64xf32>
    %79 = vector.broadcast %78 : vector<1x64xf32> to vector<8x64xf32>
    %80 = arith.addf %77, %79 : vector<8x64xf32>
    %c0_40 = arith.constant 0 : index
    %c0_41 = arith.constant 0 : index
    %c0_42 = arith.constant 0 : index
    %81 = vector.load %arg9[%c0_40, %c0_41, %c0_42] : memref<4x32x32xf32, #tpu.memory_space<vmem>>, vector<1x32x32xf32>
    %82 = vector.shape_cast %81 : vector<1x32x32xf32> to vector<32x32xf32>
    %cst_43 = arith.constant dense<0.000000e+00> : vector<16x32xf32>
    %83 = tpu.matmul %74, %82, %cst_43 {dimension_numbers = #tpu.dot_dimension_numbers<[1], [0], [0], [1], [0, 0, 1, 1], [], []>} : vector<16x32xf32>, vector<32x32xf32>, vector<16x32xf32> -> vector<16x32xf32>
    %c0_44 = arith.constant 0 : index
    %c0_45 = arith.constant 0 : index
    %84 = vector.load %arg10[%c0_44, %c0_45] : memref<4x32xf32, #tpu.memory_space<vmem>>, vector<1x32xf32>
    %85 = vector.broadcast %84 : vector<1x32xf32> to vector<16x32xf32>
    %86 = arith.addf %83, %85 : vector<16x32xf32>
    %c1_46 = arith.constant 1 : index
    %c0_47 = arith.constant 0 : index
    %c0_48 = arith.constant 0 : index
    %87 = vector.load %arg9[%c1_46, %c0_47, %c0_48] : memref<4x32x32xf32, #tpu.memory_space<vmem>>, vector<1x32x32xf32>
    %88 = vector.shape_cast %87 : vector<1x32x32xf32> to vector<32x32xf32>
    %cst_49 = arith.constant dense<0.000000e+00> : vector<16x32xf32>
    %89 = tpu.matmul %29, %88, %cst_49 {dimension_numbers = #tpu.dot_dimension_numbers<[1], [0], [0], [1], [0, 0, 1, 1], [], []>} : vector<16x32xf32>, vector<32x32xf32>, vector<16x32xf32> -> vector<16x32xf32>
    %c1_50 = arith.constant 1 : index
    %c0_51 = arith.constant 0 : index
    %90 = vector.load %arg10[%c1_50, %c0_51] : memref<4x32xf32, #tpu.memory_space<vmem>>, vector<1x32xf32>
    %91 = vector.broadcast %90 : vector<1x32xf32> to vector<16x32xf32>
    %92 = arith.addf %89, %91 : vector<16x32xf32>
    %c2_52 = arith.constant 2 : index
    %c0_53 = arith.constant 0 : index
    %c0_54 = arith.constant 0 : index
    %93 = vector.load %arg9[%c2_52, %c0_53, %c0_54] : memref<4x32x32xf32, #tpu.memory_space<vmem>>, vector<1x32x32xf32>
    %94 = vector.shape_cast %93 : vector<1x32x32xf32> to vector<32x32xf32>
    %cst_55 = arith.constant dense<0.000000e+00> : vector<16x32xf32>
    %95 = tpu.matmul %75, %94, %cst_55 {dimension_numbers = #tpu.dot_dimension_numbers<[1], [0], [0], [1], [0, 0, 1, 1], [], []>} : vector<16x32xf32>, vector<32x32xf32>, vector<16x32xf32> -> vector<16x32xf32>
    %c2_56 = arith.constant 2 : index
    %c0_57 = arith.constant 0 : index
    %96 = vector.load %arg10[%c2_56, %c0_57] : memref<4x32xf32, #tpu.memory_space<vmem>>, vector<1x32xf32>
    %97 = vector.broadcast %96 : vector<1x32xf32> to vector<16x32xf32>
    %98 = arith.addf %95, %97 : vector<16x32xf32>
    %c3 = arith.constant 3 : index
    %c0_58 = arith.constant 0 : index
    %c0_59 = arith.constant 0 : index
    %99 = vector.load %arg9[%c3, %c0_58, %c0_59] : memref<4x32x32xf32, #tpu.memory_space<vmem>>, vector<1x32x32xf32>
    %100 = vector.shape_cast %99 : vector<1x32x32xf32> to vector<32x32xf32>
    %cst_60 = arith.constant dense<0.000000e+00> : vector<16x32xf32>
    %101 = tpu.matmul %51, %100, %cst_60 {dimension_numbers = #tpu.dot_dimension_numbers<[1], [0], [0], [1], [0, 0, 1, 1], [], []>} : vector<16x32xf32>, vector<32x32xf32>, vector<16x32xf32> -> vector<16x32xf32>
    %c3_61 = arith.constant 3 : index
    %c0_62 = arith.constant 0 : index
    %102 = vector.load %arg10[%c3_61, %c0_62] : memref<4x32xf32, #tpu.memory_space<vmem>>, vector<1x32xf32>
    %103 = vector.broadcast %102 : vector<1x32xf32> to vector<16x32xf32>
    %104 = arith.addf %101, %103 : vector<16x32xf32>
    %105 = vector.extract_strided_slice %80 {offsets = [0, 0], sizes = [8, 32], strides = [1, 1]} : vector<8x64xf32> to vector<8x32xf32>
    %106 = vector.extract_strided_slice %105 {offsets = [0, 0], sizes = [8, 4], strides = [1, 1]} : vector<8x32xf32> to vector<8x4xf32>
    %107 = vector.extract_strided_slice %86 {offsets = [0, 0], sizes = [16, 4], strides = [1, 1]} : vector<16x32xf32> to vector<16x4xf32>
    %cst_63 = arith.constant dense<0.000000e+00> : vector<8x16xf32>
    %108 = tpu.matmul %106, %107, %cst_63 {dimension_numbers = #tpu.dot_dimension_numbers<[1], [1], [0], [0], [0, 0, 1, 0], [], []>} : vector<8x4xf32>, vector<16x4xf32>, vector<8x16xf32> -> vector<8x16xf32>
    %cst_64 = arith.constant 5.000000e-01 : f32
    %109 = vector.broadcast %cst_64 : f32 to vector<8x16xf32>
    %110 = arith.mulf %108, %109 : vector<8x16xf32>
    %cst_65 = arith.constant dense<0xFF800000> : vector<8xf32>
    %111 = vector.multi_reduction <maximumf>, %110, %cst_65 [1] : vector<8x16xf32> to vector<8xf32>
    %112 = vector.shape_cast %111 : vector<8xf32> to vector<8x1xf32>
    %113 = vector.broadcast %112 : vector<8x1xf32> to vector<8x16xf32>
    %114 = arith.subf %110, %113 : vector<8x16xf32>
    %115 = math.exp %114 : vector<8x16xf32>
    %cst_66 = arith.constant dense<0.000000e+00> : vector<8xf32>
    %116 = vector.multi_reduction <add>, %115, %cst_66 [1] : vector<8x16xf32> to vector<8xf32>
    %117 = vector.shape_cast %116 : vector<8xf32> to vector<8x1xf32>
    %118 = tpu.reciprocal %117 {approx = true} : vector<8x1xf32> -> vector<8x1xf32>
    %119 = vector.broadcast %118 : vector<8x1xf32> to vector<8x16xf32>
    %120 = arith.mulf %115, %119 : vector<8x16xf32>
    %121 = vector.extract_strided_slice %92 {offsets = [0, 0], sizes = [16, 4], strides = [1, 1]} : vector<16x32xf32> to vector<16x4xf32>
    %cst_67 = arith.constant dense<0.000000e+00> : vector<8x4xf32>
    %122 = tpu.matmul %120, %121, %cst_67 {dimension_numbers = #tpu.dot_dimension_numbers<[1], [0], [0], [1], [0, 0, 1, 1], [], []>} : vector<8x16xf32>, vector<16x4xf32>, vector<8x4xf32> -> vector<8x4xf32>
    %123 = vector.extract_strided_slice %105 {offsets = [0, 4], sizes = [8, 4], strides = [1, 1]} : vector<8x32xf32> to vector<8x4xf32>
    %124 = vector.extract_strided_slice %86 {offsets = [0, 4], sizes = [16, 4], strides = [1, 1]} : vector<16x32xf32> to vector<16x4xf32>
    %cst_68 = arith.constant dense<0.000000e+00> : vector<8x16xf32>
    %125 = tpu.matmul %123, %124, %cst_68 {dimension_numbers = #tpu.dot_dimension_numbers<[1], [1], [0], [0], [0, 0, 1, 0], [], []>} : vector<8x4xf32>, vector<16x4xf32>, vector<8x16xf32> -> vector<8x16xf32>
    %cst_69 = arith.constant 5.000000e-01 : f32
    %126 = vector.broadcast %cst_69 : f32 to vector<8x16xf32>
    %127 = arith.mulf %125, %126 : vector<8x16xf32>
    %cst_70 = arith.constant dense<0xFF800000> : vector<8xf32>
    %128 = vector.multi_reduction <maximumf>, %127, %cst_70 [1] : vector<8x16xf32> to vector<8xf32>
    %129 = vector.shape_cast %128 : vector<8xf32> to vector<8x1xf32>
    %130 = vector.broadcast %129 : vector<8x1xf32> to vector<8x16xf32>
    %131 = arith.subf %127, %130 : vector<8x16xf32>
    %132 = math.exp %131 : vector<8x16xf32>
    %cst_71 = arith.constant dense<0.000000e+00> : vector<8xf32>
    %133 = vector.multi_reduction <add>, %132, %cst_71 [1] : vector<8x16xf32> to vector<8xf32>
    %134 = vector.shape_cast %133 : vector<8xf32> to vector<8x1xf32>
    %135 = tpu.reciprocal %134 {approx = true} : vector<8x1xf32> -> vector<8x1xf32>
    %136 = vector.broadcast %135 : vector<8x1xf32> to vector<8x16xf32>
    %137 = arith.mulf %132, %136 : vector<8x16xf32>
    %138 = vector.extract_strided_slice %92 {offsets = [0, 4], sizes = [16, 4], strides = [1, 1]} : vector<16x32xf32> to vector<16x4xf32>
    %cst_72 = arith.constant dense<0.000000e+00> : vector<8x4xf32>
    %139 = tpu.matmul %137, %138, %cst_72 {dimension_numbers = #tpu.dot_dimension_numbers<[1], [0], [0], [1], [0, 0, 1, 1], [], []>} : vector<8x16xf32>, vector<16x4xf32>, vector<8x4xf32> -> vector<8x4xf32>
    %140 = vector.extract_strided_slice %105 {offsets = [0, 8], sizes = [8, 4], strides = [1, 1]} : vector<8x32xf32> to vector<8x4xf32>
    %141 = vector.extract_strided_slice %86 {offsets = [0, 8], sizes = [16, 4], strides = [1, 1]} : vector<16x32xf32> to vector<16x4xf32>
    %cst_73 = arith.constant dense<0.000000e+00> : vector<8x16xf32>
    %142 = tpu.matmul %140, %141, %cst_73 {dimension_numbers = #tpu.dot_dimension_numbers<[1], [1], [0], [0], [0, 0, 1, 0], [], []>} : vector<8x4xf32>, vector<16x4xf32>, vector<8x16xf32> -> vector<8x16xf32>
    %cst_74 = arith.constant 5.000000e-01 : f32
    %143 = vector.broadcast %cst_74 : f32 to vector<8x16xf32>
    %144 = arith.mulf %142, %143 : vector<8x16xf32>
    %cst_75 = arith.constant dense<0xFF800000> : vector<8xf32>
    %145 = vector.multi_reduction <maximumf>, %144, %cst_75 [1] : vector<8x16xf32> to vector<8xf32>
    %146 = vector.shape_cast %145 : vector<8xf32> to vector<8x1xf32>
    %147 = vector.broadcast %146 : vector<8x1xf32> to vector<8x16xf32>
    %148 = arith.subf %144, %147 : vector<8x16xf32>
    %149 = math.exp %148 : vector<8x16xf32>
    %cst_76 = arith.constant dense<0.000000e+00> : vector<8xf32>
    %150 = vector.multi_reduction <add>, %149, %cst_76 [1] : vector<8x16xf32> to vector<8xf32>
    %151 = vector.shape_cast %150 : vector<8xf32> to vector<8x1xf32>
    %152 = tpu.reciprocal %151 {approx = true} : vector<8x1xf32> -> vector<8x1xf32>
    %153 = vector.broadcast %152 : vector<8x1xf32> to vector<8x16xf32>
    %154 = arith.mulf %149, %153 : vector<8x16xf32>
    %155 = vector.extract_strided_slice %92 {offsets = [0, 8], sizes = [16, 4], strides = [1, 1]} : vector<16x32xf32> to vector<16x4xf32>
    %cst_77 = arith.constant dense<0.000000e+00> : vector<8x4xf32>
    %156 = tpu.matmul %154, %155, %cst_77 {dimension_numbers = #tpu.dot_dimension_numbers<[1], [0], [0], [1], [0, 0, 1, 1], [], []>} : vector<8x16xf32>, vector<16x4xf32>, vector<8x4xf32> -> vector<8x4xf32>
    %157 = vector.extract_strided_slice %105 {offsets = [0, 12], sizes = [8, 4], strides = [1, 1]} : vector<8x32xf32> to vector<8x4xf32>
    %158 = vector.extract_strided_slice %86 {offsets = [0, 12], sizes = [16, 4], strides = [1, 1]} : vector<16x32xf32> to vector<16x4xf32>
    %cst_78 = arith.constant dense<0.000000e+00> : vector<8x16xf32>
    %159 = tpu.matmul %157, %158, %cst_78 {dimension_numbers = #tpu.dot_dimension_numbers<[1], [1], [0], [0], [0, 0, 1, 0], [], []>} : vector<8x4xf32>, vector<16x4xf32>, vector<8x16xf32> -> vector<8x16xf32>
    %cst_79 = arith.constant 5.000000e-01 : f32
    %160 = vector.broadcast %cst_79 : f32 to vector<8x16xf32>
    %161 = arith.mulf %159, %160 : vector<8x16xf32>
    %cst_80 = arith.constant dense<0xFF800000> : vector<8xf32>
    %162 = vector.multi_reduction <maximumf>, %161, %cst_80 [1] : vector<8x16xf32> to vector<8xf32>
    %163 = vector.shape_cast %162 : vector<8xf32> to vector<8x1xf32>
    %164 = vector.broadcast %163 : vector<8x1xf32> to vector<8x16xf32>
    %165 = arith.subf %161, %164 : vector<8x16xf32>
    %166 = math.exp %165 : vector<8x16xf32>
    %cst_81 = arith.constant dense<0.000000e+00> : vector<8xf32>
    %167 = vector.multi_reduction <add>, %166, %cst_81 [1] : vector<8x16xf32> to vector<8xf32>
    %168 = vector.shape_cast %167 : vector<8xf32> to vector<8x1xf32>
    %169 = tpu.reciprocal %168 {approx = true} : vector<8x1xf32> -> vector<8x1xf32>
    %170 = vector.broadcast %169 : vector<8x1xf32> to vector<8x16xf32>
    %171 = arith.mulf %166, %170 : vector<8x16xf32>
    %172 = vector.extract_strided_slice %92 {offsets = [0, 12], sizes = [16, 4], strides = [1, 1]} : vector<16x32xf32> to vector<16x4xf32>
    %cst_82 = arith.constant dense<0.000000e+00> : vector<8x4xf32>
    %173 = tpu.matmul %171, %172, %cst_82 {dimension_numbers = #tpu.dot_dimension_numbers<[1], [0], [0], [1], [0, 0, 1, 1], [], []>} : vector<8x16xf32>, vector<16x4xf32>, vector<8x4xf32> -> vector<8x4xf32>
    %174 = vector.extract_strided_slice %105 {offsets = [0, 16], sizes = [8, 4], strides = [1, 1]} : vector<8x32xf32> to vector<8x4xf32>
    %175 = vector.extract_strided_slice %86 {offsets = [0, 16], sizes = [16, 4], strides = [1, 1]} : vector<16x32xf32> to vector<16x4xf32>
    %cst_83 = arith.constant dense<0.000000e+00> : vector<8x16xf32>
    %176 = tpu.matmul %174, %175, %cst_83 {dimension_numbers = #tpu.dot_dimension_numbers<[1], [1], [0], [0], [0, 0, 1, 0], [], []>} : vector<8x4xf32>, vector<16x4xf32>, vector<8x16xf32> -> vector<8x16xf32>
    %cst_84 = arith.constant 5.000000e-01 : f32
    %177 = vector.broadcast %cst_84 : f32 to vector<8x16xf32>
    %178 = arith.mulf %176, %177 : vector<8x16xf32>
    %cst_85 = arith.constant dense<0xFF800000> : vector<8xf32>
    %179 = vector.multi_reduction <maximumf>, %178, %cst_85 [1] : vector<8x16xf32> to vector<8xf32>
    %180 = vector.shape_cast %179 : vector<8xf32> to vector<8x1xf32>
    %181 = vector.broadcast %180 : vector<8x1xf32> to vector<8x16xf32>
    %182 = arith.subf %178, %181 : vector<8x16xf32>
    %183 = math.exp %182 : vector<8x16xf32>
    %cst_86 = arith.constant dense<0.000000e+00> : vector<8xf32>
    %184 = vector.multi_reduction <add>, %183, %cst_86 [1] : vector<8x16xf32> to vector<8xf32>
    %185 = vector.shape_cast %184 : vector<8xf32> to vector<8x1xf32>
    %186 = tpu.reciprocal %185 {approx = true} : vector<8x1xf32> -> vector<8x1xf32>
    %187 = vector.broadcast %186 : vector<8x1xf32> to vector<8x16xf32>
    %188 = arith.mulf %183, %187 : vector<8x16xf32>
    %189 = vector.extract_strided_slice %92 {offsets = [0, 16], sizes = [16, 4], strides = [1, 1]} : vector<16x32xf32> to vector<16x4xf32>
    %cst_87 = arith.constant dense<0.000000e+00> : vector<8x4xf32>
    %190 = tpu.matmul %188, %189, %cst_87 {dimension_numbers = #tpu.dot_dimension_numbers<[1], [0], [0], [1], [0, 0, 1, 1], [], []>} : vector<8x16xf32>, vector<16x4xf32>, vector<8x4xf32> -> vector<8x4xf32>
    %191 = vector.extract_strided_slice %105 {offsets = [0, 20], sizes = [8, 4], strides = [1, 1]} : vector<8x32xf32> to vector<8x4xf32>
    %192 = vector.extract_strided_slice %86 {offsets = [0, 20], sizes = [16, 4], strides = [1, 1]} : vector<16x32xf32> to vector<16x4xf32>
    %cst_88 = arith.constant dense<0.000000e+00> : vector<8x16xf32>
    %193 = tpu.matmul %191, %192, %cst_88 {dimension_numbers = #tpu.dot_dimension_numbers<[1], [1], [0], [0], [0, 0, 1, 0], [], []>} : vector<8x4xf32>, vector<16x4xf32>, vector<8x16xf32> -> vector<8x16xf32>
    %cst_89 = arith.constant 5.000000e-01 : f32
    %194 = vector.broadcast %cst_89 : f32 to vector<8x16xf32>
    %195 = arith.mulf %193, %194 : vector<8x16xf32>
    %cst_90 = arith.constant dense<0xFF800000> : vector<8xf32>
    %196 = vector.multi_reduction <maximumf>, %195, %cst_90 [1] : vector<8x16xf32> to vector<8xf32>
    %197 = vector.shape_cast %196 : vector<8xf32> to vector<8x1xf32>
    %198 = vector.broadcast %197 : vector<8x1xf32> to vector<8x16xf32>
    %199 = arith.subf %195, %198 : vector<8x16xf32>
    %200 = math.exp %199 : vector<8x16xf32>
    %cst_91 = arith.constant dense<0.000000e+00> : vector<8xf32>
    %201 = vector.multi_reduction <add>, %200, %cst_91 [1] : vector<8x16xf32> to vector<8xf32>
    %202 = vector.shape_cast %201 : vector<8xf32> to vector<8x1xf32>
    %203 = tpu.reciprocal %202 {approx = true} : vector<8x1xf32> -> vector<8x1xf32>
    %204 = vector.broadcast %203 : vector<8x1xf32> to vector<8x16xf32>
    %205 = arith.mulf %200, %204 : vector<8x16xf32>
    %206 = vector.extract_strided_slice %92 {offsets = [0, 20], sizes = [16, 4], strides = [1, 1]} : vector<16x32xf32> to vector<16x4xf32>
    %cst_92 = arith.constant dense<0.000000e+00> : vector<8x4xf32>
    %207 = tpu.matmul %205, %206, %cst_92 {dimension_numbers = #tpu.dot_dimension_numbers<[1], [0], [0], [1], [0, 0, 1, 1], [], []>} : vector<8x16xf32>, vector<16x4xf32>, vector<8x4xf32> -> vector<8x4xf32>
    %208 = vector.extract_strided_slice %105 {offsets = [0, 24], sizes = [8, 4], strides = [1, 1]} : vector<8x32xf32> to vector<8x4xf32>
    %209 = vector.extract_strided_slice %86 {offsets = [0, 24], sizes = [16, 4], strides = [1, 1]} : vector<16x32xf32> to vector<16x4xf32>
    %cst_93 = arith.constant dense<0.000000e+00> : vector<8x16xf32>
    %210 = tpu.matmul %208, %209, %cst_93 {dimension_numbers = #tpu.dot_dimension_numbers<[1], [1], [0], [0], [0, 0, 1, 0], [], []>} : vector<8x4xf32>, vector<16x4xf32>, vector<8x16xf32> -> vector<8x16xf32>
    %cst_94 = arith.constant 5.000000e-01 : f32
    %211 = vector.broadcast %cst_94 : f32 to vector<8x16xf32>
    %212 = arith.mulf %210, %211 : vector<8x16xf32>
    %cst_95 = arith.constant dense<0xFF800000> : vector<8xf32>
    %213 = vector.multi_reduction <maximumf>, %212, %cst_95 [1] : vector<8x16xf32> to vector<8xf32>
    %214 = vector.shape_cast %213 : vector<8xf32> to vector<8x1xf32>
    %215 = vector.broadcast %214 : vector<8x1xf32> to vector<8x16xf32>
    %216 = arith.subf %212, %215 : vector<8x16xf32>
    %217 = math.exp %216 : vector<8x16xf32>
    %cst_96 = arith.constant dense<0.000000e+00> : vector<8xf32>
    %218 = vector.multi_reduction <add>, %217, %cst_96 [1] : vector<8x16xf32> to vector<8xf32>
    %219 = vector.shape_cast %218 : vector<8xf32> to vector<8x1xf32>
    %220 = tpu.reciprocal %219 {approx = true} : vector<8x1xf32> -> vector<8x1xf32>
    %221 = vector.broadcast %220 : vector<8x1xf32> to vector<8x16xf32>
    %222 = arith.mulf %217, %221 : vector<8x16xf32>
    %223 = vector.extract_strided_slice %92 {offsets = [0, 24], sizes = [16, 4], strides = [1, 1]} : vector<16x32xf32> to vector<16x4xf32>
    %cst_97 = arith.constant dense<0.000000e+00> : vector<8x4xf32>
    %224 = tpu.matmul %222, %223, %cst_97 {dimension_numbers = #tpu.dot_dimension_numbers<[1], [0], [0], [1], [0, 0, 1, 1], [], []>} : vector<8x16xf32>, vector<16x4xf32>, vector<8x4xf32> -> vector<8x4xf32>
    %225 = vector.extract_strided_slice %105 {offsets = [0, 28], sizes = [8, 4], strides = [1, 1]} : vector<8x32xf32> to vector<8x4xf32>
    %226 = vector.extract_strided_slice %86 {offsets = [0, 28], sizes = [16, 4], strides = [1, 1]} : vector<16x32xf32> to vector<16x4xf32>
    %cst_98 = arith.constant dense<0.000000e+00> : vector<8x16xf32>
    %227 = tpu.matmul %225, %226, %cst_98 {dimension_numbers = #tpu.dot_dimension_numbers<[1], [1], [0], [0], [0, 0, 1, 0], [], []>} : vector<8x4xf32>, vector<16x4xf32>, vector<8x16xf32> -> vector<8x16xf32>
    %cst_99 = arith.constant 5.000000e-01 : f32
    %228 = vector.broadcast %cst_99 : f32 to vector<8x16xf32>
    %229 = arith.mulf %227, %228 : vector<8x16xf32>
    %cst_100 = arith.constant dense<0xFF800000> : vector<8xf32>
    %230 = vector.multi_reduction <maximumf>, %229, %cst_100 [1] : vector<8x16xf32> to vector<8xf32>
    %231 = vector.shape_cast %230 : vector<8xf32> to vector<8x1xf32>
    %232 = vector.broadcast %231 : vector<8x1xf32> to vector<8x16xf32>
    %233 = arith.subf %229, %232 : vector<8x16xf32>
    %234 = math.exp %233 : vector<8x16xf32>
    %cst_101 = arith.constant dense<0.000000e+00> : vector<8xf32>
    %235 = vector.multi_reduction <add>, %234, %cst_101 [1] : vector<8x16xf32> to vector<8xf32>
    %236 = vector.shape_cast %235 : vector<8xf32> to vector<8x1xf32>
    %237 = tpu.reciprocal %236 {approx = true} : vector<8x1xf32> -> vector<8x1xf32>
    %238 = vector.broadcast %237 : vector<8x1xf32> to vector<8x16xf32>
    %239 = arith.mulf %234, %238 : vector<8x16xf32>
    %240 = vector.extract_strided_slice %92 {offsets = [0, 28], sizes = [16, 4], strides = [1, 1]} : vector<16x32xf32> to vector<16x4xf32>
    %cst_102 = arith.constant dense<0.000000e+00> : vector<8x4xf32>
    %241 = tpu.matmul %239, %240, %cst_102 {dimension_numbers = #tpu.dot_dimension_numbers<[1], [0], [0], [1], [0, 0, 1, 1], [], []>} : vector<8x16xf32>, vector<16x4xf32>, vector<8x4xf32> -> vector<8x4xf32>
    %242 = vector.extract_strided_slice %80 {offsets = [0, 32], sizes = [8, 32], strides = [1, 1]} : vector<8x64xf32> to vector<8x32xf32>
    %243 = vector.extract_strided_slice %242 {offsets = [0, 0], sizes = [8, 4], strides = [1, 1]} : vector<8x32xf32> to vector<8x4xf32>
    %244 = vector.extract_strided_slice %98 {offsets = [0, 0], sizes = [16, 4], strides = [1, 1]} : vector<16x32xf32> to vector<16x4xf32>
    %cst_103 = arith.constant dense<0.000000e+00> : vector<8x16xf32>
    %245 = tpu.matmul %243, %244, %cst_103 {dimension_numbers = #tpu.dot_dimension_numbers<[1], [1], [0], [0], [0, 0, 1, 0], [], []>} : vector<8x4xf32>, vector<16x4xf32>, vector<8x16xf32> -> vector<8x16xf32>
    %cst_104 = arith.constant 5.000000e-01 : f32
    %246 = vector.broadcast %cst_104 : f32 to vector<8x16xf32>
    %247 = arith.mulf %245, %246 : vector<8x16xf32>
    %cst_105 = arith.constant dense<0xFF800000> : vector<8xf32>
    %248 = vector.multi_reduction <maximumf>, %247, %cst_105 [1] : vector<8x16xf32> to vector<8xf32>
    %249 = vector.shape_cast %248 : vector<8xf32> to vector<8x1xf32>
    %250 = vector.broadcast %249 : vector<8x1xf32> to vector<8x16xf32>
    %251 = arith.subf %247, %250 : vector<8x16xf32>
    %252 = math.exp %251 : vector<8x16xf32>
    %cst_106 = arith.constant dense<0.000000e+00> : vector<8xf32>
    %253 = vector.multi_reduction <add>, %252, %cst_106 [1] : vector<8x16xf32> to vector<8xf32>
    %254 = vector.shape_cast %253 : vector<8xf32> to vector<8x1xf32>
    %255 = tpu.reciprocal %254 {approx = true} : vector<8x1xf32> -> vector<8x1xf32>
    %256 = vector.broadcast %255 : vector<8x1xf32> to vector<8x16xf32>
    %257 = arith.mulf %252, %256 : vector<8x16xf32>
    %258 = vector.extract_strided_slice %104 {offsets = [0, 0], sizes = [16, 4], strides = [1, 1]} : vector<16x32xf32> to vector<16x4xf32>
    %cst_107 = arith.constant dense<0.000000e+00> : vector<8x4xf32>
    %259 = tpu.matmul %257, %258, %cst_107 {dimension_numbers = #tpu.dot_dimension_numbers<[1], [0], [0], [1], [0, 0, 1, 1], [], []>} : vector<8x16xf32>, vector<16x4xf32>, vector<8x4xf32> -> vector<8x4xf32>
    %260 = vector.extract_strided_slice %242 {offsets = [0, 4], sizes = [8, 4], strides = [1, 1]} : vector<8x32xf32> to vector<8x4xf32>
    %261 = vector.extract_strided_slice %98 {offsets = [0, 4], sizes = [16, 4], strides = [1, 1]} : vector<16x32xf32> to vector<16x4xf32>
    %cst_108 = arith.constant dense<0.000000e+00> : vector<8x16xf32>
    %262 = tpu.matmul %260, %261, %cst_108 {dimension_numbers = #tpu.dot_dimension_numbers<[1], [1], [0], [0], [0, 0, 1, 0], [], []>} : vector<8x4xf32>, vector<16x4xf32>, vector<8x16xf32> -> vector<8x16xf32>
    %cst_109 = arith.constant 5.000000e-01 : f32
    %263 = vector.broadcast %cst_109 : f32 to vector<8x16xf32>
    %264 = arith.mulf %262, %263 : vector<8x16xf32>
    %cst_110 = arith.constant dense<0xFF800000> : vector<8xf32>
    %265 = vector.multi_reduction <maximumf>, %264, %cst_110 [1] : vector<8x16xf32> to vector<8xf32>
    %266 = vector.shape_cast %265 : vector<8xf32> to vector<8x1xf32>
    %267 = vector.broadcast %266 : vector<8x1xf32> to vector<8x16xf32>
    %268 = arith.subf %264, %267 : vector<8x16xf32>
    %269 = math.exp %268 : vector<8x16xf32>
    %cst_111 = arith.constant dense<0.000000e+00> : vector<8xf32>
    %270 = vector.multi_reduction <add>, %269, %cst_111 [1] : vector<8x16xf32> to vector<8xf32>
    %271 = vector.shape_cast %270 : vector<8xf32> to vector<8x1xf32>
    %272 = tpu.reciprocal %271 {approx = true} : vector<8x1xf32> -> vector<8x1xf32>
    %273 = vector.broadcast %272 : vector<8x1xf32> to vector<8x16xf32>
    %274 = arith.mulf %269, %273 : vector<8x16xf32>
    %275 = vector.extract_strided_slice %104 {offsets = [0, 4], sizes = [16, 4], strides = [1, 1]} : vector<16x32xf32> to vector<16x4xf32>
    %cst_112 = arith.constant dense<0.000000e+00> : vector<8x4xf32>
    %276 = tpu.matmul %274, %275, %cst_112 {dimension_numbers = #tpu.dot_dimension_numbers<[1], [0], [0], [1], [0, 0, 1, 1], [], []>} : vector<8x16xf32>, vector<16x4xf32>, vector<8x4xf32> -> vector<8x4xf32>
    %277 = vector.extract_strided_slice %242 {offsets = [0, 8], sizes = [8, 4], strides = [1, 1]} : vector<8x32xf32> to vector<8x4xf32>
    %278 = vector.extract_strided_slice %98 {offsets = [0, 8], sizes = [16, 4], strides = [1, 1]} : vector<16x32xf32> to vector<16x4xf32>
    %cst_113 = arith.constant dense<0.000000e+00> : vector<8x16xf32>
    %279 = tpu.matmul %277, %278, %cst_113 {dimension_numbers = #tpu.dot_dimension_numbers<[1], [1], [0], [0], [0, 0, 1, 0], [], []>} : vector<8x4xf32>, vector<16x4xf32>, vector<8x16xf32> -> vector<8x16xf32>
    %cst_114 = arith.constant 5.000000e-01 : f32
    %280 = vector.broadcast %cst_114 : f32 to vector<8x16xf32>
    %281 = arith.mulf %279, %280 : vector<8x16xf32>
    %cst_115 = arith.constant dense<0xFF800000> : vector<8xf32>
    %282 = vector.multi_reduction <maximumf>, %281, %cst_115 [1] : vector<8x16xf32> to vector<8xf32>
    %283 = vector.shape_cast %282 : vector<8xf32> to vector<8x1xf32>
    %284 = vector.broadcast %283 : vector<8x1xf32> to vector<8x16xf32>
    %285 = arith.subf %281, %284 : vector<8x16xf32>
    %286 = math.exp %285 : vector<8x16xf32>
    %cst_116 = arith.constant dense<0.000000e+00> : vector<8xf32>
    %287 = vector.multi_reduction <add>, %286, %cst_116 [1] : vector<8x16xf32> to vector<8xf32>
    %288 = vector.shape_cast %287 : vector<8xf32> to vector<8x1xf32>
    %289 = tpu.reciprocal %288 {approx = true} : vector<8x1xf32> -> vector<8x1xf32>
    %290 = vector.broadcast %289 : vector<8x1xf32> to vector<8x16xf32>
    %291 = arith.mulf %286, %290 : vector<8x16xf32>
    %292 = vector.extract_strided_slice %104 {offsets = [0, 8], sizes = [16, 4], strides = [1, 1]} : vector<16x32xf32> to vector<16x4xf32>
    %cst_117 = arith.constant dense<0.000000e+00> : vector<8x4xf32>
    %293 = tpu.matmul %291, %292, %cst_117 {dimension_numbers = #tpu.dot_dimension_numbers<[1], [0], [0], [1], [0, 0, 1, 1], [], []>} : vector<8x16xf32>, vector<16x4xf32>, vector<8x4xf32> -> vector<8x4xf32>
    %294 = vector.extract_strided_slice %242 {offsets = [0, 12], sizes = [8, 4], strides = [1, 1]} : vector<8x32xf32> to vector<8x4xf32>
    %295 = vector.extract_strided_slice %98 {offsets = [0, 12], sizes = [16, 4], strides = [1, 1]} : vector<16x32xf32> to vector<16x4xf32>
    %cst_118 = arith.constant dense<0.000000e+00> : vector<8x16xf32>
    %296 = tpu.matmul %294, %295, %cst_118 {dimension_numbers = #tpu.dot_dimension_numbers<[1], [1], [0], [0], [0, 0, 1, 0], [], []>} : vector<8x4xf32>, vector<16x4xf32>, vector<8x16xf32> -> vector<8x16xf32>
    %cst_119 = arith.constant 5.000000e-01 : f32
    %297 = vector.broadcast %cst_119 : f32 to vector<8x16xf32>
    %298 = arith.mulf %296, %297 : vector<8x16xf32>
    %cst_120 = arith.constant dense<0xFF800000> : vector<8xf32>
    %299 = vector.multi_reduction <maximumf>, %298, %cst_120 [1] : vector<8x16xf32> to vector<8xf32>
    %300 = vector.shape_cast %299 : vector<8xf32> to vector<8x1xf32>
    %301 = vector.broadcast %300 : vector<8x1xf32> to vector<8x16xf32>
    %302 = arith.subf %298, %301 : vector<8x16xf32>
    %303 = math.exp %302 : vector<8x16xf32>
    %cst_121 = arith.constant dense<0.000000e+00> : vector<8xf32>
    %304 = vector.multi_reduction <add>, %303, %cst_121 [1] : vector<8x16xf32> to vector<8xf32>
    %305 = vector.shape_cast %304 : vector<8xf32> to vector<8x1xf32>
    %306 = tpu.reciprocal %305 {approx = true} : vector<8x1xf32> -> vector<8x1xf32>
    %307 = vector.broadcast %306 : vector<8x1xf32> to vector<8x16xf32>
    %308 = arith.mulf %303, %307 : vector<8x16xf32>
    %309 = vector.extract_strided_slice %104 {offsets = [0, 12], sizes = [16, 4], strides = [1, 1]} : vector<16x32xf32> to vector<16x4xf32>
    %cst_122 = arith.constant dense<0.000000e+00> : vector<8x4xf32>
    %310 = tpu.matmul %308, %309, %cst_122 {dimension_numbers = #tpu.dot_dimension_numbers<[1], [0], [0], [1], [0, 0, 1, 1], [], []>} : vector<8x16xf32>, vector<16x4xf32>, vector<8x4xf32> -> vector<8x4xf32>
    %311 = vector.extract_strided_slice %242 {offsets = [0, 16], sizes = [8, 4], strides = [1, 1]} : vector<8x32xf32> to vector<8x4xf32>
    %312 = vector.extract_strided_slice %98 {offsets = [0, 16], sizes = [16, 4], strides = [1, 1]} : vector<16x32xf32> to vector<16x4xf32>
    %cst_123 = arith.constant dense<0.000000e+00> : vector<8x16xf32>
    %313 = tpu.matmul %311, %312, %cst_123 {dimension_numbers = #tpu.dot_dimension_numbers<[1], [1], [0], [0], [0, 0, 1, 0], [], []>} : vector<8x4xf32>, vector<16x4xf32>, vector<8x16xf32> -> vector<8x16xf32>
    %cst_124 = arith.constant 5.000000e-01 : f32
    %314 = vector.broadcast %cst_124 : f32 to vector<8x16xf32>
    %315 = arith.mulf %313, %314 : vector<8x16xf32>
    %cst_125 = arith.constant dense<0xFF800000> : vector<8xf32>
    %316 = vector.multi_reduction <maximumf>, %315, %cst_125 [1] : vector<8x16xf32> to vector<8xf32>
    %317 = vector.shape_cast %316 : vector<8xf32> to vector<8x1xf32>
    %318 = vector.broadcast %317 : vector<8x1xf32> to vector<8x16xf32>
    %319 = arith.subf %315, %318 : vector<8x16xf32>
    %320 = math.exp %319 : vector<8x16xf32>
    %cst_126 = arith.constant dense<0.000000e+00> : vector<8xf32>
    %321 = vector.multi_reduction <add>, %320, %cst_126 [1] : vector<8x16xf32> to vector<8xf32>
    %322 = vector.shape_cast %321 : vector<8xf32> to vector<8x1xf32>
    %323 = tpu.reciprocal %322 {approx = true} : vector<8x1xf32> -> vector<8x1xf32>
    %324 = vector.broadcast %323 : vector<8x1xf32> to vector<8x16xf32>
    %325 = arith.mulf %320, %324 : vector<8x16xf32>
    %326 = vector.extract_strided_slice %104 {offsets = [0, 16], sizes = [16, 4], strides = [1, 1]} : vector<16x32xf32> to vector<16x4xf32>
    %cst_127 = arith.constant dense<0.000000e+00> : vector<8x4xf32>
    %327 = tpu.matmul %325, %326, %cst_127 {dimension_numbers = #tpu.dot_dimension_numbers<[1], [0], [0], [1], [0, 0, 1, 1], [], []>} : vector<8x16xf32>, vector<16x4xf32>, vector<8x4xf32> -> vector<8x4xf32>
    %328 = vector.extract_strided_slice %242 {offsets = [0, 20], sizes = [8, 4], strides = [1, 1]} : vector<8x32xf32> to vector<8x4xf32>
    %329 = vector.extract_strided_slice %98 {offsets = [0, 20], sizes = [16, 4], strides = [1, 1]} : vector<16x32xf32> to vector<16x4xf32>
    %cst_128 = arith.constant dense<0.000000e+00> : vector<8x16xf32>
    %330 = tpu.matmul %328, %329, %cst_128 {dimension_numbers = #tpu.dot_dimension_numbers<[1], [1], [0], [0], [0, 0, 1, 0], [], []>} : vector<8x4xf32>, vector<16x4xf32>, vector<8x16xf32> -> vector<8x16xf32>
    %cst_129 = arith.constant 5.000000e-01 : f32
    %331 = vector.broadcast %cst_129 : f32 to vector<8x16xf32>
    %332 = arith.mulf %330, %331 : vector<8x16xf32>
    %cst_130 = arith.constant dense<0xFF800000> : vector<8xf32>
    %333 = vector.multi_reduction <maximumf>, %332, %cst_130 [1] : vector<8x16xf32> to vector<8xf32>
    %334 = vector.shape_cast %333 : vector<8xf32> to vector<8x1xf32>
    %335 = vector.broadcast %334 : vector<8x1xf32> to vector<8x16xf32>
    %336 = arith.subf %332, %335 : vector<8x16xf32>
    %337 = math.exp %336 : vector<8x16xf32>
    %cst_131 = arith.constant dense<0.000000e+00> : vector<8xf32>
    %338 = vector.multi_reduction <add>, %337, %cst_131 [1] : vector<8x16xf32> to vector<8xf32>
    %339 = vector.shape_cast %338 : vector<8xf32> to vector<8x1xf32>
    %340 = tpu.reciprocal %339 {approx = true} : vector<8x1xf32> -> vector<8x1xf32>
    %341 = vector.broadcast %340 : vector<8x1xf32> to vector<8x16xf32>
    %342 = arith.mulf %337, %341 : vector<8x16xf32>
    %343 = vector.extract_strided_slice %104 {offsets = [0, 20], sizes = [16, 4], strides = [1, 1]} : vector<16x32xf32> to vector<16x4xf32>
    %cst_132 = arith.constant dense<0.000000e+00> : vector<8x4xf32>
    %344 = tpu.matmul %342, %343, %cst_132 {dimension_numbers = #tpu.dot_dimension_numbers<[1], [0], [0], [1], [0, 0, 1, 1], [], []>} : vector<8x16xf32>, vector<16x4xf32>, vector<8x4xf32> -> vector<8x4xf32>
    %345 = vector.extract_strided_slice %242 {offsets = [0, 24], sizes = [8, 4], strides = [1, 1]} : vector<8x32xf32> to vector<8x4xf32>
    %346 = vector.extract_strided_slice %98 {offsets = [0, 24], sizes = [16, 4], strides = [1, 1]} : vector<16x32xf32> to vector<16x4xf32>
    %cst_133 = arith.constant dense<0.000000e+00> : vector<8x16xf32>
    %347 = tpu.matmul %345, %346, %cst_133 {dimension_numbers = #tpu.dot_dimension_numbers<[1], [1], [0], [0], [0, 0, 1, 0], [], []>} : vector<8x4xf32>, vector<16x4xf32>, vector<8x16xf32> -> vector<8x16xf32>
    %cst_134 = arith.constant 5.000000e-01 : f32
    %348 = vector.broadcast %cst_134 : f32 to vector<8x16xf32>
    %349 = arith.mulf %347, %348 : vector<8x16xf32>
    %cst_135 = arith.constant dense<0xFF800000> : vector<8xf32>
    %350 = vector.multi_reduction <maximumf>, %349, %cst_135 [1] : vector<8x16xf32> to vector<8xf32>
    %351 = vector.shape_cast %350 : vector<8xf32> to vector<8x1xf32>
    %352 = vector.broadcast %351 : vector<8x1xf32> to vector<8x16xf32>
    %353 = arith.subf %349, %352 : vector<8x16xf32>
    %354 = math.exp %353 : vector<8x16xf32>
    %cst_136 = arith.constant dense<0.000000e+00> : vector<8xf32>
    %355 = vector.multi_reduction <add>, %354, %cst_136 [1] : vector<8x16xf32> to vector<8xf32>
    %356 = vector.shape_cast %355 : vector<8xf32> to vector<8x1xf32>
    %357 = tpu.reciprocal %356 {approx = true} : vector<8x1xf32> -> vector<8x1xf32>
    %358 = vector.broadcast %357 : vector<8x1xf32> to vector<8x16xf32>
    %359 = arith.mulf %354, %358 : vector<8x16xf32>
    %360 = vector.extract_strided_slice %104 {offsets = [0, 24], sizes = [16, 4], strides = [1, 1]} : vector<16x32xf32> to vector<16x4xf32>
    %cst_137 = arith.constant dense<0.000000e+00> : vector<8x4xf32>
    %361 = tpu.matmul %359, %360, %cst_137 {dimension_numbers = #tpu.dot_dimension_numbers<[1], [0], [0], [1], [0, 0, 1, 1], [], []>} : vector<8x16xf32>, vector<16x4xf32>, vector<8x4xf32> -> vector<8x4xf32>
    %362 = vector.extract_strided_slice %242 {offsets = [0, 28], sizes = [8, 4], strides = [1, 1]} : vector<8x32xf32> to vector<8x4xf32>
    %363 = vector.extract_strided_slice %98 {offsets = [0, 28], sizes = [16, 4], strides = [1, 1]} : vector<16x32xf32> to vector<16x4xf32>
    %cst_138 = arith.constant dense<0.000000e+00> : vector<8x16xf32>
    %364 = tpu.matmul %362, %363, %cst_138 {dimension_numbers = #tpu.dot_dimension_numbers<[1], [1], [0], [0], [0, 0, 1, 0], [], []>} : vector<8x4xf32>, vector<16x4xf32>, vector<8x16xf32> -> vector<8x16xf32>
    %cst_139 = arith.constant 5.000000e-01 : f32
    %365 = vector.broadcast %cst_139 : f32 to vector<8x16xf32>
    %366 = arith.mulf %364, %365 : vector<8x16xf32>
    %cst_140 = arith.constant dense<0xFF800000> : vector<8xf32>
    %367 = vector.multi_reduction <maximumf>, %366, %cst_140 [1] : vector<8x16xf32> to vector<8xf32>
    %368 = vector.shape_cast %367 : vector<8xf32> to vector<8x1xf32>
    %369 = vector.broadcast %368 : vector<8x1xf32> to vector<8x16xf32>
    %370 = arith.subf %366, %369 : vector<8x16xf32>
    %371 = math.exp %370 : vector<8x16xf32>
    %cst_141 = arith.constant dense<0.000000e+00> : vector<8xf32>
    %372 = vector.multi_reduction <add>, %371, %cst_141 [1] : vector<8x16xf32> to vector<8xf32>
    %373 = vector.shape_cast %372 : vector<8xf32> to vector<8x1xf32>
    %374 = tpu.reciprocal %373 {approx = true} : vector<8x1xf32> -> vector<8x1xf32>
    %375 = vector.broadcast %374 : vector<8x1xf32> to vector<8x16xf32>
    %376 = arith.mulf %371, %375 : vector<8x16xf32>
    %377 = vector.extract_strided_slice %104 {offsets = [0, 28], sizes = [16, 4], strides = [1, 1]} : vector<16x32xf32> to vector<16x4xf32>
    %cst_142 = arith.constant dense<0.000000e+00> : vector<8x4xf32>
    %378 = tpu.matmul %376, %377, %cst_142 {dimension_numbers = #tpu.dot_dimension_numbers<[1], [0], [0], [1], [0, 0, 1, 1], [], []>} : vector<8x16xf32>, vector<16x4xf32>, vector<8x4xf32> -> vector<8x4xf32>
    %379 = tpu.concatenate %122, %139, %156, %173, %190, %207, %224, %241, %259, %276, %293, %310, %327, %344, %361, %378 in 1 : vector<8x4xf32>, vector<8x4xf32>, vector<8x4xf32>, vector<8x4xf32>, vector<8x4xf32>, vector<8x4xf32>, vector<8x4xf32>, vector<8x4xf32>, vector<8x4xf32>, vector<8x4xf32>, vector<8x4xf32>, vector<8x4xf32>, vector<8x4xf32>, vector<8x4xf32>, vector<8x4xf32>, vector<8x4xf32> -> vector<8x64xf32>
    %c0_143 = arith.constant 0 : index
    %c0_144 = arith.constant 0 : index
    %380 = vector.load %arg11[%c0_143, %c0_144] : memref<64x32xf32, #tpu.memory_space<vmem>>, vector<64x32xf32>
    %cst_145 = arith.constant dense<0.000000e+00> : vector<8x32xf32>
    %381 = tpu.matmul %379, %380, %cst_145 {dimension_numbers = #tpu.dot_dimension_numbers<[1], [0], [0], [1], [0, 0, 1, 1], [], []>} : vector<8x64xf32>, vector<64x32xf32>, vector<8x32xf32> -> vector<8x32xf32>
    %382 = arith.addf %5, %381 : vector<8x32xf32>
    %c0_146 = arith.constant 0 : index
    %c0_147 = arith.constant 0 : index
    %383 = vector.load %arg12[%c0_146, %c0_147] : memref<1x32xf32, #tpu.memory_space<vmem>>, vector<1x32xf32>
    %384 = vector.broadcast %383 : vector<1x32xf32> to vector<8x32xf32>
    %385 = arith.addf %382, %384 : vector<8x32xf32>
    %cst_148 = arith.constant dense<0.000000e+00> : vector<8xf32>
    %386 = vector.multi_reduction <add>, %385, %cst_148 [1] : vector<8x32xf32> to vector<8xf32>
    %387 = vector.shape_cast %386 : vector<8xf32> to vector<8x1xf32>
    %cst_149 = arith.constant 3.200000e+01 : f32
    %388 = vector.broadcast %cst_149 : f32 to vector<8x1xf32>
    %389 = arith.divf %387, %388 : vector<8x1xf32>
    %390 = vector.broadcast %389 : vector<8x1xf32> to vector<8x32xf32>
    %391 = arith.subf %385, %390 : vector<8x32xf32>
    %392 = arith.mulf %391, %391 : vector<8x32xf32>
    %cst_150 = arith.constant dense<0.000000e+00> : vector<8xf32>
    %393 = vector.multi_reduction <add>, %392, %cst_150 [1] : vector<8x32xf32> to vector<8xf32>
    %394 = vector.shape_cast %393 : vector<8xf32> to vector<8x1xf32>
    %cst_151 = arith.constant 3.200000e+01 : f32
    %395 = vector.broadcast %cst_151 : f32 to vector<8x1xf32>
    %396 = arith.divf %394, %395 : vector<8x1xf32>
    %cst_152 = arith.constant 9.99999974E-6 : f32
    %397 = vector.broadcast %cst_152 : f32 to vector<8x1xf32>
    %398 = arith.addf %396, %397 : vector<8x1xf32>
    %399 = math.rsqrt %398 : vector<8x1xf32>
    %400 = vector.broadcast %399 : vector<8x1xf32> to vector<8x32xf32>
    %401 = arith.mulf %391, %400 : vector<8x32xf32>
    %c3_153 = arith.constant 3 : index
    %c0_154 = arith.constant 0 : index
    %402 = vector.load %arg5[%c3_153, %c0_154] : memref<6x32xf32, #tpu.memory_space<vmem>>, vector<1x32xf32>
    %403 = vector.broadcast %402 : vector<1x32xf32> to vector<8x32xf32>
    %404 = arith.mulf %401, %403 : vector<8x32xf32>
    %c3_155 = arith.constant 3 : index
    %c0_156 = arith.constant 0 : index
    %405 = vector.load %arg6[%c3_155, %c0_156] : memref<6x32xf32, #tpu.memory_space<vmem>>, vector<1x32xf32>
    %406 = vector.broadcast %405 : vector<1x32xf32> to vector<8x32xf32>
    %407 = arith.addf %404, %406 : vector<8x32xf32>
    %c0_157 = arith.constant 0 : index
    %c0_158 = arith.constant 0 : index
    %408 = vector.load %arg15[%c0_157, %c0_158] : memref<32x128xf32, #tpu.memory_space<vmem>>, vector<32x128xf32>
    %cst_159 = arith.constant dense<0.000000e+00> : vector<8x128xf32>
    %409 = tpu.matmul %407, %408, %cst_159 {dimension_numbers = #tpu.dot_dimension_numbers<[1], [0], [0], [1], [0, 0, 1, 1], [], []>} : vector<8x32xf32>, vector<32x128xf32>, vector<8x128xf32> -> vector<8x128xf32>
    %c0_160 = arith.constant 0 : index
    %c0_161 = arith.constant 0 : index
    %410 = vector.load %arg16[%c0_160, %c0_161] : memref<1x128xf32, #tpu.memory_space<vmem>>, vector<1x128xf32>
    %411 = vector.broadcast %410 : vector<1x128xf32> to vector<8x128xf32>
    %412 = arith.addf %409, %411 : vector<8x128xf32>
    %c0_162 = arith.constant 0 : index
    %c0_163 = arith.constant 0 : index
    %c0_164 = arith.constant 0 : index
    %413 = vector.load %arg13[%c0_162, %c0_163, %c0_164] : memref<2x32x32xf32, #tpu.memory_space<vmem>>, vector<1x32x32xf32>
    %414 = vector.shape_cast %413 : vector<1x32x32xf32> to vector<32x32xf32>
    %cst_165 = arith.constant dense<0.000000e+00> : vector<16x32xf32>
    %415 = tpu.matmul %74, %414, %cst_165 {dimension_numbers = #tpu.dot_dimension_numbers<[1], [0], [0], [1], [0, 0, 1, 1], [], []>} : vector<16x32xf32>, vector<32x32xf32>, vector<16x32xf32> -> vector<16x32xf32>
    %c0_166 = arith.constant 0 : index
    %c0_167 = arith.constant 0 : index
    %416 = vector.load %arg14[%c0_166, %c0_167] : memref<2x32xf32, #tpu.memory_space<vmem>>, vector<1x32xf32>
    %417 = vector.broadcast %416 : vector<1x32xf32> to vector<16x32xf32>
    %418 = arith.addf %415, %417 : vector<16x32xf32>
    %c1_168 = arith.constant 1 : index
    %c0_169 = arith.constant 0 : index
    %c0_170 = arith.constant 0 : index
    %419 = vector.load %arg13[%c1_168, %c0_169, %c0_170] : memref<2x32x32xf32, #tpu.memory_space<vmem>>, vector<1x32x32xf32>
    %420 = vector.shape_cast %419 : vector<1x32x32xf32> to vector<32x32xf32>
    %cst_171 = arith.constant dense<0.000000e+00> : vector<16x32xf32>
    %421 = tpu.matmul %75, %420, %cst_171 {dimension_numbers = #tpu.dot_dimension_numbers<[1], [0], [0], [1], [0, 0, 1, 1], [], []>} : vector<16x32xf32>, vector<32x32xf32>, vector<16x32xf32> -> vector<16x32xf32>
    %c1_172 = arith.constant 1 : index
    %c0_173 = arith.constant 0 : index
    %422 = vector.load %arg14[%c1_172, %c0_173] : memref<2x32xf32, #tpu.memory_space<vmem>>, vector<1x32xf32>
    %423 = vector.broadcast %422 : vector<1x32xf32> to vector<16x32xf32>
    %424 = arith.addf %421, %423 : vector<16x32xf32>
    %425 = vector.extract_strided_slice %412 {offsets = [0, 0], sizes = [8, 32], strides = [1, 1]} : vector<8x128xf32> to vector<8x32xf32>
    %426 = vector.extract_strided_slice %412 {offsets = [0, 32], sizes = [8, 32], strides = [1, 1]} : vector<8x128xf32> to vector<8x32xf32>
    %427 = vector.extract_strided_slice %418 {offsets = [0, 0], sizes = [16, 4], strides = [1, 1]} : vector<16x32xf32> to vector<16x4xf32>
    %428 = vector.extract_strided_slice %425 {offsets = [0, 0], sizes = [8, 4], strides = [1, 1]} : vector<8x32xf32> to vector<8x4xf32>
    %cst_174 = arith.constant dense<0.000000e+00> : vector<16x8xf32>
    %429 = tpu.matmul %427, %428, %cst_174 {dimension_numbers = #tpu.dot_dimension_numbers<[1], [1], [0], [0], [0, 0, 1, 0], [], []>} : vector<16x4xf32>, vector<8x4xf32>, vector<16x8xf32> -> vector<16x8xf32>
    %cst_175 = arith.constant 5.000000e-01 : f32
    %430 = vector.broadcast %cst_175 : f32 to vector<16x8xf32>
    %431 = arith.mulf %429, %430 : vector<16x8xf32>
    %cst_176 = arith.constant dense<0xFF800000> : vector<16xf32>
    %432 = vector.multi_reduction <maximumf>, %431, %cst_176 [1] : vector<16x8xf32> to vector<16xf32>
    %433 = vector.shape_cast %432 : vector<16xf32> to vector<16x1xf32>
    %434 = vector.broadcast %433 : vector<16x1xf32> to vector<16x8xf32>
    %435 = arith.subf %431, %434 : vector<16x8xf32>
    %436 = math.exp %435 : vector<16x8xf32>
    %cst_177 = arith.constant dense<0.000000e+00> : vector<16xf32>
    %437 = vector.multi_reduction <add>, %436, %cst_177 [1] : vector<16x8xf32> to vector<16xf32>
    %438 = vector.shape_cast %437 : vector<16xf32> to vector<16x1xf32>
    %439 = tpu.reciprocal %438 {approx = true} : vector<16x1xf32> -> vector<16x1xf32>
    %440 = vector.broadcast %439 : vector<16x1xf32> to vector<16x8xf32>
    %441 = arith.mulf %436, %440 : vector<16x8xf32>
    %442 = vector.extract_strided_slice %426 {offsets = [0, 0], sizes = [8, 4], strides = [1, 1]} : vector<8x32xf32> to vector<8x4xf32>
    %cst_178 = arith.constant dense<0.000000e+00> : vector<16x4xf32>
    %443 = tpu.matmul %441, %442, %cst_178 {dimension_numbers = #tpu.dot_dimension_numbers<[1], [0], [0], [1], [0, 0, 1, 1], [], []>} : vector<16x8xf32>, vector<8x4xf32>, vector<16x4xf32> -> vector<16x4xf32>
    %444 = vector.extract_strided_slice %418 {offsets = [0, 4], sizes = [16, 4], strides = [1, 1]} : vector<16x32xf32> to vector<16x4xf32>
    %445 = vector.extract_strided_slice %425 {offsets = [0, 4], sizes = [8, 4], strides = [1, 1]} : vector<8x32xf32> to vector<8x4xf32>
    %cst_179 = arith.constant dense<0.000000e+00> : vector<16x8xf32>
    %446 = tpu.matmul %444, %445, %cst_179 {dimension_numbers = #tpu.dot_dimension_numbers<[1], [1], [0], [0], [0, 0, 1, 0], [], []>} : vector<16x4xf32>, vector<8x4xf32>, vector<16x8xf32> -> vector<16x8xf32>
    %cst_180 = arith.constant 5.000000e-01 : f32
    %447 = vector.broadcast %cst_180 : f32 to vector<16x8xf32>
    %448 = arith.mulf %446, %447 : vector<16x8xf32>
    %cst_181 = arith.constant dense<0xFF800000> : vector<16xf32>
    %449 = vector.multi_reduction <maximumf>, %448, %cst_181 [1] : vector<16x8xf32> to vector<16xf32>
    %450 = vector.shape_cast %449 : vector<16xf32> to vector<16x1xf32>
    %451 = vector.broadcast %450 : vector<16x1xf32> to vector<16x8xf32>
    %452 = arith.subf %448, %451 : vector<16x8xf32>
    %453 = math.exp %452 : vector<16x8xf32>
    %cst_182 = arith.constant dense<0.000000e+00> : vector<16xf32>
    %454 = vector.multi_reduction <add>, %453, %cst_182 [1] : vector<16x8xf32> to vector<16xf32>
    %455 = vector.shape_cast %454 : vector<16xf32> to vector<16x1xf32>
    %456 = tpu.reciprocal %455 {approx = true} : vector<16x1xf32> -> vector<16x1xf32>
    %457 = vector.broadcast %456 : vector<16x1xf32> to vector<16x8xf32>
    %458 = arith.mulf %453, %457 : vector<16x8xf32>
    %459 = vector.extract_strided_slice %426 {offsets = [0, 4], sizes = [8, 4], strides = [1, 1]} : vector<8x32xf32> to vector<8x4xf32>
    %cst_183 = arith.constant dense<0.000000e+00> : vector<16x4xf32>
    %460 = tpu.matmul %458, %459, %cst_183 {dimension_numbers = #tpu.dot_dimension_numbers<[1], [0], [0], [1], [0, 0, 1, 1], [], []>} : vector<16x8xf32>, vector<8x4xf32>, vector<16x4xf32> -> vector<16x4xf32>
    %461 = vector.extract_strided_slice %418 {offsets = [0, 8], sizes = [16, 4], strides = [1, 1]} : vector<16x32xf32> to vector<16x4xf32>
    %462 = vector.extract_strided_slice %425 {offsets = [0, 8], sizes = [8, 4], strides = [1, 1]} : vector<8x32xf32> to vector<8x4xf32>
    %cst_184 = arith.constant dense<0.000000e+00> : vector<16x8xf32>
    %463 = tpu.matmul %461, %462, %cst_184 {dimension_numbers = #tpu.dot_dimension_numbers<[1], [1], [0], [0], [0, 0, 1, 0], [], []>} : vector<16x4xf32>, vector<8x4xf32>, vector<16x8xf32> -> vector<16x8xf32>
    %cst_185 = arith.constant 5.000000e-01 : f32
    %464 = vector.broadcast %cst_185 : f32 to vector<16x8xf32>
    %465 = arith.mulf %463, %464 : vector<16x8xf32>
    %cst_186 = arith.constant dense<0xFF800000> : vector<16xf32>
    %466 = vector.multi_reduction <maximumf>, %465, %cst_186 [1] : vector<16x8xf32> to vector<16xf32>
    %467 = vector.shape_cast %466 : vector<16xf32> to vector<16x1xf32>
    %468 = vector.broadcast %467 : vector<16x1xf32> to vector<16x8xf32>
    %469 = arith.subf %465, %468 : vector<16x8xf32>
    %470 = math.exp %469 : vector<16x8xf32>
    %cst_187 = arith.constant dense<0.000000e+00> : vector<16xf32>
    %471 = vector.multi_reduction <add>, %470, %cst_187 [1] : vector<16x8xf32> to vector<16xf32>
    %472 = vector.shape_cast %471 : vector<16xf32> to vector<16x1xf32>
    %473 = tpu.reciprocal %472 {approx = true} : vector<16x1xf32> -> vector<16x1xf32>
    %474 = vector.broadcast %473 : vector<16x1xf32> to vector<16x8xf32>
    %475 = arith.mulf %470, %474 : vector<16x8xf32>
    %476 = vector.extract_strided_slice %426 {offsets = [0, 8], sizes = [8, 4], strides = [1, 1]} : vector<8x32xf32> to vector<8x4xf32>
    %cst_188 = arith.constant dense<0.000000e+00> : vector<16x4xf32>
    %477 = tpu.matmul %475, %476, %cst_188 {dimension_numbers = #tpu.dot_dimension_numbers<[1], [0], [0], [1], [0, 0, 1, 1], [], []>} : vector<16x8xf32>, vector<8x4xf32>, vector<16x4xf32> -> vector<16x4xf32>
    %478 = vector.extract_strided_slice %418 {offsets = [0, 12], sizes = [16, 4], strides = [1, 1]} : vector<16x32xf32> to vector<16x4xf32>
    %479 = vector.extract_strided_slice %425 {offsets = [0, 12], sizes = [8, 4], strides = [1, 1]} : vector<8x32xf32> to vector<8x4xf32>
    %cst_189 = arith.constant dense<0.000000e+00> : vector<16x8xf32>
    %480 = tpu.matmul %478, %479, %cst_189 {dimension_numbers = #tpu.dot_dimension_numbers<[1], [1], [0], [0], [0, 0, 1, 0], [], []>} : vector<16x4xf32>, vector<8x4xf32>, vector<16x8xf32> -> vector<16x8xf32>
    %cst_190 = arith.constant 5.000000e-01 : f32
    %481 = vector.broadcast %cst_190 : f32 to vector<16x8xf32>
    %482 = arith.mulf %480, %481 : vector<16x8xf32>
    %cst_191 = arith.constant dense<0xFF800000> : vector<16xf32>
    %483 = vector.multi_reduction <maximumf>, %482, %cst_191 [1] : vector<16x8xf32> to vector<16xf32>
    %484 = vector.shape_cast %483 : vector<16xf32> to vector<16x1xf32>
    %485 = vector.broadcast %484 : vector<16x1xf32> to vector<16x8xf32>
    %486 = arith.subf %482, %485 : vector<16x8xf32>
    %487 = math.exp %486 : vector<16x8xf32>
    %cst_192 = arith.constant dense<0.000000e+00> : vector<16xf32>
    %488 = vector.multi_reduction <add>, %487, %cst_192 [1] : vector<16x8xf32> to vector<16xf32>
    %489 = vector.shape_cast %488 : vector<16xf32> to vector<16x1xf32>
    %490 = tpu.reciprocal %489 {approx = true} : vector<16x1xf32> -> vector<16x1xf32>
    %491 = vector.broadcast %490 : vector<16x1xf32> to vector<16x8xf32>
    %492 = arith.mulf %487, %491 : vector<16x8xf32>
    %493 = vector.extract_strided_slice %426 {offsets = [0, 12], sizes = [8, 4], strides = [1, 1]} : vector<8x32xf32> to vector<8x4xf32>
    %cst_193 = arith.constant dense<0.000000e+00> : vector<16x4xf32>
    %494 = tpu.matmul %492, %493, %cst_193 {dimension_numbers = #tpu.dot_dimension_numbers<[1], [0], [0], [1], [0, 0, 1, 1], [], []>} : vector<16x8xf32>, vector<8x4xf32>, vector<16x4xf32> -> vector<16x4xf32>
    %495 = vector.extract_strided_slice %418 {offsets = [0, 16], sizes = [16, 4], strides = [1, 1]} : vector<16x32xf32> to vector<16x4xf32>
    %496 = vector.extract_strided_slice %425 {offsets = [0, 16], sizes = [8, 4], strides = [1, 1]} : vector<8x32xf32> to vector<8x4xf32>
    %cst_194 = arith.constant dense<0.000000e+00> : vector<16x8xf32>
    %497 = tpu.matmul %495, %496, %cst_194 {dimension_numbers = #tpu.dot_dimension_numbers<[1], [1], [0], [0], [0, 0, 1, 0], [], []>} : vector<16x4xf32>, vector<8x4xf32>, vector<16x8xf32> -> vector<16x8xf32>
    %cst_195 = arith.constant 5.000000e-01 : f32
    %498 = vector.broadcast %cst_195 : f32 to vector<16x8xf32>
    %499 = arith.mulf %497, %498 : vector<16x8xf32>
    %cst_196 = arith.constant dense<0xFF800000> : vector<16xf32>
    %500 = vector.multi_reduction <maximumf>, %499, %cst_196 [1] : vector<16x8xf32> to vector<16xf32>
    %501 = vector.shape_cast %500 : vector<16xf32> to vector<16x1xf32>
    %502 = vector.broadcast %501 : vector<16x1xf32> to vector<16x8xf32>
    %503 = arith.subf %499, %502 : vector<16x8xf32>
    %504 = math.exp %503 : vector<16x8xf32>
    %cst_197 = arith.constant dense<0.000000e+00> : vector<16xf32>
    %505 = vector.multi_reduction <add>, %504, %cst_197 [1] : vector<16x8xf32> to vector<16xf32>
    %506 = vector.shape_cast %505 : vector<16xf32> to vector<16x1xf32>
    %507 = tpu.reciprocal %506 {approx = true} : vector<16x1xf32> -> vector<16x1xf32>
    %508 = vector.broadcast %507 : vector<16x1xf32> to vector<16x8xf32>
    %509 = arith.mulf %504, %508 : vector<16x8xf32>
    %510 = vector.extract_strided_slice %426 {offsets = [0, 16], sizes = [8, 4], strides = [1, 1]} : vector<8x32xf32> to vector<8x4xf32>
    %cst_198 = arith.constant dense<0.000000e+00> : vector<16x4xf32>
    %511 = tpu.matmul %509, %510, %cst_198 {dimension_numbers = #tpu.dot_dimension_numbers<[1], [0], [0], [1], [0, 0, 1, 1], [], []>} : vector<16x8xf32>, vector<8x4xf32>, vector<16x4xf32> -> vector<16x4xf32>
    %512 = vector.extract_strided_slice %418 {offsets = [0, 20], sizes = [16, 4], strides = [1, 1]} : vector<16x32xf32> to vector<16x4xf32>
    %513 = vector.extract_strided_slice %425 {offsets = [0, 20], sizes = [8, 4], strides = [1, 1]} : vector<8x32xf32> to vector<8x4xf32>
    %cst_199 = arith.constant dense<0.000000e+00> : vector<16x8xf32>
    %514 = tpu.matmul %512, %513, %cst_199 {dimension_numbers = #tpu.dot_dimension_numbers<[1], [1], [0], [0], [0, 0, 1, 0], [], []>} : vector<16x4xf32>, vector<8x4xf32>, vector<16x8xf32> -> vector<16x8xf32>
    %cst_200 = arith.constant 5.000000e-01 : f32
    %515 = vector.broadcast %cst_200 : f32 to vector<16x8xf32>
    %516 = arith.mulf %514, %515 : vector<16x8xf32>
    %cst_201 = arith.constant dense<0xFF800000> : vector<16xf32>
    %517 = vector.multi_reduction <maximumf>, %516, %cst_201 [1] : vector<16x8xf32> to vector<16xf32>
    %518 = vector.shape_cast %517 : vector<16xf32> to vector<16x1xf32>
    %519 = vector.broadcast %518 : vector<16x1xf32> to vector<16x8xf32>
    %520 = arith.subf %516, %519 : vector<16x8xf32>
    %521 = math.exp %520 : vector<16x8xf32>
    %cst_202 = arith.constant dense<0.000000e+00> : vector<16xf32>
    %522 = vector.multi_reduction <add>, %521, %cst_202 [1] : vector<16x8xf32> to vector<16xf32>
    %523 = vector.shape_cast %522 : vector<16xf32> to vector<16x1xf32>
    %524 = tpu.reciprocal %523 {approx = true} : vector<16x1xf32> -> vector<16x1xf32>
    %525 = vector.broadcast %524 : vector<16x1xf32> to vector<16x8xf32>
    %526 = arith.mulf %521, %525 : vector<16x8xf32>
    %527 = vector.extract_strided_slice %426 {offsets = [0, 20], sizes = [8, 4], strides = [1, 1]} : vector<8x32xf32> to vector<8x4xf32>
    %cst_203 = arith.constant dense<0.000000e+00> : vector<16x4xf32>
    %528 = tpu.matmul %526, %527, %cst_203 {dimension_numbers = #tpu.dot_dimension_numbers<[1], [0], [0], [1], [0, 0, 1, 1], [], []>} : vector<16x8xf32>, vector<8x4xf32>, vector<16x4xf32> -> vector<16x4xf32>
    %529 = vector.extract_strided_slice %418 {offsets = [0, 24], sizes = [16, 4], strides = [1, 1]} : vector<16x32xf32> to vector<16x4xf32>
    %530 = vector.extract_strided_slice %425 {offsets = [0, 24], sizes = [8, 4], strides = [1, 1]} : vector<8x32xf32> to vector<8x4xf32>
    %cst_204 = arith.constant dense<0.000000e+00> : vector<16x8xf32>
    %531 = tpu.matmul %529, %530, %cst_204 {dimension_numbers = #tpu.dot_dimension_numbers<[1], [1], [0], [0], [0, 0, 1, 0], [], []>} : vector<16x4xf32>, vector<8x4xf32>, vector<16x8xf32> -> vector<16x8xf32>
    %cst_205 = arith.constant 5.000000e-01 : f32
    %532 = vector.broadcast %cst_205 : f32 to vector<16x8xf32>
    %533 = arith.mulf %531, %532 : vector<16x8xf32>
    %cst_206 = arith.constant dense<0xFF800000> : vector<16xf32>
    %534 = vector.multi_reduction <maximumf>, %533, %cst_206 [1] : vector<16x8xf32> to vector<16xf32>
    %535 = vector.shape_cast %534 : vector<16xf32> to vector<16x1xf32>
    %536 = vector.broadcast %535 : vector<16x1xf32> to vector<16x8xf32>
    %537 = arith.subf %533, %536 : vector<16x8xf32>
    %538 = math.exp %537 : vector<16x8xf32>
    %cst_207 = arith.constant dense<0.000000e+00> : vector<16xf32>
    %539 = vector.multi_reduction <add>, %538, %cst_207 [1] : vector<16x8xf32> to vector<16xf32>
    %540 = vector.shape_cast %539 : vector<16xf32> to vector<16x1xf32>
    %541 = tpu.reciprocal %540 {approx = true} : vector<16x1xf32> -> vector<16x1xf32>
    %542 = vector.broadcast %541 : vector<16x1xf32> to vector<16x8xf32>
    %543 = arith.mulf %538, %542 : vector<16x8xf32>
    %544 = vector.extract_strided_slice %426 {offsets = [0, 24], sizes = [8, 4], strides = [1, 1]} : vector<8x32xf32> to vector<8x4xf32>
    %cst_208 = arith.constant dense<0.000000e+00> : vector<16x4xf32>
    %545 = tpu.matmul %543, %544, %cst_208 {dimension_numbers = #tpu.dot_dimension_numbers<[1], [0], [0], [1], [0, 0, 1, 1], [], []>} : vector<16x8xf32>, vector<8x4xf32>, vector<16x4xf32> -> vector<16x4xf32>
    %546 = vector.extract_strided_slice %418 {offsets = [0, 28], sizes = [16, 4], strides = [1, 1]} : vector<16x32xf32> to vector<16x4xf32>
    %547 = vector.extract_strided_slice %425 {offsets = [0, 28], sizes = [8, 4], strides = [1, 1]} : vector<8x32xf32> to vector<8x4xf32>
    %cst_209 = arith.constant dense<0.000000e+00> : vector<16x8xf32>
    %548 = tpu.matmul %546, %547, %cst_209 {dimension_numbers = #tpu.dot_dimension_numbers<[1], [1], [0], [0], [0, 0, 1, 0], [], []>} : vector<16x4xf32>, vector<8x4xf32>, vector<16x8xf32> -> vector<16x8xf32>
    %cst_210 = arith.constant 5.000000e-01 : f32
    %549 = vector.broadcast %cst_210 : f32 to vector<16x8xf32>
    %550 = arith.mulf %548, %549 : vector<16x8xf32>
    %cst_211 = arith.constant dense<0xFF800000> : vector<16xf32>
    %551 = vector.multi_reduction <maximumf>, %550, %cst_211 [1] : vector<16x8xf32> to vector<16xf32>
    %552 = vector.shape_cast %551 : vector<16xf32> to vector<16x1xf32>
    %553 = vector.broadcast %552 : vector<16x1xf32> to vector<16x8xf32>
    %554 = arith.subf %550, %553 : vector<16x8xf32>
    %555 = math.exp %554 : vector<16x8xf32>
    %cst_212 = arith.constant dense<0.000000e+00> : vector<16xf32>
    %556 = vector.multi_reduction <add>, %555, %cst_212 [1] : vector<16x8xf32> to vector<16xf32>
    %557 = vector.shape_cast %556 : vector<16xf32> to vector<16x1xf32>
    %558 = tpu.reciprocal %557 {approx = true} : vector<16x1xf32> -> vector<16x1xf32>
    %559 = vector.broadcast %558 : vector<16x1xf32> to vector<16x8xf32>
    %560 = arith.mulf %555, %559 : vector<16x8xf32>
    %561 = vector.extract_strided_slice %426 {offsets = [0, 28], sizes = [8, 4], strides = [1, 1]} : vector<8x32xf32> to vector<8x4xf32>
    %cst_213 = arith.constant dense<0.000000e+00> : vector<16x4xf32>
    %562 = tpu.matmul %560, %561, %cst_213 {dimension_numbers = #tpu.dot_dimension_numbers<[1], [0], [0], [1], [0, 0, 1, 1], [], []>} : vector<16x8xf32>, vector<8x4xf32>, vector<16x4xf32> -> vector<16x4xf32>
    %563 = tpu.concatenate %443, %460, %477, %494, %511, %528, %545, %562 in 1 : vector<16x4xf32>, vector<16x4xf32>, vector<16x4xf32>, vector<16x4xf32>, vector<16x4xf32>, vector<16x4xf32>, vector<16x4xf32>, vector<16x4xf32> -> vector<16x32xf32>
    %564 = vector.extract_strided_slice %412 {offsets = [0, 64], sizes = [8, 32], strides = [1, 1]} : vector<8x128xf32> to vector<8x32xf32>
    %565 = vector.extract_strided_slice %412 {offsets = [0, 96], sizes = [8, 32], strides = [1, 1]} : vector<8x128xf32> to vector<8x32xf32>
    %566 = vector.extract_strided_slice %424 {offsets = [0, 0], sizes = [16, 4], strides = [1, 1]} : vector<16x32xf32> to vector<16x4xf32>
    %567 = vector.extract_strided_slice %564 {offsets = [0, 0], sizes = [8, 4], strides = [1, 1]} : vector<8x32xf32> to vector<8x4xf32>
    %cst_214 = arith.constant dense<0.000000e+00> : vector<16x8xf32>
    %568 = tpu.matmul %566, %567, %cst_214 {dimension_numbers = #tpu.dot_dimension_numbers<[1], [1], [0], [0], [0, 0, 1, 0], [], []>} : vector<16x4xf32>, vector<8x4xf32>, vector<16x8xf32> -> vector<16x8xf32>
    %cst_215 = arith.constant 5.000000e-01 : f32
    %569 = vector.broadcast %cst_215 : f32 to vector<16x8xf32>
    %570 = arith.mulf %568, %569 : vector<16x8xf32>
    %cst_216 = arith.constant dense<0xFF800000> : vector<16xf32>
    %571 = vector.multi_reduction <maximumf>, %570, %cst_216 [1] : vector<16x8xf32> to vector<16xf32>
    %572 = vector.shape_cast %571 : vector<16xf32> to vector<16x1xf32>
    %573 = vector.broadcast %572 : vector<16x1xf32> to vector<16x8xf32>
    %574 = arith.subf %570, %573 : vector<16x8xf32>
    %575 = math.exp %574 : vector<16x8xf32>
    %cst_217 = arith.constant dense<0.000000e+00> : vector<16xf32>
    %576 = vector.multi_reduction <add>, %575, %cst_217 [1] : vector<16x8xf32> to vector<16xf32>
    %577 = vector.shape_cast %576 : vector<16xf32> to vector<16x1xf32>
    %578 = tpu.reciprocal %577 {approx = true} : vector<16x1xf32> -> vector<16x1xf32>
    %579 = vector.broadcast %578 : vector<16x1xf32> to vector<16x8xf32>
    %580 = arith.mulf %575, %579 : vector<16x8xf32>
    %581 = vector.extract_strided_slice %565 {offsets = [0, 0], sizes = [8, 4], strides = [1, 1]} : vector<8x32xf32> to vector<8x4xf32>
    %cst_218 = arith.constant dense<0.000000e+00> : vector<16x4xf32>
    %582 = tpu.matmul %580, %581, %cst_218 {dimension_numbers = #tpu.dot_dimension_numbers<[1], [0], [0], [1], [0, 0, 1, 1], [], []>} : vector<16x8xf32>, vector<8x4xf32>, vector<16x4xf32> -> vector<16x4xf32>
    %583 = vector.extract_strided_slice %424 {offsets = [0, 4], sizes = [16, 4], strides = [1, 1]} : vector<16x32xf32> to vector<16x4xf32>
    %584 = vector.extract_strided_slice %564 {offsets = [0, 4], sizes = [8, 4], strides = [1, 1]} : vector<8x32xf32> to vector<8x4xf32>
    %cst_219 = arith.constant dense<0.000000e+00> : vector<16x8xf32>
    %585 = tpu.matmul %583, %584, %cst_219 {dimension_numbers = #tpu.dot_dimension_numbers<[1], [1], [0], [0], [0, 0, 1, 0], [], []>} : vector<16x4xf32>, vector<8x4xf32>, vector<16x8xf32> -> vector<16x8xf32>
    %cst_220 = arith.constant 5.000000e-01 : f32
    %586 = vector.broadcast %cst_220 : f32 to vector<16x8xf32>
    %587 = arith.mulf %585, %586 : vector<16x8xf32>
    %cst_221 = arith.constant dense<0xFF800000> : vector<16xf32>
    %588 = vector.multi_reduction <maximumf>, %587, %cst_221 [1] : vector<16x8xf32> to vector<16xf32>
    %589 = vector.shape_cast %588 : vector<16xf32> to vector<16x1xf32>
    %590 = vector.broadcast %589 : vector<16x1xf32> to vector<16x8xf32>
    %591 = arith.subf %587, %590 : vector<16x8xf32>
    %592 = math.exp %591 : vector<16x8xf32>
    %cst_222 = arith.constant dense<0.000000e+00> : vector<16xf32>
    %593 = vector.multi_reduction <add>, %592, %cst_222 [1] : vector<16x8xf32> to vector<16xf32>
    %594 = vector.shape_cast %593 : vector<16xf32> to vector<16x1xf32>
    %595 = tpu.reciprocal %594 {approx = true} : vector<16x1xf32> -> vector<16x1xf32>
    %596 = vector.broadcast %595 : vector<16x1xf32> to vector<16x8xf32>
    %597 = arith.mulf %592, %596 : vector<16x8xf32>
    %598 = vector.extract_strided_slice %565 {offsets = [0, 4], sizes = [8, 4], strides = [1, 1]} : vector<8x32xf32> to vector<8x4xf32>
    %cst_223 = arith.constant dense<0.000000e+00> : vector<16x4xf32>
    %599 = tpu.matmul %597, %598, %cst_223 {dimension_numbers = #tpu.dot_dimension_numbers<[1], [0], [0], [1], [0, 0, 1, 1], [], []>} : vector<16x8xf32>, vector<8x4xf32>, vector<16x4xf32> -> vector<16x4xf32>
    %600 = vector.extract_strided_slice %424 {offsets = [0, 8], sizes = [16, 4], strides = [1, 1]} : vector<16x32xf32> to vector<16x4xf32>
    %601 = vector.extract_strided_slice %564 {offsets = [0, 8], sizes = [8, 4], strides = [1, 1]} : vector<8x32xf32> to vector<8x4xf32>
    %cst_224 = arith.constant dense<0.000000e+00> : vector<16x8xf32>
    %602 = tpu.matmul %600, %601, %cst_224 {dimension_numbers = #tpu.dot_dimension_numbers<[1], [1], [0], [0], [0, 0, 1, 0], [], []>} : vector<16x4xf32>, vector<8x4xf32>, vector<16x8xf32> -> vector<16x8xf32>
    %cst_225 = arith.constant 5.000000e-01 : f32
    %603 = vector.broadcast %cst_225 : f32 to vector<16x8xf32>
    %604 = arith.mulf %602, %603 : vector<16x8xf32>
    %cst_226 = arith.constant dense<0xFF800000> : vector<16xf32>
    %605 = vector.multi_reduction <maximumf>, %604, %cst_226 [1] : vector<16x8xf32> to vector<16xf32>
    %606 = vector.shape_cast %605 : vector<16xf32> to vector<16x1xf32>
    %607 = vector.broadcast %606 : vector<16x1xf32> to vector<16x8xf32>
    %608 = arith.subf %604, %607 : vector<16x8xf32>
    %609 = math.exp %608 : vector<16x8xf32>
    %cst_227 = arith.constant dense<0.000000e+00> : vector<16xf32>
    %610 = vector.multi_reduction <add>, %609, %cst_227 [1] : vector<16x8xf32> to vector<16xf32>
    %611 = vector.shape_cast %610 : vector<16xf32> to vector<16x1xf32>
    %612 = tpu.reciprocal %611 {approx = true} : vector<16x1xf32> -> vector<16x1xf32>
    %613 = vector.broadcast %612 : vector<16x1xf32> to vector<16x8xf32>
    %614 = arith.mulf %609, %613 : vector<16x8xf32>
    %615 = vector.extract_strided_slice %565 {offsets = [0, 8], sizes = [8, 4], strides = [1, 1]} : vector<8x32xf32> to vector<8x4xf32>
    %cst_228 = arith.constant dense<0.000000e+00> : vector<16x4xf32>
    %616 = tpu.matmul %614, %615, %cst_228 {dimension_numbers = #tpu.dot_dimension_numbers<[1], [0], [0], [1], [0, 0, 1, 1], [], []>} : vector<16x8xf32>, vector<8x4xf32>, vector<16x4xf32> -> vector<16x4xf32>
    %617 = vector.extract_strided_slice %424 {offsets = [0, 12], sizes = [16, 4], strides = [1, 1]} : vector<16x32xf32> to vector<16x4xf32>
    %618 = vector.extract_strided_slice %564 {offsets = [0, 12], sizes = [8, 4], strides = [1, 1]} : vector<8x32xf32> to vector<8x4xf32>
    %cst_229 = arith.constant dense<0.000000e+00> : vector<16x8xf32>
    %619 = tpu.matmul %617, %618, %cst_229 {dimension_numbers = #tpu.dot_dimension_numbers<[1], [1], [0], [0], [0, 0, 1, 0], [], []>} : vector<16x4xf32>, vector<8x4xf32>, vector<16x8xf32> -> vector<16x8xf32>
    %cst_230 = arith.constant 5.000000e-01 : f32
    %620 = vector.broadcast %cst_230 : f32 to vector<16x8xf32>
    %621 = arith.mulf %619, %620 : vector<16x8xf32>
    %cst_231 = arith.constant dense<0xFF800000> : vector<16xf32>
    %622 = vector.multi_reduction <maximumf>, %621, %cst_231 [1] : vector<16x8xf32> to vector<16xf32>
    %623 = vector.shape_cast %622 : vector<16xf32> to vector<16x1xf32>
    %624 = vector.broadcast %623 : vector<16x1xf32> to vector<16x8xf32>
    %625 = arith.subf %621, %624 : vector<16x8xf32>
    %626 = math.exp %625 : vector<16x8xf32>
    %cst_232 = arith.constant dense<0.000000e+00> : vector<16xf32>
    %627 = vector.multi_reduction <add>, %626, %cst_232 [1] : vector<16x8xf32> to vector<16xf32>
    %628 = vector.shape_cast %627 : vector<16xf32> to vector<16x1xf32>
    %629 = tpu.reciprocal %628 {approx = true} : vector<16x1xf32> -> vector<16x1xf32>
    %630 = vector.broadcast %629 : vector<16x1xf32> to vector<16x8xf32>
    %631 = arith.mulf %626, %630 : vector<16x8xf32>
    %632 = vector.extract_strided_slice %565 {offsets = [0, 12], sizes = [8, 4], strides = [1, 1]} : vector<8x32xf32> to vector<8x4xf32>
    %cst_233 = arith.constant dense<0.000000e+00> : vector<16x4xf32>
    %633 = tpu.matmul %631, %632, %cst_233 {dimension_numbers = #tpu.dot_dimension_numbers<[1], [0], [0], [1], [0, 0, 1, 1], [], []>} : vector<16x8xf32>, vector<8x4xf32>, vector<16x4xf32> -> vector<16x4xf32>
    %634 = vector.extract_strided_slice %424 {offsets = [0, 16], sizes = [16, 4], strides = [1, 1]} : vector<16x32xf32> to vector<16x4xf32>
    %635 = vector.extract_strided_slice %564 {offsets = [0, 16], sizes = [8, 4], strides = [1, 1]} : vector<8x32xf32> to vector<8x4xf32>
    %cst_234 = arith.constant dense<0.000000e+00> : vector<16x8xf32>
    %636 = tpu.matmul %634, %635, %cst_234 {dimension_numbers = #tpu.dot_dimension_numbers<[1], [1], [0], [0], [0, 0, 1, 0], [], []>} : vector<16x4xf32>, vector<8x4xf32>, vector<16x8xf32> -> vector<16x8xf32>
    %cst_235 = arith.constant 5.000000e-01 : f32
    %637 = vector.broadcast %cst_235 : f32 to vector<16x8xf32>
    %638 = arith.mulf %636, %637 : vector<16x8xf32>
    %cst_236 = arith.constant dense<0xFF800000> : vector<16xf32>
    %639 = vector.multi_reduction <maximumf>, %638, %cst_236 [1] : vector<16x8xf32> to vector<16xf32>
    %640 = vector.shape_cast %639 : vector<16xf32> to vector<16x1xf32>
    %641 = vector.broadcast %640 : vector<16x1xf32> to vector<16x8xf32>
    %642 = arith.subf %638, %641 : vector<16x8xf32>
    %643 = math.exp %642 : vector<16x8xf32>
    %cst_237 = arith.constant dense<0.000000e+00> : vector<16xf32>
    %644 = vector.multi_reduction <add>, %643, %cst_237 [1] : vector<16x8xf32> to vector<16xf32>
    %645 = vector.shape_cast %644 : vector<16xf32> to vector<16x1xf32>
    %646 = tpu.reciprocal %645 {approx = true} : vector<16x1xf32> -> vector<16x1xf32>
    %647 = vector.broadcast %646 : vector<16x1xf32> to vector<16x8xf32>
    %648 = arith.mulf %643, %647 : vector<16x8xf32>
    %649 = vector.extract_strided_slice %565 {offsets = [0, 16], sizes = [8, 4], strides = [1, 1]} : vector<8x32xf32> to vector<8x4xf32>
    %cst_238 = arith.constant dense<0.000000e+00> : vector<16x4xf32>
    %650 = tpu.matmul %648, %649, %cst_238 {dimension_numbers = #tpu.dot_dimension_numbers<[1], [0], [0], [1], [0, 0, 1, 1], [], []>} : vector<16x8xf32>, vector<8x4xf32>, vector<16x4xf32> -> vector<16x4xf32>
    %651 = vector.extract_strided_slice %424 {offsets = [0, 20], sizes = [16, 4], strides = [1, 1]} : vector<16x32xf32> to vector<16x4xf32>
    %652 = vector.extract_strided_slice %564 {offsets = [0, 20], sizes = [8, 4], strides = [1, 1]} : vector<8x32xf32> to vector<8x4xf32>
    %cst_239 = arith.constant dense<0.000000e+00> : vector<16x8xf32>
    %653 = tpu.matmul %651, %652, %cst_239 {dimension_numbers = #tpu.dot_dimension_numbers<[1], [1], [0], [0], [0, 0, 1, 0], [], []>} : vector<16x4xf32>, vector<8x4xf32>, vector<16x8xf32> -> vector<16x8xf32>
    %cst_240 = arith.constant 5.000000e-01 : f32
    %654 = vector.broadcast %cst_240 : f32 to vector<16x8xf32>
    %655 = arith.mulf %653, %654 : vector<16x8xf32>
    %cst_241 = arith.constant dense<0xFF800000> : vector<16xf32>
    %656 = vector.multi_reduction <maximumf>, %655, %cst_241 [1] : vector<16x8xf32> to vector<16xf32>
    %657 = vector.shape_cast %656 : vector<16xf32> to vector<16x1xf32>
    %658 = vector.broadcast %657 : vector<16x1xf32> to vector<16x8xf32>
    %659 = arith.subf %655, %658 : vector<16x8xf32>
    %660 = math.exp %659 : vector<16x8xf32>
    %cst_242 = arith.constant dense<0.000000e+00> : vector<16xf32>
    %661 = vector.multi_reduction <add>, %660, %cst_242 [1] : vector<16x8xf32> to vector<16xf32>
    %662 = vector.shape_cast %661 : vector<16xf32> to vector<16x1xf32>
    %663 = tpu.reciprocal %662 {approx = true} : vector<16x1xf32> -> vector<16x1xf32>
    %664 = vector.broadcast %663 : vector<16x1xf32> to vector<16x8xf32>
    %665 = arith.mulf %660, %664 : vector<16x8xf32>
    %666 = vector.extract_strided_slice %565 {offsets = [0, 20], sizes = [8, 4], strides = [1, 1]} : vector<8x32xf32> to vector<8x4xf32>
    %cst_243 = arith.constant dense<0.000000e+00> : vector<16x4xf32>
    %667 = tpu.matmul %665, %666, %cst_243 {dimension_numbers = #tpu.dot_dimension_numbers<[1], [0], [0], [1], [0, 0, 1, 1], [], []>} : vector<16x8xf32>, vector<8x4xf32>, vector<16x4xf32> -> vector<16x4xf32>
    %668 = vector.extract_strided_slice %424 {offsets = [0, 24], sizes = [16, 4], strides = [1, 1]} : vector<16x32xf32> to vector<16x4xf32>
    %669 = vector.extract_strided_slice %564 {offsets = [0, 24], sizes = [8, 4], strides = [1, 1]} : vector<8x32xf32> to vector<8x4xf32>
    %cst_244 = arith.constant dense<0.000000e+00> : vector<16x8xf32>
    %670 = tpu.matmul %668, %669, %cst_244 {dimension_numbers = #tpu.dot_dimension_numbers<[1], [1], [0], [0], [0, 0, 1, 0], [], []>} : vector<16x4xf32>, vector<8x4xf32>, vector<16x8xf32> -> vector<16x8xf32>
    %cst_245 = arith.constant 5.000000e-01 : f32
    %671 = vector.broadcast %cst_245 : f32 to vector<16x8xf32>
    %672 = arith.mulf %670, %671 : vector<16x8xf32>
    %cst_246 = arith.constant dense<0xFF800000> : vector<16xf32>
    %673 = vector.multi_reduction <maximumf>, %672, %cst_246 [1] : vector<16x8xf32> to vector<16xf32>
    %674 = vector.shape_cast %673 : vector<16xf32> to vector<16x1xf32>
    %675 = vector.broadcast %674 : vector<16x1xf32> to vector<16x8xf32>
    %676 = arith.subf %672, %675 : vector<16x8xf32>
    %677 = math.exp %676 : vector<16x8xf32>
    %cst_247 = arith.constant dense<0.000000e+00> : vector<16xf32>
    %678 = vector.multi_reduction <add>, %677, %cst_247 [1] : vector<16x8xf32> to vector<16xf32>
    %679 = vector.shape_cast %678 : vector<16xf32> to vector<16x1xf32>
    %680 = tpu.reciprocal %679 {approx = true} : vector<16x1xf32> -> vector<16x1xf32>
    %681 = vector.broadcast %680 : vector<16x1xf32> to vector<16x8xf32>
    %682 = arith.mulf %677, %681 : vector<16x8xf32>
    %683 = vector.extract_strided_slice %565 {offsets = [0, 24], sizes = [8, 4], strides = [1, 1]} : vector<8x32xf32> to vector<8x4xf32>
    %cst_248 = arith.constant dense<0.000000e+00> : vector<16x4xf32>
    %684 = tpu.matmul %682, %683, %cst_248 {dimension_numbers = #tpu.dot_dimension_numbers<[1], [0], [0], [1], [0, 0, 1, 1], [], []>} : vector<16x8xf32>, vector<8x4xf32>, vector<16x4xf32> -> vector<16x4xf32>
    %685 = vector.extract_strided_slice %424 {offsets = [0, 28], sizes = [16, 4], strides = [1, 1]} : vector<16x32xf32> to vector<16x4xf32>
    %686 = vector.extract_strided_slice %564 {offsets = [0, 28], sizes = [8, 4], strides = [1, 1]} : vector<8x32xf32> to vector<8x4xf32>
    %cst_249 = arith.constant dense<0.000000e+00> : vector<16x8xf32>
    %687 = tpu.matmul %685, %686, %cst_249 {dimension_numbers = #tpu.dot_dimension_numbers<[1], [1], [0], [0], [0, 0, 1, 0], [], []>} : vector<16x4xf32>, vector<8x4xf32>, vector<16x8xf32> -> vector<16x8xf32>
    %cst_250 = arith.constant 5.000000e-01 : f32
    %688 = vector.broadcast %cst_250 : f32 to vector<16x8xf32>
    %689 = arith.mulf %687, %688 : vector<16x8xf32>
    %cst_251 = arith.constant dense<0xFF800000> : vector<16xf32>
    %690 = vector.multi_reduction <maximumf>, %689, %cst_251 [1] : vector<16x8xf32> to vector<16xf32>
    %691 = vector.shape_cast %690 : vector<16xf32> to vector<16x1xf32>
    %692 = vector.broadcast %691 : vector<16x1xf32> to vector<16x8xf32>
    %693 = arith.subf %689, %692 : vector<16x8xf32>
    %694 = math.exp %693 : vector<16x8xf32>
    %cst_252 = arith.constant dense<0.000000e+00> : vector<16xf32>
    %695 = vector.multi_reduction <add>, %694, %cst_252 [1] : vector<16x8xf32> to vector<16xf32>
    %696 = vector.shape_cast %695 : vector<16xf32> to vector<16x1xf32>
    %697 = tpu.reciprocal %696 {approx = true} : vector<16x1xf32> -> vector<16x1xf32>
    %698 = vector.broadcast %697 : vector<16x1xf32> to vector<16x8xf32>
    %699 = arith.mulf %694, %698 : vector<16x8xf32>
    %700 = vector.extract_strided_slice %565 {offsets = [0, 28], sizes = [8, 4], strides = [1, 1]} : vector<8x32xf32> to vector<8x4xf32>
    %cst_253 = arith.constant dense<0.000000e+00> : vector<16x4xf32>
    %701 = tpu.matmul %699, %700, %cst_253 {dimension_numbers = #tpu.dot_dimension_numbers<[1], [0], [0], [1], [0, 0, 1, 1], [], []>} : vector<16x8xf32>, vector<8x4xf32>, vector<16x4xf32> -> vector<16x4xf32>
    %702 = tpu.concatenate %582, %599, %616, %633, %650, %667, %684, %701 in 1 : vector<16x4xf32>, vector<16x4xf32>, vector<16x4xf32>, vector<16x4xf32>, vector<16x4xf32>, vector<16x4xf32>, vector<16x4xf32>, vector<16x4xf32> -> vector<16x32xf32>
    %c0_254 = arith.constant 0 : index
    %c0_255 = arith.constant 0 : index
    %c0_256 = arith.constant 0 : index
    %703 = vector.load %arg17[%c0_254, %c0_255, %c0_256] : memref<2x32x32xf32, #tpu.memory_space<vmem>>, vector<1x32x32xf32>
    %704 = vector.shape_cast %703 : vector<1x32x32xf32> to vector<32x32xf32>
    %cst_257 = arith.constant dense<0.000000e+00> : vector<16x32xf32>
    %705 = tpu.matmul %563, %704, %cst_257 {dimension_numbers = #tpu.dot_dimension_numbers<[1], [0], [0], [1], [0, 0, 1, 1], [], []>} : vector<16x32xf32>, vector<32x32xf32>, vector<16x32xf32> -> vector<16x32xf32>
    %706 = arith.addf %1, %705 : vector<16x32xf32>
    %c0_258 = arith.constant 0 : index
    %c0_259 = arith.constant 0 : index
    %707 = vector.load %arg18[%c0_258, %c0_259] : memref<2x32xf32, #tpu.memory_space<vmem>>, vector<1x32xf32>
    %708 = vector.broadcast %707 : vector<1x32xf32> to vector<16x32xf32>
    %709 = arith.addf %706, %708 : vector<16x32xf32>
    %c1_260 = arith.constant 1 : index
    %c0_261 = arith.constant 0 : index
    %c0_262 = arith.constant 0 : index
    %710 = vector.load %arg17[%c1_260, %c0_261, %c0_262] : memref<2x32x32xf32, #tpu.memory_space<vmem>>, vector<1x32x32xf32>
    %711 = vector.shape_cast %710 : vector<1x32x32xf32> to vector<32x32xf32>
    %cst_263 = arith.constant dense<0.000000e+00> : vector<16x32xf32>
    %712 = tpu.matmul %702, %711, %cst_263 {dimension_numbers = #tpu.dot_dimension_numbers<[1], [0], [0], [1], [0, 0, 1, 1], [], []>} : vector<16x32xf32>, vector<32x32xf32>, vector<16x32xf32> -> vector<16x32xf32>
    %713 = arith.addf %3, %712 : vector<16x32xf32>
    %c1_264 = arith.constant 1 : index
    %c0_265 = arith.constant 0 : index
    %714 = vector.load %arg18[%c1_264, %c0_265] : memref<2x32xf32, #tpu.memory_space<vmem>>, vector<1x32xf32>
    %715 = vector.broadcast %714 : vector<1x32xf32> to vector<16x32xf32>
    %716 = arith.addf %713, %715 : vector<16x32xf32>
    %cst_266 = arith.constant dense<0.000000e+00> : vector<16xf32>
    %717 = vector.multi_reduction <add>, %709, %cst_266 [1] : vector<16x32xf32> to vector<16xf32>
    %718 = vector.shape_cast %717 : vector<16xf32> to vector<16x1xf32>
    %cst_267 = arith.constant 3.200000e+01 : f32
    %719 = vector.broadcast %cst_267 : f32 to vector<16x1xf32>
    %720 = arith.divf %718, %719 : vector<16x1xf32>
    %721 = vector.broadcast %720 : vector<16x1xf32> to vector<16x32xf32>
    %722 = arith.subf %709, %721 : vector<16x32xf32>
    %723 = arith.mulf %722, %722 : vector<16x32xf32>
    %cst_268 = arith.constant dense<0.000000e+00> : vector<16xf32>
    %724 = vector.multi_reduction <add>, %723, %cst_268 [1] : vector<16x32xf32> to vector<16xf32>
    %725 = vector.shape_cast %724 : vector<16xf32> to vector<16x1xf32>
    %cst_269 = arith.constant 3.200000e+01 : f32
    %726 = vector.broadcast %cst_269 : f32 to vector<16x1xf32>
    %727 = arith.divf %725, %726 : vector<16x1xf32>
    %cst_270 = arith.constant 9.99999974E-6 : f32
    %728 = vector.broadcast %cst_270 : f32 to vector<16x1xf32>
    %729 = arith.addf %727, %728 : vector<16x1xf32>
    %730 = math.rsqrt %729 : vector<16x1xf32>
    %731 = vector.broadcast %730 : vector<16x1xf32> to vector<16x32xf32>
    %732 = arith.mulf %722, %731 : vector<16x32xf32>
    %c4 = arith.constant 4 : index
    %c0_271 = arith.constant 0 : index
    %733 = vector.load %arg5[%c4, %c0_271] : memref<6x32xf32, #tpu.memory_space<vmem>>, vector<1x32xf32>
    %734 = vector.broadcast %733 : vector<1x32xf32> to vector<16x32xf32>
    %735 = arith.mulf %732, %734 : vector<16x32xf32>
    %c4_272 = arith.constant 4 : index
    %c0_273 = arith.constant 0 : index
    %736 = vector.load %arg6[%c4_272, %c0_273] : memref<6x32xf32, #tpu.memory_space<vmem>>, vector<1x32xf32>
    %737 = vector.broadcast %736 : vector<1x32xf32> to vector<16x32xf32>
    %738 = arith.addf %735, %737 : vector<16x32xf32>
    %cst_274 = arith.constant dense<0.000000e+00> : vector<16xf32>
    %739 = vector.multi_reduction <add>, %716, %cst_274 [1] : vector<16x32xf32> to vector<16xf32>
    %740 = vector.shape_cast %739 : vector<16xf32> to vector<16x1xf32>
    %cst_275 = arith.constant 3.200000e+01 : f32
    %741 = vector.broadcast %cst_275 : f32 to vector<16x1xf32>
    %742 = arith.divf %740, %741 : vector<16x1xf32>
    %743 = vector.broadcast %742 : vector<16x1xf32> to vector<16x32xf32>
    %744 = arith.subf %716, %743 : vector<16x32xf32>
    %745 = arith.mulf %744, %744 : vector<16x32xf32>
    %cst_276 = arith.constant dense<0.000000e+00> : vector<16xf32>
    %746 = vector.multi_reduction <add>, %745, %cst_276 [1] : vector<16x32xf32> to vector<16xf32>
    %747 = vector.shape_cast %746 : vector<16xf32> to vector<16x1xf32>
    %cst_277 = arith.constant 3.200000e+01 : f32
    %748 = vector.broadcast %cst_277 : f32 to vector<16x1xf32>
    %749 = arith.divf %747, %748 : vector<16x1xf32>
    %cst_278 = arith.constant 9.99999974E-6 : f32
    %750 = vector.broadcast %cst_278 : f32 to vector<16x1xf32>
    %751 = arith.addf %749, %750 : vector<16x1xf32>
    %752 = math.rsqrt %751 : vector<16x1xf32>
    %753 = vector.broadcast %752 : vector<16x1xf32> to vector<16x32xf32>
    %754 = arith.mulf %744, %753 : vector<16x32xf32>
    %c5 = arith.constant 5 : index
    %c0_279 = arith.constant 0 : index
    %755 = vector.load %arg5[%c5, %c0_279] : memref<6x32xf32, #tpu.memory_space<vmem>>, vector<1x32xf32>
    %756 = vector.broadcast %755 : vector<1x32xf32> to vector<16x32xf32>
    %757 = arith.mulf %754, %756 : vector<16x32xf32>
    %c5_280 = arith.constant 5 : index
    %c0_281 = arith.constant 0 : index
    %758 = vector.load %arg6[%c5_280, %c0_281] : memref<6x32xf32, #tpu.memory_space<vmem>>, vector<1x32xf32>
    %759 = vector.broadcast %758 : vector<1x32xf32> to vector<16x32xf32>
    %760 = arith.addf %757, %759 : vector<16x32xf32>
    %c0_282 = arith.constant 0 : index
    %c0_283 = arith.constant 0 : index
    %c0_284 = arith.constant 0 : index
    %761 = vector.load %arg19[%c0_282, %c0_283, %c0_284] : memref<2x32x128xf32, #tpu.memory_space<vmem>>, vector<1x32x128xf32>
    %762 = vector.shape_cast %761 : vector<1x32x128xf32> to vector<32x128xf32>
    %cst_285 = arith.constant dense<0.000000e+00> : vector<16x128xf32>
    %763 = tpu.matmul %738, %762, %cst_285 {dimension_numbers = #tpu.dot_dimension_numbers<[1], [0], [0], [1], [0, 0, 1, 1], [], []>} : vector<16x32xf32>, vector<32x128xf32>, vector<16x128xf32> -> vector<16x128xf32>
    %c0_286 = arith.constant 0 : index
    %c0_287 = arith.constant 0 : index
    %764 = vector.load %arg20[%c0_286, %c0_287] : memref<2x128xf32, #tpu.memory_space<vmem>>, vector<1x128xf32>
    %765 = vector.broadcast %764 : vector<1x128xf32> to vector<16x128xf32>
    %766 = arith.addf %763, %765 : vector<16x128xf32>
    %cst_288 = arith.constant 0.000000e+00 : f32
    %767 = vector.broadcast %cst_288 : f32 to vector<16x128xf32>
    %768 = arith.maximumf %766, %767 : vector<16x128xf32>
    %c0_289 = arith.constant 0 : index
    %c0_290 = arith.constant 0 : index
    %c0_291 = arith.constant 0 : index
    %769 = vector.load %arg21[%c0_289, %c0_290, %c0_291] : memref<2x128x32xf32, #tpu.memory_space<vmem>>, vector<1x128x32xf32>
    %770 = vector.shape_cast %769 : vector<1x128x32xf32> to vector<128x32xf32>
    %cst_292 = arith.constant dense<0.000000e+00> : vector<16x32xf32>
    %771 = tpu.matmul %768, %770, %cst_292 {dimension_numbers = #tpu.dot_dimension_numbers<[1], [0], [0], [1], [0, 0, 1, 1], [], []>} : vector<16x128xf32>, vector<128x32xf32>, vector<16x32xf32> -> vector<16x32xf32>
    %772 = arith.addf %709, %771 : vector<16x32xf32>
    %c0_293 = arith.constant 0 : index
    %c0_294 = arith.constant 0 : index
    %773 = vector.load %arg22[%c0_293, %c0_294] : memref<2x32xf32, #tpu.memory_space<vmem>>, vector<1x32xf32>
    %774 = vector.broadcast %773 : vector<1x32xf32> to vector<16x32xf32>
    %775 = arith.addf %772, %774 : vector<16x32xf32>
    %c1_295 = arith.constant 1 : index
    %c0_296 = arith.constant 0 : index
    %c0_297 = arith.constant 0 : index
    %776 = vector.load %arg19[%c1_295, %c0_296, %c0_297] : memref<2x32x128xf32, #tpu.memory_space<vmem>>, vector<1x32x128xf32>
    %777 = vector.shape_cast %776 : vector<1x32x128xf32> to vector<32x128xf32>
    %cst_298 = arith.constant dense<0.000000e+00> : vector<16x128xf32>
    %778 = tpu.matmul %760, %777, %cst_298 {dimension_numbers = #tpu.dot_dimension_numbers<[1], [0], [0], [1], [0, 0, 1, 1], [], []>} : vector<16x32xf32>, vector<32x128xf32>, vector<16x128xf32> -> vector<16x128xf32>
    %c1_299 = arith.constant 1 : index
    %c0_300 = arith.constant 0 : index
    %779 = vector.load %arg20[%c1_299, %c0_300] : memref<2x128xf32, #tpu.memory_space<vmem>>, vector<1x128xf32>
    %780 = vector.broadcast %779 : vector<1x128xf32> to vector<16x128xf32>
    %781 = arith.addf %778, %780 : vector<16x128xf32>
    %cst_301 = arith.constant 0.000000e+00 : f32
    %782 = vector.broadcast %cst_301 : f32 to vector<16x128xf32>
    %783 = arith.maximumf %781, %782 : vector<16x128xf32>
    %c1_302 = arith.constant 1 : index
    %c0_303 = arith.constant 0 : index
    %c0_304 = arith.constant 0 : index
    %784 = vector.load %arg21[%c1_302, %c0_303, %c0_304] : memref<2x128x32xf32, #tpu.memory_space<vmem>>, vector<1x128x32xf32>
    %785 = vector.shape_cast %784 : vector<1x128x32xf32> to vector<128x32xf32>
    %cst_305 = arith.constant dense<0.000000e+00> : vector<16x32xf32>
    %786 = tpu.matmul %783, %785, %cst_305 {dimension_numbers = #tpu.dot_dimension_numbers<[1], [0], [0], [1], [0, 0, 1, 1], [], []>} : vector<16x128xf32>, vector<128x32xf32>, vector<16x32xf32> -> vector<16x32xf32>
    %787 = arith.addf %716, %786 : vector<16x32xf32>
    %c1_306 = arith.constant 1 : index
    %c0_307 = arith.constant 0 : index
    %788 = vector.load %arg22[%c1_306, %c0_307] : memref<2x32xf32, #tpu.memory_space<vmem>>, vector<1x32xf32>
    %789 = vector.broadcast %788 : vector<1x32xf32> to vector<16x32xf32>
    %790 = arith.addf %787, %789 : vector<16x32xf32>
    %c0_308 = arith.constant 0 : index
    %c0_309 = arith.constant 0 : index
    %c0_310 = arith.constant 0 : index
    %791 = vector.load %arg23[%c0_308, %c0_309, %c0_310] : memref<1x16x32xf32, #tpu.memory_space<vmem>>, vector<1x16x32xf32>
    %792 = vector.shape_cast %791 : vector<1x16x32xf32> to vector<16x32xf32>
    %793 = vector.shape_cast %775 : vector<16x32xf32> to vector<1x16x32xf32>
    tpu.vector_store %arg23[%c0_308, %c0_309, %c0_310], %793 {strides = array<i32>} : memref<1x16x32xf32, #tpu.memory_space<vmem>>, vector<1x16x32xf32>,
    %c0_311 = arith.constant 0 : index
    %c0_312 = arith.constant 0 : index
    %c0_313 = arith.constant 0 : index
    %794 = vector.load %arg24[%c0_311, %c0_312, %c0_313] : memref<1x16x32xf32, #tpu.memory_space<vmem>>, vector<1x16x32xf32>
    %795 = vector.shape_cast %794 : vector<1x16x32xf32> to vector<16x32xf32>
    %796 = vector.shape_cast %790 : vector<16x32xf32> to vector<1x16x32xf32>
    tpu.vector_store %arg24[%c0_311, %c0_312, %c0_313], %796 {strides = array<i32>} : memref<1x16x32xf32, #tpu.memory_space<vmem>>, vector<1x16x32xf32>,
    %c0_314 = arith.constant 0 : index
    %c0_315 = arith.constant 0 : index
    %c0_316 = arith.constant 0 : index
    %797 = vector.load %arg25[%c0_314, %c0_315, %c0_316] : memref<1x8x32xf32, #tpu.memory_space<vmem>>, vector<1x8x32xf32>
    %798 = vector.shape_cast %797 : vector<1x8x32xf32> to vector<8x32xf32>
    %799 = vector.shape_cast %385 : vector<8x32xf32> to vector<1x8x32xf32>
    tpu.vector_store %arg25[%c0_314, %c0_315, %c0_316], %799 {strides = array<i32>} : memref<1x8x32xf32, #tpu.memory_space<vmem>>, vector<1x8x32xf32>,
    return
  }
  func.func @transform_0(%arg0: i32) -> (i32, i32, i32) {
    %c0_i32 = arith.constant 0 : i32
    %c0_i32_0 = arith.constant 0 : i32
    %c0_i32_1 = arith.constant 0 : i32
    return %arg0, %c0_i32, %c0_i32_0 : i32, i32, i32
  }
  func.func @transform_1(%arg0: i32) -> (i32, i32, i32) {
    %c0_i32 = arith.constant 0 : i32
    %c0_i32_0 = arith.constant 0 : i32
    %c0_i32_1 = arith.constant 0 : i32
    return %arg0, %c0_i32, %c0_i32_0 : i32, i32, i32
  }
  func.func @transform_2(%arg0: i32) -> (i32, i32, i32) {
    %c0_i32 = arith.constant 0 : i32
    %c0_i32_0 = arith.constant 0 : i32
    %c0_i32_1 = arith.constant 0 : i32
    return %arg0, %c0_i32, %c0_i32_0 : i32, i32, i32
  }
  func.func @transform_3(%arg0: i32) -> (i32, i32, i32) {
    %c0_i32 = arith.constant 0 : i32
    %c0_i32_0 = arith.constant 0 : i32
    %c0_i32_1 = arith.constant 0 : i32
    %c0_i32_2 = arith.constant 0 : i32
    return %c0_i32, %c0_i32_0, %c0_i32_1 : i32, i32, i32
  }
  func.func @transform_4(%arg0: i32) -> (i32, i32) {
    %c0_i32 = arith.constant 0 : i32
    %c0_i32_0 = arith.constant 0 : i32
    %c0_i32_1 = arith.constant 0 : i32
    return %c0_i32, %c0_i32_0 : i32, i32
  }
  func.func @transform_5(%arg0: i32) -> (i32, i32) {
    %c0_i32 = arith.constant 0 : i32
    %c0_i32_0 = arith.constant 0 : i32
    %c0_i32_1 = arith.constant 0 : i32
    return %c0_i32, %c0_i32_0 : i32, i32
  }
  func.func @transform_6(%arg0: i32) -> (i32, i32) {
    %c0_i32 = arith.constant 0 : i32
    %c0_i32_0 = arith.constant 0 : i32
    %c0_i32_1 = arith.constant 0 : i32
    return %c0_i32, %c0_i32_0 : i32, i32
  }
  func.func @transform_7(%arg0: i32) -> (i32, i32) {
    %c0_i32 = arith.constant 0 : i32
    %c0_i32_0 = arith.constant 0 : i32
    %c0_i32_1 = arith.constant 0 : i32
    return %c0_i32, %c0_i32_0 : i32, i32
  }
  func.func @transform_8(%arg0: i32) -> (i32, i32, i32) {
    %c0_i32 = arith.constant 0 : i32
    %c0_i32_0 = arith.constant 0 : i32
    %c0_i32_1 = arith.constant 0 : i32
    %c0_i32_2 = arith.constant 0 : i32
    return %c0_i32, %c0_i32_0, %c0_i32_1 : i32, i32, i32
  }
  func.func @transform_9(%arg0: i32) -> (i32, i32) {
    %c0_i32 = arith.constant 0 : i32
    %c0_i32_0 = arith.constant 0 : i32
    %c0_i32_1 = arith.constant 0 : i32
    return %c0_i32, %c0_i32_0 : i32, i32
  }
  func.func @transform_10(%arg0: i32) -> (i32, i32) {
    %c0_i32 = arith.constant 0 : i32
    %c0_i32_0 = arith.constant 0 : i32
    %c0_i32_1 = arith.constant 0 : i32
    return %c0_i32, %c0_i32_0 : i32, i32
  }
  func.func @transform_11(%arg0: i32) -> (i32, i32) {
    %c0_i32 = arith.constant 0 : i32
    %c0_i32_0 = arith.constant 0 : i32
    %c0_i32_1 = arith.constant 0 : i32
    return %c0_i32, %c0_i32_0 : i32, i32
  }
  func.func @transform_12(%arg0: i32) -> (i32, i32, i32) {
    %c0_i32 = arith.constant 0 : i32
    %c0_i32_0 = arith.constant 0 : i32
    %c0_i32_1 = arith.constant 0 : i32
    %c0_i32_2 = arith.constant 0 : i32
    return %c0_i32, %c0_i32_0, %c0_i32_1 : i32, i32, i32
  }
  func.func @transform_13(%arg0: i32) -> (i32, i32) {
    %c0_i32 = arith.constant 0 : i32
    %c0_i32_0 = arith.constant 0 : i32
    %c0_i32_1 = arith.constant 0 : i32
    return %c0_i32, %c0_i32_0 : i32, i32
  }
  func.func @transform_14(%arg0: i32) -> (i32, i32) {
    %c0_i32 = arith.constant 0 : i32
    %c0_i32_0 = arith.constant 0 : i32
    %c0_i32_1 = arith.constant 0 : i32
    return %c0_i32, %c0_i32_0 : i32, i32
  }
  func.func @transform_15(%arg0: i32) -> (i32, i32) {
    %c0_i32 = arith.constant 0 : i32
    %c0_i32_0 = arith.constant 0 : i32
    %c0_i32_1 = arith.constant 0 : i32
    return %c0_i32, %c0_i32_0 : i32, i32
  }
  func.func @transform_16(%arg0: i32) -> (i32, i32, i32) {
    %c0_i32 = arith.constant 0 : i32
    %c0_i32_0 = arith.constant 0 : i32
    %c0_i32_1 = arith.constant 0 : i32
    %c0_i32_2 = arith.constant 0 : i32
    return %c0_i32, %c0_i32_0, %c0_i32_1 : i32, i32, i32
  }
  func.func @transform_17(%arg0: i32) -> (i32, i32) {
    %c0_i32 = arith.constant 0 : i32
    %c0_i32_0 = arith.constant 0 : i32
    %c0_i32_1 = arith.constant 0 : i32
    return %c0_i32, %c0_i32_0 : i32, i32
  }
  func.func @transform_18(%arg0: i32) -> (i32, i32, i32) {
    %c0_i32 = arith.constant 0 : i32
    %c0_i32_0 = arith.constant 0 : i32
    %c0_i32_1 = arith.constant 0 : i32
    %c0_i32_2 = arith.constant 0 : i32
    return %c0_i32, %c0_i32_0, %c0_i32_1 : i32, i32, i32
  }
  func.func @transform_19(%arg0: i32) -> (i32, i32) {
    %c0_i32 = arith.constant 0 : i32
    %c0_i32_0 = arith.constant 0 : i32
    %c0_i32_1 = arith.constant 0 : i32
    return %c0_i32, %c0_i32_0 : i32, i32
  }
  func.func @transform_20(%arg0: i32) -> (i32, i32, i32) {
    %c0_i32 = arith.constant 0 : i32
    %c0_i32_0 = arith.constant 0 : i32
    %c0_i32_1 = arith.constant 0 : i32
    %c0_i32_2 = arith.constant 0 : i32
    return %c0_i32, %c0_i32_0, %c0_i32_1 : i32, i32, i32
  }
  func.func @transform_21(%arg0: i32) -> (i32, i32) {
    %c0_i32 = arith.constant 0 : i32
    %c0_i32_0 = arith.constant 0 : i32
    %c0_i32_1 = arith.constant 0 : i32
    return %c0_i32, %c0_i32_0 : i32, i32
  }
  func.func @transform_22(%arg0: i32) -> (i32, i32, i32) {
    %c0_i32 = arith.constant 0 : i32
    %c0_i32_0 = arith.constant 0 : i32
    %c0_i32_1 = arith.constant 0 : i32
    return %arg0, %c0_i32, %c0_i32_0 : i32, i32, i32
  }
  func.func @transform_23(%arg0: i32) -> (i32, i32, i32) {
    %c0_i32 = arith.constant 0 : i32
    %c0_i32_0 = arith.constant 0 : i32
    %c0_i32_1 = arith.constant 0 : i32
    return %arg0, %c0_i32, %c0_i32_0 : i32, i32, i32
  }
  func.func @transform_24(%arg0: i32) -> (i32, i32, i32) {
    %c0_i32 = arith.constant 0 : i32
    %c0_i32_0 = arith.constant 0 : i32
    %c0_i32_1 = arith.constant 0 : i32
    return %arg0, %c0_i32, %c0_i32_0 : i32, i32, i32
  }
}

</mosaic_0001>

<llo_original>
// kernel: bottleneck_transformer_layer.1
$region0: #{bottleneck_transformer_layer.1}
  #allocation0 [shape = 'u32[]', space=smem, size = 0x4, offset = 0x4, fixed_abs, tag = 'smem constant byte address 0x4 - core index']
  #allocation1 [shape = 'u32[144,128]{1,0:T(1,128)}', space=vmem, size = 0x12000, scoped, tag = 'internal scratch']
  %s0 = inlined_call_operand.vmem [shape: f32[2,16,32], index: 0, kind: input, shape index: {}]
  %s1 = inlined_call_operand.vmem [shape: f32[2,16,32], index: 1, kind: input, shape index: {}]
  %s2 = inlined_call_operand.vmem [shape: f32[2,8,32], index: 2, kind: input, shape index: {}]
  %s3 = inlined_call_operand.vmem [shape: f32[1,16,32], index: 3, kind: input, shape index: {}]
  %s4 = inlined_call_operand.vmem [shape: f32[6,32], index: 4, kind: input, shape index: {}]
  %s5 = inlined_call_operand.vmem [shape: f32[6,32], index: 5, kind: input, shape index: {}]
  %s6 = inlined_call_operand.vmem [shape: f32[32,64], index: 6, kind: input, shape index: {}]
  %s7 = inlined_call_operand.vmem [shape: f32[1,64], index: 7, kind: input, shape index: {}]
  %s8 = inlined_call_operand.vmem [shape: f32[4,32,32], index: 8, kind: input, shape index: {}]
  %s9 = inlined_call_operand.vmem [shape: f32[4,32], index: 9, kind: input, shape index: {}]
  %s10 = inlined_call_operand.vmem [shape: f32[64,32], index: 10, kind: input, shape index: {}]
  %s11 = inlined_call_operand.vmem [shape: f32[1,32], index: 11, kind: input, shape index: {}]
  %s12 = inlined_call_operand.vmem [shape: f32[2,32,32], index: 12, kind: input, shape index: {}]
  %s13 = inlined_call_operand.vmem [shape: f32[2,32], index: 13, kind: input, shape index: {}]
  %s14 = inlined_call_operand.vmem [shape: f32[32,128], index: 14, kind: input, shape index: {}]
  %s15 = inlined_call_operand.vmem [shape: f32[1,128], index: 15, kind: input, shape index: {}]
  %s16 = inlined_call_operand.vmem [shape: f32[2,32,32], index: 16, kind: input, shape index: {}]
  %s17 = inlined_call_operand.vmem [shape: f32[2,32], index: 17, kind: input, shape index: {}]
  %s18 = inlined_call_operand.vmem [shape: f32[2,32,128], index: 18, kind: input, shape index: {}]
  %s19 = inlined_call_operand.vmem [shape: f32[2,128], index: 19, kind: input, shape index: {}]
  %s20 = inlined_call_operand.vmem [shape: f32[2,128,32], index: 20, kind: input, shape index: {}]
  %s21 = inlined_call_operand.vmem [shape: f32[2,32], index: 21, kind: input, shape index: {}]
  %s22 = inlined_call_operand.hbm [shape: f32[2,16,32], index: 22, kind: output, shape index: {0}]
  %s23 = inlined_call_operand.hbm [shape: f32[2,16,32], index: 23, kind: output, shape index: {1}]
  %s24 = inlined_call_operand.hbm [shape: f32[2,8,32], index: 24, kind: output, shape index: {2}]
  %25 = xla_tuple %s22, %s23, %s24
  %s26 = sld [smem:[#allocation0]]
  $region137: #{bottleneck_transformer_layer.1} parent=0
    _
  %s28 = ssub.s32 1, %s26
  %s29 = scalar_select 0, %s28, %s26
  $region1: #{bottleneck_transformer_layer.1} parent=0
    #allocation2 [shape = 'u8[16384]{0}', space=vmem, size = 0x4000, scoped, tag = 'output window, operand 0']
    #allocation3 [shape = 's32[2]{0}', space=sflag, size = 0x8, scoped, tag = 'scoped memory for bottleneck_transformer_layer.1']
    #allocation4 [shape = 'u8[16384]{0}', space=vmem, size = 0x4000, scoped, tag = 'output window, operand 1']
    #allocation5 [shape = 's32[2]{0}', space=sflag, size = 0x8, scoped, tag = 'scoped memory for bottleneck_transformer_layer.1']
    #allocation6 [shape = 'u8[8192]{0}', space=vmem, size = 0x2000, scoped, tag = 'output window, operand 2']
    %30 = vsyncpa [#allocation3], 0
    %s31 = scalar_lea.sflag [#allocation3], 1
    %32 = vsyncpa %s31, 0
    %33 = vsyncpa [#allocation5], 0
    %s34 = scalar_lea.sflag [#allocation5], 1
    %35 = vsyncpa %s34, 0
    loop: start=0, step=1, limit=4
    $region2: #{bottleneck_transformer_layer.1} parent=1 // loop_pre_header
      _
    $region3: #{bottleneck_transformer_layer.1} parent=1 // loop_header
      %s37 = sphi 0, %s41
      %p38 = scmp.ge.s32.totalorder %s37, 4
      %s47 = sphi 0, %s49
      %s50 = sphi 0, %s47
      %s51 = sphi 0, %s50
      %s67 = sphi 0, %s51
      %s73 = sphi 0, %s75
      %s76 = sphi 0, %s73
      %s77 = sphi 0, %s76
      %s93 = sphi 0, %s77
      %s99 = sphi 0, %s101
      %s102 = sphi 0, %s99
      %s103 = sphi 0, %s102
      %s119 = sphi 0, %s103
      %s123 = sphi 0, %s123
      %s125 = sphi 0, %s123
      %s126 = sphi 0, %s125
      %s140 = sphi 0, %s126
      %s144 = sphi 0, %s144
      %s146 = sphi 0, %s144
      %s147 = sphi 0, %s146
      %s161 = sphi 0, %s147
      %s165 = sphi 0, %s165
      %s167 = sphi 0, %s165
      %s168 = sphi 0, %s167
      %s182 = sphi 0, %s168
      %s186 = sphi 0, %s186
      %s188 = sphi 0, %s186
      %s189 = sphi 0, %s188
      %s203 = sphi 0, %s189
      %s207 = sphi 0, %s207
      %s209 = sphi 0, %s207
      %s210 = sphi 0, %s209
      %s224 = sphi 0, %s210
      %s228 = sphi 0, %s228
      %s230 = sphi 0, %s228
      %s231 = sphi 0, %s230
      %s245 = sphi 0, %s231
      %s249 = sphi 0, %s249
      %s251 = sphi 0, %s249
      %s252 = sphi 0, %s251
      %s266 = sphi 0, %s252
      %s270 = sphi 0, %s270
      %s272 = sphi 0, %s270
      %s273 = sphi 0, %s272
      %s287 = sphi 0, %s273
      %s291 = sphi 0, %s291
      %s293 = sphi 0, %s291
      %s294 = sphi 0, %s293
      %s308 = sphi 0, %s294
      %s312 = sphi 0, %s312
      %s314 = sphi 0, %s312
      %s315 = sphi 0, %s314
      %s329 = sphi 0, %s315
      %s333 = sphi 0, %s333
      %s335 = sphi 0, %s333
      %s336 = sphi 0, %s335
      %s350 = sphi 0, %s336
      %s354 = sphi 0, %s354
      %s356 = sphi 0, %s354
      %s357 = sphi 0, %s356
      %s371 = sphi 0, %s357
      %s375 = sphi 0, %s375
      %s377 = sphi 0, %s375
      %s378 = sphi 0, %s377
      %s392 = sphi 0, %s378
      %s396 = sphi 0, %s396
      %s398 = sphi 0, %s396
      %s399 = sphi 0, %s398
      %s413 = sphi 0, %s399
      %s417 = sphi 0, %s417
      %s419 = sphi 0, %s417
      %s420 = sphi 0, %s419
      %s434 = sphi 0, %s420
      %s438 = sphi 0, %s438
      %s440 = sphi 0, %s438
      %s441 = sphi 0, %s440
      %s455 = sphi 0, %s441
      %s459 = sphi 0, %s459
      %s461 = sphi 0, %s459
      %s462 = sphi 0, %s461
      %s476 = sphi 0, %s462
      %s480 = sphi 0, %s480
      %s482 = sphi 0, %s480
      %s483 = sphi 0, %s482
      %s497 = sphi 0, %s483
      %s501 = sphi 0, %s501
      %s503 = sphi 0, %s501
      %s504 = sphi 0, %s503
      %s518 = sphi 0, %s504
      %s524 = sphi 0, %s526
      %s527 = sphi 0, %s524
      %s528 = sphi 0, %s527
      %s544 = sphi 0, %s528
      %s550 = sphi 0, %s552
      %s553 = sphi 0, %s550
      %s554 = sphi 0, %s553
      %s570 = sphi 0, %s554
      %s576 = sphi 0, %s578
      %s579 = sphi 0, %s576
      %s580 = sphi 0, %s579
      %s596 = sphi 0, %s580
    $region4: #{bottleneck_transformer_layer.1} parent=1 // loop_header_branch
      %40 = sbr.rel (%p38) target = $region8
    $region5: #{bottleneck_transformer_layer.1} parent=1 // loop_body
      %s42 = ssub.s32 %s37, 1
      %s43 = ssub.s32 %s37, 2
      %s44 = sadd.s32 %s37, 1
      %s45 = ssub.s32 %s37, %s44
      %p46 = scmp.eq.s32.totalorder %s45, 0
      %s48 = sadd.s32 %s47, 1
      %s49 = scalar_select %p46, %s47, %s48
      %p52 = pneg %p46
      %p53 = scmp.eq.s32.totalorder %s37, 1
      %p54 = por %p52, %p53
      %p55 = scmp.ne.s32.totalorder %s47, %s50
      %p56 = scmp.eq.s32.totalorder %s37, 0
      %p57 = por %p55, %p56
      %p58 = scmp.ne.s32.totalorder %s47, %s50
      %p59 = scmp.eq.s32.totalorder %s42, 1
      %p60 = por %p58, %p59
      %p61 = scmp.ne.s32.totalorder %s50, %s51
      %p62 = scmp.eq.s32.totalorder %s42, 0
      %p63 = por %p61, %p62
      %p64 = scmp.ne.s32.totalorder %s50, %s51
      %p65 = scmp.eq.s32.totalorder %s43, 1
      %p66 = por %p64, %p65
      %p68 = scmp.ne.s32.totalorder %s51, %s67
      %p69 = scmp.eq.s32.totalorder %s43, 0
      %p70 = por %p68, %p69
      %s71 = ssub.s32 %s37, %s44
      %p72 = scmp.eq.s32.totalorder %s71, 0
      %s74 = sadd.s32 %s73, 1
      %s75 = scalar_select %p72, %s73, %s74
      %p78 = pneg %p72
      %p79 = scmp.eq.s32.totalorder %s37, 1
      %p80 = por %p78, %p79
      %p81 = scmp.ne.s32.totalorder %s73, %s76
      %p82 = scmp.eq.s32.totalorder %s37, 0
      %p83 = por %p81, %p82
      %p84 = scmp.ne.s32.totalorder %s73, %s76
      %p85 = scmp.eq.s32.totalorder %s42, 1
      %p86 = por %p84, %p85
      %p87 = scmp.ne.s32.totalorder %s76, %s77
      %p88 = scmp.eq.s32.totalorder %s42, 0
      %p89 = por %p87, %p88
      %p90 = scmp.ne.s32.totalorder %s76, %s77
      %p91 = scmp.eq.s32.totalorder %s43, 1
      %p92 = por %p90, %p91
      %p94 = scmp.ne.s32.totalorder %s77, %s93
      %p95 = scmp.eq.s32.totalorder %s43, 0
      %p96 = por %p94, %p95
      %s97 = ssub.s32 %s37, %s44
      %p98 = scmp.eq.s32.totalorder %s97, 0
      %s100 = sadd.s32 %s99, 1
      %s101 = scalar_select %p98, %s99, %s100
      %p104 = pneg %p98
      %p105 = scmp.eq.s32.totalorder %s37, 1
      %p106 = por %p104, %p105
      %p107 = scmp.ne.s32.totalorder %s99, %s102
      %p108 = scmp.eq.s32.totalorder %s37, 0
      %p109 = por %p107, %p108
      %p110 = scmp.ne.s32.totalorder %s99, %s102
      %p111 = scmp.eq.s32.totalorder %s42, 1
      %p112 = por %p110, %p111
      %p113 = scmp.ne.s32.totalorder %s102, %s103
      %p114 = scmp.eq.s32.totalorder %s42, 0
      %p115 = por %p113, %p114
      %p116 = scmp.ne.s32.totalorder %s102, %s103
      %p117 = scmp.eq.s32.totalorder %s43, 1
      %p118 = por %p116, %p117
      %p120 = scmp.ne.s32.totalorder %s103, %s119
      %p121 = scmp.eq.s32.totalorder %s43, 0
      %p122 = por %p120, %p121
      %s124 = sadd.s32 %s123, 1
      %p127 = scmp.eq.s32.totalorder %s37, 1
      %p128 = scmp.ne.s32.totalorder %s123, %s125
      %p129 = scmp.eq.s32.totalorder %s37, 0
      %p130 = por %p128, %p129
      %p131 = scmp.ne.s32.totalorder %s123, %s125
      %p132 = scmp.eq.s32.totalorder %s42, 1
      %p133 = por %p131, %p132
      %p134 = scmp.ne.s32.totalorder %s125, %s126
      %p135 = scmp.eq.s32.totalorder %s42, 0
      %p136 = por %p134, %p135
      %p137 = scmp.ne.s32.totalorder %s125, %s126
      %p138 = scmp.eq.s32.totalorder %s43, 1
      %p139 = por %p137, %p138
      %p141 = scmp.ne.s32.totalorder %s126, %s140
      %p142 = scmp.eq.s32.totalorder %s43, 0
      %p143 = por %p141, %p142
      %s145 = sadd.s32 %s144, 1
      %p148 = scmp.eq.s32.totalorder %s37, 1
      %p149 = scmp.ne.s32.totalorder %s144, %s146
      %p150 = scmp.eq.s32.totalorder %s37, 0
      %p151 = por %p149, %p150
      %p152 = scmp.ne.s32.totalorder %s144, %s146
      %p153 = scmp.eq.s32.totalorder %s42, 1
      %p154 = por %p152, %p153
      %p155 = scmp.ne.s32.totalorder %s146, %s147
      %p156 = scmp.eq.s32.totalorder %s42, 0
      %p157 = por %p155, %p156
      %p158 = scmp.ne.s32.totalorder %s146, %s147
      %p159 = scmp.eq.s32.totalorder %s43, 1
      %p160 = por %p158, %p159
      %p162 = scmp.ne.s32.totalorder %s147, %s161
      %p163 = scmp.eq.s32.totalorder %s43, 0
      %p164 = por %p162, %p163
      %s166 = sadd.s32 %s165, 1
      %p169 = scmp.eq.s32.totalorder %s37, 1
      %p170 = scmp.ne.s32.totalorder %s165, %s167
      %p171 = scmp.eq.s32.totalorder %s37, 0
      %p172 = por %p170, %p171
      %p173 = scmp.ne.s32.totalorder %s165, %s167
      %p174 = scmp.eq.s32.totalorder %s42, 1
      %p175 = por %p173, %p174
      %p176 = scmp.ne.s32.totalorder %s167, %s168
      %p177 = scmp.eq.s32.totalorder %s42, 0
      %p178 = por %p176, %p177
      %p179 = scmp.ne.s32.totalorder %s167, %s168
      %p180 = scmp.eq.s32.totalorder %s43, 1
      %p181 = por %p179, %p180
      %p183 = scmp.ne.s32.totalorder %s168, %s182
      %p184 = scmp.eq.s32.totalorder %s43, 0
      %p185 = por %p183, %p184
      %s187 = sadd.s32 %s186, 1
      %p190 = scmp.eq.s32.totalorder %s37, 1
      %p191 = scmp.ne.s32.totalorder %s186, %s188
      %p192 = scmp.eq.s32.totalorder %s37, 0
      %p193 = por %p191, %p192
      %p194 = scmp.ne.s32.totalorder %s186, %s188
      %p195 = scmp.eq.s32.totalorder %s42, 1
      %p196 = por %p194, %p195
      %p197 = scmp.ne.s32.totalorder %s188, %s189
      %p198 = scmp.eq.s32.totalorder %s42, 0
      %p199 = por %p197, %p198
      %p200 = scmp.ne.s32.totalorder %s188, %s189
      %p201 = scmp.eq.s32.totalorder %s43, 1
      %p202 = por %p200, %p201
      %p204 = scmp.ne.s32.totalorder %s189, %s203
      %p205 = scmp.eq.s32.totalorder %s43, 0
      %p206 = por %p204, %p205
      %s208 = sadd.s32 %s207, 1
      %p211 = scmp.eq.s32.totalorder %s37, 1
      %p212 = scmp.ne.s32.totalorder %s207, %s209
      %p213 = scmp.eq.s32.totalorder %s37, 0
      %p214 = por %p212, %p213
      %p215 = scmp.ne.s32.totalorder %s207, %s209
      %p216 = scmp.eq.s32.totalorder %s42, 1
      %p217 = por %p215, %p216
      %p218 = scmp.ne.s32.totalorder %s209, %s210
      %p219 = scmp.eq.s32.totalorder %s42, 0
      %p220 = por %p218, %p219
      %p221 = scmp.ne.s32.totalorder %s209, %s210
      %p222 = scmp.eq.s32.totalorder %s43, 1
      %p223 = por %p221, %p222
      %p225 = scmp.ne.s32.totalorder %s210, %s224
      %p226 = scmp.eq.s32.totalorder %s43, 0
      %p227 = por %p225, %p226
      %s229 = sadd.s32 %s228, 1
      %p232 = scmp.eq.s32.totalorder %s37, 1
      %p233 = scmp.ne.s32.totalorder %s228, %s230
      %p234 = scmp.eq.s32.totalorder %s37, 0
      %p235 = por %p233, %p234
      %p236 = scmp.ne.s32.totalorder %s228, %s230
      %p237 = scmp.eq.s32.totalorder %s42, 1
      %p238 = por %p236, %p237
      %p239 = scmp.ne.s32.totalorder %s230, %s231
      %p240 = scmp.eq.s32.totalorder %s42, 0
      %p241 = por %p239, %p240
      %p242 = scmp.ne.s32.totalorder %s230, %s231
      %p243 = scmp.eq.s32.totalorder %s43, 1
      %p244 = por %p242, %p243
      %p246 = scmp.ne.s32.totalorder %s231, %s245
      %p247 = scmp.eq.s32.totalorder %s43, 0
      %p248 = por %p246, %p247
      %s250 = sadd.s32 %s249, 1
      %p253 = scmp.eq.s32.totalorder %s37, 1
      %p254 = scmp.ne.s32.totalorder %s249, %s251
      %p255 = scmp.eq.s32.totalorder %s37, 0
      %p256 = por %p254, %p255
      %p257 = scmp.ne.s32.totalorder %s249, %s251
      %p258 = scmp.eq.s32.totalorder %s42, 1
      %p259 = por %p257, %p258
      %p260 = scmp.ne.s32.totalorder %s251, %s252
      %p261 = scmp.eq.s32.totalorder %s42, 0
      %p262 = por %p260, %p261
      %p263 = scmp.ne.s32.totalorder %s251, %s252
      %p264 = scmp.eq.s32.totalorder %s43, 1
      %p265 = por %p263, %p264
      %p267 = scmp.ne.s32.totalorder %s252, %s266
      %p268 = scmp.eq.s32.totalorder %s43, 0
      %p269 = por %p267, %p268
      %s271 = sadd.s32 %s270, 1
      %p274 = scmp.eq.s32.totalorder %s37, 1
      %p275 = scmp.ne.s32.totalorder %s270, %s272
      %p276 = scmp.eq.s32.totalorder %s37, 0
      %p277 = por %p275, %p276
      %p278 = scmp.ne.s32.totalorder %s270, %s272
      %p279 = scmp.eq.s32.totalorder %s42, 1
      %p280 = por %p278, %p279
      %p281 = scmp.ne.s32.totalorder %s272, %s273
      %p282 = scmp.eq.s32.totalorder %s42, 0
      %p283 = por %p281, %p282
      %p284 = scmp.ne.s32.totalorder %s272, %s273
      %p285 = scmp.eq.s32.totalorder %s43, 1
      %p286 = por %p284, %p285
      %p288 = scmp.ne.s32.totalorder %s273, %s287
      %p289 = scmp.eq.s32.totalorder %s43, 0
      %p290 = por %p288, %p289
      %s292 = sadd.s32 %s291, 1
      %p295 = scmp.eq.s32.totalorder %s37, 1
      %p296 = scmp.ne.s32.totalorder %s291, %s293
      %p297 = scmp.eq.s32.totalorder %s37, 0
      %p298 = por %p296, %p297
      %p299 = scmp.ne.s32.totalorder %s291, %s293
      %p300 = scmp.eq.s32.totalorder %s42, 1
      %p301 = por %p299, %p300
      %p302 = scmp.ne.s32.totalorder %s293, %s294
      %p303 = scmp.eq.s32.totalorder %s42, 0
      %p304 = por %p302, %p303
      %p305 = scmp.ne.s32.totalorder %s293, %s294
      %p306 = scmp.eq.s32.totalorder %s43, 1
      %p307 = por %p305, %p306
      %p309 = scmp.ne.s32.totalorder %s294, %s308
      %p310 = scmp.eq.s32.totalorder %s43, 0
      %p311 = por %p309, %p310
      %s313 = sadd.s32 %s312, 1
      %p316 = scmp.eq.s32.totalorder %s37, 1
      %p317 = scmp.ne.s32.totalorder %s312, %s314
      %p318 = scmp.eq.s32.totalorder %s37, 0
      %p319 = por %p317, %p318
      %p320 = scmp.ne.s32.totalorder %s312, %s314
      %p321 = scmp.eq.s32.totalorder %s42, 1
      %p322 = por %p320, %p321
      %p323 = scmp.ne.s32.totalorder %s314, %s315
      %p324 = scmp.eq.s32.totalorder %s42, 0
      %p325 = por %p323, %p324
      %p326 = scmp.ne.s32.totalorder %s314, %s315
      %p327 = scmp.eq.s32.totalorder %s43, 1
      %p328 = por %p326, %p327
      %p330 = scmp.ne.s32.totalorder %s315, %s329
      %p331 = scmp.eq.s32.totalorder %s43, 0
      %p332 = por %p330, %p331
      %s334 = sadd.s32 %s333, 1
      %p337 = scmp.eq.s32.totalorder %s37, 1
      %p338 = scmp.ne.s32.totalorder %s333, %s335
      %p339 = scmp.eq.s32.totalorder %s37, 0
      %p340 = por %p338, %p339
      %p341 = scmp.ne.s32.totalorder %s333, %s335
      %p342 = scmp.eq.s32.totalorder %s42, 1
      %p343 = por %p341, %p342
      %p344 = scmp.ne.s32.totalorder %s335, %s336
      %p345 = scmp.eq.s32.totalorder %s42, 0
      %p346 = por %p344, %p345
      %p347 = scmp.ne.s32.totalorder %s335, %s336
      %p348 = scmp.eq.s32.totalorder %s43, 1
      %p349 = por %p347, %p348
      %p351 = scmp.ne.s32.totalorder %s336, %s350
      %p352 = scmp.eq.s32.totalorder %s43, 0
      %p353 = por %p351, %p352
      %s355 = sadd.s32 %s354, 1
      %p358 = scmp.eq.s32.totalorder %s37, 1
      %p359 = scmp.ne.s32.totalorder %s354, %s356
      %p360 = scmp.eq.s32.totalorder %s37, 0
      %p361 = por %p359, %p360
      %p362 = scmp.ne.s32.totalorder %s354, %s356
      %p363 = scmp.eq.s32.totalorder %s42, 1
      %p364 = por %p362, %p363
      %p365 = scmp.ne.s32.totalorder %s356, %s357
      %p366 = scmp.eq.s32.totalorder %s42, 0
      %p367 = por %p365, %p366
      %p368 = scmp.ne.s32.totalorder %s356, %s357
      %p369 = scmp.eq.s32.totalorder %s43, 1
      %p370 = por %p368, %p369
      %p372 = scmp.ne.s32.totalorder %s357, %s371
      %p373 = scmp.eq.s32.totalorder %s43, 0
      %p374 = por %p372, %p373
      %s376 = sadd.s32 %s375, 1
      %p379 = scmp.eq.s32.totalorder %s37, 1
      %p380 = scmp.ne.s32.totalorder %s375, %s377
      %p381 = scmp.eq.s32.totalorder %s37, 0
      %p382 = por %p380, %p381
      %p383 = scmp.ne.s32.totalorder %s375, %s377
      %p384 = scmp.eq.s32.totalorder %s42, 1
      %p385 = por %p383, %p384
      %p386 = scmp.ne.s32.totalorder %s377, %s378
      %p387 = scmp.eq.s32.totalorder %s42, 0
      %p388 = por %p386, %p387
      %p389 = scmp.ne.s32.totalorder %s377, %s378
      %p390 = scmp.eq.s32.totalorder %s43, 1
      %p391 = por %p389, %p390
      %p393 = scmp.ne.s32.totalorder %s378, %s392
      %p394 = scmp.eq.s32.totalorder %s43, 0
      %p395 = por %p393, %p394
      %s397 = sadd.s32 %s396, 1
      %p400 = scmp.eq.s32.totalorder %s37, 1
      %p401 = scmp.ne.s32.totalorder %s396, %s398
      %p402 = scmp.eq.s32.totalorder %s37, 0
      %p403 = por %p401, %p402
      %p404 = scmp.ne.s32.totalorder %s396, %s398
      %p405 = scmp.eq.s32.totalorder %s42, 1
      %p406 = por %p404, %p405
      %p407 = scmp.ne.s32.totalorder %s398, %s399
      %p408 = scmp.eq.s32.totalorder %s42, 0
      %p409 = por %p407, %p408
      %p410 = scmp.ne.s32.totalorder %s398, %s399
      %p411 = scmp.eq.s32.totalorder %s43, 1
      %p412 = por %p410, %p411
      %p414 = scmp.ne.s32.totalorder %s399, %s413
      %p415 = scmp.eq.s32.totalorder %s43, 0
      %p416 = por %p414, %p415
      %s418 = sadd.s32 %s417, 1
      %p421 = scmp.eq.s32.totalorder %s37, 1
      %p422 = scmp.ne.s32.totalorder %s417, %s419
      %p423 = scmp.eq.s32.totalorder %s37, 0
      %p424 = por %p422, %p423
      %p425 = scmp.ne.s32.totalorder %s417, %s419
      %p426 = scmp.eq.s32.totalorder %s42, 1
      %p427 = por %p425, %p426
      %p428 = scmp.ne.s32.totalorder %s419, %s420
      %p429 = scmp.eq.s32.totalorder %s42, 0
      %p430 = por %p428, %p429
      %p431 = scmp.ne.s32.totalorder %s419, %s420
      %p432 = scmp.eq.s32.totalorder %s43, 1
      %p433 = por %p431, %p432
      %p435 = scmp.ne.s32.totalorder %s420, %s434
      %p436 = scmp.eq.s32.totalorder %s43, 0
      %p437 = por %p435, %p436
      %s439 = sadd.s32 %s438, 1
      %p442 = scmp.eq.s32.totalorder %s37, 1
      %p443 = scmp.ne.s32.totalorder %s438, %s440
      %p444 = scmp.eq.s32.totalorder %s37, 0
      %p445 = por %p443, %p444
      %p446 = scmp.ne.s32.totalorder %s438, %s440
      %p447 = scmp.eq.s32.totalorder %s42, 1
      %p448 = por %p446, %p447
      %p449 = scmp.ne.s32.totalorder %s440, %s441
      %p450 = scmp.eq.s32.totalorder %s42, 0
      %p451 = por %p449, %p450
      %p452 = scmp.ne.s32.totalorder %s440, %s441
      %p453 = scmp.eq.s32.totalorder %s43, 1
      %p454 = por %p452, %p453
      %p456 = scmp.ne.s32.totalorder %s441, %s455
      %p457 = scmp.eq.s32.totalorder %s43, 0
      %p458 = por %p456, %p457
      %s460 = sadd.s32 %s459, 1
      %p463 = scmp.eq.s32.totalorder %s37, 1
      %p464 = scmp.ne.s32.totalorder %s459, %s461
      %p465 = scmp.eq.s32.totalorder %s37, 0
      %p466 = por %p464, %p465
      %p467 = scmp.ne.s32.totalorder %s459, %s461
      %p468 = scmp.eq.s32.totalorder %s42, 1
      %p469 = por %p467, %p468
      %p470 = scmp.ne.s32.totalorder %s461, %s462
      %p471 = scmp.eq.s32.totalorder %s42, 0
      %p472 = por %p470, %p471
      %p473 = scmp.ne.s32.totalorder %s461, %s462
      %p474 = scmp.eq.s32.totalorder %s43, 1
      %p475 = por %p473, %p474
      %p477 = scmp.ne.s32.totalorder %s462, %s476
      %p478 = scmp.eq.s32.totalorder %s43, 0
      %p479 = por %p477, %p478
      %s481 = sadd.s32 %s480, 1
      %p484 = scmp.eq.s32.totalorder %s37, 1
      %p485 = scmp.ne.s32.totalorder %s480, %s482
      %p486 = scmp.eq.s32.totalorder %s37, 0
      %p487 = por %p485, %p486
      %p488 = scmp.ne.s32.totalorder %s480, %s482
      %p489 = scmp.eq.s32.totalorder %s42, 1
      %p490 = por %p488, %p489
      %p491 = scmp.ne.s32.totalorder %s482, %s483
      %p492 = scmp.eq.s32.totalorder %s42, 0
      %p493 = por %p491, %p492
      %p494 = scmp.ne.s32.totalorder %s482, %s483
      %p495 = scmp.eq.s32.totalorder %s43, 1
      %p496 = por %p494, %p495
      %p498 = scmp.ne.s32.totalorder %s483, %s497
      %p499 = scmp.eq.s32.totalorder %s43, 0
      %p500 = por %p498, %p499
      %s502 = sadd.s32 %s501, 1
      %p505 = scmp.eq.s32.totalorder %s37, 1
      %p506 = scmp.ne.s32.totalorder %s501, %s503
      %p507 = scmp.eq.s32.totalorder %s37, 0
      %p508 = por %p506, %p507
      %p509 = scmp.ne.s32.totalorder %s501, %s503
      %p510 = scmp.eq.s32.totalorder %s42, 1
      %p511 = por %p509, %p510
      %p512 = scmp.ne.s32.totalorder %s503, %s504
      %p513 = scmp.eq.s32.totalorder %s42, 0
      %p514 = por %p512, %p513
      %p515 = scmp.ne.s32.totalorder %s503, %s504
      %p516 = scmp.eq.s32.totalorder %s43, 1
      %p517 = por %p515, %p516
      %p519 = scmp.ne.s32.totalorder %s504, %s518
      %p520 = scmp.eq.s32.totalorder %s43, 0
      %p521 = por %p519, %p520
      %s522 = ssub.s32 %s37, %s44
      %p523 = scmp.eq.s32.totalorder %s522, 0
      %s525 = sadd.s32 %s524, 1
      %s526 = scalar_select %p523, %s524, %s525
      %p529 = pneg %p523
      %p530 = scmp.eq.s32.totalorder %s37, 1
      %p531 = por %p529, %p530
      %p532 = scmp.ne.s32.totalorder %s524, %s527
      %p533 = scmp.eq.s32.totalorder %s37, 0
      %p534 = por %p532, %p533
      %p535 = scmp.ne.s32.totalorder %s524, %s527
      %p536 = scmp.eq.s32.totalorder %s42, 1
      %p537 = por %p535, %p536
      %p538 = scmp.ne.s32.totalorder %s527, %s528
      %p539 = scmp.eq.s32.totalorder %s42, 0
      %p540 = por %p538, %p539
      %p541 = scmp.ne.s32.totalorder %s527, %s528
      %p542 = scmp.eq.s32.totalorder %s43, 1
      %p543 = por %p541, %p542
      %p545 = scmp.ne.s32.totalorder %s528, %s544
      %p546 = scmp.eq.s32.totalorder %s43, 0
      %p547 = por %p545, %p546
      %s548 = ssub.s32 %s37, %s44
      %p549 = scmp.eq.s32.totalorder %s548, 0
      %s551 = sadd.s32 %s550, 1
      %s552 = scalar_select %p549, %s550, %s551
      %p555 = pneg %p549
      %p556 = scmp.eq.s32.totalorder %s37, 1
      %p557 = por %p555, %p556
      %p558 = scmp.ne.s32.totalorder %s550, %s553
      %p559 = scmp.eq.s32.totalorder %s37, 0
      %p560 = por %p558, %p559
      %p561 = scmp.ne.s32.totalorder %s550, %s553
      %p562 = scmp.eq.s32.totalorder %s42, 1
      %p563 = por %p561, %p562
      %p564 = scmp.ne.s32.totalorder %s553, %s554
      %p565 = scmp.eq.s32.totalorder %s42, 0
      %p566 = por %p564, %p565
      %p567 = scmp.ne.s32.totalorder %s553, %s554
      %p568 = scmp.eq.s32.totalorder %s43, 1
      %p569 = por %p567, %p568
      %p571 = scmp.ne.s32.totalorder %s554, %s570
      %p572 = scmp.eq.s32.totalorder %s43, 0
      %p573 = por %p571, %p572
      %s574 = ssub.s32 %s37, %s44
      %p575 = scmp.eq.s32.totalorder %s574, 0
      %s577 = sadd.s32 %s576, 1
      %s578 = scalar_select %p575, %s576, %s577
      %p581 = pneg %p575
      %p582 = scmp.eq.s32.totalorder %s37, 1
      %p583 = por %p581, %p582
      %p584 = scmp.ne.s32.totalorder %s576, %s579
      %p585 = scmp.eq.s32.totalorder %s37, 0
      %p586 = por %p584, %p585
      %p587 = scmp.ne.s32.totalorder %s576, %s579
      %p588 = scmp.eq.s32.totalorder %s42, 1
      %p589 = por %p587, %p588
      %p590 = scmp.ne.s32.totalorder %s579, %s580
      %p591 = scmp.eq.s32.totalorder %s42, 0
      %p592 = por %p590, %p591
      %p593 = scmp.ne.s32.totalorder %s579, %s580
      %p594 = scmp.eq.s32.totalorder %s43, 1
      %p595 = por %p593, %p594
      %p597 = scmp.ne.s32.totalorder %s580, %s596
      %p598 = scmp.eq.s32.totalorder %s43, 0
      %p599 = por %p597, %p598
      %p600 = scmp.le.s32.totalorder 1, %s37
      %p601 = scmp.lt.s32.totalorder %s37, 3
      %p602 = pnand %p600, %p601
      %p603 = pneg %p602
      // Predicated region
      $region9: #{bottleneck_transformer_layer.1} parent=5 // pred_check
        _
      $region10: #{bottleneck_transformer_layer.1} parent=5 // pred_check_branch
        %605 = sbr.rel (%p602) target = $region12
      $region11: #{bottleneck_transformer_layer.1} parent=5 // pred_region
        %s606 = ssub.s32 %s37, 1
        // Predicated region
        $region13: #{bottleneck_transformer_layer.1} parent=11 // pred_check
          %p607 = pneg %p136
        $region14: #{bottleneck_transformer_layer.1} parent=11 // pred_check_branch
          %609 = sbr.rel (%p607) target = $region16
        $region15: #{bottleneck_transformer_layer.1} parent=11 // pred_region
          _
        $region16: #{bottleneck_transformer_layer.1} parent=11 // pred_fallthru
          _
        // Predicated region
        $region17: #{bottleneck_transformer_layer.1} parent=11 // pred_check
          %p610 = pneg %p157
        $region18: #{bottleneck_transformer_layer.1} parent=11 // pred_check_branch
          %612 = sbr.rel (%p610) target = $region20
        $region19: #{bottleneck_transformer_layer.1} parent=11 // pred_region
          _
        $region20: #{bottleneck_transformer_layer.1} parent=11 // pred_fallthru
          _
        // Predicated region
        $region21: #{bottleneck_transformer_layer.1} parent=11 // pred_check
          %p613 = pneg %p178
        $region22: #{bottleneck_transformer_layer.1} parent=11 // pred_check_branch
          %615 = sbr.rel (%p613) target = $region24
        $region23: #{bottleneck_transformer_layer.1} parent=11 // pred_region
          _
        $region24: #{bottleneck_transformer_layer.1} parent=11 // pred_fallthru
          _
        // Predicated region
        $region25: #{bottleneck_transformer_layer.1} parent=11 // pred_check
          %p616 = pneg %p199
        $region26: #{bottleneck_transformer_layer.1} parent=11 // pred_check_branch
          %618 = sbr.rel (%p616) target = $region28
        $region27: #{bottleneck_transformer_layer.1} parent=11 // pred_region
          _
        $region28: #{bottleneck_transformer_layer.1} parent=11 // pred_fallthru
          _
        // Predicated region
        $region29: #{bottleneck_transformer_layer.1} parent=11 // pred_check
          %p619 = pneg %p220
        $region30: #{bottleneck_transformer_layer.1} parent=11 // pred_check_branch
          %621 = sbr.rel (%p619) target = $region32
        $region31: #{bottleneck_transformer_layer.1} parent=11 // pred_region
          _
        $region32: #{bottleneck_transformer_layer.1} parent=11 // pred_fallthru
          _
        // Predicated region
        $region33: #{bottleneck_transformer_layer.1} parent=11 // pred_check
          %p622 = pneg %p241
        $region34: #{bottleneck_transformer_layer.1} parent=11 // pred_check_branch
          %624 = sbr.rel (%p622) target = $region36
        $region35: #{bottleneck_transformer_layer.1} parent=11 // pred_region
          _
        $region36: #{bottleneck_transformer_layer.1} parent=11 // pred_fallthru
          _
        // Predicated region
        $region37: #{bottleneck_transformer_layer.1} parent=11 // pred_check
          %p625 = pneg %p262
        $region38: #{bottleneck_transformer_layer.1} parent=11 // pred_check_branch
          %627 = sbr.rel (%p625) target = $region40
        $region39: #{bottleneck_transformer_layer.1} parent=11 // pred_region
          _
        $region40: #{bottleneck_transformer_layer.1} parent=11 // pred_fallthru
          _
        // Predicated region
        $region41: #{bottleneck_transformer_layer.1} parent=11 // pred_check
          %p628 = pneg %p283
        $region42: #{bottleneck_transformer_layer.1} parent=11 // pred_check_branch
          %630 = sbr.rel (%p628) target = $region44
        $region43: #{bottleneck_transformer_layer.1} parent=11 // pred_region
          _
        $region44: #{bottleneck_transformer_layer.1} parent=11 // pred_fallthru
          _
        // Predicated region
        $region45: #{bottleneck_transformer_layer.1} parent=11 // pred_check
          %p631 = pneg %p304
        $region46: #{bottleneck_transformer_layer.1} parent=11 // pred_check_branch
          %633 = sbr.rel (%p631) target = $region48
        $region47: #{bottleneck_transformer_layer.1} parent=11 // pred_region
          _
        $region48: #{bottleneck_transformer_layer.1} parent=11 // pred_fallthru
          _
        // Predicated region
        $region49: #{bottleneck_transformer_layer.1} parent=11 // pred_check
          %p634 = pneg %p325
        $region50: #{bottleneck_transformer_layer.1} parent=11 // pred_check_branch
          %636 = sbr.rel (%p634) target = $region52
        $region51: #{bottleneck_transformer_layer.1} parent=11 // pred_region
          _
        $region52: #{bottleneck_transformer_layer.1} parent=11 // pred_fallthru
          _
        // Predicated region
        $region53: #{bottleneck_transformer_layer.1} parent=11 // pred_check
          %p637 = pneg %p346
        $region54: #{bottleneck_transformer_layer.1} parent=11 // pred_check_branch
          %639 = sbr.rel (%p637) target = $region56
        $region55: #{bottleneck_transformer_layer.1} parent=11 // pred_region
          _
        $region56: #{bottleneck_transformer_layer.1} parent=11 // pred_fallthru
          _
        // Predicated region
        $region57: #{bottleneck_transformer_layer.1} parent=11 // pred_check
          %p640 = pneg %p367
        $region58: #{bottleneck_transformer_layer.1} parent=11 // pred_check_branch
          %642 = sbr.rel (%p640) target = $region60
        $region59: #{bottleneck_transformer_layer.1} parent=11 // pred_region
          _
        $region60: #{bottleneck_transformer_layer.1} parent=11 // pred_fallthru
          _
        // Predicated region
        $region61: #{bottleneck_transformer_layer.1} parent=11 // pred_check
          %p643 = pneg %p388
        $region62: #{bottleneck_transformer_layer.1} parent=11 // pred_check_branch
          %645 = sbr.rel (%p643) target = $region64
        $region63: #{bottleneck_transformer_layer.1} parent=11 // pred_region
          _
        $region64: #{bottleneck_transformer_layer.1} parent=11 // pred_fallthru
          _
        // Predicated region
        $region65: #{bottleneck_transformer_layer.1} parent=11 // pred_check
          %p646 = pneg %p409
        $region66: #{bottleneck_transformer_layer.1} parent=11 // pred_check_branch
          %648 = sbr.rel (%p646) target = $region68
        $region67: #{bottleneck_transformer_layer.1} parent=11 // pred_region
          _
        $region68: #{bottleneck_transformer_layer.1} parent=11 // pred_fallthru
          _
        // Predicated region
        $region69: #{bottleneck_transformer_layer.1} parent=11 // pred_check
          %p649 = pneg %p430
        $region70: #{bottleneck_transformer_layer.1} parent=11 // pred_check_branch
          %651 = sbr.rel (%p649) target = $region72
        $region71: #{bottleneck_transformer_layer.1} parent=11 // pred_region
          _
        $region72: #{bottleneck_transformer_layer.1} parent=11 // pred_fallthru
          _
        // Predicated region
        $region73: #{bottleneck_transformer_layer.1} parent=11 // pred_check
          %p652 = pneg %p451
        $region74: #{bottleneck_transformer_layer.1} parent=11 // pred_check_branch
          %654 = sbr.rel (%p652) target = $region76
        $region75: #{bottleneck_transformer_layer.1} parent=11 // pred_region
          _
        $region76: #{bottleneck_transformer_layer.1} parent=11 // pred_fallthru
          _
        // Predicated region
        $region77: #{bottleneck_transformer_layer.1} parent=11 // pred_check
          %p655 = pneg %p472
        $region78: #{bottleneck_transformer_layer.1} parent=11 // pred_check_branch
          %657 = sbr.rel (%p655) target = $region80
        $region79: #{bottleneck_transformer_layer.1} parent=11 // pred_region
          _
        $region80: #{bottleneck_transformer_layer.1} parent=11 // pred_fallthru
          _
        // Predicated region
        $region81: #{bottleneck_transformer_layer.1} parent=11 // pred_check
          %p658 = pneg %p493
        $region82: #{bottleneck_transformer_layer.1} parent=11 // pred_check_branch
          %660 = sbr.rel (%p658) target = $region84
        $region83: #{bottleneck_transformer_layer.1} parent=11 // pred_region
          _
        $region84: #{bottleneck_transformer_layer.1} parent=11 // pred_fallthru
          _
        // Predicated region
        $region85: #{bottleneck_transformer_layer.1} parent=11 // pred_check
          %p661 = pneg %p514
        $region86: #{bottleneck_transformer_layer.1} parent=11 // pred_check_branch
          %663 = sbr.rel (%p661) target = $region88
        $region87: #{bottleneck_transformer_layer.1} parent=11 // pred_region
          _
        $region88: #{bottleneck_transformer_layer.1} parent=11 // pred_fallthru
          _
      $region12: #{bottleneck_transformer_layer.1} parent=5 // pred_fallthru
        _
      %p664 = scmp.lt.s32.totalorder %s37, 2
      // Predicated region
      $region89: #{bottleneck_transformer_layer.1} parent=5 // pred_check
        %p665 = pneg %p664
      $region90: #{bottleneck_transformer_layer.1} parent=5 // pred_check_branch
        %667 = sbr.rel (%p665) target = $region92
      $region91: #{bottleneck_transformer_layer.1} parent=5 // pred_region
        // Predicated region
        $region93: #{bottleneck_transformer_layer.1} parent=91 // pred_check
          %p668 = pneg %p57
        $region94: #{bottleneck_transformer_layer.1} parent=91 // pred_check_branch
          %670 = sbr.rel (%p668) target = $region96
        $region95: #{bottleneck_transformer_layer.1} parent=91 // pred_region
          %p671 = scmp.lt.s32.totalorder %s37, 1
          %s672 = scalar_select %p671, %s37, 1
          %s673 = smul.addr %s672, 2
          %s674 = smul.addr %s673, 8
          %s675 = scalar_lea.vmem %s0, %s674
        $region96: #{bottleneck_transformer_layer.1} parent=91 // pred_fallthru
          _
        // Predicated region
        $region97: #{bottleneck_transformer_layer.1} parent=91 // pred_check
          %p676 = pneg %p83
        $region98: #{bottleneck_transformer_layer.1} parent=91 // pred_check_branch
          %678 = sbr.rel (%p676) target = $region100
        $region99: #{bottleneck_transformer_layer.1} parent=91 // pred_region
          %p679 = scmp.lt.s32.totalorder %s37, 1
          %s680 = scalar_select %p679, %s37, 1
          %s681 = smul.addr %s680, 2
          %s682 = smul.addr %s681, 8
          %s683 = scalar_lea.vmem %s1, %s682
        $region100: #{bottleneck_transformer_layer.1} parent=91 // pred_fallthru
          _
        // Predicated region
        $region101: #{bottleneck_transformer_layer.1} parent=91 // pred_check
          %p684 = pneg %p109
        $region102: #{bottleneck_transformer_layer.1} parent=91 // pred_check_branch
          %686 = sbr.rel (%p684) target = $region104
        $region103: #{bottleneck_transformer_layer.1} parent=91 // pred_region
          %p687 = scmp.lt.s32.totalorder %s37, 1
          %s688 = scalar_select %p687, %s37, 1
          %s689 = smul.addr %s688, 8
          %s690 = scalar_lea.vmem %s2, %s689
        $region104: #{bottleneck_transformer_layer.1} parent=91 // pred_fallthru
          _
      $region92: #{bottleneck_transformer_layer.1} parent=5 // pred_fallthru
        _
      %p691 = scmp.le.s32.totalorder 1, %s37
      %p692 = scmp.lt.s32.totalorder %s37, 3
      %p693 = pnand %p691, %p692
      %p694 = pneg %p693
      // Predicated region
      $region105: #{bottleneck_transformer_layer.1} parent=5 // pred_check
        _
      $region106: #{bottleneck_transformer_layer.1} parent=5 // pred_check_branch
        %696 = sbr.rel (%p693) target = $region108
      $region107: #{bottleneck_transformer_layer.1} parent=5 // pred_region
        %s697 = ssub.s32 %s37, 1
        %p698 = scmp.lt.s32.totalorder %s42, 1
        %s699 = scalar_select %p698, %s42, 1
        %s700 = smul.addr %s699, 2
        %s701 = smul.addr %s700, 8
        %s702 = scalar_lea.vmem %s0, %s701
        %p703 = pneg %p63
        %p704 = pneg %p60
        %p705 = scmp.lt.s32.totalorder %s42, 1
        %s706 = scalar_select %p705, %s42, 1
        %s707 = smul.addr %s706, 2
        %s708 = smul.addr %s707, 8
        %s709 = scalar_lea.vmem %s1, %s708
        %p710 = pneg %p89
        %p711 = pneg %p86
        %p712 = scmp.lt.s32.totalorder %s42, 1
        %s713 = scalar_select %p712, %s42, 1
        %s714 = smul.addr %s713, 8
        %s715 = scalar_lea.vmem %s2, %s714
        %p716 = pneg %p115
        %p717 = pneg %p112
        %p718 = pneg %p136
        %p719 = pneg %p133
        %p720 = pneg %p157
        %p721 = pneg %p154
        %p722 = pneg %p178
        %p723 = pneg %p175
        %p724 = pneg %p199
        %p725 = pneg %p196
        %p726 = pneg %p220
        %p727 = pneg %p217
        %p728 = pneg %p241
        %p729 = pneg %p238
        %p730 = pneg %p262
        %p731 = pneg %p259
        %p732 = pneg %p283
        %p733 = pneg %p280
        %p734 = pneg %p304
        %p735 = pneg %p301
        %p736 = pneg %p325
        %p737 = pneg %p322
        %p738 = pneg %p346
        %p739 = pneg %p343
        %p740 = pneg %p367
        %p741 = pneg %p364
        %p742 = pneg %p388
        %p743 = pneg %p385
        %p744 = pneg %p409
        %p745 = pneg %p406
        %p746 = pneg %p430
        %p747 = pneg %p427
        %p748 = pneg %p451
        %p749 = pneg %p448
        %p750 = pneg %p472
        %p751 = pneg %p469
        %p752 = pneg %p493
        %p753 = pneg %p490
        %p754 = pneg %p514
        %p755 = pneg %p511
        %p756 = pneg %p540
        %p757 = pneg %p537
        %s758 = sand.u32 %s527, 1
        %s759 = scalar_lea.sflag [#allocation3], %s758
        %s760 = sand.u32 %s527, 1
        %s761 = smul.addr %s760, 16
        %s762 = scalar_lea.vmem [#allocation2], %s761
        %p763 = pneg %p566
        %p764 = pneg %p563
        %s765 = sand.u32 %s42, 1
        %s766 = scalar_lea.sflag [#allocation5], %s765
        %s767 = sand.u32 %s553, 1
        %s768 = smul.addr %s767, 16
        %s769 = scalar_lea.vmem [#allocation4], %s768
        %p770 = pneg %p592
        %p771 = pneg %p589
        %s772 = sand.u32 %s42, 1
        %s773 = scalar_lea.sflag [#allocation5], %s772
        %s774 = sand.u32 %s579, 1
        %s775 = smul.addr %s774, 8
        %s776 = scalar_lea.vmem [#allocation6], %s775
        %p777 = scmp.lt.s32.totalorder %s42, 1
        %s778 = scalar_select %p777, %s42, 1
        %s779 = smul.addr %s778, 2
        %s780 = smul.addr %s779, 8
        %s781 = scalar_lea.vmem %s0, %s780
        %p782 = scmp.lt.s32.totalorder %s42, 1
        %s783 = scalar_select %p782, %s42, 1
        %s784 = smul.addr %s783, 2
        %s785 = smul.addr %s784, 8
        %s786 = scalar_lea.vmem %s1, %s785
        %p787 = scmp.lt.s32.totalorder %s42, 1
        %s788 = scalar_select %p787, %s42, 1
        %s789 = smul.addr %s788, 8
        %s790 = scalar_lea.vmem %s2, %s789
        %v791 = vld [vmem:[%s781] sm:$0xff]
        %v792 = vld [vmem:[%s781 + $0x8] sm:$0xff]
        %v793 = vld [vmem:[%s786] sm:$0xff]
        %v794 = vld [vmem:[%s786 + $0x8] sm:$0xff]
        %v795 = vld [vmem:[%s790] sm:$0xff]
        %v796 = vld [vmem:[%s3] sm:$0xff]
        %v797 = vld [vmem:[%s3 + $0x8] sm:$0xff]
        %vm798 = vcmask 261120
        %v799 = vsel %vm798, %v791, 0.0
        %800 = vadd.xlane.f32.xlu0 %v799
        %v801 = vpop.xlane.xlu0 %800
        %v802 = vsel %vm798, %v792, 0.0
        %803 = vadd.xlane.f32.xlu0 %v802
        %v804 = vpop.xlane.xlu0 %803
        %v805 = vrcp.pop 32.0
        %v806 = vmul.f32 %v801, %v805
        %v807 = vmul.f32 %v804, %v805
        %v808 = vsub.f32 %v791, %v806
        %v809 = vsub.f32 %v792, %v807
        %v810 = vmul.f32 %v808, %v808
        %v811 = vmul.f32 %v809, %v809
        %v812 = vsel %vm798, %v810, 0.0
        %813 = vadd.xlane.f32.xlu0 %v812
        %v814 = vpop.xlane.xlu0 %813
        %v815 = vsel %vm798, %v811, 0.0
        %816 = vadd.xlane.f32.xlu0 %v815
        %v817 = vpop.xlane.xlu0 %816
        %v818 = vmul.f32 %v814, %v805
        %v819 = vmul.f32 %v817, %v805
        %v820 = vadd.f32 %v818, 1e-05
        %v821 = vadd.f32 %v819, 1e-05
        %v822 = vrsqrt.pop %v820
        %v823 = vrsqrt.pop %v821
        %v824 = vmul.f32 %v808, %v822
        %v825 = vmul.f32 %v809, %v823
        %v826 = vld [vmem:[%s4] sm:$0x1]
        %v827 = vlaneseq
        %v828 = vshrl.u32 %v827, 7
        %v829 = vsub.s32 0, %v828
        %v830 = vrot.slane %v826, %v829
        %v831 = vmul.f32 %v824, %v830
        %v832 = vmul.f32 %v825, %v830
        %v833 = vld [vmem:[%s5] sm:$0x1]
        %v834 = vlaneseq
        %v835 = vshrl.u32 %v834, 7
        %v836 = vsub.s32 0, %v835
        %v837 = vrot.slane %v833, %v836
        %v838 = vadd.f32 %v831, %v837
        %v839 = vadd.f32 %v832, %v837
        %v840 = vsel %vm798, %v793, 0.0
        %841 = vadd.xlane.f32.xlu0 %v840
        %v842 = vpop.xlane.xlu0 %841
        %v843 = vsel %vm798, %v794, 0.0
        %844 = vadd.xlane.f32.xlu0 %v843
        %v845 = vpop.xlane.xlu0 %844
        %v846 = vmul.f32 %v842, %v805
        %v847 = vmul.f32 %v845, %v805
        %v848 = vsub.f32 %v793, %v846
        %v849 = vsub.f32 %v794, %v847
        %v850 = vmul.f32 %v848, %v848
        %v851 = vmul.f32 %v849, %v849
        %v852 = vsel %vm798, %v850, 0.0
        %853 = vadd.xlane.f32.xlu0 %v852
        %v854 = vpop.xlane.xlu0 %853
        %v855 = vsel %vm798, %v851, 0.0
        %856 = vadd.xlane.f32.xlu0 %v855
        %v857 = vpop.xlane.xlu0 %856
        %v858 = vmul.f32 %v854, %v805
        %v859 = vmul.f32 %v857, %v805
        %v860 = vadd.f32 %v858, 1e-05
        %v861 = vadd.f32 %v859, 1e-05
        %v862 = vrsqrt.pop %v860
        %v863 = vrsqrt.pop %v861
        %v864 = vmul.f32 %v848, %v862
        %v865 = vmul.f32 %v849, %v863
        %v866 = vld [vmem:[%s4 + $0x1] sm:$0x1]
        %v867 = vlaneseq
        %v868 = vshrl.u32 %v867, 7
        %v869 = vsub.s32 0, %v868
        %v870 = vrot.slane %v866, %v869
        %v871 = vmul.f32 %v864, %v870
        %v872 = vmul.f32 %v865, %v870
        %v873 = vld [vmem:[%s5 + $0x1] sm:$0x1]
        %v874 = vlaneseq
        %v875 = vshrl.u32 %v874, 7
        %v876 = vsub.s32 0, %v875
        %v877 = vrot.slane %v873, %v876
        %v878 = vadd.f32 %v871, %v877
        %v879 = vadd.f32 %v872, %v877
        %v880 = vsel %vm798, %v795, 0.0
        %881 = vadd.xlane.f32.xlu0 %v880
        %v882 = vpop.xlane.xlu0 %881
        %v883 = vmul.f32 %v882, %v805
        %v884 = vsub.f32 %v795, %v883
        %v885 = vmul.f32 %v884, %v884
        %v886 = vsel %vm798, %v885, 0.0
        %887 = vadd.xlane.f32.xlu0 %v886
        %v888 = vpop.xlane.xlu0 %887
        %v889 = vmul.f32 %v888, %v805
        %v890 = vadd.f32 %v889, 1e-05
        %v891 = vrsqrt.pop %v890
        %v892 = vmul.f32 %v884, %v891
        %v893 = vld [vmem:[%s4 + $0x2] sm:$0x1]
        %v894 = vlaneseq
        %v895 = vshrl.u32 %v894, 7
        %v896 = vsub.s32 0, %v895
        %v897 = vrot.slane %v893, %v896
        %v898 = vmul.f32 %v892, %v897
        %v899 = vld [vmem:[%s5 + $0x2] sm:$0x1]
        %v900 = vlaneseq
        %v901 = vshrl.u32 %v900, 7
        %v902 = vsub.s32 0, %v901
        %v903 = vrot.slane %v899, %v902
        %v904 = vadd.f32 %v898, %v903
        %v905 = vadd.f32 %v838, %v796
        %v906 = vadd.f32 %v839, %v797
        %v907 = vadd.f32 %v878, %v796
        %v908 = vadd.f32 %v879, %v797
        %v909 = vld [vmem:[%s6] sm:$0xff]
        %v910 = vld [vmem:[%s6 + $0x8] sm:$0xff]
        %v911 = vld [vmem:[%s6 + $0x10] sm:$0xff]
        %v912 = vld [vmem:[%s6 + $0x18] sm:$0xff]
        %v913 = vld [vmem:[%s7] sm:$0x1]
        %v915 = vlaneseq
        %v916 = vshrl.u32 %v915, 7
        %v917 = vsub.s32 0, %v916
        %v918 = vrot.slane %v913, %v917
        %v921 = vsel %vm798, %v904, 0
        %923 = vmatprep.subr.mxu0 0.0
        %924 = vmatpush1.msra.mxu0 %v909
        %925 = vmatprep.subr.mxu0 0.0
        %926 = vmatpush1.msra.mxu0 %v910
        %927 = vmatprep.subr.mxu0 0.0
        %928 = vmatpush1.msra.mxu0 %v911
        %929 = vmatprep.subr.mxu0 0.0
        %930 = vmatpush1.msra.mxu0 %v912
        %931 = vmatprep.subr.mxu0 0.0
        %932 = vmatpush1.msra.mxu0 0.0
        %933 = vmatprep.subr.mxu0 0.0
        %934 = vmatpush1.msra.mxu0 0.0
        %935 = vmatprep.subr.mxu0 0.0
        %936 = vmatpush1.msra.mxu0 0.0
        %937 = vmatprep.subr.mxu0 0.0
        %938 = vmatpush1.msra.mxu0 0.0
        %939 = vmatprep.subr.mxu0 0.0
        %940 = vmatpush1.msra.mxu0 0.0
        %941 = vmatprep.subr.mxu0 0.0
        %942 = vmatpush1.msra.mxu0 0.0
        %943 = vmatprep.subr.mxu0 0.0
        %944 = vmatpush1.msra.mxu0 0.0
        %945 = vmatprep.subr.mxu0 0.0
        %946 = vmatpush1.msra.mxu0 0.0
        %947 = vmatprep.subr.mxu0 0.0
        %948 = vmatpush1.msra.mxu0 0.0
        %949 = vmatprep.subr.mxu0 0.0
        %950 = vmatpush1.msra.mxu0 0.0
        %951 = vmatprep.subr.mxu0 0.0
        %952 = vmatpush1.msra.mxu0 0.0
        %953 = vmatprep.subr.mxu0 0.0
        %954 = vmatpush1.msra.mxu0 0.0
        %955 = vmatprep.subr.mxu0 0.0
        %956 = vmatpush1.msra.mxu0 0.0
        %957 = vmatprep.subr.mxu0 0.0
        %958 = vmatpush1.msra.mxu0 0.0
        %959 = vmatprep.subr.mxu0 0.0
        %960 = vmatpush1.msra.mxu0 0.0
        %961 = vmatprep.subr.mxu0 0.0
        %962 = vmatpush1.msra.mxu0 0.0
        %963 = vmatprep.subr.mxu0 0.0
        %964 = vmatpush1.msra.mxu0 0.0
        %965 = vmatprep.subr.mxu0 0.0
        %966 = vmatpush1.msra.mxu0 0.0
        %967 = vmatprep.subr.mxu0 0.0
        %968 = vmatpush1.msra.mxu0 0.0
        %969 = vmatprep.subr.mxu0 0.0
        %970 = vmatpush1.msra.mxu0 0.0
        %971 = vmatprep.subr.mxu0 0.0
        %972 = vmatpush1.msra.mxu0 0.0
        %973 = vmatprep.subr.mxu0 0.0
        %974 = vmatpush1.msra.mxu0 0.0
        %975 = vmatprep.subr.mxu0 0.0
        %976 = vmatpush1.msra.mxu0 0.0
        %977 = vmatprep.subr.mxu0 0.0
        %978 = vmatpush1.msra.mxu0 0.0
        %979 = vmatprep.subr.mxu0 0.0
        %980 = vmatpush1.msra.mxu0 0.0
        %981 = vmatprep.subr.mxu0 0.0
        %982 = vmatpush1.msra.mxu0 0.0
        %983 = vmatprep.subr.mxu0 0.0
        %984 = vmatpush1.msra.mxu0 0.0
        %985 = vmatprep.subr.mxu0 0.0
        %986 = vmatpush1.msra.mxu0 0.0
        %987 = vmatprep.mubr.f32.mxu0 0.0
        %988 = vmatmul.mubr.f32.gmra.mrb[0].mxu0 %v921
        %v989 = vpop.f32.mrb[0].mxu0
        %v990 = vadd.f32 %v918, %v989
        %v991 = vpop.f32.mrb[0].mxu0
        %992 = vdwg.mxu0
        %v993 = vld [vmem:[%s8] sm:$0xff]
        %v994 = vld [vmem:[%s8 + $0x8] sm:$0xff]
        %v995 = vld [vmem:[%s8 + $0x10] sm:$0xff]
        %v996 = vld [vmem:[%s8 + $0x18] sm:$0xff]
        %v997 = vld [vmem:[%s9] sm:$0x1]
        %v998 = vlaneseq
        %v999 = vshrl.u32 %v998, 7
        %v1000 = vsub.s32 0, %v999
        %v1001 = vrot.slane %v997, %v1000
        %v1003 = vsel %vm798, %v905, 0
        %v1006 = vsel %vm798, %v906, 0
        %1008 = vmatprep.subr.mxu0 0.0
        %1009 = vmatpush1.msra.mxu0 %v993
        %1010 = vmatprep.subr.mxu0 0.0
        %1011 = vmatpush1.msra.mxu0 %v994
        %1012 = vmatprep.subr.mxu0 0.0
        %1013 = vmatpush1.msra.mxu0 %v995
        %1014 = vmatprep.subr.mxu0 0.0
        %1015 = vmatpush1.msra.mxu0 %v996
        %1016 = vmatprep.subr.mxu0 0.0
        %1017 = vmatpush1.msra.mxu0 0.0
        %1018 = vmatprep.subr.mxu0 0.0
        %1019 = vmatpush1.msra.mxu0 0.0
        %1020 = vmatprep.subr.mxu0 0.0
        %1021 = vmatpush1.msra.mxu0 0.0
        %1022 = vmatprep.subr.mxu0 0.0
        %1023 = vmatpush1.msra.mxu0 0.0
        %1024 = vmatprep.subr.mxu0 0.0
        %1025 = vmatpush1.msra.mxu0 0.0
        %1026 = vmatprep.subr.mxu0 0.0
        %1027 = vmatpush1.msra.mxu0 0.0
        %1028 = vmatprep.subr.mxu0 0.0
        %1029 = vmatpush1.msra.mxu0 0.0
        %1030 = vmatprep.subr.mxu0 0.0
        %1031 = vmatpush1.msra.mxu0 0.0
        %1032 = vmatprep.subr.mxu0 0.0
        %1033 = vmatpush1.msra.mxu0 0.0
        %1034 = vmatprep.subr.mxu0 0.0
        %1035 = vmatpush1.msra.mxu0 0.0
        %1036 = vmatprep.subr.mxu0 0.0
        %1037 = vmatpush1.msra.mxu0 0.0
        %1038 = vmatprep.subr.mxu0 0.0
        %1039 = vmatpush1.msra.mxu0 0.0
        %1040 = vmatprep.subr.mxu0 0.0
        %1041 = vmatpush1.msra.mxu0 0.0
        %1042 = vmatprep.subr.mxu0 0.0
        %1043 = vmatpush1.msra.mxu0 0.0
        %1044 = vmatprep.subr.mxu0 0.0
        %1045 = vmatpush1.msra.mxu0 0.0
        %1046 = vmatprep.subr.mxu0 0.0
        %1047 = vmatpush1.msra.mxu0 0.0
        %1048 = vmatprep.subr.mxu0 0.0
        %1049 = vmatpush1.msra.mxu0 0.0
        %1050 = vmatprep.subr.mxu0 0.0
        %1051 = vmatpush1.msra.mxu0 0.0
        %1052 = vmatprep.subr.mxu0 0.0
        %1053 = vmatpush1.msra.mxu0 0.0
        %1054 = vmatprep.subr.mxu0 0.0
        %1055 = vmatpush1.msra.mxu0 0.0
        %1056 = vmatprep.subr.mxu0 0.0
        %1057 = vmatpush1.msra.mxu0 0.0
        %1058 = vmatprep.subr.mxu0 0.0
        %1059 = vmatpush1.msra.mxu0 0.0
        %1060 = vmatprep.subr.mxu0 0.0
        %1061 = vmatpush1.msra.mxu0 0.0
        %1062 = vmatprep.subr.mxu0 0.0
        %1063 = vmatpush1.msra.mxu0 0.0
        %1064 = vmatprep.subr.mxu0 0.0
        %1065 = vmatpush1.msra.mxu0 0.0
        %1066 = vmatprep.subr.mxu0 0.0
        %1067 = vmatpush1.msra.mxu0 0.0
        %1068 = vmatprep.subr.mxu0 0.0
        %1069 = vmatpush1.msra.mxu0 0.0
        %1070 = vmatprep.subr.mxu0 0.0
        %1071 = vmatpush1.msra.mxu0 0.0
        %1072 = vmatprep.mubr.f32.mxu0 0.0
        %1073 = vmatmul.mubr.f32.gmra.mrb[0].mxu0 %v1003
        %v1074 = vpop.f32.mrb[0].mxu0
        %v1075 = vadd.f32 %v1001, %v1074
        %v1076 = vpop.f32.mrb[0].mxu0
        %1077 = vmatprep.mubr.f32.mxu0 0.0
        %1078 = vmatmul.mubr.f32.gmra.mrb[0].mxu0 %v1006
        %v1079 = vpop.f32.mrb[0].mxu0
        %v1080 = vadd.f32 %v1001, %v1079
        %v1081 = vpop.f32.mrb[0].mxu0
        %1082 = vdwg.mxu0
        %s1083 = scalar_lea.vmem %s8, 32
        %v1084 = vld [vmem:[%s1083] sm:$0xff]
        %v1085 = vld [vmem:[%s1083 + $0x8] sm:$0xff]
        %v1086 = vld [vmem:[%s1083 + $0x10] sm:$0xff]
        %v1087 = vld [vmem:[%s1083 + $0x18] sm:$0xff]
        %v1088 = vld [vmem:[%s9 + $0x1] sm:$0x1]
        %v1089 = vlaneseq
        %v1090 = vshrl.u32 %v1089, 7
        %v1091 = vsub.s32 0, %v1090
        %v1092 = vrot.slane %v1088, %v1091
        %v1094 = vsel %vm798, %v838, 0
        %v1097 = vsel %vm798, %v839, 0
        %1099 = vmatprep.subr.mxu0 0.0
        %1100 = vmatpush1.msra.mxu0 %v1084
        %1101 = vmatprep.subr.mxu0 0.0
        %1102 = vmatpush1.msra.mxu0 %v1085
        %1103 = vmatprep.subr.mxu0 0.0
        %1104 = vmatpush1.msra.mxu0 %v1086
        %1105 = vmatprep.subr.mxu0 0.0
        %1106 = vmatpush1.msra.mxu0 %v1087
        %1107 = vmatprep.subr.mxu0 0.0
        %1108 = vmatpush1.msra.mxu0 0.0
        %1109 = vmatprep.subr.mxu0 0.0
        %1110 = vmatpush1.msra.mxu0 0.0
        %1111 = vmatprep.subr.mxu0 0.0
        %1112 = vmatpush1.msra.mxu0 0.0
        %1113 = vmatprep.subr.mxu0 0.0
        %1114 = vmatpush1.msra.mxu0 0.0
        %1115 = vmatprep.subr.mxu0 0.0
        %1116 = vmatpush1.msra.mxu0 0.0
        %1117 = vmatprep.subr.mxu0 0.0
        %1118 = vmatpush1.msra.mxu0 0.0
        %1119 = vmatprep.subr.mxu0 0.0
        %1120 = vmatpush1.msra.mxu0 0.0
        %1121 = vmatprep.subr.mxu0 0.0
        %1122 = vmatpush1.msra.mxu0 0.0
        %1123 = vmatprep.subr.mxu0 0.0
        %1124 = vmatpush1.msra.mxu0 0.0
        %1125 = vmatprep.subr.mxu0 0.0
        %1126 = vmatpush1.msra.mxu0 0.0
        %1127 = vmatprep.subr.mxu0 0.0
        %1128 = vmatpush1.msra.mxu0 0.0
        %1129 = vmatprep.subr.mxu0 0.0
        %1130 = vmatpush1.msra.mxu0 0.0
        %1131 = vmatprep.subr.mxu0 0.0
        %1132 = vmatpush1.msra.mxu0 0.0
        %1133 = vmatprep.subr.mxu0 0.0
        %1134 = vmatpush1.msra.mxu0 0.0
        %1135 = vmatprep.subr.mxu0 0.0
        %1136 = vmatpush1.msra.mxu0 0.0
        %1137 = vmatprep.subr.mxu0 0.0
        %1138 = vmatpush1.msra.mxu0 0.0
        %1139 = vmatprep.subr.mxu0 0.0
        %1140 = vmatpush1.msra.mxu0 0.0
        %1141 = vmatprep.subr.mxu0 0.0
        %1142 = vmatpush1.msra.mxu0 0.0
        %1143 = vmatprep.subr.mxu0 0.0
        %1144 = vmatpush1.msra.mxu0 0.0
        %1145 = vmatprep.subr.mxu0 0.0
        %1146 = vmatpush1.msra.mxu0 0.0
        %1147 = vmatprep.subr.mxu0 0.0
        %1148 = vmatpush1.msra.mxu0 0.0
        %1149 = vmatprep.subr.mxu0 0.0
        %1150 = vmatpush1.msra.mxu0 0.0
        %1151 = vmatprep.subr.mxu0 0.0
        %1152 = vmatpush1.msra.mxu0 0.0
        %1153 = vmatprep.subr.mxu0 0.0
        %1154 = vmatpush1.msra.mxu0 0.0
        %1155 = vmatprep.subr.mxu0 0.0
        %1156 = vmatpush1.msra.mxu0 0.0
        %1157 = vmatprep.subr.mxu0 0.0
        %1158 = vmatpush1.msra.mxu0 0.0
        %1159 = vmatprep.subr.mxu0 0.0
        %1160 = vmatpush1.msra.mxu0 0.0
        %1161 = vmatprep.subr.mxu0 0.0
        %1162 = vmatpush1.msra.mxu0 0.0
        %1163 = vmatprep.mubr.f32.mxu0 0.0
        %1164 = vmatmul.mubr.f32.gmra.mrb[0].mxu0 %v1094
        %v1165 = vpop.f32.mrb[0].mxu0
        %v1166 = vadd.f32 %v1092, %v1165
        %v1167 = vpop.f32.mrb[0].mxu0
        %1168 = vmatprep.mubr.f32.mxu0 0.0
        %1169 = vmatmul.mubr.f32.gmra.mrb[0].mxu0 %v1097
        %v1170 = vpop.f32.mrb[0].mxu0
        %v1171 = vadd.f32 %v1092, %v1170
        %v1172 = vpop.f32.mrb[0].mxu0
        %1173 = vdwg.mxu0
        %s1174 = scalar_lea.vmem %s8, 64
        %v1175 = vld [vmem:[%s1174] sm:$0xff]
        %v1176 = vld [vmem:[%s1174 + $0x8] sm:$0xff]
        %v1177 = vld [vmem:[%s1174 + $0x10] sm:$0xff]
        %v1178 = vld [vmem:[%s1174 + $0x18] sm:$0xff]
        %v1179 = vld [vmem:[%s9 + $0x2] sm:$0x1]
        %v1180 = vlaneseq
        %v1181 = vshrl.u32 %v1180, 7
        %v1182 = vsub.s32 0, %v1181
        %v1183 = vrot.slane %v1179, %v1182
        %v1185 = vsel %vm798, %v907, 0
        %v1188 = vsel %vm798, %v908, 0
        %1190 = vmatprep.subr.mxu0 0.0
        %1191 = vmatpush1.msra.mxu0 %v1175
        %1192 = vmatprep.subr.mxu0 0.0
        %1193 = vmatpush1.msra.mxu0 %v1176
        %1194 = vmatprep.subr.mxu0 0.0
        %1195 = vmatpush1.msra.mxu0 %v1177
        %1196 = vmatprep.subr.mxu0 0.0
        %1197 = vmatpush1.msra.mxu0 %v1178
        %1198 = vmatprep.subr.mxu0 0.0
        %1199 = vmatpush1.msra.mxu0 0.0
        %1200 = vmatprep.subr.mxu0 0.0
        %1201 = vmatpush1.msra.mxu0 0.0
        %1202 = vmatprep.subr.mxu0 0.0
        %1203 = vmatpush1.msra.mxu0 0.0
        %1204 = vmatprep.subr.mxu0 0.0
        %1205 = vmatpush1.msra.mxu0 0.0
        %1206 = vmatprep.subr.mxu0 0.0
        %1207 = vmatpush1.msra.mxu0 0.0
        %1208 = vmatprep.subr.mxu0 0.0
        %1209 = vmatpush1.msra.mxu0 0.0
        %1210 = vmatprep.subr.mxu0 0.0
        %1211 = vmatpush1.msra.mxu0 0.0
        %1212 = vmatprep.subr.mxu0 0.0
        %1213 = vmatpush1.msra.mxu0 0.0
        %1214 = vmatprep.subr.mxu0 0.0
        %1215 = vmatpush1.msra.mxu0 0.0
        %1216 = vmatprep.subr.mxu0 0.0
        %1217 = vmatpush1.msra.mxu0 0.0
        %1218 = vmatprep.subr.mxu0 0.0
        %1219 = vmatpush1.msra.mxu0 0.0
        %1220 = vmatprep.subr.mxu0 0.0
        %1221 = vmatpush1.msra.mxu0 0.0
        %1222 = vmatprep.subr.mxu0 0.0
        %1223 = vmatpush1.msra.mxu0 0.0
        %1224 = vmatprep.subr.mxu0 0.0
        %1225 = vmatpush1.msra.mxu0 0.0
        %1226 = vmatprep.subr.mxu0 0.0
        %1227 = vmatpush1.msra.mxu0 0.0
        %1228 = vmatprep.subr.mxu0 0.0
        %1229 = vmatpush1.msra.mxu0 0.0
        %1230 = vmatprep.subr.mxu0 0.0
        %1231 = vmatpush1.msra.mxu0 0.0
        %1232 = vmatprep.subr.mxu0 0.0
        %1233 = vmatpush1.msra.mxu0 0.0
        %1234 = vmatprep.subr.mxu0 0.0
        %1235 = vmatpush1.msra.mxu0 0.0
        %1236 = vmatprep.subr.mxu0 0.0
        %1237 = vmatpush1.msra.mxu0 0.0
        %1238 = vmatprep.subr.mxu0 0.0
        %1239 = vmatpush1.msra.mxu0 0.0
        %1240 = vmatprep.subr.mxu0 0.0
        %1241 = vmatpush1.msra.mxu0 0.0
        %1242 = vmatprep.subr.mxu0 0.0
        %1243 = vmatpush1.msra.mxu0 0.0
        %1244 = vmatprep.subr.mxu0 0.0
        %1245 = vmatpush1.msra.mxu0 0.0
        %1246 = vmatprep.subr.mxu0 0.0
        %1247 = vmatpush1.msra.mxu0 0.0
        %1248 = vmatprep.subr.mxu0 0.0
        %1249 = vmatpush1.msra.mxu0 0.0
        %1250 = vmatprep.subr.mxu0 0.0
        %1251 = vmatpush1.msra.mxu0 0.0
        %1252 = vmatprep.subr.mxu0 0.0
        %1253 = vmatpush1.msra.mxu0 0.0
        %1254 = vmatprep.mubr.f32.mxu0 0.0
        %1255 = vmatmul.mubr.f32.gmra.mrb[0].mxu0 %v1185
        %v1256 = vpop.f32.mrb[0].mxu0
        %v1257 = vadd.f32 %v1183, %v1256
        %v1258 = vpop.f32.mrb[0].mxu0
        %1259 = vmatprep.mubr.f32.mxu0 0.0
        %1260 = vmatmul.mubr.f32.gmra.mrb[0].mxu0 %v1188
        %v1261 = vpop.f32.mrb[0].mxu0
        %v1262 = vadd.f32 %v1183, %v1261
        %v1263 = vpop.f32.mrb[0].mxu0
        %1264 = vdwg.mxu0
        %s1265 = scalar_lea.vmem %s8, 96
        %v1266 = vld [vmem:[%s1265] sm:$0xff]
        %v1267 = vld [vmem:[%s1265 + $0x8] sm:$0xff]
        %v1268 = vld [vmem:[%s1265 + $0x10] sm:$0xff]
        %v1269 = vld [vmem:[%s1265 + $0x18] sm:$0xff]
        %v1270 = vld [vmem:[%s9 + $0x3] sm:$0x1]
        %v1271 = vlaneseq
        %v1272 = vshrl.u32 %v1271, 7
        %v1273 = vsub.s32 0, %v1272
        %v1274 = vrot.slane %v1270, %v1273
        %v1276 = vsel %vm798, %v878, 0
        %v1279 = vsel %vm798, %v879, 0
        %1281 = vmatprep.subr.mxu0 0.0
        %1282 = vmatpush1.msra.mxu0 %v1266
        %1283 = vmatprep.subr.mxu0 0.0
        %1284 = vmatpush1.msra.mxu0 %v1267
        %1285 = vmatprep.subr.mxu0 0.0
        %1286 = vmatpush1.msra.mxu0 %v1268
        %1287 = vmatprep.subr.mxu0 0.0
        %1288 = vmatpush1.msra.mxu0 %v1269
        %1289 = vmatprep.subr.mxu0 0.0
        %1290 = vmatpush1.msra.mxu0 0.0
        %1291 = vmatprep.subr.mxu0 0.0
        %1292 = vmatpush1.msra.mxu0 0.0
        %1293 = vmatprep.subr.mxu0 0.0
        %1294 = vmatpush1.msra.mxu0 0.0
        %1295 = vmatprep.subr.mxu0 0.0
        %1296 = vmatpush1.msra.mxu0 0.0
        %1297 = vmatprep.subr.mxu0 0.0
        %1298 = vmatpush1.msra.mxu0 0.0
        %1299 = vmatprep.subr.mxu0 0.0
        %1300 = vmatpush1.msra.mxu0 0.0
        %1301 = vmatprep.subr.mxu0 0.0
        %1302 = vmatpush1.msra.mxu0 0.0
        %1303 = vmatprep.subr.mxu0 0.0
        %1304 = vmatpush1.msra.mxu0 0.0
        %1305 = vmatprep.subr.mxu0 0.0
        %1306 = vmatpush1.msra.mxu0 0.0
        %1307 = vmatprep.subr.mxu0 0.0
        %1308 = vmatpush1.msra.mxu0 0.0
        %1309 = vmatprep.subr.mxu0 0.0
        %1310 = vmatpush1.msra.mxu0 0.0
        %1311 = vmatprep.subr.mxu0 0.0
        %1312 = vmatpush1.msra.mxu0 0.0
        %1313 = vmatprep.subr.mxu0 0.0
        %1314 = vmatpush1.msra.mxu0 0.0
        %1315 = vmatprep.subr.mxu0 0.0
        %1316 = vmatpush1.msra.mxu0 0.0
        %1317 = vmatprep.subr.mxu0 0.0
        %1318 = vmatpush1.msra.mxu0 0.0
        %1319 = vmatprep.subr.mxu0 0.0
        %1320 = vmatpush1.msra.mxu0 0.0
        %1321 = vmatprep.subr.mxu0 0.0
        %1322 = vmatpush1.msra.mxu0 0.0
        %1323 = vmatprep.subr.mxu0 0.0
        %1324 = vmatpush1.msra.mxu0 0.0
        %1325 = vmatprep.subr.mxu0 0.0
        %1326 = vmatpush1.msra.mxu0 0.0
        %1327 = vmatprep.subr.mxu0 0.0
        %1328 = vmatpush1.msra.mxu0 0.0
        %1329 = vmatprep.subr.mxu0 0.0
        %1330 = vmatpush1.msra.mxu0 0.0
        %1331 = vmatprep.subr.mxu0 0.0
        %1332 = vmatpush1.msra.mxu0 0.0
        %1333 = vmatprep.subr.mxu0 0.0
        %1334 = vmatpush1.msra.mxu0 0.0
        %1335 = vmatprep.subr.mxu0 0.0
        %1336 = vmatpush1.msra.mxu0 0.0
        %1337 = vmatprep.subr.mxu0 0.0
        %1338 = vmatpush1.msra.mxu0 0.0
        %1339 = vmatprep.subr.mxu0 0.0
        %1340 = vmatpush1.msra.mxu0 0.0
        %1341 = vmatprep.subr.mxu0 0.0
        %1342 = vmatpush1.msra.mxu0 0.0
        %1343 = vmatprep.subr.mxu0 0.0
        %1344 = vmatpush1.msra.mxu0 0.0
        %1345 = vmatprep.mubr.f32.mxu0 0.0
        %1346 = vmatmul.mubr.f32.gmra.mrb[0].mxu0 %v1276
        %v1347 = vpop.f32.mrb[0].mxu0
        %v1348 = vadd.f32 %v1274, %v1347
        %v1349 = vpop.f32.mrb[0].mxu0
        %1350 = vmatprep.mubr.f32.mxu0 0.0
        %1351 = vmatmul.mubr.f32.gmra.mrb[0].mxu0 %v1279
        %v1352 = vpop.f32.mrb[0].mxu0
        %v1353 = vadd.f32 %v1274, %v1352
        %v1354 = vpop.f32.mrb[0].mxu0
        %1355 = vdwg.mxu0
        %vm1356 = vcmask 31744
        %v1358 = vsel %vm1356, %v990, 0
        %v1361 = vsel %vm1356, %v1075, 0
        %v1364 = vsel %vm1356, %v1080, 0
        %1366 = vmatprep.subr.mxu0 0.0
        %1367 = vmatpush1.xpose.msra.mxu0 %v1361
        %1368 = vmatprep.subr.mxu0 0.0
        %1369 = vmatpush1.xpose.msra.mxu0 %v1364
        %1370 = vmatprep.subr.mxu0 0.0
        %1371 = vmatpush1.xpose.msra.mxu0 0.0
        %1372 = vmatprep.subr.mxu0 0.0
        %1373 = vmatpush1.xpose.msra.mxu0 0.0
        %1374 = vmatprep.subr.mxu0 0.0
        %1375 = vmatpush1.xpose.msra.mxu0 0.0
        %1376 = vmatprep.subr.mxu0 0.0
        %1377 = vmatpush1.xpose.msra.mxu0 0.0
        %1378 = vmatprep.subr.mxu0 0.0
        %1379 = vmatpush1.xpose.msra.mxu0 0.0
        %1380 = vmatprep.subr.mxu0 0.0
        %1381 = vmatpush1.xpose.msra.mxu0 0.0
        %1382 = vmatprep.subr.mxu0 0.0
        %1383 = vmatpush1.xpose.msra.mxu0 0.0
        %1384 = vmatprep.subr.mxu0 0.0
        %1385 = vmatpush1.xpose.msra.mxu0 0.0
        %1386 = vmatprep.subr.mxu0 0.0
        %1387 = vmatpush1.xpose.msra.mxu0 0.0
        %1388 = vmatprep.subr.mxu0 0.0
        %1389 = vmatpush1.xpose.msra.mxu0 0.0
        %1390 = vmatprep.subr.mxu0 0.0
        %1391 = vmatpush1.xpose.msra.mxu0 0.0
        %1392 = vmatprep.subr.mxu0 0.0
        %1393 = vmatpush1.xpose.msra.mxu0 0.0
        %1394 = vmatprep.subr.mxu0 0.0
        %1395 = vmatpush1.xpose.msra.mxu0 0.0
        %1396 = vmatprep.subr.mxu0 0.0
        %1397 = vmatpush1.xpose.msra.mxu0 0.0
        %1398 = vmatprep.subr.mxu0 0.0
        %1399 = vmatpush1.xpose.msra.mxu0 0.0
        %1400 = vmatprep.subr.mxu0 0.0
        %1401 = vmatpush1.xpose.msra.mxu0 0.0
        %1402 = vmatprep.subr.mxu0 0.0
        %1403 = vmatpush1.xpose.msra.mxu0 0.0
        %1404 = vmatprep.subr.mxu0 0.0
        %1405 = vmatpush1.xpose.msra.mxu0 0.0
        %1406 = vmatprep.subr.mxu0 0.0
        %1407 = vmatpush1.xpose.msra.mxu0 0.0
        %1408 = vmatprep.subr.mxu0 0.0
        %1409 = vmatpush1.xpose.msra.mxu0 0.0
        %1410 = vmatprep.subr.mxu0 0.0
        %1411 = vmatpush1.xpose.msra.mxu0 0.0
        %1412 = vmatprep.subr.mxu0 0.0
        %1413 = vmatpush1.xpose.msra.mxu0 0.0
        %1414 = vmatprep.subr.mxu0 0.0
        %1415 = vmatpush1.xpose.msra.mxu0 0.0
        %1416 = vmatprep.subr.mxu0 0.0
        %1417 = vmatpush1.xpose.msra.mxu0 0.0
        %1418 = vmatprep.subr.mxu0 0.0
        %1419 = vmatpush1.xpose.msra.mxu0 0.0
        %1420 = vmatprep.subr.mxu0 0.0
        %1421 = vmatpush1.xpose.msra.mxu0 0.0
        %1422 = vmatprep.subr.mxu0 0.0
        %1423 = vmatpush1.xpose.msra.mxu0 0.0
        %1424 = vmatprep.subr.mxu0 0.0
        %1425 = vmatpush1.xpose.msra.mxu0 0.0
        %1426 = vmatprep.subr.mxu0 0.0
        %1427 = vmatpush1.xpose.msra.mxu0 0.0
        %1428 = vmatprep.subr.mxu0 0.0
        %1429 = vmatpush1.xpose.msra.mxu0 0.0
        %1430 = vmatprep.mubr.f32.mxu0 0.0
        %1431 = vmatmul.mubr.f32.gmra.mrb[0].mxu0 %v1358
        %v1432 = vpop.f32.mrb[0].mxu0
        %v1433 = vadd.f32 0.0, %v1432
        %v1434 = vpop.f32.mrb[0].mxu0
        %1435 = vdwg.mxu0
        %v1436 = vmul.f32 %v1433, 0.5
        %vm1437 = vcmask 130048
        %v1438 = vsel %vm1437, %v1436, -inf
        %1439 = vmax.xlane.f32.xlu0 %v1438
        %v1440 = vpop.xlane.xlu0 %1439
        %v1441 = vsub.f32 %v1436, %v1440
        %v1442 = vmul.f32 %v1441, 1.442695
        %v1443 = vpow.pop %v1442
        %v1444 = vsel %vm1437, %v1443, 0.0
        %1445 = vadd.xlane.f32.xlu0 %v1444
        %v1446 = vpop.xlane.xlu0 %1445
        %v1447 = vrcp.pop %v1446
        %v1448 = vmul.f32 %v1443, %v1447
        %v1450 = vsel %vm1437, %v1448, 0
        %1452 = vmatprep.subr.mxu0 0.0
        %1453 = vmatpush1.msra.mxu0 %v1166
        %1454 = vmatprep.subr.mxu0 0.0
        %1455 = vmatpush1.msra.mxu0 %v1171
        %1456 = vmatprep.subr.mxu0 0.0
        %1457 = vmatpush1.msra.mxu0 0.0
        %1458 = vmatprep.subr.mxu0 0.0
        %1459 = vmatpush1.msra.mxu0 0.0
        %1460 = vmatprep.subr.mxu0 0.0
        %1461 = vmatpush1.msra.mxu0 0.0
        %1462 = vmatprep.subr.mxu0 0.0
        %1463 = vmatpush1.msra.mxu0 0.0
        %1464 = vmatprep.subr.mxu0 0.0
        %1465 = vmatpush1.msra.mxu0 0.0
        %1466 = vmatprep.subr.mxu0 0.0
        %1467 = vmatpush1.msra.mxu0 0.0
        %1468 = vmatprep.subr.mxu0 0.0
        %1469 = vmatpush1.msra.mxu0 0.0
        %1470 = vmatprep.subr.mxu0 0.0
        %1471 = vmatpush1.msra.mxu0 0.0
        %1472 = vmatprep.subr.mxu0 0.0
        %1473 = vmatpush1.msra.mxu0 0.0
        %1474 = vmatprep.subr.mxu0 0.0
        %1475 = vmatpush1.msra.mxu0 0.0
        %1476 = vmatprep.subr.mxu0 0.0
        %1477 = vmatpush1.msra.mxu0 0.0
        %1478 = vmatprep.subr.mxu0 0.0
        %1479 = vmatpush1.msra.mxu0 0.0
        %1480 = vmatprep.subr.mxu0 0.0
        %1481 = vmatpush1.msra.mxu0 0.0
        %1482 = vmatprep.subr.mxu0 0.0
        %1483 = vmatpush1.msra.mxu0 0.0
        %1484 = vmatprep.subr.mxu0 0.0
        %1485 = vmatpush1.msra.mxu0 0.0
        %1486 = vmatprep.subr.mxu0 0.0
        %1487 = vmatpush1.msra.mxu0 0.0
        %1488 = vmatprep.subr.mxu0 0.0
        %1489 = vmatpush1.msra.mxu0 0.0
        %1490 = vmatprep.subr.mxu0 0.0
        %1491 = vmatpush1.msra.mxu0 0.0
        %1492 = vmatprep.subr.mxu0 0.0
        %1493 = vmatpush1.msra.mxu0 0.0
        %1494 = vmatprep.subr.mxu0 0.0
        %1495 = vmatpush1.msra.mxu0 0.0
        %1496 = vmatprep.subr.mxu0 0.0
        %1497 = vmatpush1.msra.mxu0 0.0
        %1498 = vmatprep.subr.mxu0 0.0
        %1499 = vmatpush1.msra.mxu0 0.0
        %1500 = vmatprep.subr.mxu0 0.0
        %1501 = vmatpush1.msra.mxu0 0.0
        %1502 = vmatprep.subr.mxu0 0.0
        %1503 = vmatpush1.msra.mxu0 0.0
        %1504 = vmatprep.subr.mxu0 0.0
        %1505 = vmatpush1.msra.mxu0 0.0
        %1506 = vmatprep.subr.mxu0 0.0
        %1507 = vmatpush1.msra.mxu0 0.0
        %1508 = vmatprep.subr.mxu0 0.0
        %1509 = vmatpush1.msra.mxu0 0.0
        %1510 = vmatprep.subr.mxu0 0.0
        %1511 = vmatpush1.msra.mxu0 0.0
        %1512 = vmatprep.subr.mxu0 0.0
        %1513 = vmatpush1.msra.mxu0 0.0
        %1514 = vmatprep.subr.mxu0 0.0
        %1515 = vmatpush1.msra.mxu0 0.0
        %1516 = vmatprep.mubr.f32.mxu0 0.0
        %1517 = vmatmul.mubr.f32.gmra.mrb[0].mxu0 %v1450
        %v1518 = vpop.f32.mrb[0].mxu0
        %v1519 = vadd.f32 0.0, %v1518
        %v1520 = vpop.f32.mrb[0].mxu0
        %1521 = vdwg.mxu0
        %1522 = vrot.lane.b32.xlu0 %v990, 124
        %v1523 = vpop.permute.xlu0 %1522
        %1524 = vrot.lane.b32.xlu0 %v1075, 124
        %v1525 = vpop.permute.xlu0 %1524
        %1526 = vrot.lane.b32.xlu0 %v1080, 124
        %v1527 = vpop.permute.xlu0 %1526
        %v1528 = vsel %vm1356, %v1523, 0
        %v1530 = vsel %vm1356, %v1525, 0
        %v1532 = vsel %vm1356, %v1527, 0
        %1534 = vmatprep.subr.mxu0 0.0
        %1535 = vmatpush1.xpose.msra.mxu0 %v1530
        %1536 = vmatprep.subr.mxu0 0.0
        %1537 = vmatpush1.xpose.msra.mxu0 %v1532
        %1538 = vmatprep.subr.mxu0 0.0
        %1539 = vmatpush1.xpose.msra.mxu0 0.0
        %1540 = vmatprep.subr.mxu0 0.0
        %1541 = vmatpush1.xpose.msra.mxu0 0.0
        %1542 = vmatprep.subr.mxu0 0.0
        %1543 = vmatpush1.xpose.msra.mxu0 0.0
        %1544 = vmatprep.subr.mxu0 0.0
        %1545 = vmatpush1.xpose.msra.mxu0 0.0
        %1546 = vmatprep.subr.mxu0 0.0
        %1547 = vmatpush1.xpose.msra.mxu0 0.0
        %1548 = vmatprep.subr.mxu0 0.0
        %1549 = vmatpush1.xpose.msra.mxu0 0.0
        %1550 = vmatprep.subr.mxu0 0.0
        %1551 = vmatpush1.xpose.msra.mxu0 0.0
        %1552 = vmatprep.subr.mxu0 0.0
        %1553 = vmatpush1.xpose.msra.mxu0 0.0
        %1554 = vmatprep.subr.mxu0 0.0
        %1555 = vmatpush1.xpose.msra.mxu0 0.0
        %1556 = vmatprep.subr.mxu0 0.0
        %1557 = vmatpush1.xpose.msra.mxu0 0.0
        %1558 = vmatprep.subr.mxu0 0.0
        %1559 = vmatpush1.xpose.msra.mxu0 0.0
        %1560 = vmatprep.subr.mxu0 0.0
        %1561 = vmatpush1.xpose.msra.mxu0 0.0
        %1562 = vmatprep.subr.mxu0 0.0
        %1563 = vmatpush1.xpose.msra.mxu0 0.0
        %1564 = vmatprep.subr.mxu0 0.0
        %1565 = vmatpush1.xpose.msra.mxu0 0.0
        %1566 = vmatprep.subr.mxu0 0.0
        %1567 = vmatpush1.xpose.msra.mxu0 0.0
        %1568 = vmatprep.subr.mxu0 0.0
        %1569 = vmatpush1.xpose.msra.mxu0 0.0
        %1570 = vmatprep.subr.mxu0 0.0
        %1571 = vmatpush1.xpose.msra.mxu0 0.0
        %1572 = vmatprep.subr.mxu0 0.0
        %1573 = vmatpush1.xpose.msra.mxu0 0.0
        %1574 = vmatprep.subr.mxu0 0.0
        %1575 = vmatpush1.xpose.msra.mxu0 0.0
        %1576 = vmatprep.subr.mxu0 0.0
        %1577 = vmatpush1.xpose.msra.mxu0 0.0
        %1578 = vmatprep.subr.mxu0 0.0
        %1579 = vmatpush1.xpose.msra.mxu0 0.0
        %1580 = vmatprep.subr.mxu0 0.0
        %1581 = vmatpush1.xpose.msra.mxu0 0.0
        %1582 = vmatprep.subr.mxu0 0.0
        %1583 = vmatpush1.xpose.msra.mxu0 0.0
        %1584 = vmatprep.subr.mxu0 0.0
        %1585 = vmatpush1.xpose.msra.mxu0 0.0
        %1586 = vmatprep.subr.mxu0 0.0
        %1587 = vmatpush1.xpose.msra.mxu0 0.0
        %1588 = vmatprep.subr.mxu0 0.0
        %1589 = vmatpush1.xpose.msra.mxu0 0.0
        %1590 = vmatprep.subr.mxu0 0.0
        %1591 = vmatpush1.xpose.msra.mxu0 0.0
        %1592 = vmatprep.subr.mxu0 0.0
        %1593 = vmatpush1.xpose.msra.mxu0 0.0
        %1594 = vmatprep.subr.mxu0 0.0
        %1595 = vmatpush1.xpose.msra.mxu0 0.0
        %1596 = vmatprep.subr.mxu0 0.0
        %1597 = vmatpush1.xpose.msra.mxu0 0.0
        %1598 = vmatprep.mubr.f32.mxu0 0.0
        %1599 = vmatmul.mubr.f32.gmra.mrb[0].mxu0 %v1528
        %v1600 = vpop.f32.mrb[0].mxu0
        %v1601 = vadd.f32 0.0, %v1600
        %v1602 = vpop.f32.mrb[0].mxu0
        %1603 = vdwg.mxu0
        %v1604 = vmul.f32 %v1601, 0.5
        %v1605 = vsel %vm1437, %v1604, -inf
        %1606 = vmax.xlane.f32.xlu0 %v1605
        %v1607 = vpop.xlane.xlu0 %1606
        %v1608 = vsub.f32 %v1604, %v1607
        %v1609 = vmul.f32 %v1608, 1.442695
        %v1610 = vpow.pop %v1609
        %v1611 = vsel %vm1437, %v1610, 0.0
        %1612 = vadd.xlane.f32.xlu0 %v1611
        %v1613 = vpop.xlane.xlu0 %1612
        %v1614 = vrcp.pop %v1613
        %v1615 = vmul.f32 %v1610, %v1614
        %1618 = vrot.lane.b32.xlu0 %v1166, 124
        %v1619 = vpop.permute.xlu0 %1618
        %1620 = vrot.lane.b32.xlu0 %v1171, 124
        %v1621 = vpop.permute.xlu0 %1620
        %v1625 = vsel %vm1437, %v1615, 0
        %1627 = vmatprep.subr.mxu0 0.0
        %1628 = vmatpush1.msra.mxu0 %v1619
        %1629 = vmatprep.subr.mxu0 0.0
        %1630 = vmatpush1.msra.mxu0 %v1621
        %1631 = vmatprep.subr.mxu0 0.0
        %1632 = vmatpush1.msra.mxu0 0.0
        %1633 = vmatprep.subr.mxu0 0.0
        %1634 = vmatpush1.msra.mxu0 0.0
        %1635 = vmatprep.subr.mxu0 0.0
        %1636 = vmatpush1.msra.mxu0 0.0
        %1637 = vmatprep.subr.mxu0 0.0
        %1638 = vmatpush1.msra.mxu0 0.0
        %1639 = vmatprep.subr.mxu0 0.0
        %1640 = vmatpush1.msra.mxu0 0.0
        %1641 = vmatprep.subr.mxu0 0.0
        %1642 = vmatpush1.msra.mxu0 0.0
        %1643 = vmatprep.subr.mxu0 0.0
        %1644 = vmatpush1.msra.mxu0 0.0
        %1645 = vmatprep.subr.mxu0 0.0
        %1646 = vmatpush1.msra.mxu0 0.0
        %1647 = vmatprep.subr.mxu0 0.0
        %1648 = vmatpush1.msra.mxu0 0.0
        %1649 = vmatprep.subr.mxu0 0.0
        %1650 = vmatpush1.msra.mxu0 0.0
        %1651 = vmatprep.subr.mxu0 0.0
        %1652 = vmatpush1.msra.mxu0 0.0
        %1653 = vmatprep.subr.mxu0 0.0
        %1654 = vmatpush1.msra.mxu0 0.0
        %1655 = vmatprep.subr.mxu0 0.0
        %1656 = vmatpush1.msra.mxu0 0.0
        %1657 = vmatprep.subr.mxu0 0.0
        %1658 = vmatpush1.msra.mxu0 0.0
        %1659 = vmatprep.subr.mxu0 0.0
        %1660 = vmatpush1.msra.mxu0 0.0
        %1661 = vmatprep.subr.mxu0 0.0
        %1662 = vmatpush1.msra.mxu0 0.0
        %1663 = vmatprep.subr.mxu0 0.0
        %1664 = vmatpush1.msra.mxu0 0.0
        %1665 = vmatprep.subr.mxu0 0.0
        %1666 = vmatpush1.msra.mxu0 0.0
        %1667 = vmatprep.subr.mxu0 0.0
        %1668 = vmatpush1.msra.mxu0 0.0
        %1669 = vmatprep.subr.mxu0 0.0
        %1670 = vmatpush1.msra.mxu0 0.0
        %1671 = vmatprep.subr.mxu0 0.0
        %1672 = vmatpush1.msra.mxu0 0.0
        %1673 = vmatprep.subr.mxu0 0.0
        %1674 = vmatpush1.msra.mxu0 0.0
        %1675 = vmatprep.subr.mxu0 0.0
        %1676 = vmatpush1.msra.mxu0 0.0
        %1677 = vmatprep.subr.mxu0 0.0
        %1678 = vmatpush1.msra.mxu0 0.0
        %1679 = vmatprep.subr.mxu0 0.0
        %1680 = vmatpush1.msra.mxu0 0.0
        %1681 = vmatprep.subr.mxu0 0.0
        %1682 = vmatpush1.msra.mxu0 0.0
        %1683 = vmatprep.subr.mxu0 0.0
        %1684 = vmatpush1.msra.mxu0 0.0
        %1685 = vmatprep.subr.mxu0 0.0
        %1686 = vmatpush1.msra.mxu0 0.0
        %1687 = vmatprep.subr.mxu0 0.0
        %1688 = vmatpush1.msra.mxu0 0.0
        %1689 = vmatprep.subr.mxu0 0.0
        %1690 = vmatpush1.msra.mxu0 0.0
        %1691 = vmatprep.mubr.f32.mxu0 0.0
        %1692 = vmatmul.mubr.f32.gmra.mrb[0].mxu0 %v1625
        %v1693 = vpop.f32.mrb[0].mxu0
        %v1694 = vadd.f32 0.0, %v1693
        %v1695 = vpop.f32.mrb[0].mxu0
        %1696 = vdwg.mxu0
        %1697 = vrot.lane.b32.xlu0 %v990, 120
        %v1698 = vpop.permute.xlu0 %1697
        %1699 = vrot.lane.b32.xlu0 %v1075, 120
        %v1700 = vpop.permute.xlu0 %1699
        %1701 = vrot.lane.b32.xlu0 %v1080, 120
        %v1702 = vpop.permute.xlu0 %1701
        %v1703 = vsel %vm1356, %v1698, 0
        %v1705 = vsel %vm1356, %v1700, 0
        %v1707 = vsel %vm1356, %v1702, 0
        %1709 = vmatprep.subr.mxu0 0.0
        %1710 = vmatpush1.xpose.msra.mxu0 %v1705
        %1711 = vmatprep.subr.mxu0 0.0
        %1712 = vmatpush1.xpose.msra.mxu0 %v1707
        %1713 = vmatprep.subr.mxu0 0.0
        %1714 = vmatpush1.xpose.msra.mxu0 0.0
        %1715 = vmatprep.subr.mxu0 0.0
        %1716 = vmatpush1.xpose.msra.mxu0 0.0
        %1717 = vmatprep.subr.mxu0 0.0
        %1718 = vmatpush1.xpose.msra.mxu0 0.0
        %1719 = vmatprep.subr.mxu0 0.0
        %1720 = vmatpush1.xpose.msra.mxu0 0.0
        %1721 = vmatprep.subr.mxu0 0.0
        %1722 = vmatpush1.xpose.msra.mxu0 0.0
        %1723 = vmatprep.subr.mxu0 0.0
        %1724 = vmatpush1.xpose.msra.mxu0 0.0
        %1725 = vmatprep.subr.mxu0 0.0
        %1726 = vmatpush1.xpose.msra.mxu0 0.0
        %1727 = vmatprep.subr.mxu0 0.0
        %1728 = vmatpush1.xpose.msra.mxu0 0.0
        %1729 = vmatprep.subr.mxu0 0.0
        %1730 = vmatpush1.xpose.msra.mxu0 0.0
        %1731 = vmatprep.subr.mxu0 0.0
        %1732 = vmatpush1.xpose.msra.mxu0 0.0
        %1733 = vmatprep.subr.mxu0 0.0
        %1734 = vmatpush1.xpose.msra.mxu0 0.0
        %1735 = vmatprep.subr.mxu0 0.0
        %1736 = vmatpush1.xpose.msra.mxu0 0.0
        %1737 = vmatprep.subr.mxu0 0.0
        %1738 = vmatpush1.xpose.msra.mxu0 0.0
        %1739 = vmatprep.subr.mxu0 0.0
        %1740 = vmatpush1.xpose.msra.mxu0 0.0
        %1741 = vmatprep.subr.mxu0 0.0
        %1742 = vmatpush1.xpose.msra.mxu0 0.0
        %1743 = vmatprep.subr.mxu0 0.0
        %1744 = vmatpush1.xpose.msra.mxu0 0.0
        %1745 = vmatprep.subr.mxu0 0.0
        %1746 = vmatpush1.xpose.msra.mxu0 0.0
        %1747 = vmatprep.subr.mxu0 0.0
        %1748 = vmatpush1.xpose.msra.mxu0 0.0
        %1749 = vmatprep.subr.mxu0 0.0
        %1750 = vmatpush1.xpose.msra.mxu0 0.0
        %1751 = vmatprep.subr.mxu0 0.0
        %1752 = vmatpush1.xpose.msra.mxu0 0.0
        %1753 = vmatprep.subr.mxu0 0.0
        %1754 = vmatpush1.xpose.msra.mxu0 0.0
        %1755 = vmatprep.subr.mxu0 0.0
        %1756 = vmatpush1.xpose.msra.mxu0 0.0
        %1757 = vmatprep.subr.mxu0 0.0
        %1758 = vmatpush1.xpose.msra.mxu0 0.0
        %1759 = vmatprep.subr.mxu0 0.0
        %1760 = vmatpush1.xpose.msra.mxu0 0.0
        %1761 = vmatprep.subr.mxu0 0.0
        %1762 = vmatpush1.xpose.msra.mxu0 0.0
        %1763 = vmatprep.subr.mxu0 0.0
        %1764 = vmatpush1.xpose.msra.mxu0 0.0
        %1765 = vmatprep.subr.mxu0 0.0
        %1766 = vmatpush1.xpose.msra.mxu0 0.0
        %1767 = vmatprep.subr.mxu0 0.0
        %1768 = vmatpush1.xpose.msra.mxu0 0.0
        %1769 = vmatprep.subr.mxu0 0.0
        %1770 = vmatpush1.xpose.msra.mxu0 0.0
        %1771 = vmatprep.subr.mxu0 0.0
        %1772 = vmatpush1.xpose.msra.mxu0 0.0
        %1773 = vmatprep.mubr.f32.mxu0 0.0
        %1774 = vmatmul.mubr.f32.gmra.mrb[0].mxu0 %v1703
        %v1775 = vpop.f32.mrb[0].mxu0
        %v1776 = vadd.f32 0.0, %v1775
        %v1777 = vpop.f32.mrb[0].mxu0
        %1778 = vdwg.mxu0
        %v1779 = vmul.f32 %v1776, 0.5
        %v1780 = vsel %vm1437, %v1779, -inf
        %1781 = vmax.xlane.f32.xlu0 %v1780
        %v1782 = vpop.xlane.xlu0 %1781
        %v1783 = vsub.f32 %v1779, %v1782
        %v1784 = vmul.f32 %v1783, 1.442695
        %v1785 = vpow.pop %v1784
        %v1786 = vsel %vm1437, %v1785, 0.0
        %1787 = vadd.xlane.f32.xlu0 %v1786
        %v1788 = vpop.xlane.xlu0 %1787
        %v1789 = vrcp.pop %v1788
        %v1790 = vmul.f32 %v1785, %v1789
        %1791 = vrot.lane.b32.xlu0 %v1166, 120
        %v1792 = vpop.permute.xlu0 %1791
        %1793 = vrot.lane.b32.xlu0 %v1171, 120
        %v1794 = vpop.permute.xlu0 %1793
        %v1798 = vsel %vm1437, %v1790, 0
        %1800 = vmatprep.subr.mxu0 0.0
        %1801 = vmatpush1.msra.mxu0 %v1792
        %1802 = vmatprep.subr.mxu0 0.0
        %1803 = vmatpush1.msra.mxu0 %v1794
        %1804 = vmatprep.subr.mxu0 0.0
        %1805 = vmatpush1.msra.mxu0 0.0
        %1806 = vmatprep.subr.mxu0 0.0
        %1807 = vmatpush1.msra.mxu0 0.0
        %1808 = vmatprep.subr.mxu0 0.0
        %1809 = vmatpush1.msra.mxu0 0.0
        %1810 = vmatprep.subr.mxu0 0.0
        %1811 = vmatpush1.msra.mxu0 0.0
        %1812 = vmatprep.subr.mxu0 0.0
        %1813 = vmatpush1.msra.mxu0 0.0
        %1814 = vmatprep.subr.mxu0 0.0
        %1815 = vmatpush1.msra.mxu0 0.0
        %1816 = vmatprep.subr.mxu0 0.0
        %1817 = vmatpush1.msra.mxu0 0.0
        %1818 = vmatprep.subr.mxu0 0.0
        %1819 = vmatpush1.msra.mxu0 0.0
        %1820 = vmatprep.subr.mxu0 0.0
        %1821 = vmatpush1.msra.mxu0 0.0
        %1822 = vmatprep.subr.mxu0 0.0
        %1823 = vmatpush1.msra.mxu0 0.0
        %1824 = vmatprep.subr.mxu0 0.0
        %1825 = vmatpush1.msra.mxu0 0.0
        %1826 = vmatprep.subr.mxu0 0.0
        %1827 = vmatpush1.msra.mxu0 0.0
        %1828 = vmatprep.subr.mxu0 0.0
        %1829 = vmatpush1.msra.mxu0 0.0
        %1830 = vmatprep.subr.mxu0 0.0
        %1831 = vmatpush1.msra.mxu0 0.0
        %1832 = vmatprep.subr.mxu0 0.0
        %1833 = vmatpush1.msra.mxu0 0.0
        %1834 = vmatprep.subr.mxu0 0.0
        %1835 = vmatpush1.msra.mxu0 0.0
        %1836 = vmatprep.subr.mxu0 0.0
        %1837 = vmatpush1.msra.mxu0 0.0
        %1838 = vmatprep.subr.mxu0 0.0
        %1839 = vmatpush1.msra.mxu0 0.0
        %1840 = vmatprep.subr.mxu0 0.0
        %1841 = vmatpush1.msra.mxu0 0.0
        %1842 = vmatprep.subr.mxu0 0.0
        %1843 = vmatpush1.msra.mxu0 0.0
        %1844 = vmatprep.subr.mxu0 0.0
        %1845 = vmatpush1.msra.mxu0 0.0
        %1846 = vmatprep.subr.mxu0 0.0
        %1847 = vmatpush1.msra.mxu0 0.0
        %1848 = vmatprep.subr.mxu0 0.0
        %1849 = vmatpush1.msra.mxu0 0.0
        %1850 = vmatprep.subr.mxu0 0.0
        %1851 = vmatpush1.msra.mxu0 0.0
        %1852 = vmatprep.subr.mxu0 0.0
        %1853 = vmatpush1.msra.mxu0 0.0
        %1854 = vmatprep.subr.mxu0 0.0
        %1855 = vmatpush1.msra.mxu0 0.0
        %1856 = vmatprep.subr.mxu0 0.0
        %1857 = vmatpush1.msra.mxu0 0.0
        %1858 = vmatprep.subr.mxu0 0.0
        %1859 = vmatpush1.msra.mxu0 0.0
        %1860 = vmatprep.subr.mxu0 0.0
        %1861 = vmatpush1.msra.mxu0 0.0
        %1862 = vmatprep.subr.mxu0 0.0
        %1863 = vmatpush1.msra.mxu0 0.0
        %1864 = vmatprep.mubr.f32.mxu0 0.0
        %1865 = vmatmul.mubr.f32.gmra.mrb[0].mxu0 %v1798
        %v1866 = vpop.f32.mrb[0].mxu0
        %v1867 = vadd.f32 0.0, %v1866
        %v1868 = vpop.f32.mrb[0].mxu0
        %1869 = vdwg.mxu0
        %1870 = vrot.lane.b32.xlu0 %v990, 116
        %v1871 = vpop.permute.xlu0 %1870
        %1872 = vrot.lane.b32.xlu0 %v1075, 116
        %v1873 = vpop.permute.xlu0 %1872
        %1874 = vrot.lane.b32.xlu0 %v1080, 116
        %v1875 = vpop.permute.xlu0 %1874
        %v1876 = vsel %vm1356, %v1871, 0
        %v1878 = vsel %vm1356, %v1873, 0
        %v1880 = vsel %vm1356, %v1875, 0
        %1882 = vmatprep.subr.mxu0 0.0
        %1883 = vmatpush1.xpose.msra.mxu0 %v1878
        %1884 = vmatprep.subr.mxu0 0.0
        %1885 = vmatpush1.xpose.msra.mxu0 %v1880
        %1886 = vmatprep.subr.mxu0 0.0
        %1887 = vmatpush1.xpose.msra.mxu0 0.0
        %1888 = vmatprep.subr.mxu0 0.0
        %1889 = vmatpush1.xpose.msra.mxu0 0.0
        %1890 = vmatprep.subr.mxu0 0.0
        %1891 = vmatpush1.xpose.msra.mxu0 0.0
        %1892 = vmatprep.subr.mxu0 0.0
        %1893 = vmatpush1.xpose.msra.mxu0 0.0
        %1894 = vmatprep.subr.mxu0 0.0
        %1895 = vmatpush1.xpose.msra.mxu0 0.0
        %1896 = vmatprep.subr.mxu0 0.0
        %1897 = vmatpush1.xpose.msra.mxu0 0.0
        %1898 = vmatprep.subr.mxu0 0.0
        %1899 = vmatpush1.xpose.msra.mxu0 0.0
        %1900 = vmatprep.subr.mxu0 0.0
        %1901 = vmatpush1.xpose.msra.mxu0 0.0
        %1902 = vmatprep.subr.mxu0 0.0
        %1903 = vmatpush1.xpose.msra.mxu0 0.0
        %1904 = vmatprep.subr.mxu0 0.0
        %1905 = vmatpush1.xpose.msra.mxu0 0.0
        %1906 = vmatprep.subr.mxu0 0.0
        %1907 = vmatpush1.xpose.msra.mxu0 0.0
        %1908 = vmatprep.subr.mxu0 0.0
        %1909 = vmatpush1.xpose.msra.mxu0 0.0
        %1910 = vmatprep.subr.mxu0 0.0
        %1911 = vmatpush1.xpose.msra.mxu0 0.0
        %1912 = vmatprep.subr.mxu0 0.0
        %1913 = vmatpush1.xpose.msra.mxu0 0.0
        %1914 = vmatprep.subr.mxu0 0.0
        %1915 = vmatpush1.xpose.msra.mxu0 0.0
        %1916 = vmatprep.subr.mxu0 0.0
        %1917 = vmatpush1.xpose.msra.mxu0 0.0
        %1918 = vmatprep.subr.mxu0 0.0
        %1919 = vmatpush1.xpose.msra.mxu0 0.0
        %1920 = vmatprep.subr.mxu0 0.0
        %1921 = vmatpush1.xpose.msra.mxu0 0.0
        %1922 = vmatprep.subr.mxu0 0.0
        %1923 = vmatpush1.xpose.msra.mxu0 0.0
        %1924 = vmatprep.subr.mxu0 0.0
        %1925 = vmatpush1.xpose.msra.mxu0 0.0
        %1926 = vmatprep.subr.mxu0 0.0
        %1927 = vmatpush1.xpose.msra.mxu0 0.0
        %1928 = vmatprep.subr.mxu0 0.0
        %1929 = vmatpush1.xpose.msra.mxu0 0.0
        %1930 = vmatprep.subr.mxu0 0.0
        %1931 = vmatpush1.xpose.msra.mxu0 0.0
        %1932 = vmatprep.subr.mxu0 0.0
        %1933 = vmatpush1.xpose.msra.mxu0 0.0
        %1934 = vmatprep.subr.mxu0 0.0
        %1935 = vmatpush1.xpose.msra.mxu0 0.0
        %1936 = vmatprep.subr.mxu0 0.0
        %1937 = vmatpush1.xpose.msra.mxu0 0.0
        %1938 = vmatprep.subr.mxu0 0.0
        %1939 = vmatpush1.xpose.msra.mxu0 0.0
        %1940 = vmatprep.subr.mxu0 0.0
        %1941 = vmatpush1.xpose.msra.mxu0 0.0
        %1942 = vmatprep.subr.mxu0 0.0
        %1943 = vmatpush1.xpose.msra.mxu0 0.0
        %1944 = vmatprep.subr.mxu0 0.0
        %1945 = vmatpush1.xpose.msra.mxu0 0.0
        %1946 = vmatprep.mubr.f32.mxu0 0.0
        %1947 = vmatmul.mubr.f32.gmra.mrb[0].mxu0 %v1876
        %v1948 = vpop.f32.mrb[0].mxu0
        %v1949 = vadd.f32 0.0, %v1948
        %v1950 = vpop.f32.mrb[0].mxu0
        %1951 = vdwg.mxu0
        %v1952 = vmul.f32 %v1949, 0.5
        %v1953 = vsel %vm1437, %v1952, -inf
        %1954 = vmax.xlane.f32.xlu0 %v1953
        %v1955 = vpop.xlane.xlu0 %1954
        %v1956 = vsub.f32 %v1952, %v1955
        %v1957 = vmul.f32 %v1956, 1.442695
        %v1958 = vpow.pop %v1957
        %v1959 = vsel %vm1437, %v1958, 0.0
        %1960 = vadd.xlane.f32.xlu0 %v1959
        %v1961 = vpop.xlane.xlu0 %1960
        %v1962 = vrcp.pop %v1961
        %v1963 = vmul.f32 %v1958, %v1962
        %1964 = vrot.lane.b32.xlu0 %v1166, 116
        %v1965 = vpop.permute.xlu0 %1964
        %1966 = vrot.lane.b32.xlu0 %v1171, 116
        %v1967 = vpop.permute.xlu0 %1966
        %v1971 = vsel %vm1437, %v1963, 0
        %1973 = vmatprep.subr.mxu0 0.0
        %1974 = vmatpush1.msra.mxu0 %v1965
        %1975 = vmatprep.subr.mxu0 0.0
        %1976 = vmatpush1.msra.mxu0 %v1967
        %1977 = vmatprep.subr.mxu0 0.0
        %1978 = vmatpush1.msra.mxu0 0.0
        %1979 = vmatprep.subr.mxu0 0.0
        %1980 = vmatpush1.msra.mxu0 0.0
        %1981 = vmatprep.subr.mxu0 0.0
        %1982 = vmatpush1.msra.mxu0 0.0
        %1983 = vmatprep.subr.mxu0 0.0
        %1984 = vmatpush1.msra.mxu0 0.0
        %1985 = vmatprep.subr.mxu0 0.0
        %1986 = vmatpush1.msra.mxu0 0.0
        %1987 = vmatprep.subr.mxu0 0.0
        %1988 = vmatpush1.msra.mxu0 0.0
        %1989 = vmatprep.subr.mxu0 0.0
        %1990 = vmatpush1.msra.mxu0 0.0
        %1991 = vmatprep.subr.mxu0 0.0
        %1992 = vmatpush1.msra.mxu0 0.0
        %1993 = vmatprep.subr.mxu0 0.0
        %1994 = vmatpush1.msra.mxu0 0.0
        %1995 = vmatprep.subr.mxu0 0.0
        %1996 = vmatpush1.msra.mxu0 0.0
        %1997 = vmatprep.subr.mxu0 0.0
        %1998 = vmatpush1.msra.mxu0 0.0
        %1999 = vmatprep.subr.mxu0 0.0
        %2000 = vmatpush1.msra.mxu0 0.0
        %2001 = vmatprep.subr.mxu0 0.0
        %2002 = vmatpush1.msra.mxu0 0.0
        %2003 = vmatprep.subr.mxu0 0.0
        %2004 = vmatpush1.msra.mxu0 0.0
        %2005 = vmatprep.subr.mxu0 0.0
        %2006 = vmatpush1.msra.mxu0 0.0
        %2007 = vmatprep.subr.mxu0 0.0
        %2008 = vmatpush1.msra.mxu0 0.0
        %2009 = vmatprep.subr.mxu0 0.0
        %2010 = vmatpush1.msra.mxu0 0.0
        %2011 = vmatprep.subr.mxu0 0.0
        %2012 = vmatpush1.msra.mxu0 0.0
        %2013 = vmatprep.subr.mxu0 0.0
        %2014 = vmatpush1.msra.mxu0 0.0
        %2015 = vmatprep.subr.mxu0 0.0
        %2016 = vmatpush1.msra.mxu0 0.0
        %2017 = vmatprep.subr.mxu0 0.0
        %2018 = vmatpush1.msra.mxu0 0.0
        %2019 = vmatprep.subr.mxu0 0.0
        %2020 = vmatpush1.msra.mxu0 0.0
        %2021 = vmatprep.subr.mxu0 0.0
        %2022 = vmatpush1.msra.mxu0 0.0
        %2023 = vmatprep.subr.mxu0 0.0
        %2024 = vmatpush1.msra.mxu0 0.0
        %2025 = vmatprep.subr.mxu0 0.0
        %2026 = vmatpush1.msra.mxu0 0.0
        %2027 = vmatprep.subr.mxu0 0.0
        %2028 = vmatpush1.msra.mxu0 0.0
        %2029 = vmatprep.subr.mxu0 0.0
        %2030 = vmatpush1.msra.mxu0 0.0
        %2031 = vmatprep.subr.mxu0 0.0
        %2032 = vmatpush1.msra.mxu0 0.0
        %2033 = vmatprep.subr.mxu0 0.0
        %2034 = vmatpush1.msra.mxu0 0.0
        %2035 = vmatprep.subr.mxu0 0.0
        %2036 = vmatpush1.msra.mxu0 0.0
        %2037 = vmatprep.mubr.f32.mxu0 0.0
        %2038 = vmatmul.mubr.f32.gmra.mrb[0].mxu0 %v1971
        %v2039 = vpop.f32.mrb[0].mxu0
        %v2040 = vadd.f32 0.0, %v2039
        %v2041 = vpop.f32.mrb[0].mxu0
        %2042 = vdwg.mxu0
        %2043 = vrot.lane.b32.xlu0 %v990, 112
        %v2044 = vpop.permute.xlu0 %2043
        %2045 = vrot.lane.b32.xlu0 %v1075, 112
        %v2046 = vpop.permute.xlu0 %2045
        %2047 = vrot.lane.b32.xlu0 %v1080, 112
        %v2048 = vpop.permute.xlu0 %2047
        %v2049 = vsel %vm1356, %v2044, 0
        %v2051 = vsel %vm1356, %v2046, 0
        %v2053 = vsel %vm1356, %v2048, 0
        %2055 = vmatprep.subr.mxu0 0.0
        %2056 = vmatpush1.xpose.msra.mxu0 %v2051
        %2057 = vmatprep.subr.mxu0 0.0
        %2058 = vmatpush1.xpose.msra.mxu0 %v2053
        %2059 = vmatprep.subr.mxu0 0.0
        %2060 = vmatpush1.xpose.msra.mxu0 0.0
        %2061 = vmatprep.subr.mxu0 0.0
        %2062 = vmatpush1.xpose.msra.mxu0 0.0
        %2063 = vmatprep.subr.mxu0 0.0
        %2064 = vmatpush1.xpose.msra.mxu0 0.0
        %2065 = vmatprep.subr.mxu0 0.0
        %2066 = vmatpush1.xpose.msra.mxu0 0.0
        %2067 = vmatprep.subr.mxu0 0.0
        %2068 = vmatpush1.xpose.msra.mxu0 0.0
        %2069 = vmatprep.subr.mxu0 0.0
        %2070 = vmatpush1.xpose.msra.mxu0 0.0
        %2071 = vmatprep.subr.mxu0 0.0
        %2072 = vmatpush1.xpose.msra.mxu0 0.0
        %2073 = vmatprep.subr.mxu0 0.0
        %2074 = vmatpush1.xpose.msra.mxu0 0.0
        %2075 = vmatprep.subr.mxu0 0.0
        %2076 = vmatpush1.xpose.msra.mxu0 0.0
        %2077 = vmatprep.subr.mxu0 0.0
        %2078 = vmatpush1.xpose.msra.mxu0 0.0
        %2079 = vmatprep.subr.mxu0 0.0
        %2080 = vmatpush1.xpose.msra.mxu0 0.0
        %2081 = vmatprep.subr.mxu0 0.0
        %2082 = vmatpush1.xpose.msra.mxu0 0.0
        %2083 = vmatprep.subr.mxu0 0.0
        %2084 = vmatpush1.xpose.msra.mxu0 0.0
        %2085 = vmatprep.subr.mxu0 0.0
        %2086 = vmatpush1.xpose.msra.mxu0 0.0
        %2087 = vmatprep.subr.mxu0 0.0
        %2088 = vmatpush1.xpose.msra.mxu0 0.0
        %2089 = vmatprep.subr.mxu0 0.0
        %2090 = vmatpush1.xpose.msra.mxu0 0.0
        %2091 = vmatprep.subr.mxu0 0.0
        %2092 = vmatpush1.xpose.msra.mxu0 0.0
        %2093 = vmatprep.subr.mxu0 0.0
        %2094 = vmatpush1.xpose.msra.mxu0 0.0
        %2095 = vmatprep.subr.mxu0 0.0
        %2096 = vmatpush1.xpose.msra.mxu0 0.0
        %2097 = vmatprep.subr.mxu0 0.0
        %2098 = vmatpush1.xpose.msra.mxu0 0.0
        %2099 = vmatprep.subr.mxu0 0.0
        %2100 = vmatpush1.xpose.msra.mxu0 0.0
        %2101 = vmatprep.subr.mxu0 0.0
        %2102 = vmatpush1.xpose.msra.mxu0 0.0
        %2103 = vmatprep.subr.mxu0 0.0
        %2104 = vmatpush1.xpose.msra.mxu0 0.0
        %2105 = vmatprep.subr.mxu0 0.0
        %2106 = vmatpush1.xpose.msra.mxu0 0.0
        %2107 = vmatprep.subr.mxu0 0.0
        %2108 = vmatpush1.xpose.msra.mxu0 0.0
        %2109 = vmatprep.subr.mxu0 0.0
        %2110 = vmatpush1.xpose.msra.mxu0 0.0
        %2111 = vmatprep.subr.mxu0 0.0
        %2112 = vmatpush1.xpose.msra.mxu0 0.0
        %2113 = vmatprep.subr.mxu0 0.0
        %2114 = vmatpush1.xpose.msra.mxu0 0.0
        %2115 = vmatprep.subr.mxu0 0.0
        %2116 = vmatpush1.xpose.msra.mxu0 0.0
        %2117 = vmatprep.subr.mxu0 0.0
        %2118 = vmatpush1.xpose.msra.mxu0 0.0
        %2119 = vmatprep.mubr.f32.mxu0 0.0
        %2120 = vmatmul.mubr.f32.gmra.mrb[0].mxu0 %v2049
        %v2121 = vpop.f32.mrb[0].mxu0
        %v2122 = vadd.f32 0.0, %v2121
        %v2123 = vpop.f32.mrb[0].mxu0
        %2124 = vdwg.mxu0
        %v2125 = vmul.f32 %v2122, 0.5
        %v2126 = vsel %vm1437, %v2125, -inf
        %2127 = vmax.xlane.f32.xlu0 %v2126
        %v2128 = vpop.xlane.xlu0 %2127
        %v2129 = vsub.f32 %v2125, %v2128
        %v2130 = vmul.f32 %v2129, 1.442695
        %v2131 = vpow.pop %v2130
        %v2132 = vsel %vm1437, %v2131, 0.0
        %2133 = vadd.xlane.f32.xlu0 %v2132
        %v2134 = vpop.xlane.xlu0 %2133
        %v2135 = vrcp.pop %v2134
        %v2136 = vmul.f32 %v2131, %v2135
        %2137 = vrot.lane.b32.xlu0 %v1166, 112
        %v2138 = vpop.permute.xlu0 %2137
        %2139 = vrot.lane.b32.xlu0 %v1171, 112
        %v2140 = vpop.permute.xlu0 %2139
        %v2144 = vsel %vm1437, %v2136, 0
        %2146 = vmatprep.subr.mxu0 0.0
        %2147 = vmatpush1.msra.mxu0 %v2138
        %2148 = vmatprep.subr.mxu0 0.0
        %2149 = vmatpush1.msra.mxu0 %v2140
        %2150 = vmatprep.subr.mxu0 0.0
        %2151 = vmatpush1.msra.mxu0 0.0
        %2152 = vmatprep.subr.mxu0 0.0
        %2153 = vmatpush1.msra.mxu0 0.0
        %2154 = vmatprep.subr.mxu0 0.0
        %2155 = vmatpush1.msra.mxu0 0.0
        %2156 = vmatprep.subr.mxu0 0.0
        %2157 = vmatpush1.msra.mxu0 0.0
        %2158 = vmatprep.subr.mxu0 0.0
        %2159 = vmatpush1.msra.mxu0 0.0
        %2160 = vmatprep.subr.mxu0 0.0
        %2161 = vmatpush1.msra.mxu0 0.0
        %2162 = vmatprep.subr.mxu0 0.0
        %2163 = vmatpush1.msra.mxu0 0.0
        %2164 = vmatprep.subr.mxu0 0.0
        %2165 = vmatpush1.msra.mxu0 0.0
        %2166 = vmatprep.subr.mxu0 0.0
        %2167 = vmatpush1.msra.mxu0 0.0
        %2168 = vmatprep.subr.mxu0 0.0
        %2169 = vmatpush1.msra.mxu0 0.0
        %2170 = vmatprep.subr.mxu0 0.0
        %2171 = vmatpush1.msra.mxu0 0.0
        %2172 = vmatprep.subr.mxu0 0.0
        %2173 = vmatpush1.msra.mxu0 0.0
        %2174 = vmatprep.subr.mxu0 0.0
        %2175 = vmatpush1.msra.mxu0 0.0
        %2176 = vmatprep.subr.mxu0 0.0
        %2177 = vmatpush1.msra.mxu0 0.0
        %2178 = vmatprep.subr.mxu0 0.0
        %2179 = vmatpush1.msra.mxu0 0.0
        %2180 = vmatprep.subr.mxu0 0.0
        %2181 = vmatpush1.msra.mxu0 0.0
        %2182 = vmatprep.subr.mxu0 0.0
        %2183 = vmatpush1.msra.mxu0 0.0
        %2184 = vmatprep.subr.mxu0 0.0
        %2185 = vmatpush1.msra.mxu0 0.0
        %2186 = vmatprep.subr.mxu0 0.0
        %2187 = vmatpush1.msra.mxu0 0.0
        %2188 = vmatprep.subr.mxu0 0.0
        %2189 = vmatpush1.msra.mxu0 0.0
        %2190 = vmatprep.subr.mxu0 0.0
        %2191 = vmatpush1.msra.mxu0 0.0
        %2192 = vmatprep.subr.mxu0 0.0
        %2193 = vmatpush1.msra.mxu0 0.0
        %2194 = vmatprep.subr.mxu0 0.0
        %2195 = vmatpush1.msra.mxu0 0.0
        %2196 = vmatprep.subr.mxu0 0.0
        %2197 = vmatpush1.msra.mxu0 0.0
        %2198 = vmatprep.subr.mxu0 0.0
        %2199 = vmatpush1.msra.mxu0 0.0
        %2200 = vmatprep.subr.mxu0 0.0
        %2201 = vmatpush1.msra.mxu0 0.0
        %2202 = vmatprep.subr.mxu0 0.0
        %2203 = vmatpush1.msra.mxu0 0.0
        %2204 = vmatprep.subr.mxu0 0.0
        %2205 = vmatpush1.msra.mxu0 0.0
        %2206 = vmatprep.subr.mxu0 0.0
        %2207 = vmatpush1.msra.mxu0 0.0
        %2208 = vmatprep.subr.mxu0 0.0
        %2209 = vmatpush1.msra.mxu0 0.0
        %2210 = vmatprep.mubr.f32.mxu0 0.0
        %2211 = vmatmul.mubr.f32.gmra.mrb[0].mxu0 %v2144
        %v2212 = vpop.f32.mrb[0].mxu0
        %v2213 = vadd.f32 0.0, %v2212
        %v2214 = vpop.f32.mrb[0].mxu0
        %2215 = vdwg.mxu0
        %2216 = vrot.lane.b32.xlu0 %v990, 108
        %v2217 = vpop.permute.xlu0 %2216
        %2218 = vrot.lane.b32.xlu0 %v1075, 108
        %v2219 = vpop.permute.xlu0 %2218
        %2220 = vrot.lane.b32.xlu0 %v1080, 108
        %v2221 = vpop.permute.xlu0 %2220
        %v2222 = vsel %vm1356, %v2217, 0
        %v2224 = vsel %vm1356, %v2219, 0
        %v2226 = vsel %vm1356, %v2221, 0
        %2228 = vmatprep.subr.mxu0 0.0
        %2229 = vmatpush1.xpose.msra.mxu0 %v2224
        %2230 = vmatprep.subr.mxu0 0.0
        %2231 = vmatpush1.xpose.msra.mxu0 %v2226
        %2232 = vmatprep.subr.mxu0 0.0
        %2233 = vmatpush1.xpose.msra.mxu0 0.0
        %2234 = vmatprep.subr.mxu0 0.0
        %2235 = vmatpush1.xpose.msra.mxu0 0.0
        %2236 = vmatprep.subr.mxu0 0.0
        %2237 = vmatpush1.xpose.msra.mxu0 0.0
        %2238 = vmatprep.subr.mxu0 0.0
        %2239 = vmatpush1.xpose.msra.mxu0 0.0
        %2240 = vmatprep.subr.mxu0 0.0
        %2241 = vmatpush1.xpose.msra.mxu0 0.0
        %2242 = vmatprep.subr.mxu0 0.0
        %2243 = vmatpush1.xpose.msra.mxu0 0.0
        %2244 = vmatprep.subr.mxu0 0.0
        %2245 = vmatpush1.xpose.msra.mxu0 0.0
        %2246 = vmatprep.subr.mxu0 0.0
        %2247 = vmatpush1.xpose.msra.mxu0 0.0
        %2248 = vmatprep.subr.mxu0 0.0
        %2249 = vmatpush1.xpose.msra.mxu0 0.0
        %2250 = vmatprep.subr.mxu0 0.0
        %2251 = vmatpush1.xpose.msra.mxu0 0.0
        %2252 = vmatprep.subr.mxu0 0.0
        %2253 = vmatpush1.xpose.msra.mxu0 0.0
        %2254 = vmatprep.subr.mxu0 0.0
        %2255 = vmatpush1.xpose.msra.mxu0 0.0
        %2256 = vmatprep.subr.mxu0 0.0
        %2257 = vmatpush1.xpose.msra.mxu0 0.0
        %2258 = vmatprep.subr.mxu0 0.0
        %2259 = vmatpush1.xpose.msra.mxu0 0.0
        %2260 = vmatprep.subr.mxu0 0.0
        %2261 = vmatpush1.xpose.msra.mxu0 0.0
        %2262 = vmatprep.subr.mxu0 0.0
        %2263 = vmatpush1.xpose.msra.mxu0 0.0
        %2264 = vmatprep.subr.mxu0 0.0
        %2265 = vmatpush1.xpose.msra.mxu0 0.0
        %2266 = vmatprep.subr.mxu0 0.0
        %2267 = vmatpush1.xpose.msra.mxu0 0.0
        %2268 = vmatprep.subr.mxu0 0.0
        %2269 = vmatpush1.xpose.msra.mxu0 0.0
        %2270 = vmatprep.subr.mxu0 0.0
        %2271 = vmatpush1.xpose.msra.mxu0 0.0
        %2272 = vmatprep.subr.mxu0 0.0
        %2273 = vmatpush1.xpose.msra.mxu0 0.0
        %2274 = vmatprep.subr.mxu0 0.0
        %2275 = vmatpush1.xpose.msra.mxu0 0.0
        %2276 = vmatprep.subr.mxu0 0.0
        %2277 = vmatpush1.xpose.msra.mxu0 0.0
        %2278 = vmatprep.subr.mxu0 0.0
        %2279 = vmatpush1.xpose.msra.mxu0 0.0
        %2280 = vmatprep.subr.mxu0 0.0
        %2281 = vmatpush1.xpose.msra.mxu0 0.0
        %2282 = vmatprep.subr.mxu0 0.0
        %2283 = vmatpush1.xpose.msra.mxu0 0.0
        %2284 = vmatprep.subr.mxu0 0.0
        %2285 = vmatpush1.xpose.msra.mxu0 0.0
        %2286 = vmatprep.subr.mxu0 0.0
        %2287 = vmatpush1.xpose.msra.mxu0 0.0
        %2288 = vmatprep.subr.mxu0 0.0
        %2289 = vmatpush1.xpose.msra.mxu0 0.0
        %2290 = vmatprep.subr.mxu0 0.0
        %2291 = vmatpush1.xpose.msra.mxu0 0.0
        %2292 = vmatprep.mubr.f32.mxu0 0.0
        %2293 = vmatmul.mubr.f32.gmra.mrb[0].mxu0 %v2222
        %v2294 = vpop.f32.mrb[0].mxu0
        %v2295 = vadd.f32 0.0, %v2294
        %v2296 = vpop.f32.mrb[0].mxu0
        %2297 = vdwg.mxu0
        %v2298 = vmul.f32 %v2295, 0.5
        %v2299 = vsel %vm1437, %v2298, -inf
        %2300 = vmax.xlane.f32.xlu0 %v2299
        %v2301 = vpop.xlane.xlu0 %2300
        %v2302 = vsub.f32 %v2298, %v2301
        %v2303 = vmul.f32 %v2302, 1.442695
        %v2304 = vpow.pop %v2303
        %v2305 = vsel %vm1437, %v2304, 0.0
        %2306 = vadd.xlane.f32.xlu0 %v2305
        %v2307 = vpop.xlane.xlu0 %2306
        %v2308 = vrcp.pop %v2307
        %v2309 = vmul.f32 %v2304, %v2308
        %2310 = vrot.lane.b32.xlu0 %v1166, 108
        %v2311 = vpop.permute.xlu0 %2310
        %2312 = vrot.lane.b32.xlu0 %v1171, 108
        %v2313 = vpop.permute.xlu0 %2312
        %v2317 = vsel %vm1437, %v2309, 0
        %2319 = vmatprep.subr.mxu0 0.0
        %2320 = vmatpush1.msra.mxu0 %v2311
        %2321 = vmatprep.subr.mxu0 0.0
        %2322 = vmatpush1.msra.mxu0 %v2313
        %2323 = vmatprep.subr.mxu0 0.0
        %2324 = vmatpush1.msra.mxu0 0.0
        %2325 = vmatprep.subr.mxu0 0.0
        %2326 = vmatpush1.msra.mxu0 0.0
        %2327 = vmatprep.subr.mxu0 0.0
        %2328 = vmatpush1.msra.mxu0 0.0
        %2329 = vmatprep.subr.mxu0 0.0
        %2330 = vmatpush1.msra.mxu0 0.0
        %2331 = vmatprep.subr.mxu0 0.0
        %2332 = vmatpush1.msra.mxu0 0.0
        %2333 = vmatprep.subr.mxu0 0.0
        %2334 = vmatpush1.msra.mxu0 0.0
        %2335 = vmatprep.subr.mxu0 0.0
        %2336 = vmatpush1.msra.mxu0 0.0
        %2337 = vmatprep.subr.mxu0 0.0
        %2338 = vmatpush1.msra.mxu0 0.0
        %2339 = vmatprep.subr.mxu0 0.0
        %2340 = vmatpush1.msra.mxu0 0.0
        %2341 = vmatprep.subr.mxu0 0.0
        %2342 = vmatpush1.msra.mxu0 0.0
        %2343 = vmatprep.subr.mxu0 0.0
        %2344 = vmatpush1.msra.mxu0 0.0
        %2345 = vmatprep.subr.mxu0 0.0
        %2346 = vmatpush1.msra.mxu0 0.0
        %2347 = vmatprep.subr.mxu0 0.0
        %2348 = vmatpush1.msra.mxu0 0.0
        %2349 = vmatprep.subr.mxu0 0.0
        %2350 = vmatpush1.msra.mxu0 0.0
        %2351 = vmatprep.subr.mxu0 0.0
        %2352 = vmatpush1.msra.mxu0 0.0
        %2353 = vmatprep.subr.mxu0 0.0
        %2354 = vmatpush1.msra.mxu0 0.0
        %2355 = vmatprep.subr.mxu0 0.0
        %2356 = vmatpush1.msra.mxu0 0.0
        %2357 = vmatprep.subr.mxu0 0.0
        %2358 = vmatpush1.msra.mxu0 0.0
        %2359 = vmatprep.subr.mxu0 0.0
        %2360 = vmatpush1.msra.mxu0 0.0
        %2361 = vmatprep.subr.mxu0 0.0
        %2362 = vmatpush1.msra.mxu0 0.0
        %2363 = vmatprep.subr.mxu0 0.0
        %2364 = vmatpush1.msra.mxu0 0.0
        %2365 = vmatprep.subr.mxu0 0.0
        %2366 = vmatpush1.msra.mxu0 0.0
        %2367 = vmatprep.subr.mxu0 0.0
        %2368 = vmatpush1.msra.mxu0 0.0
        %2369 = vmatprep.subr.mxu0 0.0
        %2370 = vmatpush1.msra.mxu0 0.0
        %2371 = vmatprep.subr.mxu0 0.0
        %2372 = vmatpush1.msra.mxu0 0.0
        %2373 = vmatprep.subr.mxu0 0.0
        %2374 = vmatpush1.msra.mxu0 0.0
        %2375 = vmatprep.subr.mxu0 0.0
        %2376 = vmatpush1.msra.mxu0 0.0
        %2377 = vmatprep.subr.mxu0 0.0
        %2378 = vmatpush1.msra.mxu0 0.0
        %2379 = vmatprep.subr.mxu0 0.0
        %2380 = vmatpush1.msra.mxu0 0.0
        %2381 = vmatprep.subr.mxu0 0.0
        %2382 = vmatpush1.msra.mxu0 0.0
        %2383 = vmatprep.mubr.f32.mxu0 0.0
        %2384 = vmatmul.mubr.f32.gmra.mrb[0].mxu0 %v2317
        %v2385 = vpop.f32.mrb[0].mxu0
        %v2386 = vadd.f32 0.0, %v2385
        %v2387 = vpop.f32.mrb[0].mxu0
        %2388 = vdwg.mxu0
        %2389 = vrot.lane.b32.xlu0 %v990, 104
        %v2390 = vpop.permute.xlu0 %2389
        %2391 = vrot.lane.b32.xlu0 %v1075, 104
        %v2392 = vpop.permute.xlu0 %2391
        %2393 = vrot.lane.b32.xlu0 %v1080, 104
        %v2394 = vpop.permute.xlu0 %2393
        %v2395 = vsel %vm1356, %v2390, 0
        %v2397 = vsel %vm1356, %v2392, 0
        %v2399 = vsel %vm1356, %v2394, 0
        %2401 = vmatprep.subr.mxu0 0.0
        %2402 = vmatpush1.xpose.msra.mxu0 %v2397
        %2403 = vmatprep.subr.mxu0 0.0
        %2404 = vmatpush1.xpose.msra.mxu0 %v2399
        %2405 = vmatprep.subr.mxu0 0.0
        %2406 = vmatpush1.xpose.msra.mxu0 0.0
        %2407 = vmatprep.subr.mxu0 0.0
        %2408 = vmatpush1.xpose.msra.mxu0 0.0
        %2409 = vmatprep.subr.mxu0 0.0
        %2410 = vmatpush1.xpose.msra.mxu0 0.0
        %2411 = vmatprep.subr.mxu0 0.0
        %2412 = vmatpush1.xpose.msra.mxu0 0.0
        %2413 = vmatprep.subr.mxu0 0.0
        %2414 = vmatpush1.xpose.msra.mxu0 0.0
        %2415 = vmatprep.subr.mxu0 0.0
        %2416 = vmatpush1.xpose.msra.mxu0 0.0
        %2417 = vmatprep.subr.mxu0 0.0
        %2418 = vmatpush1.xpose.msra.mxu0 0.0
        %2419 = vmatprep.subr.mxu0 0.0
        %2420 = vmatpush1.xpose.msra.mxu0 0.0
        %2421 = vmatprep.subr.mxu0 0.0
        %2422 = vmatpush1.xpose.msra.mxu0 0.0
        %2423 = vmatprep.subr.mxu0 0.0
        %2424 = vmatpush1.xpose.msra.mxu0 0.0
        %2425 = vmatprep.subr.mxu0 0.0
        %2426 = vmatpush1.xpose.msra.mxu0 0.0
        %2427 = vmatprep.subr.mxu0 0.0
        %2428 = vmatpush1.xpose.msra.mxu0 0.0
        %2429 = vmatprep.subr.mxu0 0.0
        %2430 = vmatpush1.xpose.msra.mxu0 0.0
        %2431 = vmatprep.subr.mxu0 0.0
        %2432 = vmatpush1.xpose.msra.mxu0 0.0
        %2433 = vmatprep.subr.mxu0 0.0
        %2434 = vmatpush1.xpose.msra.mxu0 0.0
        %2435 = vmatprep.subr.mxu0 0.0
        %2436 = vmatpush1.xpose.msra.mxu0 0.0
        %2437 = vmatprep.subr.mxu0 0.0
        %2438 = vmatpush1.xpose.msra.mxu0 0.0
        %2439 = vmatprep.subr.mxu0 0.0
        %2440 = vmatpush1.xpose.msra.mxu0 0.0
        %2441 = vmatprep.subr.mxu0 0.0
        %2442 = vmatpush1.xpose.msra.mxu0 0.0
        %2443 = vmatprep.subr.mxu0 0.0
        %2444 = vmatpush1.xpose.msra.mxu0 0.0
        %2445 = vmatprep.subr.mxu0 0.0
        %2446 = vmatpush1.xpose.msra.mxu0 0.0
        %2447 = vmatprep.subr.mxu0 0.0
        %2448 = vmatpush1.xpose.msra.mxu0 0.0
        %2449 = vmatprep.subr.mxu0 0.0
        %2450 = vmatpush1.xpose.msra.mxu0 0.0
        %2451 = vmatprep.subr.mxu0 0.0
        %2452 = vmatpush1.xpose.msra.mxu0 0.0
        %2453 = vmatprep.subr.mxu0 0.0
        %2454 = vmatpush1.xpose.msra.mxu0 0.0
        %2455 = vmatprep.subr.mxu0 0.0
        %2456 = vmatpush1.xpose.msra.mxu0 0.0
        %2457 = vmatprep.subr.mxu0 0.0
        %2458 = vmatpush1.xpose.msra.mxu0 0.0
        %2459 = vmatprep.subr.mxu0 0.0
        %2460 = vmatpush1.xpose.msra.mxu0 0.0
        %2461 = vmatprep.subr.mxu0 0.0
        %2462 = vmatpush1.xpose.msra.mxu0 0.0
        %2463 = vmatprep.subr.mxu0 0.0
        %2464 = vmatpush1.xpose.msra.mxu0 0.0
        %2465 = vmatprep.mubr.f32.mxu0 0.0
        %2466 = vmatmul.mubr.f32.gmra.mrb[0].mxu0 %v2395
        %v2467 = vpop.f32.mrb[0].mxu0
        %v2468 = vadd.f32 0.0, %v2467
        %v2469 = vpop.f32.mrb[0].mxu0
        %2470 = vdwg.mxu0
        %v2471 = vmul.f32 %v2468, 0.5
        %v2472 = vsel %vm1437, %v2471, -inf
        %2473 = vmax.xlane.f32.xlu0 %v2472
        %v2474 = vpop.xlane.xlu0 %2473
        %v2475 = vsub.f32 %v2471, %v2474
        %v2476 = vmul.f32 %v2475, 1.442695
        %v2477 = vpow.pop %v2476
        %v2478 = vsel %vm1437, %v2477, 0.0
        %2479 = vadd.xlane.f32.xlu0 %v2478
        %v2480 = vpop.xlane.xlu0 %2479
        %v2481 = vrcp.pop %v2480
        %v2482 = vmul.f32 %v2477, %v2481
        %2483 = vrot.lane.b32.xlu0 %v1166, 104
        %v2484 = vpop.permute.xlu0 %2483
        %2485 = vrot.lane.b32.xlu0 %v1171, 104
        %v2486 = vpop.permute.xlu0 %2485
        %v2490 = vsel %vm1437, %v2482, 0
        %2492 = vmatprep.subr.mxu0 0.0
        %2493 = vmatpush1.msra.mxu0 %v2484
        %2494 = vmatprep.subr.mxu0 0.0
        %2495 = vmatpush1.msra.mxu0 %v2486
        %2496 = vmatprep.subr.mxu0 0.0
        %2497 = vmatpush1.msra.mxu0 0.0
        %2498 = vmatprep.subr.mxu0 0.0
        %2499 = vmatpush1.msra.mxu0 0.0
        %2500 = vmatprep.subr.mxu0 0.0
        %2501 = vmatpush1.msra.mxu0 0.0
        %2502 = vmatprep.subr.mxu0 0.0
        %2503 = vmatpush1.msra.mxu0 0.0
        %2504 = vmatprep.subr.mxu0 0.0
        %2505 = vmatpush1.msra.mxu0 0.0
        %2506 = vmatprep.subr.mxu0 0.0
        %2507 = vmatpush1.msra.mxu0 0.0
        %2508 = vmatprep.subr.mxu0 0.0
        %2509 = vmatpush1.msra.mxu0 0.0
        %2510 = vmatprep.subr.mxu0 0.0
        %2511 = vmatpush1.msra.mxu0 0.0
        %2512 = vmatprep.subr.mxu0 0.0
        %2513 = vmatpush1.msra.mxu0 0.0
        %2514 = vmatprep.subr.mxu0 0.0
        %2515 = vmatpush1.msra.mxu0 0.0
        %2516 = vmatprep.subr.mxu0 0.0
        %2517 = vmatpush1.msra.mxu0 0.0
        %2518 = vmatprep.subr.mxu0 0.0
        %2519 = vmatpush1.msra.mxu0 0.0
        %2520 = vmatprep.subr.mxu0 0.0
        %2521 = vmatpush1.msra.mxu0 0.0
        %2522 = vmatprep.subr.mxu0 0.0
        %2523 = vmatpush1.msra.mxu0 0.0
        %2524 = vmatprep.subr.mxu0 0.0
        %2525 = vmatpush1.msra.mxu0 0.0
        %2526 = vmatprep.subr.mxu0 0.0
        %2527 = vmatpush1.msra.mxu0 0.0
        %2528 = vmatprep.subr.mxu0 0.0
        %2529 = vmatpush1.msra.mxu0 0.0
        %2530 = vmatprep.subr.mxu0 0.0
        %2531 = vmatpush1.msra.mxu0 0.0
        %2532 = vmatprep.subr.mxu0 0.0
        %2533 = vmatpush1.msra.mxu0 0.0
        %2534 = vmatprep.subr.mxu0 0.0
        %2535 = vmatpush1.msra.mxu0 0.0
        %2536 = vmatprep.subr.mxu0 0.0
        %2537 = vmatpush1.msra.mxu0 0.0
        %2538 = vmatprep.subr.mxu0 0.0
        %2539 = vmatpush1.msra.mxu0 0.0
        %2540 = vmatprep.subr.mxu0 0.0
        %2541 = vmatpush1.msra.mxu0 0.0
        %2542 = vmatprep.subr.mxu0 0.0
        %2543 = vmatpush1.msra.mxu0 0.0
        %2544 = vmatprep.subr.mxu0 0.0
        %2545 = vmatpush1.msra.mxu0 0.0
        %2546 = vmatprep.subr.mxu0 0.0
        %2547 = vmatpush1.msra.mxu0 0.0
        %2548 = vmatprep.subr.mxu0 0.0
        %2549 = vmatpush1.msra.mxu0 0.0
        %2550 = vmatprep.subr.mxu0 0.0
        %2551 = vmatpush1.msra.mxu0 0.0
        %2552 = vmatprep.subr.mxu0 0.0
        %2553 = vmatpush1.msra.mxu0 0.0
        %2554 = vmatprep.subr.mxu0 0.0
        %2555 = vmatpush1.msra.mxu0 0.0
        %2556 = vmatprep.mubr.f32.mxu0 0.0
        %2557 = vmatmul.mubr.f32.gmra.mrb[0].mxu0 %v2490
        %v2558 = vpop.f32.mrb[0].mxu0
        %v2559 = vadd.f32 0.0, %v2558
        %v2560 = vpop.f32.mrb[0].mxu0
        %2561 = vdwg.mxu0
        %2562 = vrot.lane.b32.xlu0 %v990, 100
        %v2563 = vpop.permute.xlu0 %2562
        %2564 = vrot.lane.b32.xlu0 %v1075, 100
        %v2565 = vpop.permute.xlu0 %2564
        %2566 = vrot.lane.b32.xlu0 %v1080, 100
        %v2567 = vpop.permute.xlu0 %2566
        %v2568 = vsel %vm1356, %v2563, 0
        %v2570 = vsel %vm1356, %v2565, 0
        %v2572 = vsel %vm1356, %v2567, 0
        %2574 = vmatprep.subr.mxu0 0.0
        %2575 = vmatpush1.xpose.msra.mxu0 %v2570
        %2576 = vmatprep.subr.mxu0 0.0
        %2577 = vmatpush1.xpose.msra.mxu0 %v2572
        %2578 = vmatprep.subr.mxu0 0.0
        %2579 = vmatpush1.xpose.msra.mxu0 0.0
        %2580 = vmatprep.subr.mxu0 0.0
        %2581 = vmatpush1.xpose.msra.mxu0 0.0
        %2582 = vmatprep.subr.mxu0 0.0
        %2583 = vmatpush1.xpose.msra.mxu0 0.0
        %2584 = vmatprep.subr.mxu0 0.0
        %2585 = vmatpush1.xpose.msra.mxu0 0.0
        %2586 = vmatprep.subr.mxu0 0.0
        %2587 = vmatpush1.xpose.msra.mxu0 0.0
        %2588 = vmatprep.subr.mxu0 0.0
        %2589 = vmatpush1.xpose.msra.mxu0 0.0
        %2590 = vmatprep.subr.mxu0 0.0
        %2591 = vmatpush1.xpose.msra.mxu0 0.0
        %2592 = vmatprep.subr.mxu0 0.0
        %2593 = vmatpush1.xpose.msra.mxu0 0.0
        %2594 = vmatprep.subr.mxu0 0.0
        %2595 = vmatpush1.xpose.msra.mxu0 0.0
        %2596 = vmatprep.subr.mxu0 0.0
        %2597 = vmatpush1.xpose.msra.mxu0 0.0
        %2598 = vmatprep.subr.mxu0 0.0
        %2599 = vmatpush1.xpose.msra.mxu0 0.0
        %2600 = vmatprep.subr.mxu0 0.0
        %2601 = vmatpush1.xpose.msra.mxu0 0.0
        %2602 = vmatprep.subr.mxu0 0.0
        %2603 = vmatpush1.xpose.msra.mxu0 0.0
        %2604 = vmatprep.subr.mxu0 0.0
        %2605 = vmatpush1.xpose.msra.mxu0 0.0
        %2606 = vmatprep.subr.mxu0 0.0
        %2607 = vmatpush1.xpose.msra.mxu0 0.0
        %2608 = vmatprep.subr.mxu0 0.0
        %2609 = vmatpush1.xpose.msra.mxu0 0.0
        %2610 = vmatprep.subr.mxu0 0.0
        %2611 = vmatpush1.xpose.msra.mxu0 0.0
        %2612 = vmatprep.subr.mxu0 0.0
        %2613 = vmatpush1.xpose.msra.mxu0 0.0
        %2614 = vmatprep.subr.mxu0 0.0
        %2615 = vmatpush1.xpose.msra.mxu0 0.0
        %2616 = vmatprep.subr.mxu0 0.0
        %2617 = vmatpush1.xpose.msra.mxu0 0.0
        %2618 = vmatprep.subr.mxu0 0.0
        %2619 = vmatpush1.xpose.msra.mxu0 0.0
        %2620 = vmatprep.subr.mxu0 0.0
        %2621 = vmatpush1.xpose.msra.mxu0 0.0
        %2622 = vmatprep.subr.mxu0 0.0
        %2623 = vmatpush1.xpose.msra.mxu0 0.0
        %2624 = vmatprep.subr.mxu0 0.0
        %2625 = vmatpush1.xpose.msra.mxu0 0.0
        %2626 = vmatprep.subr.mxu0 0.0
        %2627 = vmatpush1.xpose.msra.mxu0 0.0
        %2628 = vmatprep.subr.mxu0 0.0
        %2629 = vmatpush1.xpose.msra.mxu0 0.0
        %2630 = vmatprep.subr.mxu0 0.0
        %2631 = vmatpush1.xpose.msra.mxu0 0.0
        %2632 = vmatprep.subr.mxu0 0.0
        %2633 = vmatpush1.xpose.msra.mxu0 0.0
        %2634 = vmatprep.subr.mxu0 0.0
        %2635 = vmatpush1.xpose.msra.mxu0 0.0
        %2636 = vmatprep.subr.mxu0 0.0
        %2637 = vmatpush1.xpose.msra.mxu0 0.0
        %2638 = vmatprep.mubr.f32.mxu0 0.0
        %2639 = vmatmul.mubr.f32.gmra.mrb[0].mxu0 %v2568
        %v2640 = vpop.f32.mrb[0].mxu0
        %v2641 = vadd.f32 0.0, %v2640
        %v2642 = vpop.f32.mrb[0].mxu0
        %2643 = vdwg.mxu0
        %v2644 = vmul.f32 %v2641, 0.5
        %v2645 = vsel %vm1437, %v2644, -inf
        %2646 = vmax.xlane.f32.xlu0 %v2645
        %v2647 = vpop.xlane.xlu0 %2646
        %v2648 = vsub.f32 %v2644, %v2647
        %v2649 = vmul.f32 %v2648, 1.442695
        %v2650 = vpow.pop %v2649
        %v2651 = vsel %vm1437, %v2650, 0.0
        %2652 = vadd.xlane.f32.xlu0 %v2651
        %v2653 = vpop.xlane.xlu0 %2652
        %v2654 = vrcp.pop %v2653
        %v2655 = vmul.f32 %v2650, %v2654
        %2656 = vrot.lane.b32.xlu0 %v1166, 100
        %v2657 = vpop.permute.xlu0 %2656
        %2658 = vrot.lane.b32.xlu0 %v1171, 100
        %v2659 = vpop.permute.xlu0 %2658
        %v2663 = vsel %vm1437, %v2655, 0
        %2665 = vmatprep.subr.mxu0 0.0
        %2666 = vmatpush1.msra.mxu0 %v2657
        %2667 = vmatprep.subr.mxu0 0.0
        %2668 = vmatpush1.msra.mxu0 %v2659
        %2669 = vmatprep.subr.mxu0 0.0
        %2670 = vmatpush1.msra.mxu0 0.0
        %2671 = vmatprep.subr.mxu0 0.0
        %2672 = vmatpush1.msra.mxu0 0.0
        %2673 = vmatprep.subr.mxu0 0.0
        %2674 = vmatpush1.msra.mxu0 0.0
        %2675 = vmatprep.subr.mxu0 0.0
        %2676 = vmatpush1.msra.mxu0 0.0
        %2677 = vmatprep.subr.mxu0 0.0
        %2678 = vmatpush1.msra.mxu0 0.0
        %2679 = vmatprep.subr.mxu0 0.0
        %2680 = vmatpush1.msra.mxu0 0.0
        %2681 = vmatprep.subr.mxu0 0.0
        %2682 = vmatpush1.msra.mxu0 0.0
        %2683 = vmatprep.subr.mxu0 0.0
        %2684 = vmatpush1.msra.mxu0 0.0
        %2685 = vmatprep.subr.mxu0 0.0
        %2686 = vmatpush1.msra.mxu0 0.0
        %2687 = vmatprep.subr.mxu0 0.0
        %2688 = vmatpush1.msra.mxu0 0.0
        %2689 = vmatprep.subr.mxu0 0.0
        %2690 = vmatpush1.msra.mxu0 0.0
        %2691 = vmatprep.subr.mxu0 0.0
        %2692 = vmatpush1.msra.mxu0 0.0
        %2693 = vmatprep.subr.mxu0 0.0
        %2694 = vmatpush1.msra.mxu0 0.0
        %2695 = vmatprep.subr.mxu0 0.0
        %2696 = vmatpush1.msra.mxu0 0.0
        %2697 = vmatprep.subr.mxu0 0.0
        %2698 = vmatpush1.msra.mxu0 0.0
        %2699 = vmatprep.subr.mxu0 0.0
        %2700 = vmatpush1.msra.mxu0 0.0
        %2701 = vmatprep.subr.mxu0 0.0
        %2702 = vmatpush1.msra.mxu0 0.0
        %2703 = vmatprep.subr.mxu0 0.0
        %2704 = vmatpush1.msra.mxu0 0.0
        %2705 = vmatprep.subr.mxu0 0.0
        %2706 = vmatpush1.msra.mxu0 0.0
        %2707 = vmatprep.subr.mxu0 0.0
        %2708 = vmatpush1.msra.mxu0 0.0
        %2709 = vmatprep.subr.mxu0 0.0
        %2710 = vmatpush1.msra.mxu0 0.0
        %2711 = vmatprep.subr.mxu0 0.0
        %2712 = vmatpush1.msra.mxu0 0.0
        %2713 = vmatprep.subr.mxu0 0.0
        %2714 = vmatpush1.msra.mxu0 0.0
        %2715 = vmatprep.subr.mxu0 0.0
        %2716 = vmatpush1.msra.mxu0 0.0
        %2717 = vmatprep.subr.mxu0 0.0
        %2718 = vmatpush1.msra.mxu0 0.0
        %2719 = vmatprep.subr.mxu0 0.0
        %2720 = vmatpush1.msra.mxu0 0.0
        %2721 = vmatprep.subr.mxu0 0.0
        %2722 = vmatpush1.msra.mxu0 0.0
        %2723 = vmatprep.subr.mxu0 0.0
        %2724 = vmatpush1.msra.mxu0 0.0
        %2725 = vmatprep.subr.mxu0 0.0
        %2726 = vmatpush1.msra.mxu0 0.0
        %2727 = vmatprep.subr.mxu0 0.0
        %2728 = vmatpush1.msra.mxu0 0.0
        %2729 = vmatprep.mubr.f32.mxu0 0.0
        %2730 = vmatmul.mubr.f32.gmra.mrb[0].mxu0 %v2663
        %v2731 = vpop.f32.mrb[0].mxu0
        %v2732 = vadd.f32 0.0, %v2731
        %v2733 = vpop.f32.mrb[0].mxu0
        %2734 = vdwg.mxu0
        %2735 = vrot.lane.b32.xlu0 %v990, 96
        %v2736 = vpop.permute.xlu0 %2735
        %v2737 = vsel %vm1356, %v2736, 0
        %v2740 = vsel %vm1356, %v1257, 0
        %v2743 = vsel %vm1356, %v1262, 0
        %2745 = vmatprep.subr.mxu0 0.0
        %2746 = vmatpush1.xpose.msra.mxu0 %v2740
        %2747 = vmatprep.subr.mxu0 0.0
        %2748 = vmatpush1.xpose.msra.mxu0 %v2743
        %2749 = vmatprep.subr.mxu0 0.0
        %2750 = vmatpush1.xpose.msra.mxu0 0.0
        %2751 = vmatprep.subr.mxu0 0.0
        %2752 = vmatpush1.xpose.msra.mxu0 0.0
        %2753 = vmatprep.subr.mxu0 0.0
        %2754 = vmatpush1.xpose.msra.mxu0 0.0
        %2755 = vmatprep.subr.mxu0 0.0
        %2756 = vmatpush1.xpose.msra.mxu0 0.0
        %2757 = vmatprep.subr.mxu0 0.0
        %2758 = vmatpush1.xpose.msra.mxu0 0.0
        %2759 = vmatprep.subr.mxu0 0.0
        %2760 = vmatpush1.xpose.msra.mxu0 0.0
        %2761 = vmatprep.subr.mxu0 0.0
        %2762 = vmatpush1.xpose.msra.mxu0 0.0
        %2763 = vmatprep.subr.mxu0 0.0
        %2764 = vmatpush1.xpose.msra.mxu0 0.0
        %2765 = vmatprep.subr.mxu0 0.0
        %2766 = vmatpush1.xpose.msra.mxu0 0.0
        %2767 = vmatprep.subr.mxu0 0.0
        %2768 = vmatpush1.xpose.msra.mxu0 0.0
        %2769 = vmatprep.subr.mxu0 0.0
        %2770 = vmatpush1.xpose.msra.mxu0 0.0
        %2771 = vmatprep.subr.mxu0 0.0
        %2772 = vmatpush1.xpose.msra.mxu0 0.0
        %2773 = vmatprep.subr.mxu0 0.0
        %2774 = vmatpush1.xpose.msra.mxu0 0.0
        %2775 = vmatprep.subr.mxu0 0.0
        %2776 = vmatpush1.xpose.msra.mxu0 0.0
        %2777 = vmatprep.subr.mxu0 0.0
        %2778 = vmatpush1.xpose.msra.mxu0 0.0
        %2779 = vmatprep.subr.mxu0 0.0
        %2780 = vmatpush1.xpose.msra.mxu0 0.0
        %2781 = vmatprep.subr.mxu0 0.0
        %2782 = vmatpush1.xpose.msra.mxu0 0.0
        %2783 = vmatprep.subr.mxu0 0.0
        %2784 = vmatpush1.xpose.msra.mxu0 0.0
        %2785 = vmatprep.subr.mxu0 0.0
        %2786 = vmatpush1.xpose.msra.mxu0 0.0
        %2787 = vmatprep.subr.mxu0 0.0
        %2788 = vmatpush1.xpose.msra.mxu0 0.0
        %2789 = vmatprep.subr.mxu0 0.0
        %2790 = vmatpush1.xpose.msra.mxu0 0.0
        %2791 = vmatprep.subr.mxu0 0.0
        %2792 = vmatpush1.xpose.msra.mxu0 0.0
        %2793 = vmatprep.subr.mxu0 0.0
        %2794 = vmatpush1.xpose.msra.mxu0 0.0
        %2795 = vmatprep.subr.mxu0 0.0
        %2796 = vmatpush1.xpose.msra.mxu0 0.0
        %2797 = vmatprep.subr.mxu0 0.0
        %2798 = vmatpush1.xpose.msra.mxu0 0.0
        %2799 = vmatprep.subr.mxu0 0.0
        %2800 = vmatpush1.xpose.msra.mxu0 0.0
        %2801 = vmatprep.subr.mxu0 0.0
        %2802 = vmatpush1.xpose.msra.mxu0 0.0
        %2803 = vmatprep.subr.mxu0 0.0
        %2804 = vmatpush1.xpose.msra.mxu0 0.0
        %2805 = vmatprep.subr.mxu0 0.0
        %2806 = vmatpush1.xpose.msra.mxu0 0.0
        %2807 = vmatprep.subr.mxu0 0.0
        %2808 = vmatpush1.xpose.msra.mxu0 0.0
        %2809 = vmatprep.mubr.f32.mxu0 0.0
        %2810 = vmatmul.mubr.f32.gmra.mrb[0].mxu0 %v2737
        %v2811 = vpop.f32.mrb[0].mxu0
        %v2812 = vadd.f32 0.0, %v2811
        %v2813 = vpop.f32.mrb[0].mxu0
        %2814 = vdwg.mxu0
        %v2815 = vmul.f32 %v2812, 0.5
        %v2816 = vsel %vm1437, %v2815, -inf
        %2817 = vmax.xlane.f32.xlu0 %v2816
        %v2818 = vpop.xlane.xlu0 %2817
        %v2819 = vsub.f32 %v2815, %v2818
        %v2820 = vmul.f32 %v2819, 1.442695
        %v2821 = vpow.pop %v2820
        %v2822 = vsel %vm1437, %v2821, 0.0
        %2823 = vadd.xlane.f32.xlu0 %v2822
        %v2824 = vpop.xlane.xlu0 %2823
        %v2825 = vrcp.pop %v2824
        %v2826 = vmul.f32 %v2821, %v2825
        %v2828 = vsel %vm1437, %v2826, 0
        %2830 = vmatprep.subr.mxu0 0.0
        %2831 = vmatpush1.msra.mxu0 %v1348
        %2832 = vmatprep.subr.mxu0 0.0
        %2833 = vmatpush1.msra.mxu0 %v1353
        %2834 = vmatprep.subr.mxu0 0.0
        %2835 = vmatpush1.msra.mxu0 0.0
        %2836 = vmatprep.subr.mxu0 0.0
        %2837 = vmatpush1.msra.mxu0 0.0
        %2838 = vmatprep.subr.mxu0 0.0
        %2839 = vmatpush1.msra.mxu0 0.0
        %2840 = vmatprep.subr.mxu0 0.0
        %2841 = vmatpush1.msra.mxu0 0.0
        %2842 = vmatprep.subr.mxu0 0.0
        %2843 = vmatpush1.msra.mxu0 0.0
        %2844 = vmatprep.subr.mxu0 0.0
        %2845 = vmatpush1.msra.mxu0 0.0
        %2846 = vmatprep.subr.mxu0 0.0
        %2847 = vmatpush1.msra.mxu0 0.0
        %2848 = vmatprep.subr.mxu0 0.0
        %2849 = vmatpush1.msra.mxu0 0.0
        %2850 = vmatprep.subr.mxu0 0.0
        %2851 = vmatpush1.msra.mxu0 0.0
        %2852 = vmatprep.subr.mxu0 0.0
        %2853 = vmatpush1.msra.mxu0 0.0
        %2854 = vmatprep.subr.mxu0 0.0
        %2855 = vmatpush1.msra.mxu0 0.0
        %2856 = vmatprep.subr.mxu0 0.0
        %2857 = vmatpush1.msra.mxu0 0.0
        %2858 = vmatprep.subr.mxu0 0.0
        %2859 = vmatpush1.msra.mxu0 0.0
        %2860 = vmatprep.subr.mxu0 0.0
        %2861 = vmatpush1.msra.mxu0 0.0
        %2862 = vmatprep.subr.mxu0 0.0
        %2863 = vmatpush1.msra.mxu0 0.0
        %2864 = vmatprep.subr.mxu0 0.0
        %2865 = vmatpush1.msra.mxu0 0.0
        %2866 = vmatprep.subr.mxu0 0.0
        %2867 = vmatpush1.msra.mxu0 0.0
        %2868 = vmatprep.subr.mxu0 0.0
        %2869 = vmatpush1.msra.mxu0 0.0
        %2870 = vmatprep.subr.mxu0 0.0
        %2871 = vmatpush1.msra.mxu0 0.0
        %2872 = vmatprep.subr.mxu0 0.0
        %2873 = vmatpush1.msra.mxu0 0.0
        %2874 = vmatprep.subr.mxu0 0.0
        %2875 = vmatpush1.msra.mxu0 0.0
        %2876 = vmatprep.subr.mxu0 0.0
        %2877 = vmatpush1.msra.mxu0 0.0
        %2878 = vmatprep.subr.mxu0 0.0
        %2879 = vmatpush1.msra.mxu0 0.0
        %2880 = vmatprep.subr.mxu0 0.0
        %2881 = vmatpush1.msra.mxu0 0.0
        %2882 = vmatprep.subr.mxu0 0.0
        %2883 = vmatpush1.msra.mxu0 0.0
        %2884 = vmatprep.subr.mxu0 0.0
        %2885 = vmatpush1.msra.mxu0 0.0
        %2886 = vmatprep.subr.mxu0 0.0
        %2887 = vmatpush1.msra.mxu0 0.0
        %2888 = vmatprep.subr.mxu0 0.0
        %2889 = vmatpush1.msra.mxu0 0.0
        %2890 = vmatprep.subr.mxu0 0.0
        %2891 = vmatpush1.msra.mxu0 0.0
        %2892 = vmatprep.subr.mxu0 0.0
        %2893 = vmatpush1.msra.mxu0 0.0
        %2894 = vmatprep.mubr.f32.mxu0 0.0
        %2895 = vmatmul.mubr.f32.gmra.mrb[0].mxu0 %v2828
        %v2896 = vpop.f32.mrb[0].mxu0
        %v2897 = vadd.f32 0.0, %v2896
        %v2898 = vpop.f32.mrb[0].mxu0
        %2899 = vdwg.mxu0
        %2900 = vrot.lane.b32.xlu0 %v990, 92
        %v2901 = vpop.permute.xlu0 %2900
        %2902 = vrot.lane.b32.xlu0 %v1257, 124
        %v2903 = vpop.permute.xlu0 %2902
        %2904 = vrot.lane.b32.xlu0 %v1262, 124
        %v2905 = vpop.permute.xlu0 %2904
        %v2906 = vsel %vm1356, %v2901, 0
        %v2908 = vsel %vm1356, %v2903, 0
        %v2910 = vsel %vm1356, %v2905, 0
        %2912 = vmatprep.subr.mxu0 0.0
        %2913 = vmatpush1.xpose.msra.mxu0 %v2908
        %2914 = vmatprep.subr.mxu0 0.0
        %2915 = vmatpush1.xpose.msra.mxu0 %v2910
        %2916 = vmatprep.subr.mxu0 0.0
        %2917 = vmatpush1.xpose.msra.mxu0 0.0
        %2918 = vmatprep.subr.mxu0 0.0
        %2919 = vmatpush1.xpose.msra.mxu0 0.0
        %2920 = vmatprep.subr.mxu0 0.0
        %2921 = vmatpush1.xpose.msra.mxu0 0.0
        %2922 = vmatprep.subr.mxu0 0.0
        %2923 = vmatpush1.xpose.msra.mxu0 0.0
        %2924 = vmatprep.subr.mxu0 0.0
        %2925 = vmatpush1.xpose.msra.mxu0 0.0
        %2926 = vmatprep.subr.mxu0 0.0
        %2927 = vmatpush1.xpose.msra.mxu0 0.0
        %2928 = vmatprep.subr.mxu0 0.0
        %2929 = vmatpush1.xpose.msra.mxu0 0.0
        %2930 = vmatprep.subr.mxu0 0.0
        %2931 = vmatpush1.xpose.msra.mxu0 0.0
        %2932 = vmatprep.subr.mxu0 0.0
        %2933 = vmatpush1.xpose.msra.mxu0 0.0
        %2934 = vmatprep.subr.mxu0 0.0
        %2935 = vmatpush1.xpose.msra.mxu0 0.0
        %2936 = vmatprep.subr.mxu0 0.0
        %2937 = vmatpush1.xpose.msra.mxu0 0.0
        %2938 = vmatprep.subr.mxu0 0.0
        %2939 = vmatpush1.xpose.msra.mxu0 0.0
        %2940 = vmatprep.subr.mxu0 0.0
        %2941 = vmatpush1.xpose.msra.mxu0 0.0
        %2942 = vmatprep.subr.mxu0 0.0
        %2943 = vmatpush1.xpose.msra.mxu0 0.0
        %2944 = vmatprep.subr.mxu0 0.0
        %2945 = vmatpush1.xpose.msra.mxu0 0.0
        %2946 = vmatprep.subr.mxu0 0.0
        %2947 = vmatpush1.xpose.msra.mxu0 0.0
        %2948 = vmatprep.subr.mxu0 0.0
        %2949 = vmatpush1.xpose.msra.mxu0 0.0
        %2950 = vmatprep.subr.mxu0 0.0
        %2951 = vmatpush1.xpose.msra.mxu0 0.0
        %2952 = vmatprep.subr.mxu0 0.0
        %2953 = vmatpush1.xpose.msra.mxu0 0.0
        %2954 = vmatprep.subr.mxu0 0.0
        %2955 = vmatpush1.xpose.msra.mxu0 0.0
        %2956 = vmatprep.subr.mxu0 0.0
        %2957 = vmatpush1.xpose.msra.mxu0 0.0
        %2958 = vmatprep.subr.mxu0 0.0
        %2959 = vmatpush1.xpose.msra.mxu0 0.0
        %2960 = vmatprep.subr.mxu0 0.0
        %2961 = vmatpush1.xpose.msra.mxu0 0.0
        %2962 = vmatprep.subr.mxu0 0.0
        %2963 = vmatpush1.xpose.msra.mxu0 0.0
        %2964 = vmatprep.subr.mxu0 0.0
        %2965 = vmatpush1.xpose.msra.mxu0 0.0
        %2966 = vmatprep.subr.mxu0 0.0
        %2967 = vmatpush1.xpose.msra.mxu0 0.0
        %2968 = vmatprep.subr.mxu0 0.0
        %2969 = vmatpush1.xpose.msra.mxu0 0.0
        %2970 = vmatprep.subr.mxu0 0.0
        %2971 = vmatpush1.xpose.msra.mxu0 0.0
        %2972 = vmatprep.subr.mxu0 0.0
        %2973 = vmatpush1.xpose.msra.mxu0 0.0
        %2974 = vmatprep.subr.mxu0 0.0
        %2975 = vmatpush1.xpose.msra.mxu0 0.0
        %2976 = vmatprep.mubr.f32.mxu0 0.0
        %2977 = vmatmul.mubr.f32.gmra.mrb[0].mxu0 %v2906
        %v2978 = vpop.f32.mrb[0].mxu0
        %v2979 = vadd.f32 0.0, %v2978
        %v2980 = vpop.f32.mrb[0].mxu0
        %2981 = vdwg.mxu0
        %v2982 = vmul.f32 %v2979, 0.5
        %v2983 = vsel %vm1437, %v2982, -inf
        %2984 = vmax.xlane.f32.xlu0 %v2983
        %v2985 = vpop.xlane.xlu0 %2984
        %v2986 = vsub.f32 %v2982, %v2985
        %v2987 = vmul.f32 %v2986, 1.442695
        %v2988 = vpow.pop %v2987
        %v2989 = vsel %vm1437, %v2988, 0.0
        %2990 = vadd.xlane.f32.xlu0 %v2989
        %v2991 = vpop.xlane.xlu0 %2990
        %v2992 = vrcp.pop %v2991
        %v2993 = vmul.f32 %v2988, %v2992
        %2996 = vrot.lane.b32.xlu0 %v1348, 124
        %v2997 = vpop.permute.xlu0 %2996
        %2998 = vrot.lane.b32.xlu0 %v1353, 124
        %v2999 = vpop.permute.xlu0 %2998
        %v3003 = vsel %vm1437, %v2993, 0
        %3005 = vmatprep.subr.mxu0 0.0
        %3006 = vmatpush1.msra.mxu0 %v2997
        %3007 = vmatprep.subr.mxu0 0.0
        %3008 = vmatpush1.msra.mxu0 %v2999
        %3009 = vmatprep.subr.mxu0 0.0
        %3010 = vmatpush1.msra.mxu0 0.0
        %3011 = vmatprep.subr.mxu0 0.0
        %3012 = vmatpush1.msra.mxu0 0.0
        %3013 = vmatprep.subr.mxu0 0.0
        %3014 = vmatpush1.msra.mxu0 0.0
        %3015 = vmatprep.subr.mxu0 0.0
        %3016 = vmatpush1.msra.mxu0 0.0
        %3017 = vmatprep.subr.mxu0 0.0
        %3018 = vmatpush1.msra.mxu0 0.0
        %3019 = vmatprep.subr.mxu0 0.0
        %3020 = vmatpush1.msra.mxu0 0.0
        %3021 = vmatprep.subr.mxu0 0.0
        %3022 = vmatpush1.msra.mxu0 0.0
        %3023 = vmatprep.subr.mxu0 0.0
        %3024 = vmatpush1.msra.mxu0 0.0
        %3025 = vmatprep.subr.mxu0 0.0
        %3026 = vmatpush1.msra.mxu0 0.0
        %3027 = vmatprep.subr.mxu0 0.0
        %3028 = vmatpush1.msra.mxu0 0.0
        %3029 = vmatprep.subr.mxu0 0.0
        %3030 = vmatpush1.msra.mxu0 0.0
        %3031 = vmatprep.subr.mxu0 0.0
        %3032 = vmatpush1.msra.mxu0 0.0
        %3033 = vmatprep.subr.mxu0 0.0
        %3034 = vmatpush1.msra.mxu0 0.0
        %3035 = vmatprep.subr.mxu0 0.0
        %3036 = vmatpush1.msra.mxu0 0.0
        %3037 = vmatprep.subr.mxu0 0.0
        %3038 = vmatpush1.msra.mxu0 0.0
        %3039 = vmatprep.subr.mxu0 0.0
        %3040 = vmatpush1.msra.mxu0 0.0
        %3041 = vmatprep.subr.mxu0 0.0
        %3042 = vmatpush1.msra.mxu0 0.0
        %3043 = vmatprep.subr.mxu0 0.0
        %3044 = vmatpush1.msra.mxu0 0.0
        %3045 = vmatprep.subr.mxu0 0.0
        %3046 = vmatpush1.msra.mxu0 0.0
        %3047 = vmatprep.subr.mxu0 0.0
        %3048 = vmatpush1.msra.mxu0 0.0
        %3049 = vmatprep.subr.mxu0 0.0
        %3050 = vmatpush1.msra.mxu0 0.0
        %3051 = vmatprep.subr.mxu0 0.0
        %3052 = vmatpush1.msra.mxu0 0.0
        %3053 = vmatprep.subr.mxu0 0.0
        %3054 = vmatpush1.msra.mxu0 0.0
        %3055 = vmatprep.subr.mxu0 0.0
        %3056 = vmatpush1.msra.mxu0 0.0
        %3057 = vmatprep.subr.mxu0 0.0
        %3058 = vmatpush1.msra.mxu0 0.0
        %3059 = vmatprep.subr.mxu0 0.0
        %3060 = vmatpush1.msra.mxu0 0.0
        %3061 = vmatprep.subr.mxu0 0.0
        %3062 = vmatpush1.msra.mxu0 0.0
        %3063 = vmatprep.subr.mxu0 0.0
        %3064 = vmatpush1.msra.mxu0 0.0
        %3065 = vmatprep.subr.mxu0 0.0
        %3066 = vmatpush1.msra.mxu0 0.0
        %3067 = vmatprep.subr.mxu0 0.0
        %3068 = vmatpush1.msra.mxu0 0.0
        %3069 = vmatprep.mubr.f32.mxu0 0.0
        %3070 = vmatmul.mubr.f32.gmra.mrb[0].mxu0 %v3003
        %v3071 = vpop.f32.mrb[0].mxu0
        %v3072 = vadd.f32 0.0, %v3071
        %v3073 = vpop.f32.mrb[0].mxu0
        %3074 = vdwg.mxu0
        %3075 = vrot.lane.b32.xlu0 %v990, 88
        %v3076 = vpop.permute.xlu0 %3075
        %3077 = vrot.lane.b32.xlu0 %v1257, 120
        %v3078 = vpop.permute.xlu0 %3077
        %3079 = vrot.lane.b32.xlu0 %v1262, 120
        %v3080 = vpop.permute.xlu0 %3079
        %v3081 = vsel %vm1356, %v3076, 0
        %v3083 = vsel %vm1356, %v3078, 0
        %v3085 = vsel %vm1356, %v3080, 0
        %3087 = vmatprep.subr.mxu0 0.0
        %3088 = vmatpush1.xpose.msra.mxu0 %v3083
        %3089 = vmatprep.subr.mxu0 0.0
        %3090 = vmatpush1.xpose.msra.mxu0 %v3085
        %3091 = vmatprep.subr.mxu0 0.0
        %3092 = vmatpush1.xpose.msra.mxu0 0.0
        %3093 = vmatprep.subr.mxu0 0.0
        %3094 = vmatpush1.xpose.msra.mxu0 0.0
        %3095 = vmatprep.subr.mxu0 0.0
        %3096 = vmatpush1.xpose.msra.mxu0 0.0
        %3097 = vmatprep.subr.mxu0 0.0
        %3098 = vmatpush1.xpose.msra.mxu0 0.0
        %3099 = vmatprep.subr.mxu0 0.0
        %3100 = vmatpush1.xpose.msra.mxu0 0.0
        %3101 = vmatprep.subr.mxu0 0.0
        %3102 = vmatpush1.xpose.msra.mxu0 0.0
        %3103 = vmatprep.subr.mxu0 0.0
        %3104 = vmatpush1.xpose.msra.mxu0 0.0
        %3105 = vmatprep.subr.mxu0 0.0
        %3106 = vmatpush1.xpose.msra.mxu0 0.0
        %3107 = vmatprep.subr.mxu0 0.0
        %3108 = vmatpush1.xpose.msra.mxu0 0.0
        %3109 = vmatprep.subr.mxu0 0.0
        %3110 = vmatpush1.xpose.msra.mxu0 0.0
        %3111 = vmatprep.subr.mxu0 0.0
        %3112 = vmatpush1.xpose.msra.mxu0 0.0
        %3113 = vmatprep.subr.mxu0 0.0
        %3114 = vmatpush1.xpose.msra.mxu0 0.0
        %3115 = vmatprep.subr.mxu0 0.0
        %3116 = vmatpush1.xpose.msra.mxu0 0.0
        %3117 = vmatprep.subr.mxu0 0.0
        %3118 = vmatpush1.xpose.msra.mxu0 0.0
        %3119 = vmatprep.subr.mxu0 0.0
        %3120 = vmatpush1.xpose.msra.mxu0 0.0
        %3121 = vmatprep.subr.mxu0 0.0
        %3122 = vmatpush1.xpose.msra.mxu0 0.0
        %3123 = vmatprep.subr.mxu0 0.0
        %3124 = vmatpush1.xpose.msra.mxu0 0.0
        %3125 = vmatprep.subr.mxu0 0.0
        %3126 = vmatpush1.xpose.msra.mxu0 0.0
        %3127 = vmatprep.subr.mxu0 0.0
        %3128 = vmatpush1.xpose.msra.mxu0 0.0
        %3129 = vmatprep.subr.mxu0 0.0
        %3130 = vmatpush1.xpose.msra.mxu0 0.0
        %3131 = vmatprep.subr.mxu0 0.0
        %3132 = vmatpush1.xpose.msra.mxu0 0.0
        %3133 = vmatprep.subr.mxu0 0.0
        %3134 = vmatpush1.xpose.msra.mxu0 0.0
        %3135 = vmatprep.subr.mxu0 0.0
        %3136 = vmatpush1.xpose.msra.mxu0 0.0
        %3137 = vmatprep.subr.mxu0 0.0
        %3138 = vmatpush1.xpose.msra.mxu0 0.0
        %3139 = vmatprep.subr.mxu0 0.0
        %3140 = vmatpush1.xpose.msra.mxu0 0.0
        %3141 = vmatprep.subr.mxu0 0.0
        %3142 = vmatpush1.xpose.msra.mxu0 0.0
        %3143 = vmatprep.subr.mxu0 0.0
        %3144 = vmatpush1.xpose.msra.mxu0 0.0
        %3145 = vmatprep.subr.mxu0 0.0
        %3146 = vmatpush1.xpose.msra.mxu0 0.0
        %3147 = vmatprep.subr.mxu0 0.0
        %3148 = vmatpush1.xpose.msra.mxu0 0.0
        %3149 = vmatprep.subr.mxu0 0.0
        %3150 = vmatpush1.xpose.msra.mxu0 0.0
        %3151 = vmatprep.mubr.f32.mxu0 0.0
        %3152 = vmatmul.mubr.f32.gmra.mrb[0].mxu0 %v3081
        %v3153 = vpop.f32.mrb[0].mxu0
        %v3154 = vadd.f32 0.0, %v3153
        %v3155 = vpop.f32.mrb[0].mxu0
        %3156 = vdwg.mxu0
        %v3157 = vmul.f32 %v3154, 0.5
        %v3158 = vsel %vm1437, %v3157, -inf
        %3159 = vmax.xlane.f32.xlu0 %v3158
        %v3160 = vpop.xlane.xlu0 %3159
        %v3161 = vsub.f32 %v3157, %v3160
        %v3162 = vmul.f32 %v3161, 1.442695
        %v3163 = vpow.pop %v3162
        %v3164 = vsel %vm1437, %v3163, 0.0
        %3165 = vadd.xlane.f32.xlu0 %v3164
        %v3166 = vpop.xlane.xlu0 %3165
        %v3167 = vrcp.pop %v3166
        %v3168 = vmul.f32 %v3163, %v3167
        %3169 = vrot.lane.b32.xlu0 %v1348, 120
        %v3170 = vpop.permute.xlu0 %3169
        %3171 = vrot.lane.b32.xlu0 %v1353, 120
        %v3172 = vpop.permute.xlu0 %3171
        %v3176 = vsel %vm1437, %v3168, 0
        %3178 = vmatprep.subr.mxu0 0.0
        %3179 = vmatpush1.msra.mxu0 %v3170
        %3180 = vmatprep.subr.mxu0 0.0
        %3181 = vmatpush1.msra.mxu0 %v3172
        %3182 = vmatprep.subr.mxu0 0.0
        %3183 = vmatpush1.msra.mxu0 0.0
        %3184 = vmatprep.subr.mxu0 0.0
        %3185 = vmatpush1.msra.mxu0 0.0
        %3186 = vmatprep.subr.mxu0 0.0
        %3187 = vmatpush1.msra.mxu0 0.0
        %3188 = vmatprep.subr.mxu0 0.0
        %3189 = vmatpush1.msra.mxu0 0.0
        %3190 = vmatprep.subr.mxu0 0.0
        %3191 = vmatpush1.msra.mxu0 0.0
        %3192 = vmatprep.subr.mxu0 0.0
        %3193 = vmatpush1.msra.mxu0 0.0
        %3194 = vmatprep.subr.mxu0 0.0
        %3195 = vmatpush1.msra.mxu0 0.0
        %3196 = vmatprep.subr.mxu0 0.0
        %3197 = vmatpush1.msra.mxu0 0.0
        %3198 = vmatprep.subr.mxu0 0.0
        %3199 = vmatpush1.msra.mxu0 0.0
        %3200 = vmatprep.subr.mxu0 0.0
        %3201 = vmatpush1.msra.mxu0 0.0
        %3202 = vmatprep.subr.mxu0 0.0
        %3203 = vmatpush1.msra.mxu0 0.0
        %3204 = vmatprep.subr.mxu0 0.0
        %3205 = vmatpush1.msra.mxu0 0.0
        %3206 = vmatprep.subr.mxu0 0.0
        %3207 = vmatpush1.msra.mxu0 0.0
        %3208 = vmatprep.subr.mxu0 0.0
        %3209 = vmatpush1.msra.mxu0 0.0
        %3210 = vmatprep.subr.mxu0 0.0
        %3211 = vmatpush1.msra.mxu0 0.0
        %3212 = vmatprep.subr.mxu0 0.0
        %3213 = vmatpush1.msra.mxu0 0.0
        %3214 = vmatprep.subr.mxu0 0.0
        %3215 = vmatpush1.msra.mxu0 0.0
        %3216 = vmatprep.subr.mxu0 0.0
        %3217 = vmatpush1.msra.mxu0 0.0
        %3218 = vmatprep.subr.mxu0 0.0
        %3219 = vmatpush1.msra.mxu0 0.0
        %3220 = vmatprep.subr.mxu0 0.0
        %3221 = vmatpush1.msra.mxu0 0.0
        %3222 = vmatprep.subr.mxu0 0.0
        %3223 = vmatpush1.msra.mxu0 0.0
        %3224 = vmatprep.subr.mxu0 0.0
        %3225 = vmatpush1.msra.mxu0 0.0
        %3226 = vmatprep.subr.mxu0 0.0
        %3227 = vmatpush1.msra.mxu0 0.0
        %3228 = vmatprep.subr.mxu0 0.0
        %3229 = vmatpush1.msra.mxu0 0.0
        %3230 = vmatprep.subr.mxu0 0.0
        %3231 = vmatpush1.msra.mxu0 0.0
        %3232 = vmatprep.subr.mxu0 0.0
        %3233 = vmatpush1.msra.mxu0 0.0
        %3234 = vmatprep.subr.mxu0 0.0
        %3235 = vmatpush1.msra.mxu0 0.0
        %3236 = vmatprep.subr.mxu0 0.0
        %3237 = vmatpush1.msra.mxu0 0.0
        %3238 = vmatprep.subr.mxu0 0.0
        %3239 = vmatpush1.msra.mxu0 0.0
        %3240 = vmatprep.subr.mxu0 0.0
        %3241 = vmatpush1.msra.mxu0 0.0
        %3242 = vmatprep.mubr.f32.mxu0 0.0
        %3243 = vmatmul.mubr.f32.gmra.mrb[0].mxu0 %v3176
        %v3244 = vpop.f32.mrb[0].mxu0
        %v3245 = vadd.f32 0.0, %v3244
        %v3246 = vpop.f32.mrb[0].mxu0
        %3247 = vdwg.mxu0
        %3248 = vrot.lane.b32.xlu0 %v990, 84
        %v3249 = vpop.permute.xlu0 %3248
        %3250 = vrot.lane.b32.xlu0 %v1257, 116
        %v3251 = vpop.permute.xlu0 %3250
        %3252 = vrot.lane.b32.xlu0 %v1262, 116
        %v3253 = vpop.permute.xlu0 %3252
        %v3254 = vsel %vm1356, %v3249, 0
        %v3256 = vsel %vm1356, %v3251, 0
        %v3258 = vsel %vm1356, %v3253, 0
        %3260 = vmatprep.subr.mxu0 0.0
        %3261 = vmatpush1.xpose.msra.mxu0 %v3256
        %3262 = vmatprep.subr.mxu0 0.0
        %3263 = vmatpush1.xpose.msra.mxu0 %v3258
        %3264 = vmatprep.subr.mxu0 0.0
        %3265 = vmatpush1.xpose.msra.mxu0 0.0
        %3266 = vmatprep.subr.mxu0 0.0
        %3267 = vmatpush1.xpose.msra.mxu0 0.0
        %3268 = vmatprep.subr.mxu0 0.0
        %3269 = vmatpush1.xpose.msra.mxu0 0.0
        %3270 = vmatprep.subr.mxu0 0.0
        %3271 = vmatpush1.xpose.msra.mxu0 0.0
        %3272 = vmatprep.subr.mxu0 0.0
        %3273 = vmatpush1.xpose.msra.mxu0 0.0
        %3274 = vmatprep.subr.mxu0 0.0
        %3275 = vmatpush1.xpose.msra.mxu0 0.0
        %3276 = vmatprep.subr.mxu0 0.0
        %3277 = vmatpush1.xpose.msra.mxu0 0.0
        %3278 = vmatprep.subr.mxu0 0.0
        %3279 = vmatpush1.xpose.msra.mxu0 0.0
        %3280 = vmatprep.subr.mxu0 0.0
        %3281 = vmatpush1.xpose.msra.mxu0 0.0
        %3282 = vmatprep.subr.mxu0 0.0
        %3283 = vmatpush1.xpose.msra.mxu0 0.0
        %3284 = vmatprep.subr.mxu0 0.0
        %3285 = vmatpush1.xpose.msra.mxu0 0.0
        %3286 = vmatprep.subr.mxu0 0.0
        %3287 = vmatpush1.xpose.msra.mxu0 0.0
        %3288 = vmatprep.subr.mxu0 0.0
        %3289 = vmatpush1.xpose.msra.mxu0 0.0
        %3290 = vmatprep.subr.mxu0 0.0
        %3291 = vmatpush1.xpose.msra.mxu0 0.0
        %3292 = vmatprep.subr.mxu0 0.0
        %3293 = vmatpush1.xpose.msra.mxu0 0.0
        %3294 = vmatprep.subr.mxu0 0.0
        %3295 = vmatpush1.xpose.msra.mxu0 0.0
        %3296 = vmatprep.subr.mxu0 0.0
        %3297 = vmatpush1.xpose.msra.mxu0 0.0
        %3298 = vmatprep.subr.mxu0 0.0
        %3299 = vmatpush1.xpose.msra.mxu0 0.0
        %3300 = vmatprep.subr.mxu0 0.0
        %3301 = vmatpush1.xpose.msra.mxu0 0.0
        %3302 = vmatprep.subr.mxu0 0.0
        %3303 = vmatpush1.xpose.msra.mxu0 0.0
        %3304 = vmatprep.subr.mxu0 0.0
        %3305 = vmatpush1.xpose.msra.mxu0 0.0
        %3306 = vmatprep.subr.mxu0 0.0
        %3307 = vmatpush1.xpose.msra.mxu0 0.0
        %3308 = vmatprep.subr.mxu0 0.0
        %3309 = vmatpush1.xpose.msra.mxu0 0.0
        %3310 = vmatprep.subr.mxu0 0.0
        %3311 = vmatpush1.xpose.msra.mxu0 0.0
        %3312 = vmatprep.subr.mxu0 0.0
        %3313 = vmatpush1.xpose.msra.mxu0 0.0
        %3314 = vmatprep.subr.mxu0 0.0
        %3315 = vmatpush1.xpose.msra.mxu0 0.0
        %3316 = vmatprep.subr.mxu0 0.0
        %3317 = vmatpush1.xpose.msra.mxu0 0.0
        %3318 = vmatprep.subr.mxu0 0.0
        %3319 = vmatpush1.xpose.msra.mxu0 0.0
        %3320 = vmatprep.subr.mxu0 0.0
        %3321 = vmatpush1.xpose.msra.mxu0 0.0
        %3322 = vmatprep.subr.mxu0 0.0
        %3323 = vmatpush1.xpose.msra.mxu0 0.0
        %3324 = vmatprep.mubr.f32.mxu0 0.0
        %3325 = vmatmul.mubr.f32.gmra.mrb[0].mxu0 %v3254
        %v3326 = vpop.f32.mrb[0].mxu0
        %v3327 = vadd.f32 0.0, %v3326
        %v3328 = vpop.f32.mrb[0].mxu0
        %3329 = vdwg.mxu0
        %v3330 = vmul.f32 %v3327, 0.5
        %v3331 = vsel %vm1437, %v3330, -inf
        %3332 = vmax.xlane.f32.xlu0 %v3331
        %v3333 = vpop.xlane.xlu0 %3332
        %v3334 = vsub.f32 %v3330, %v3333
        %v3335 = vmul.f32 %v3334, 1.442695
        %v3336 = vpow.pop %v3335
        %v3337 = vsel %vm1437, %v3336, 0.0
        %3338 = vadd.xlane.f32.xlu0 %v3337
        %v3339 = vpop.xlane.xlu0 %3338
        %v3340 = vrcp.pop %v3339
        %v3341 = vmul.f32 %v3336, %v3340
        %3342 = vrot.lane.b32.xlu0 %v1348, 116
        %v3343 = vpop.permute.xlu0 %3342
        %3344 = vrot.lane.b32.xlu0 %v1353, 116
        %v3345 = vpop.permute.xlu0 %3344
        %v3349 = vsel %vm1437, %v3341, 0
        %3351 = vmatprep.subr.mxu0 0.0
        %3352 = vmatpush1.msra.mxu0 %v3343
        %3353 = vmatprep.subr.mxu0 0.0
        %3354 = vmatpush1.msra.mxu0 %v3345
        %3355 = vmatprep.subr.mxu0 0.0
        %3356 = vmatpush1.msra.mxu0 0.0
        %3357 = vmatprep.subr.mxu0 0.0
        %3358 = vmatpush1.msra.mxu0 0.0
        %3359 = vmatprep.subr.mxu0 0.0
        %3360 = vmatpush1.msra.mxu0 0.0
        %3361 = vmatprep.subr.mxu0 0.0
        %3362 = vmatpush1.msra.mxu0 0.0
        %3363 = vmatprep.subr.mxu0 0.0
        %3364 = vmatpush1.msra.mxu0 0.0
        %3365 = vmatprep.subr.mxu0 0.0
        %3366 = vmatpush1.msra.mxu0 0.0
        %3367 = vmatprep.subr.mxu0 0.0
        %3368 = vmatpush1.msra.mxu0 0.0
        %3369 = vmatprep.subr.mxu0 0.0
        %3370 = vmatpush1.msra.mxu0 0.0
        %3371 = vmatprep.subr.mxu0 0.0
        %3372 = vmatpush1.msra.mxu0 0.0
        %3373 = vmatprep.subr.mxu0 0.0
        %3374 = vmatpush1.msra.mxu0 0.0
        %3375 = vmatprep.subr.mxu0 0.0
        %3376 = vmatpush1.msra.mxu0 0.0
        %3377 = vmatprep.subr.mxu0 0.0
        %3378 = vmatpush1.msra.mxu0 0.0
        %3379 = vmatprep.subr.mxu0 0.0
        %3380 = vmatpush1.msra.mxu0 0.0
        %3381 = vmatprep.subr.mxu0 0.0
        %3382 = vmatpush1.msra.mxu0 0.0
        %3383 = vmatprep.subr.mxu0 0.0
        %3384 = vmatpush1.msra.mxu0 0.0
        %3385 = vmatprep.subr.mxu0 0.0
        %3386 = vmatpush1.msra.mxu0 0.0
        %3387 = vmatprep.subr.mxu0 0.0
        %3388 = vmatpush1.msra.mxu0 0.0
        %3389 = vmatprep.subr.mxu0 0.0
        %3390 = vmatpush1.msra.mxu0 0.0
        %3391 = vmatprep.subr.mxu0 0.0
        %3392 = vmatpush1.msra.mxu0 0.0
        %3393 = vmatprep.subr.mxu0 0.0
        %3394 = vmatpush1.msra.mxu0 0.0
        %3395 = vmatprep.subr.mxu0 0.0
        %3396 = vmatpush1.msra.mxu0 0.0
        %3397 = vmatprep.subr.mxu0 0.0
        %3398 = vmatpush1.msra.mxu0 0.0
        %3399 = vmatprep.subr.mxu0 0.0
        %3400 = vmatpush1.msra.mxu0 0.0
        %3401 = vmatprep.subr.mxu0 0.0
        %3402 = vmatpush1.msra.mxu0 0.0
        %3403 = vmatprep.subr.mxu0 0.0
        %3404 = vmatpush1.msra.mxu0 0.0
        %3405 = vmatprep.subr.mxu0 0.0
        %3406 = vmatpush1.msra.mxu0 0.0
        %3407 = vmatprep.subr.mxu0 0.0
        %3408 = vmatpush1.msra.mxu0 0.0
        %3409 = vmatprep.subr.mxu0 0.0
        %3410 = vmatpush1.msra.mxu0 0.0
        %3411 = vmatprep.subr.mxu0 0.0
        %3412 = vmatpush1.msra.mxu0 0.0
        %3413 = vmatprep.subr.mxu0 0.0
        %3414 = vmatpush1.msra.mxu0 0.0
        %3415 = vmatprep.mubr.f32.mxu0 0.0
        %3416 = vmatmul.mubr.f32.gmra.mrb[0].mxu0 %v3349
        %v3417 = vpop.f32.mrb[0].mxu0
        %v3418 = vadd.f32 0.0, %v3417
        %v3419 = vpop.f32.mrb[0].mxu0
        %3420 = vdwg.mxu0
        %3421 = vrot.lane.b32.xlu0 %v990, 80
        %v3422 = vpop.permute.xlu0 %3421
        %3423 = vrot.lane.b32.xlu0 %v1257, 112
        %v3424 = vpop.permute.xlu0 %3423
        %3425 = vrot.lane.b32.xlu0 %v1262, 112
        %v3426 = vpop.permute.xlu0 %3425
        %v3427 = vsel %vm1356, %v3422, 0
        %v3429 = vsel %vm1356, %v3424, 0
        %v3431 = vsel %vm1356, %v3426, 0
        %3433 = vmatprep.subr.mxu0 0.0
        %3434 = vmatpush1.xpose.msra.mxu0 %v3429
        %3435 = vmatprep.subr.mxu0 0.0
        %3436 = vmatpush1.xpose.msra.mxu0 %v3431
        %3437 = vmatprep.subr.mxu0 0.0
        %3438 = vmatpush1.xpose.msra.mxu0 0.0
        %3439 = vmatprep.subr.mxu0 0.0
        %3440 = vmatpush1.xpose.msra.mxu0 0.0
        %3441 = vmatprep.subr.mxu0 0.0
        %3442 = vmatpush1.xpose.msra.mxu0 0.0
        %3443 = vmatprep.subr.mxu0 0.0
        %3444 = vmatpush1.xpose.msra.mxu0 0.0
        %3445 = vmatprep.subr.mxu0 0.0
        %3446 = vmatpush1.xpose.msra.mxu0 0.0
        %3447 = vmatprep.subr.mxu0 0.0
        %3448 = vmatpush1.xpose.msra.mxu0 0.0
        %3449 = vmatprep.subr.mxu0 0.0
        %3450 = vmatpush1.xpose.msra.mxu0 0.0
        %3451 = vmatprep.subr.mxu0 0.0
        %3452 = vmatpush1.xpose.msra.mxu0 0.0
        %3453 = vmatprep.subr.mxu0 0.0
        %3454 = vmatpush1.xpose.msra.mxu0 0.0
        %3455 = vmatprep.subr.mxu0 0.0
        %3456 = vmatpush1.xpose.msra.mxu0 0.0
        %3457 = vmatprep.subr.mxu0 0.0
        %3458 = vmatpush1.xpose.msra.mxu0 0.0
        %3459 = vmatprep.subr.mxu0 0.0
        %3460 = vmatpush1.xpose.msra.mxu0 0.0
        %3461 = vmatprep.subr.mxu0 0.0
        %3462 = vmatpush1.xpose.msra.mxu0 0.0
        %3463 = vmatprep.subr.mxu0 0.0
        %3464 = vmatpush1.xpose.msra.mxu0 0.0
        %3465 = vmatprep.subr.mxu0 0.0
        %3466 = vmatpush1.xpose.msra.mxu0 0.0
        %3467 = vmatprep.subr.mxu0 0.0
        %3468 = vmatpush1.xpose.msra.mxu0 0.0
        %3469 = vmatprep.subr.mxu0 0.0
        %3470 = vmatpush1.xpose.msra.mxu0 0.0
        %3471 = vmatprep.subr.mxu0 0.0
        %3472 = vmatpush1.xpose.msra.mxu0 0.0
        %3473 = vmatprep.subr.mxu0 0.0
        %3474 = vmatpush1.xpose.msra.mxu0 0.0
        %3475 = vmatprep.subr.mxu0 0.0
        %3476 = vmatpush1.xpose.msra.mxu0 0.0
        %3477 = vmatprep.subr.mxu0 0.0
        %3478 = vmatpush1.xpose.msra.mxu0 0.0
        %3479 = vmatprep.subr.mxu0 0.0
        %3480 = vmatpush1.xpose.msra.mxu0 0.0
        %3481 = vmatprep.subr.mxu0 0.0
        %3482 = vmatpush1.xpose.msra.mxu0 0.0
        %3483 = vmatprep.subr.mxu0 0.0
        %3484 = vmatpush1.xpose.msra.mxu0 0.0
        %3485 = vmatprep.subr.mxu0 0.0
        %3486 = vmatpush1.xpose.msra.mxu0 0.0
        %3487 = vmatprep.subr.mxu0 0.0
        %3488 = vmatpush1.xpose.msra.mxu0 0.0
        %3489 = vmatprep.subr.mxu0 0.0
        %3490 = vmatpush1.xpose.msra.mxu0 0.0
        %3491 = vmatprep.subr.mxu0 0.0
        %3492 = vmatpush1.xpose.msra.mxu0 0.0
        %3493 = vmatprep.subr.mxu0 0.0
        %3494 = vmatpush1.xpose.msra.mxu0 0.0
        %3495 = vmatprep.subr.mxu0 0.0
        %3496 = vmatpush1.xpose.msra.mxu0 0.0
        %3497 = vmatprep.mubr.f32.mxu0 0.0
        %3498 = vmatmul.mubr.f32.gmra.mrb[0].mxu0 %v3427
        %v3499 = vpop.f32.mrb[0].mxu0
        %v3500 = vadd.f32 0.0, %v3499
        %v3501 = vpop.f32.mrb[0].mxu0
        %3502 = vdwg.mxu0
        %v3503 = vmul.f32 %v3500, 0.5
        %v3504 = vsel %vm1437, %v3503, -inf
        %3505 = vmax.xlane.f32.xlu0 %v3504
        %v3506 = vpop.xlane.xlu0 %3505
        %v3507 = vsub.f32 %v3503, %v3506
        %v3508 = vmul.f32 %v3507, 1.442695
        %v3509 = vpow.pop %v3508
        %v3510 = vsel %vm1437, %v3509, 0.0
        %3511 = vadd.xlane.f32.xlu0 %v3510
        %v3512 = vpop.xlane.xlu0 %3511
        %v3513 = vrcp.pop %v3512
        %v3514 = vmul.f32 %v3509, %v3513
        %3515 = vrot.lane.b32.xlu0 %v1348, 112
        %v3516 = vpop.permute.xlu0 %3515
        %3517 = vrot.lane.b32.xlu0 %v1353, 112
        %v3518 = vpop.permute.xlu0 %3517
        %v3522 = vsel %vm1437, %v3514, 0
        %3524 = vmatprep.subr.mxu0 0.0
        %3525 = vmatpush1.msra.mxu0 %v3516
        %3526 = vmatprep.subr.mxu0 0.0
        %3527 = vmatpush1.msra.mxu0 %v3518
        %3528 = vmatprep.subr.mxu0 0.0
        %3529 = vmatpush1.msra.mxu0 0.0
        %3530 = vmatprep.subr.mxu0 0.0
        %3531 = vmatpush1.msra.mxu0 0.0
        %3532 = vmatprep.subr.mxu0 0.0
        %3533 = vmatpush1.msra.mxu0 0.0
        %3534 = vmatprep.subr.mxu0 0.0
        %3535 = vmatpush1.msra.mxu0 0.0
        %3536 = vmatprep.subr.mxu0 0.0
        %3537 = vmatpush1.msra.mxu0 0.0
        %3538 = vmatprep.subr.mxu0 0.0
        %3539 = vmatpush1.msra.mxu0 0.0
        %3540 = vmatprep.subr.mxu0 0.0
        %3541 = vmatpush1.msra.mxu0 0.0
        %3542 = vmatprep.subr.mxu0 0.0
        %3543 = vmatpush1.msra.mxu0 0.0
        %3544 = vmatprep.subr.mxu0 0.0
        %3545 = vmatpush1.msra.mxu0 0.0
        %3546 = vmatprep.subr.mxu0 0.0
        %3547 = vmatpush1.msra.mxu0 0.0
        %3548 = vmatprep.subr.mxu0 0.0
        %3549 = vmatpush1.msra.mxu0 0.0
        %3550 = vmatprep.subr.mxu0 0.0
        %3551 = vmatpush1.msra.mxu0 0.0
        %3552 = vmatprep.subr.mxu0 0.0
        %3553 = vmatpush1.msra.mxu0 0.0
        %3554 = vmatprep.subr.mxu0 0.0
        %3555 = vmatpush1.msra.mxu0 0.0
        %3556 = vmatprep.subr.mxu0 0.0
        %3557 = vmatpush1.msra.mxu0 0.0
        %3558 = vmatprep.subr.mxu0 0.0
        %3559 = vmatpush1.msra.mxu0 0.0
        %3560 = vmatprep.subr.mxu0 0.0
        %3561 = vmatpush1.msra.mxu0 0.0
        %3562 = vmatprep.subr.mxu0 0.0
        %3563 = vmatpush1.msra.mxu0 0.0
        %3564 = vmatprep.subr.mxu0 0.0
        %3565 = vmatpush1.msra.mxu0 0.0
        %3566 = vmatprep.subr.mxu0 0.0
        %3567 = vmatpush1.msra.mxu0 0.0
        %3568 = vmatprep.subr.mxu0 0.0
        %3569 = vmatpush1.msra.mxu0 0.0
        %3570 = vmatprep.subr.mxu0 0.0
        %3571 = vmatpush1.msra.mxu0 0.0
        %3572 = vmatprep.subr.mxu0 0.0
        %3573 = vmatpush1.msra.mxu0 0.0
        %3574 = vmatprep.subr.mxu0 0.0
        %3575 = vmatpush1.msra.mxu0 0.0
        %3576 = vmatprep.subr.mxu0 0.0
        %3577 = vmatpush1.msra.mxu0 0.0
        %3578 = vmatprep.subr.mxu0 0.0
        %3579 = vmatpush1.msra.mxu0 0.0
        %3580 = vmatprep.subr.mxu0 0.0
        %3581 = vmatpush1.msra.mxu0 0.0
        %3582 = vmatprep.subr.mxu0 0.0
        %3583 = vmatpush1.msra.mxu0 0.0
        %3584 = vmatprep.subr.mxu0 0.0
        %3585 = vmatpush1.msra.mxu0 0.0
        %3586 = vmatprep.subr.mxu0 0.0
        %3587 = vmatpush1.msra.mxu0 0.0
        %3588 = vmatprep.mubr.f32.mxu0 0.0
        %3589 = vmatmul.mubr.f32.gmra.mrb[0].mxu0 %v3522
        %v3590 = vpop.f32.mrb[0].mxu0
        %v3591 = vadd.f32 0.0, %v3590
        %v3592 = vpop.f32.mrb[0].mxu0
        %3593 = vdwg.mxu0
        %3594 = vrot.lane.b32.xlu0 %v990, 76
        %v3595 = vpop.permute.xlu0 %3594
        %3596 = vrot.lane.b32.xlu0 %v1257, 108
        %v3597 = vpop.permute.xlu0 %3596
        %3598 = vrot.lane.b32.xlu0 %v1262, 108
        %v3599 = vpop.permute.xlu0 %3598
        %v3600 = vsel %vm1356, %v3595, 0
        %v3602 = vsel %vm1356, %v3597, 0
        %v3604 = vsel %vm1356, %v3599, 0
        %3606 = vmatprep.subr.mxu0 0.0
        %3607 = vmatpush1.xpose.msra.mxu0 %v3602
        %3608 = vmatprep.subr.mxu0 0.0
        %3609 = vmatpush1.xpose.msra.mxu0 %v3604
        %3610 = vmatprep.subr.mxu0 0.0
        %3611 = vmatpush1.xpose.msra.mxu0 0.0
        %3612 = vmatprep.subr.mxu0 0.0
        %3613 = vmatpush1.xpose.msra.mxu0 0.0
        %3614 = vmatprep.subr.mxu0 0.0
        %3615 = vmatpush1.xpose.msra.mxu0 0.0
        %3616 = vmatprep.subr.mxu0 0.0
        %3617 = vmatpush1.xpose.msra.mxu0 0.0
        %3618 = vmatprep.subr.mxu0 0.0
        %3619 = vmatpush1.xpose.msra.mxu0 0.0
        %3620 = vmatprep.subr.mxu0 0.0
        %3621 = vmatpush1.xpose.msra.mxu0 0.0
        %3622 = vmatprep.subr.mxu0 0.0
        %3623 = vmatpush1.xpose.msra.mxu0 0.0
        %3624 = vmatprep.subr.mxu0 0.0
        %3625 = vmatpush1.xpose.msra.mxu0 0.0
        %3626 = vmatprep.subr.mxu0 0.0
        %3627 = vmatpush1.xpose.msra.mxu0 0.0
        %3628 = vmatprep.subr.mxu0 0.0
        %3629 = vmatpush1.xpose.msra.mxu0 0.0
        %3630 = vmatprep.subr.mxu0 0.0
        %3631 = vmatpush1.xpose.msra.mxu0 0.0
        %3632 = vmatprep.subr.mxu0 0.0
        %3633 = vmatpush1.xpose.msra.mxu0 0.0
        %3634 = vmatprep.subr.mxu0 0.0
        %3635 = vmatpush1.xpose.msra.mxu0 0.0
        %3636 = vmatprep.subr.mxu0 0.0
        %3637 = vmatpush1.xpose.msra.mxu0 0.0
        %3638 = vmatprep.subr.mxu0 0.0
        %3639 = vmatpush1.xpose.msra.mxu0 0.0
        %3640 = vmatprep.subr.mxu0 0.0
        %3641 = vmatpush1.xpose.msra.mxu0 0.0
        %3642 = vmatprep.subr.mxu0 0.0
        %3643 = vmatpush1.xpose.msra.mxu0 0.0
        %3644 = vmatprep.subr.mxu0 0.0
        %3645 = vmatpush1.xpose.msra.mxu0 0.0
        %3646 = vmatprep.subr.mxu0 0.0
        %3647 = vmatpush1.xpose.msra.mxu0 0.0
        %3648 = vmatprep.subr.mxu0 0.0
        %3649 = vmatpush1.xpose.msra.mxu0 0.0
        %3650 = vmatprep.subr.mxu0 0.0
        %3651 = vmatpush1.xpose.msra.mxu0 0.0
        %3652 = vmatprep.subr.mxu0 0.0
        %3653 = vmatpush1.xpose.msra.mxu0 0.0
        %3654 = vmatprep.subr.mxu0 0.0
        %3655 = vmatpush1.xpose.msra.mxu0 0.0
        %3656 = vmatprep.subr.mxu0 0.0
        %3657 = vmatpush1.xpose.msra.mxu0 0.0
        %3658 = vmatprep.subr.mxu0 0.0
        %3659 = vmatpush1.xpose.msra.mxu0 0.0
        %3660 = vmatprep.subr.mxu0 0.0
        %3661 = vmatpush1.xpose.msra.mxu0 0.0
        %3662 = vmatprep.subr.mxu0 0.0
        %3663 = vmatpush1.xpose.msra.mxu0 0.0
        %3664 = vmatprep.subr.mxu0 0.0
        %3665 = vmatpush1.xpose.msra.mxu0 0.0
        %3666 = vmatprep.subr.mxu0 0.0
        %3667 = vmatpush1.xpose.msra.mxu0 0.0
        %3668 = vmatprep.subr.mxu0 0.0
        %3669 = vmatpush1.xpose.msra.mxu0 0.0
        %3670 = vmatprep.mubr.f32.mxu0 0.0
        %3671 = vmatmul.mubr.f32.gmra.mrb[0].mxu0 %v3600
        %v3672 = vpop.f32.mrb[0].mxu0
        %v3673 = vadd.f32 0.0, %v3672
        %v3674 = vpop.f32.mrb[0].mxu0
        %3675 = vdwg.mxu0
        %v3676 = vmul.f32 %v3673, 0.5
        %v3677 = vsel %vm1437, %v3676, -inf
        %3678 = vmax.xlane.f32.xlu0 %v3677
        %v3679 = vpop.xlane.xlu0 %3678
        %v3680 = vsub.f32 %v3676, %v3679
        %v3681 = vmul.f32 %v3680, 1.442695
        %v3682 = vpow.pop %v3681
        %v3683 = vsel %vm1437, %v3682, 0.0
        %3684 = vadd.xlane.f32.xlu0 %v3683
        %v3685 = vpop.xlane.xlu0 %3684
        %v3686 = vrcp.pop %v3685
        %v3687 = vmul.f32 %v3682, %v3686
        %3688 = vrot.lane.b32.xlu0 %v1348, 108
        %v3689 = vpop.permute.xlu0 %3688
        %3690 = vrot.lane.b32.xlu0 %v1353, 108
        %v3691 = vpop.permute.xlu0 %3690
        %v3695 = vsel %vm1437, %v3687, 0
        %3697 = vmatprep.subr.mxu0 0.0
        %3698 = vmatpush1.msra.mxu0 %v3689
        %3699 = vmatprep.subr.mxu0 0.0
        %3700 = vmatpush1.msra.mxu0 %v3691
        %3701 = vmatprep.subr.mxu0 0.0
        %3702 = vmatpush1.msra.mxu0 0.0
        %3703 = vmatprep.subr.mxu0 0.0
        %3704 = vmatpush1.msra.mxu0 0.0
        %3705 = vmatprep.subr.mxu0 0.0
        %3706 = vmatpush1.msra.mxu0 0.0
        %3707 = vmatprep.subr.mxu0 0.0
        %3708 = vmatpush1.msra.mxu0 0.0
        %3709 = vmatprep.subr.mxu0 0.0
        %3710 = vmatpush1.msra.mxu0 0.0
        %3711 = vmatprep.subr.mxu0 0.0
        %3712 = vmatpush1.msra.mxu0 0.0
        %3713 = vmatprep.subr.mxu0 0.0
        %3714 = vmatpush1.msra.mxu0 0.0
        %3715 = vmatprep.subr.mxu0 0.0
        %3716 = vmatpush1.msra.mxu0 0.0
        %3717 = vmatprep.subr.mxu0 0.0
        %3718 = vmatpush1.msra.mxu0 0.0
        %3719 = vmatprep.subr.mxu0 0.0
        %3720 = vmatpush1.msra.mxu0 0.0
        %3721 = vmatprep.subr.mxu0 0.0
        %3722 = vmatpush1.msra.mxu0 0.0
        %3723 = vmatprep.subr.mxu0 0.0
        %3724 = vmatpush1.msra.mxu0 0.0
        %3725 = vmatprep.subr.mxu0 0.0
        %3726 = vmatpush1.msra.mxu0 0.0
        %3727 = vmatprep.subr.mxu0 0.0
        %3728 = vmatpush1.msra.mxu0 0.0
        %3729 = vmatprep.subr.mxu0 0.0
        %3730 = vmatpush1.msra.mxu0 0.0
        %3731 = vmatprep.subr.mxu0 0.0
        %3732 = vmatpush1.msra.mxu0 0.0
        %3733 = vmatprep.subr.mxu0 0.0
        %3734 = vmatpush1.msra.mxu0 0.0
        %3735 = vmatprep.subr.mxu0 0.0
        %3736 = vmatpush1.msra.mxu0 0.0
        %3737 = vmatprep.subr.mxu0 0.0
        %3738 = vmatpush1.msra.mxu0 0.0
        %3739 = vmatprep.subr.mxu0 0.0
        %3740 = vmatpush1.msra.mxu0 0.0
        %3741 = vmatprep.subr.mxu0 0.0
        %3742 = vmatpush1.msra.mxu0 0.0
        %3743 = vmatprep.subr.mxu0 0.0
        %3744 = vmatpush1.msra.mxu0 0.0
        %3745 = vmatprep.subr.mxu0 0.0
        %3746 = vmatpush1.msra.mxu0 0.0
        %3747 = vmatprep.subr.mxu0 0.0
        %3748 = vmatpush1.msra.mxu0 0.0
        %3749 = vmatprep.subr.mxu0 0.0
        %3750 = vmatpush1.msra.mxu0 0.0
        %3751 = vmatprep.subr.mxu0 0.0
        %3752 = vmatpush1.msra.mxu0 0.0
        %3753 = vmatprep.subr.mxu0 0.0
        %3754 = vmatpush1.msra.mxu0 0.0
        %3755 = vmatprep.subr.mxu0 0.0
        %3756 = vmatpush1.msra.mxu0 0.0
        %3757 = vmatprep.subr.mxu0 0.0
        %3758 = vmatpush1.msra.mxu0 0.0
        %3759 = vmatprep.subr.mxu0 0.0
        %3760 = vmatpush1.msra.mxu0 0.0
        %3761 = vmatprep.mubr.f32.mxu0 0.0
        %3762 = vmatmul.mubr.f32.gmra.mrb[0].mxu0 %v3695
        %v3763 = vpop.f32.mrb[0].mxu0
        %v3764 = vadd.f32 0.0, %v3763
        %v3765 = vpop.f32.mrb[0].mxu0
        %3766 = vdwg.mxu0
        %3767 = vrot.lane.b32.xlu0 %v990, 72
        %v3768 = vpop.permute.xlu0 %3767
        %3769 = vrot.lane.b32.xlu0 %v1257, 104
        %v3770 = vpop.permute.xlu0 %3769
        %3771 = vrot.lane.b32.xlu0 %v1262, 104
        %v3772 = vpop.permute.xlu0 %3771
        %v3773 = vsel %vm1356, %v3768, 0
        %v3775 = vsel %vm1356, %v3770, 0
        %v3777 = vsel %vm1356, %v3772, 0
        %3779 = vmatprep.subr.mxu0 0.0
        %3780 = vmatpush1.xpose.msra.mxu0 %v3775
        %3781 = vmatprep.subr.mxu0 0.0
        %3782 = vmatpush1.xpose.msra.mxu0 %v3777
        %3783 = vmatprep.subr.mxu0 0.0
        %3784 = vmatpush1.xpose.msra.mxu0 0.0
        %3785 = vmatprep.subr.mxu0 0.0
        %3786 = vmatpush1.xpose.msra.mxu0 0.0
        %3787 = vmatprep.subr.mxu0 0.0
        %3788 = vmatpush1.xpose.msra.mxu0 0.0
        %3789 = vmatprep.subr.mxu0 0.0
        %3790 = vmatpush1.xpose.msra.mxu0 0.0
        %3791 = vmatprep.subr.mxu0 0.0
        %3792 = vmatpush1.xpose.msra.mxu0 0.0
        %3793 = vmatprep.subr.mxu0 0.0
        %3794 = vmatpush1.xpose.msra.mxu0 0.0
        %3795 = vmatprep.subr.mxu0 0.0
        %3796 = vmatpush1.xpose.msra.mxu0 0.0
        %3797 = vmatprep.subr.mxu0 0.0
        %3798 = vmatpush1.xpose.msra.mxu0 0.0
        %3799 = vmatprep.subr.mxu0 0.0
        %3800 = vmatpush1.xpose.msra.mxu0 0.0
        %3801 = vmatprep.subr.mxu0 0.0
        %3802 = vmatpush1.xpose.msra.mxu0 0.0
        %3803 = vmatprep.subr.mxu0 0.0
        %3804 = vmatpush1.xpose.msra.mxu0 0.0
        %3805 = vmatprep.subr.mxu0 0.0
        %3806 = vmatpush1.xpose.msra.mxu0 0.0
        %3807 = vmatprep.subr.mxu0 0.0
        %3808 = vmatpush1.xpose.msra.mxu0 0.0
        %3809 = vmatprep.subr.mxu0 0.0
        %3810 = vmatpush1.xpose.msra.mxu0 0.0
        %3811 = vmatprep.subr.mxu0 0.0
        %3812 = vmatpush1.xpose.msra.mxu0 0.0
        %3813 = vmatprep.subr.mxu0 0.0
        %3814 = vmatpush1.xpose.msra.mxu0 0.0
        %3815 = vmatprep.subr.mxu0 0.0
        %3816 = vmatpush1.xpose.msra.mxu0 0.0
        %3817 = vmatprep.subr.mxu0 0.0
        %3818 = vmatpush1.xpose.msra.mxu0 0.0
        %3819 = vmatprep.subr.mxu0 0.0
        %3820 = vmatpush1.xpose.msra.mxu0 0.0
        %3821 = vmatprep.subr.mxu0 0.0
        %3822 = vmatpush1.xpose.msra.mxu0 0.0
        %3823 = vmatprep.subr.mxu0 0.0
        %3824 = vmatpush1.xpose.msra.mxu0 0.0
        %3825 = vmatprep.subr.mxu0 0.0
        %3826 = vmatpush1.xpose.msra.mxu0 0.0
        %3827 = vmatprep.subr.mxu0 0.0
        %3828 = vmatpush1.xpose.msra.mxu0 0.0
        %3829 = vmatprep.subr.mxu0 0.0
        %3830 = vmatpush1.xpose.msra.mxu0 0.0
        %3831 = vmatprep.subr.mxu0 0.0
        %3832 = vmatpush1.xpose.msra.mxu0 0.0
        %3833 = vmatprep.subr.mxu0 0.0
        %3834 = vmatpush1.xpose.msra.mxu0 0.0
        %3835 = vmatprep.subr.mxu0 0.0
        %3836 = vmatpush1.xpose.msra.mxu0 0.0
        %3837 = vmatprep.subr.mxu0 0.0
        %3838 = vmatpush1.xpose.msra.mxu0 0.0
        %3839 = vmatprep.subr.mxu0 0.0
        %3840 = vmatpush1.xpose.msra.mxu0 0.0
        %3841 = vmatprep.subr.mxu0 0.0
        %3842 = vmatpush1.xpose.msra.mxu0 0.0
        %3843 = vmatprep.mubr.f32.mxu0 0.0
        %3844 = vmatmul.mubr.f32.gmra.mrb[0].mxu0 %v3773
        %v3845 = vpop.f32.mrb[0].mxu0
        %v3846 = vadd.f32 0.0, %v3845
        %v3847 = vpop.f32.mrb[0].mxu0
        %3848 = vdwg.mxu0
        %v3849 = vmul.f32 %v3846, 0.5
        %v3850 = vsel %vm1437, %v3849, -inf
        %3851 = vmax.xlane.f32.xlu0 %v3850
        %v3852 = vpop.xlane.xlu0 %3851
        %v3853 = vsub.f32 %v3849, %v3852
        %v3854 = vmul.f32 %v3853, 1.442695
        %v3855 = vpow.pop %v3854
        %v3856 = vsel %vm1437, %v3855, 0.0
        %3857 = vadd.xlane.f32.xlu0 %v3856
        %v3858 = vpop.xlane.xlu0 %3857
        %v3859 = vrcp.pop %v3858
        %v3860 = vmul.f32 %v3855, %v3859
        %3861 = vrot.lane.b32.xlu0 %v1348, 104
        %v3862 = vpop.permute.xlu0 %3861
        %3863 = vrot.lane.b32.xlu0 %v1353, 104
        %v3864 = vpop.permute.xlu0 %3863
        %v3868 = vsel %vm1437, %v3860, 0
        %3870 = vmatprep.subr.mxu0 0.0
        %3871 = vmatpush1.msra.mxu0 %v3862
        %3872 = vmatprep.subr.mxu0 0.0
        %3873 = vmatpush1.msra.mxu0 %v3864
        %3874 = vmatprep.subr.mxu0 0.0
        %3875 = vmatpush1.msra.mxu0 0.0
        %3876 = vmatprep.subr.mxu0 0.0
        %3877 = vmatpush1.msra.mxu0 0.0
        %3878 = vmatprep.subr.mxu0 0.0
        %3879 = vmatpush1.msra.mxu0 0.0
        %3880 = vmatprep.subr.mxu0 0.0
        %3881 = vmatpush1.msra.mxu0 0.0
        %3882 = vmatprep.subr.mxu0 0.0
        %3883 = vmatpush1.msra.mxu0 0.0
        %3884 = vmatprep.subr.mxu0 0.0
        %3885 = vmatpush1.msra.mxu0 0.0
        %3886 = vmatprep.subr.mxu0 0.0
        %3887 = vmatpush1.msra.mxu0 0.0
        %3888 = vmatprep.subr.mxu0 0.0
        %3889 = vmatpush1.msra.mxu0 0.0
        %3890 = vmatprep.subr.mxu0 0.0
        %3891 = vmatpush1.msra.mxu0 0.0
        %3892 = vmatprep.subr.mxu0 0.0
        %3893 = vmatpush1.msra.mxu0 0.0
        %3894 = vmatprep.subr.mxu0 0.0
        %3895 = vmatpush1.msra.mxu0 0.0
        %3896 = vmatprep.subr.mxu0 0.0
        %3897 = vmatpush1.msra.mxu0 0.0
        %3898 = vmatprep.subr.mxu0 0.0
        %3899 = vmatpush1.msra.mxu0 0.0
        %3900 = vmatprep.subr.mxu0 0.0
        %3901 = vmatpush1.msra.mxu0 0.0
        %3902 = vmatprep.subr.mxu0 0.0
        %3903 = vmatpush1.msra.mxu0 0.0
        %3904 = vmatprep.subr.mxu0 0.0
        %3905 = vmatpush1.msra.mxu0 0.0
        %3906 = vmatprep.subr.mxu0 0.0
        %3907 = vmatpush1.msra.mxu0 0.0
        %3908 = vmatprep.subr.mxu0 0.0
        %3909 = vmatpush1.msra.mxu0 0.0
        %3910 = vmatprep.subr.mxu0 0.0
        %3911 = vmatpush1.msra.mxu0 0.0
        %3912 = vmatprep.subr.mxu0 0.0
        %3913 = vmatpush1.msra.mxu0 0.0
        %3914 = vmatprep.subr.mxu0 0.0
        %3915 = vmatpush1.msra.mxu0 0.0
        %3916 = vmatprep.subr.mxu0 0.0
        %3917 = vmatpush1.msra.mxu0 0.0
        %3918 = vmatprep.subr.mxu0 0.0
        %3919 = vmatpush1.msra.mxu0 0.0
        %3920 = vmatprep.subr.mxu0 0.0
        %3921 = vmatpush1.msra.mxu0 0.0
        %3922 = vmatprep.subr.mxu0 0.0
        %3923 = vmatpush1.msra.mxu0 0.0
        %3924 = vmatprep.subr.mxu0 0.0
        %3925 = vmatpush1.msra.mxu0 0.0
        %3926 = vmatprep.subr.mxu0 0.0
        %3927 = vmatpush1.msra.mxu0 0.0
        %3928 = vmatprep.subr.mxu0 0.0
        %3929 = vmatpush1.msra.mxu0 0.0
        %3930 = vmatprep.subr.mxu0 0.0
        %3931 = vmatpush1.msra.mxu0 0.0
        %3932 = vmatprep.subr.mxu0 0.0
        %3933 = vmatpush1.msra.mxu0 0.0
        %3934 = vmatprep.mubr.f32.mxu0 0.0
        %3935 = vmatmul.mubr.f32.gmra.mrb[0].mxu0 %v3868
        %v3936 = vpop.f32.mrb[0].mxu0
        %v3937 = vadd.f32 0.0, %v3936
        %v3938 = vpop.f32.mrb[0].mxu0
        %3939 = vdwg.mxu0
        %3940 = vrot.lane.b32.xlu0 %v990, 68
        %v3941 = vpop.permute.xlu0 %3940
        %3942 = vrot.lane.b32.xlu0 %v1257, 100
        %v3943 = vpop.permute.xlu0 %3942
        %3944 = vrot.lane.b32.xlu0 %v1262, 100
        %v3945 = vpop.permute.xlu0 %3944
        %v3946 = vsel %vm1356, %v3941, 0
        %v3948 = vsel %vm1356, %v3943, 0
        %v3950 = vsel %vm1356, %v3945, 0
        %3952 = vmatprep.subr.mxu0 0.0
        %3953 = vmatpush1.xpose.msra.mxu0 %v3948
        %3954 = vmatprep.subr.mxu0 0.0
        %3955 = vmatpush1.xpose.msra.mxu0 %v3950
        %3956 = vmatprep.subr.mxu0 0.0
        %3957 = vmatpush1.xpose.msra.mxu0 0.0
        %3958 = vmatprep.subr.mxu0 0.0
        %3959 = vmatpush1.xpose.msra.mxu0 0.0
        %3960 = vmatprep.subr.mxu0 0.0
        %3961 = vmatpush1.xpose.msra.mxu0 0.0
        %3962 = vmatprep.subr.mxu0 0.0
        %3963 = vmatpush1.xpose.msra.mxu0 0.0
        %3964 = vmatprep.subr.mxu0 0.0
        %3965 = vmatpush1.xpose.msra.mxu0 0.0
        %3966 = vmatprep.subr.mxu0 0.0
        %3967 = vmatpush1.xpose.msra.mxu0 0.0
        %3968 = vmatprep.subr.mxu0 0.0
        %3969 = vmatpush1.xpose.msra.mxu0 0.0
        %3970 = vmatprep.subr.mxu0 0.0
        %3971 = vmatpush1.xpose.msra.mxu0 0.0
        %3972 = vmatprep.subr.mxu0 0.0
        %3973 = vmatpush1.xpose.msra.mxu0 0.0
        %3974 = vmatprep.subr.mxu0 0.0
        %3975 = vmatpush1.xpose.msra.mxu0 0.0
        %3976 = vmatprep.subr.mxu0 0.0
        %3977 = vmatpush1.xpose.msra.mxu0 0.0
        %3978 = vmatprep.subr.mxu0 0.0
        %3979 = vmatpush1.xpose.msra.mxu0 0.0
        %3980 = vmatprep.subr.mxu0 0.0
        %3981 = vmatpush1.xpose.msra.mxu0 0.0
        %3982 = vmatprep.subr.mxu0 0.0
        %3983 = vmatpush1.xpose.msra.mxu0 0.0
        %3984 = vmatprep.subr.mxu0 0.0
        %3985 = vmatpush1.xpose.msra.mxu0 0.0
        %3986 = vmatprep.subr.mxu0 0.0
        %3987 = vmatpush1.xpose.msra.mxu0 0.0
        %3988 = vmatprep.subr.mxu0 0.0
        %3989 = vmatpush1.xpose.msra.mxu0 0.0
        %3990 = vmatprep.subr.mxu0 0.0
        %3991 = vmatpush1.xpose.msra.mxu0 0.0
        %3992 = vmatprep.subr.mxu0 0.0
        %3993 = vmatpush1.xpose.msra.mxu0 0.0
        %3994 = vmatprep.subr.mxu0 0.0
        %3995 = vmatpush1.xpose.msra.mxu0 0.0
        %3996 = vmatprep.subr.mxu0 0.0
        %3997 = vmatpush1.xpose.msra.mxu0 0.0
        %3998 = vmatprep.subr.mxu0 0.0
        %3999 = vmatpush1.xpose.msra.mxu0 0.0
        %4000 = vmatprep.subr.mxu0 0.0
        %4001 = vmatpush1.xpose.msra.mxu0 0.0
        %4002 = vmatprep.subr.mxu0 0.0
        %4003 = vmatpush1.xpose.msra.mxu0 0.0
        %4004 = vmatprep.subr.mxu0 0.0
        %4005 = vmatpush1.xpose.msra.mxu0 0.0
        %4006 = vmatprep.subr.mxu0 0.0
        %4007 = vmatpush1.xpose.msra.mxu0 0.0
        %4008 = vmatprep.subr.mxu0 0.0
        %4009 = vmatpush1.xpose.msra.mxu0 0.0
        %4010 = vmatprep.subr.mxu0 0.0
        %4011 = vmatpush1.xpose.msra.mxu0 0.0
        %4012 = vmatprep.subr.mxu0 0.0
        %4013 = vmatpush1.xpose.msra.mxu0 0.0
        %4014 = vmatprep.subr.mxu0 0.0
        %4015 = vmatpush1.xpose.msra.mxu0 0.0
        %4016 = vmatprep.mubr.f32.mxu0 0.0
        %4017 = vmatmul.mubr.f32.gmra.mrb[0].mxu0 %v3946
        %v4018 = vpop.f32.mrb[0].mxu0
        %v4019 = vadd.f32 0.0, %v4018
        %v4020 = vpop.f32.mrb[0].mxu0
        %4021 = vdwg.mxu0
        %v4022 = vmul.f32 %v4019, 0.5
        %v4023 = vsel %vm1437, %v4022, -inf
        %4024 = vmax.xlane.f32.xlu0 %v4023
        %v4025 = vpop.xlane.xlu0 %4024
        %v4026 = vsub.f32 %v4022, %v4025
        %v4027 = vmul.f32 %v4026, 1.442695
        %v4028 = vpow.pop %v4027
        %v4029 = vsel %vm1437, %v4028, 0.0
        %4030 = vadd.xlane.f32.xlu0 %v4029
        %v4031 = vpop.xlane.xlu0 %4030
        %v4032 = vrcp.pop %v4031
        %v4033 = vmul.f32 %v4028, %v4032
        %4034 = vrot.lane.b32.xlu0 %v1348, 100
        %v4035 = vpop.permute.xlu0 %4034
        %4036 = vrot.lane.b32.xlu0 %v1353, 100
        %v4037 = vpop.permute.xlu0 %4036
        %v4041 = vsel %vm1437, %v4033, 0
        %4043 = vmatprep.subr.mxu0 0.0
        %4044 = vmatpush1.msra.mxu0 %v4035
        %4045 = vmatprep.subr.mxu0 0.0
        %4046 = vmatpush1.msra.mxu0 %v4037
        %4047 = vmatprep.subr.mxu0 0.0
        %4048 = vmatpush1.msra.mxu0 0.0
        %4049 = vmatprep.subr.mxu0 0.0
        %4050 = vmatpush1.msra.mxu0 0.0
        %4051 = vmatprep.subr.mxu0 0.0
        %4052 = vmatpush1.msra.mxu0 0.0
        %4053 = vmatprep.subr.mxu0 0.0
        %4054 = vmatpush1.msra.mxu0 0.0
        %4055 = vmatprep.subr.mxu0 0.0
        %4056 = vmatpush1.msra.mxu0 0.0
        %4057 = vmatprep.subr.mxu0 0.0
        %4058 = vmatpush1.msra.mxu0 0.0
        %4059 = vmatprep.subr.mxu0 0.0
        %4060 = vmatpush1.msra.mxu0 0.0
        %4061 = vmatprep.subr.mxu0 0.0
        %4062 = vmatpush1.msra.mxu0 0.0
        %4063 = vmatprep.subr.mxu0 0.0
        %4064 = vmatpush1.msra.mxu0 0.0
        %4065 = vmatprep.subr.mxu0 0.0
        %4066 = vmatpush1.msra.mxu0 0.0
        %4067 = vmatprep.subr.mxu0 0.0
        %4068 = vmatpush1.msra.mxu0 0.0
        %4069 = vmatprep.subr.mxu0 0.0
        %4070 = vmatpush1.msra.mxu0 0.0
        %4071 = vmatprep.subr.mxu0 0.0
        %4072 = vmatpush1.msra.mxu0 0.0
        %4073 = vmatprep.subr.mxu0 0.0
        %4074 = vmatpush1.msra.mxu0 0.0
        %4075 = vmatprep.subr.mxu0 0.0
        %4076 = vmatpush1.msra.mxu0 0.0
        %4077 = vmatprep.subr.mxu0 0.0
        %4078 = vmatpush1.msra.mxu0 0.0
        %4079 = vmatprep.subr.mxu0 0.0
        %4080 = vmatpush1.msra.mxu0 0.0
        %4081 = vmatprep.subr.mxu0 0.0
        %4082 = vmatpush1.msra.mxu0 0.0
        %4083 = vmatprep.subr.mxu0 0.0
        %4084 = vmatpush1.msra.mxu0 0.0
        %4085 = vmatprep.subr.mxu0 0.0
        %4086 = vmatpush1.msra.mxu0 0.0
        %4087 = vmatprep.subr.mxu0 0.0
        %4088 = vmatpush1.msra.mxu0 0.0
        %4089 = vmatprep.subr.mxu0 0.0
        %4090 = vmatpush1.msra.mxu0 0.0
        %4091 = vmatprep.subr.mxu0 0.0
        %4092 = vmatpush1.msra.mxu0 0.0
        %4093 = vmatprep.subr.mxu0 0.0
        %4094 = vmatpush1.msra.mxu0 0.0
        %4095 = vmatprep.subr.mxu0 0.0
        %4096 = vmatpush1.msra.mxu0 0.0
        %4097 = vmatprep.subr.mxu0 0.0
        %4098 = vmatpush1.msra.mxu0 0.0
        %4099 = vmatprep.subr.mxu0 0.0
        %4100 = vmatpush1.msra.mxu0 0.0
        %4101 = vmatprep.subr.mxu0 0.0
        %4102 = vmatpush1.msra.mxu0 0.0
        %4103 = vmatprep.subr.mxu0 0.0
        %4104 = vmatpush1.msra.mxu0 0.0
        %4105 = vmatprep.subr.mxu0 0.0
        %4106 = vmatpush1.msra.mxu0 0.0
        %4107 = vmatprep.mubr.f32.mxu0 0.0
        %4108 = vmatmul.mubr.f32.gmra.mrb[0].mxu0 %v4041
        %v4109 = vpop.f32.mrb[0].mxu0
        %v4110 = vadd.f32 0.0, %v4109
        %v4111 = vpop.f32.mrb[0].mxu0
        %4112 = vdwg.mxu0
        %4114 = vrot.lane.b32.xlu0 %v1694, 4
        %v4115 = vpop.permute.xlu0 %4114
        %4118 = vrot.lane.b32.xlu0 %v1867, 8
        %v4119 = vpop.permute.xlu0 %4118
        %4122 = vrot.lane.b32.xlu0 %v2040, 12
        %v4123 = vpop.permute.xlu0 %4122
        %4126 = vrot.lane.b32.xlu0 %v2213, 16
        %v4127 = vpop.permute.xlu0 %4126
        %4130 = vrot.lane.b32.xlu0 %v2386, 20
        %v4131 = vpop.permute.xlu0 %4130
        %4134 = vrot.lane.b32.xlu0 %v2559, 24
        %v4135 = vpop.permute.xlu0 %4134
        %4138 = vrot.lane.b32.xlu0 %v2732, 28
        %v4139 = vpop.permute.xlu0 %4138
        %4142 = vrot.lane.b32.xlu0 %v2897, 32
        %v4143 = vpop.permute.xlu0 %4142
        %4146 = vrot.lane.b32.xlu0 %v3072, 36
        %v4147 = vpop.permute.xlu0 %4146
        %4150 = vrot.lane.b32.xlu0 %v3245, 40
        %v4151 = vpop.permute.xlu0 %4150
        %4154 = vrot.lane.b32.xlu0 %v3418, 44
        %v4155 = vpop.permute.xlu0 %4154
        %4158 = vrot.lane.b32.xlu0 %v3591, 48
        %v4159 = vpop.permute.xlu0 %4158
        %4162 = vrot.lane.b32.xlu0 %v3764, 52
        %v4163 = vpop.permute.xlu0 %4162
        %4166 = vrot.lane.b32.xlu0 %v3937, 56
        %v4167 = vpop.permute.xlu0 %4166
        %4170 = vrot.lane.b32.xlu0 %v4110, 60
        %v4171 = vpop.permute.xlu0 %4170
        %v4173 = vsel %vm1356, %v1519, %v4115
        %vm4174 = vcmask 64512
        %v4175 = vsel %vm4174, %v4173, %v4119
        %vm4176 = vcmask 97280
        %v4177 = vsel %vm4176, %v4175, %v4123
        %v4178 = vsel %vm1437, %v4177, %v4127
        %vm4179 = vcmask 162816
        %v4180 = vsel %vm4179, %v4178, %v4131
        %vm4181 = vcmask 195584
        %v4182 = vsel %vm4181, %v4180, %v4135
        %vm4183 = vcmask 228352
        %v4184 = vsel %vm4183, %v4182, %v4139
        %v4185 = vsel %vm798, %v4184, %v4143
        %vm4186 = vcmask 293888
        %v4187 = vsel %vm4186, %v4185, %v4147
        %vm4188 = vcmask 326656
        %v4189 = vsel %vm4188, %v4187, %v4151
        %vm4190 = vcmask 359424
        %v4191 = vsel %vm4190, %v4189, %v4155
        %vm4192 = vcmask 392192
        %v4193 = vsel %vm4192, %v4191, %v4159
        %vm4194 = vcmask 424960
        %v4195 = vsel %vm4194, %v4193, %v4163
        %vm4196 = vcmask 457728
        %v4197 = vsel %vm4196, %v4195, %v4167
        %vm4198 = vcmask 490496
        %v4199 = vsel %vm4198, %v4197, %v4171
        %v4200 = vld [vmem:[%s10] sm:$0xff]
        %v4201 = vld [vmem:[%s10 + $0x8] sm:$0xff]
        %v4202 = vld [vmem:[%s10 + $0x10] sm:$0xff]
        %v4203 = vld [vmem:[%s10 + $0x18] sm:$0xff]
        %v4204 = vld [vmem:[%s10 + $0x20] sm:$0xff]
        %v4205 = vld [vmem:[%s10 + $0x28] sm:$0xff]
        %v4206 = vld [vmem:[%s10 + $0x30] sm:$0xff]
        %v4207 = vld [vmem:[%s10 + $0x38] sm:$0xff]
        %vm4208 = vcmask 523264
        %v4210 = vsel %vm4208, %v4199, 0
        %4212 = vmatprep.subr.mxu0 0.0
        %4213 = vmatpush1.msra.mxu0 %v4200
        %4214 = vmatprep.subr.mxu0 0.0
        %4215 = vmatpush1.msra.mxu0 %v4201
        %4216 = vmatprep.subr.mxu0 0.0
        %4217 = vmatpush1.msra.mxu0 %v4202
        %4218 = vmatprep.subr.mxu0 0.0
        %4219 = vmatpush1.msra.mxu0 %v4203
        %4220 = vmatprep.subr.mxu0 0.0
        %4221 = vmatpush1.msra.mxu0 %v4204
        %4222 = vmatprep.subr.mxu0 0.0
        %4223 = vmatpush1.msra.mxu0 %v4205
        %4224 = vmatprep.subr.mxu0 0.0
        %4225 = vmatpush1.msra.mxu0 %v4206
        %4226 = vmatprep.subr.mxu0 0.0
        %4227 = vmatpush1.msra.mxu0 %v4207
        %4228 = vmatprep.subr.mxu0 0.0
        %4229 = vmatpush1.msra.mxu0 0.0
        %4230 = vmatprep.subr.mxu0 0.0
        %4231 = vmatpush1.msra.mxu0 0.0
        %4232 = vmatprep.subr.mxu0 0.0
        %4233 = vmatpush1.msra.mxu0 0.0
        %4234 = vmatprep.subr.mxu0 0.0
        %4235 = vmatpush1.msra.mxu0 0.0
        %4236 = vmatprep.subr.mxu0 0.0
        %4237 = vmatpush1.msra.mxu0 0.0
        %4238 = vmatprep.subr.mxu0 0.0
        %4239 = vmatpush1.msra.mxu0 0.0
        %4240 = vmatprep.subr.mxu0 0.0
        %4241 = vmatpush1.msra.mxu0 0.0
        %4242 = vmatprep.subr.mxu0 0.0
        %4243 = vmatpush1.msra.mxu0 0.0
        %4244 = vmatprep.subr.mxu0 0.0
        %4245 = vmatpush1.msra.mxu0 0.0
        %4246 = vmatprep.subr.mxu0 0.0
        %4247 = vmatpush1.msra.mxu0 0.0
        %4248 = vmatprep.subr.mxu0 0.0
        %4249 = vmatpush1.msra.mxu0 0.0
        %4250 = vmatprep.subr.mxu0 0.0
        %4251 = vmatpush1.msra.mxu0 0.0
        %4252 = vmatprep.subr.mxu0 0.0
        %4253 = vmatpush1.msra.mxu0 0.0
        %4254 = vmatprep.subr.mxu0 0.0
        %4255 = vmatpush1.msra.mxu0 0.0
        %4256 = vmatprep.subr.mxu0 0.0
        %4257 = vmatpush1.msra.mxu0 0.0
        %4258 = vmatprep.subr.mxu0 0.0
        %4259 = vmatpush1.msra.mxu0 0.0
        %4260 = vmatprep.subr.mxu0 0.0
        %4261 = vmatpush1.msra.mxu0 0.0
        %4262 = vmatprep.subr.mxu0 0.0
        %4263 = vmatpush1.msra.mxu0 0.0
        %4264 = vmatprep.subr.mxu0 0.0
        %4265 = vmatpush1.msra.mxu0 0.0
        %4266 = vmatprep.subr.mxu0 0.0
        %4267 = vmatpush1.msra.mxu0 0.0
        %4268 = vmatprep.subr.mxu0 0.0
        %4269 = vmatpush1.msra.mxu0 0.0
        %4270 = vmatprep.subr.mxu0 0.0
        %4271 = vmatpush1.msra.mxu0 0.0
        %4272 = vmatprep.subr.mxu0 0.0
        %4273 = vmatpush1.msra.mxu0 0.0
        %4274 = vmatprep.subr.mxu0 0.0
        %4275 = vmatpush1.msra.mxu0 0.0
        %4276 = vmatprep.mubr.f32.mxu0 0.0
        %4277 = vmatmul.mubr.f32.gmra.mrb[0].mxu0 %v4210
        %v4278 = vpop.f32.mrb[0].mxu0
        %v4279 = vadd.f32 0.0, %v4278
        %v4280 = vpop.f32.mrb[0].mxu0
        %4281 = vdwg.mxu0
        %v4282 = vadd.f32 %v795, %v4279
        %v4283 = vld [vmem:[%s11] sm:$0x1]
        %v4285 = vlaneseq
        %v4286 = vshrl.u32 %v4285, 7
        %v4287 = vsub.s32 0, %v4286
        %v4288 = vrot.slane %v4283, %v4287
        %v4290 = vadd.f32 %v4282, %v4288
        %v4291 = vsel %vm798, %v4290, 0.0
        %4292 = vadd.xlane.f32.xlu0 %v4291
        %v4293 = vpop.xlane.xlu0 %4292
        %v4294 = vmul.f32 %v4293, %v805
        %v4295 = vsub.f32 %v4290, %v4294
        %v4296 = vmul.f32 %v4295, %v4295
        %v4297 = vsel %vm798, %v4296, 0.0
        %4298 = vadd.xlane.f32.xlu0 %v4297
        %v4299 = vpop.xlane.xlu0 %4298
        %v4300 = vmul.f32 %v4299, %v805
        %v4301 = vadd.f32 %v4300, 1e-05
        %v4302 = vrsqrt.pop %v4301
        %v4303 = vmul.f32 %v4295, %v4302
        %v4304 = vld [vmem:[%s4 + $0x3] sm:$0x1]
        %v4305 = vlaneseq
        %v4306 = vshrl.u32 %v4305, 7
        %v4307 = vsub.s32 0, %v4306
        %v4308 = vrot.slane %v4304, %v4307
        %v4309 = vmul.f32 %v4303, %v4308
        %v4310 = vld [vmem:[%s5 + $0x3] sm:$0x1]
        %v4311 = vlaneseq
        %v4312 = vshrl.u32 %v4311, 7
        %v4313 = vsub.s32 0, %v4312
        %v4314 = vrot.slane %v4310, %v4313
        %v4315 = vadd.f32 %v4309, %v4314
        %v4316 = vld [vmem:[%s14] sm:$0xff]
        %v4317 = vld [vmem:[%s14 + $0x8] sm:$0xff]
        %v4318 = vld [vmem:[%s14 + $0x10] sm:$0xff]
        %v4319 = vld [vmem:[%s14 + $0x18] sm:$0xff]
        %v4320 = vld [vmem:[%s15] sm:$0x1]
        %v4322 = vlaneseq
        %v4323 = vshrl.u32 %v4322, 7
        %v4324 = vsub.s32 0, %v4323
        %v4325 = vrot.slane %v4320, %v4324
        %v4328 = vsel %vm798, %v4315, 0
        %4330 = vmatprep.subr.mxu0 0.0
        %4331 = vmatpush1.msra.mxu0 %v4316
        %4332 = vmatprep.subr.mxu0 0.0
        %4333 = vmatpush1.msra.mxu0 %v4317
        %4334 = vmatprep.subr.mxu0 0.0
        %4335 = vmatpush1.msra.mxu0 %v4318
        %4336 = vmatprep.subr.mxu0 0.0
        %4337 = vmatpush1.msra.mxu0 %v4319
        %4338 = vmatprep.subr.mxu0 0.0
        %4339 = vmatpush1.msra.mxu0 0.0
        %4340 = vmatprep.subr.mxu0 0.0
        %4341 = vmatpush1.msra.mxu0 0.0
        %4342 = vmatprep.subr.mxu0 0.0
        %4343 = vmatpush1.msra.mxu0 0.0
        %4344 = vmatprep.subr.mxu0 0.0
        %4345 = vmatpush1.msra.mxu0 0.0
        %4346 = vmatprep.subr.mxu0 0.0
        %4347 = vmatpush1.msra.mxu0 0.0
        %4348 = vmatprep.subr.mxu0 0.0
        %4349 = vmatpush1.msra.mxu0 0.0
        %4350 = vmatprep.subr.mxu0 0.0
        %4351 = vmatpush1.msra.mxu0 0.0
        %4352 = vmatprep.subr.mxu0 0.0
        %4353 = vmatpush1.msra.mxu0 0.0
        %4354 = vmatprep.subr.mxu0 0.0
        %4355 = vmatpush1.msra.mxu0 0.0
        %4356 = vmatprep.subr.mxu0 0.0
        %4357 = vmatpush1.msra.mxu0 0.0
        %4358 = vmatprep.subr.mxu0 0.0
        %4359 = vmatpush1.msra.mxu0 0.0
        %4360 = vmatprep.subr.mxu0 0.0
        %4361 = vmatpush1.msra.mxu0 0.0
        %4362 = vmatprep.subr.mxu0 0.0
        %4363 = vmatpush1.msra.mxu0 0.0
        %4364 = vmatprep.subr.mxu0 0.0
        %4365 = vmatpush1.msra.mxu0 0.0
        %4366 = vmatprep.subr.mxu0 0.0
        %4367 = vmatpush1.msra.mxu0 0.0
        %4368 = vmatprep.subr.mxu0 0.0
        %4369 = vmatpush1.msra.mxu0 0.0
        %4370 = vmatprep.subr.mxu0 0.0
        %4371 = vmatpush1.msra.mxu0 0.0
        %4372 = vmatprep.subr.mxu0 0.0
        %4373 = vmatpush1.msra.mxu0 0.0
        %4374 = vmatprep.subr.mxu0 0.0
        %4375 = vmatpush1.msra.mxu0 0.0
        %4376 = vmatprep.subr.mxu0 0.0
        %4377 = vmatpush1.msra.mxu0 0.0
        %4378 = vmatprep.subr.mxu0 0.0
        %4379 = vmatpush1.msra.mxu0 0.0
        %4380 = vmatprep.subr.mxu0 0.0
        %4381 = vmatpush1.msra.mxu0 0.0
        %4382 = vmatprep.subr.mxu0 0.0
        %4383 = vmatpush1.msra.mxu0 0.0
        %4384 = vmatprep.subr.mxu0 0.0
        %4385 = vmatpush1.msra.mxu0 0.0
        %4386 = vmatprep.subr.mxu0 0.0
        %4387 = vmatpush1.msra.mxu0 0.0
        %4388 = vmatprep.subr.mxu0 0.0
        %4389 = vmatpush1.msra.mxu0 0.0
        %4390 = vmatprep.subr.mxu0 0.0
        %4391 = vmatpush1.msra.mxu0 0.0
        %4392 = vmatprep.subr.mxu0 0.0
        %4393 = vmatpush1.msra.mxu0 0.0
        %4394 = vmatprep.mubr.f32.mxu0 0.0
        %4395 = vmatmul.mubr.f32.gmra.mrb[0].mxu0 %v4328
        %v4396 = vpop.f32.mrb[0].mxu0
        %v4397 = vadd.f32 %v4325, %v4396
        %v4398 = vpop.f32.mrb[0].mxu0
        %4399 = vdwg.mxu0
        %v4400 = vld [vmem:[%s12] sm:$0xff]
        %v4401 = vld [vmem:[%s12 + $0x8] sm:$0xff]
        %v4402 = vld [vmem:[%s12 + $0x10] sm:$0xff]
        %v4403 = vld [vmem:[%s12 + $0x18] sm:$0xff]
        %v4404 = vld [vmem:[%s13] sm:$0x1]
        %v4405 = vlaneseq
        %v4406 = vshrl.u32 %v4405, 7
        %v4407 = vsub.s32 0, %v4406
        %v4408 = vrot.slane %v4404, %v4407
        %4409 = vmatprep.subr.mxu0 0.0
        %4410 = vmatpush1.msra.mxu0 %v4400
        %4411 = vmatprep.subr.mxu0 0.0
        %4412 = vmatpush1.msra.mxu0 %v4401
        %4413 = vmatprep.subr.mxu0 0.0
        %4414 = vmatpush1.msra.mxu0 %v4402
        %4415 = vmatprep.subr.mxu0 0.0
        %4416 = vmatpush1.msra.mxu0 %v4403
        %4417 = vmatprep.subr.mxu0 0.0
        %4418 = vmatpush1.msra.mxu0 0.0
        %4419 = vmatprep.subr.mxu0 0.0
        %4420 = vmatpush1.msra.mxu0 0.0
        %4421 = vmatprep.subr.mxu0 0.0
        %4422 = vmatpush1.msra.mxu0 0.0
        %4423 = vmatprep.subr.mxu0 0.0
        %4424 = vmatpush1.msra.mxu0 0.0
        %4425 = vmatprep.subr.mxu0 0.0
        %4426 = vmatpush1.msra.mxu0 0.0
        %4427 = vmatprep.subr.mxu0 0.0
        %4428 = vmatpush1.msra.mxu0 0.0
        %4429 = vmatprep.subr.mxu0 0.0
        %4430 = vmatpush1.msra.mxu0 0.0
        %4431 = vmatprep.subr.mxu0 0.0
        %4432 = vmatpush1.msra.mxu0 0.0
        %4433 = vmatprep.subr.mxu0 0.0
        %4434 = vmatpush1.msra.mxu0 0.0
        %4435 = vmatprep.subr.mxu0 0.0
        %4436 = vmatpush1.msra.mxu0 0.0
        %4437 = vmatprep.subr.mxu0 0.0
        %4438 = vmatpush1.msra.mxu0 0.0
        %4439 = vmatprep.subr.mxu0 0.0
        %4440 = vmatpush1.msra.mxu0 0.0
        %4441 = vmatprep.subr.mxu0 0.0
        %4442 = vmatpush1.msra.mxu0 0.0
        %4443 = vmatprep.subr.mxu0 0.0
        %4444 = vmatpush1.msra.mxu0 0.0
        %4445 = vmatprep.subr.mxu0 0.0
        %4446 = vmatpush1.msra.mxu0 0.0
        %4447 = vmatprep.subr.mxu0 0.0
        %4448 = vmatpush1.msra.mxu0 0.0
        %4449 = vmatprep.subr.mxu0 0.0
        %4450 = vmatpush1.msra.mxu0 0.0
        %4451 = vmatprep.subr.mxu0 0.0
        %4452 = vmatpush1.msra.mxu0 0.0
        %4453 = vmatprep.subr.mxu0 0.0
        %4454 = vmatpush1.msra.mxu0 0.0
        %4455 = vmatprep.subr.mxu0 0.0
        %4456 = vmatpush1.msra.mxu0 0.0
        %4457 = vmatprep.subr.mxu0 0.0
        %4458 = vmatpush1.msra.mxu0 0.0
        %4459 = vmatprep.subr.mxu0 0.0
        %4460 = vmatpush1.msra.mxu0 0.0
        %4461 = vmatprep.subr.mxu0 0.0
        %4462 = vmatpush1.msra.mxu0 0.0
        %4463 = vmatprep.subr.mxu0 0.0
        %4464 = vmatpush1.msra.mxu0 0.0
        %4465 = vmatprep.subr.mxu0 0.0
        %4466 = vmatpush1.msra.mxu0 0.0
        %4467 = vmatprep.subr.mxu0 0.0
        %4468 = vmatpush1.msra.mxu0 0.0
        %4469 = vmatprep.subr.mxu0 0.0
        %4470 = vmatpush1.msra.mxu0 0.0
        %4471 = vmatprep.subr.mxu0 0.0
        %4472 = vmatpush1.msra.mxu0 0.0
        %4473 = vmatprep.mubr.f32.mxu0 0.0
        %4474 = vmatmul.mubr.f32.gmra.mrb[0].mxu0 %v1003
        %v4475 = vpop.f32.mrb[0].mxu0
        %v4476 = vadd.f32 %v4408, %v4475
        %v4477 = vpop.f32.mrb[0].mxu0
        %4478 = vmatprep.mubr.f32.mxu0 0.0
        %4479 = vmatmul.mubr.f32.gmra.mrb[0].mxu0 %v1006
        %v4480 = vpop.f32.mrb[0].mxu0
        %v4481 = vadd.f32 %v4408, %v4480
        %v4482 = vpop.f32.mrb[0].mxu0
        %4483 = vdwg.mxu0
        %s4484 = scalar_lea.vmem %s12, 32
        %v4485 = vld [vmem:[%s4484] sm:$0xff]
        %v4486 = vld [vmem:[%s4484 + $0x8] sm:$0xff]
        %v4487 = vld [vmem:[%s4484 + $0x10] sm:$0xff]
        %v4488 = vld [vmem:[%s4484 + $0x18] sm:$0xff]
        %v4489 = vld [vmem:[%s13 + $0x1] sm:$0x1]
        %v4490 = vlaneseq
        %v4491 = vshrl.u32 %v4490, 7
        %v4492 = vsub.s32 0, %v4491
        %v4493 = vrot.slane %v4489, %v4492
        %4494 = vmatprep.subr.mxu0 0.0
        %4495 = vmatpush1.msra.mxu0 %v4485
        %4496 = vmatprep.subr.mxu0 0.0
        %4497 = vmatpush1.msra.mxu0 %v4486
        %4498 = vmatprep.subr.mxu0 0.0
        %4499 = vmatpush1.msra.mxu0 %v4487
        %4500 = vmatprep.subr.mxu0 0.0
        %4501 = vmatpush1.msra.mxu0 %v4488
        %4502 = vmatprep.subr.mxu0 0.0
        %4503 = vmatpush1.msra.mxu0 0.0
        %4504 = vmatprep.subr.mxu0 0.0
        %4505 = vmatpush1.msra.mxu0 0.0
        %4506 = vmatprep.subr.mxu0 0.0
        %4507 = vmatpush1.msra.mxu0 0.0
        %4508 = vmatprep.subr.mxu0 0.0
        %4509 = vmatpush1.msra.mxu0 0.0
        %4510 = vmatprep.subr.mxu0 0.0
        %4511 = vmatpush1.msra.mxu0 0.0
        %4512 = vmatprep.subr.mxu0 0.0
        %4513 = vmatpush1.msra.mxu0 0.0
        %4514 = vmatprep.subr.mxu0 0.0
        %4515 = vmatpush1.msra.mxu0 0.0
        %4516 = vmatprep.subr.mxu0 0.0
        %4517 = vmatpush1.msra.mxu0 0.0
        %4518 = vmatprep.subr.mxu0 0.0
        %4519 = vmatpush1.msra.mxu0 0.0
        %4520 = vmatprep.subr.mxu0 0.0
        %4521 = vmatpush1.msra.mxu0 0.0
        %4522 = vmatprep.subr.mxu0 0.0
        %4523 = vmatpush1.msra.mxu0 0.0
        %4524 = vmatprep.subr.mxu0 0.0
        %4525 = vmatpush1.msra.mxu0 0.0
        %4526 = vmatprep.subr.mxu0 0.0
        %4527 = vmatpush1.msra.mxu0 0.0
        %4528 = vmatprep.subr.mxu0 0.0
        %4529 = vmatpush1.msra.mxu0 0.0
        %4530 = vmatprep.subr.mxu0 0.0
        %4531 = vmatpush1.msra.mxu0 0.0
        %4532 = vmatprep.subr.mxu0 0.0
        %4533 = vmatpush1.msra.mxu0 0.0
        %4534 = vmatprep.subr.mxu0 0.0
        %4535 = vmatpush1.msra.mxu0 0.0
        %4536 = vmatprep.subr.mxu0 0.0
        %4537 = vmatpush1.msra.mxu0 0.0
        %4538 = vmatprep.subr.mxu0 0.0
        %4539 = vmatpush1.msra.mxu0 0.0
        %4540 = vmatprep.subr.mxu0 0.0
        %4541 = vmatpush1.msra.mxu0 0.0
        %4542 = vmatprep.subr.mxu0 0.0
        %4543 = vmatpush1.msra.mxu0 0.0
        %4544 = vmatprep.subr.mxu0 0.0
        %4545 = vmatpush1.msra.mxu0 0.0
        %4546 = vmatprep.subr.mxu0 0.0
        %4547 = vmatpush1.msra.mxu0 0.0
        %4548 = vmatprep.subr.mxu0 0.0
        %4549 = vmatpush1.msra.mxu0 0.0
        %4550 = vmatprep.subr.mxu0 0.0
        %4551 = vmatpush1.msra.mxu0 0.0
        %4552 = vmatprep.subr.mxu0 0.0
        %4553 = vmatpush1.msra.mxu0 0.0
        %4554 = vmatprep.subr.mxu0 0.0
        %4555 = vmatpush1.msra.mxu0 0.0
        %4556 = vmatprep.subr.mxu0 0.0
        %4557 = vmatpush1.msra.mxu0 0.0
        %4558 = vmatprep.mubr.f32.mxu0 0.0
        %4559 = vmatmul.mubr.f32.gmra.mrb[0].mxu0 %v1185
        %v4560 = vpop.f32.mrb[0].mxu0
        %v4561 = vadd.f32 %v4493, %v4560
        %v4562 = vpop.f32.mrb[0].mxu0
        %4563 = vmatprep.mubr.f32.mxu0 0.0
        %4564 = vmatmul.mubr.f32.gmra.mrb[0].mxu0 %v1188
        %v4565 = vpop.f32.mrb[0].mxu0
        %v4566 = vadd.f32 %v4493, %v4565
        %v4567 = vpop.f32.mrb[0].mxu0
        %4568 = vdwg.mxu0
        %v4570 = vsel %vm1356, %v4476, 0
        %v4573 = vsel %vm1356, %v4481, 0
        %v4576 = vsel %vm1356, %v4397, 0
        %4578 = vmatprep.subr.mxu0 0.0
        %4579 = vmatpush1.xpose.msra.mxu0 %v4576
        %4580 = vmatprep.subr.mxu0 0.0
        %4581 = vmatpush1.xpose.msra.mxu0 0.0
        %4582 = vmatprep.subr.mxu0 0.0
        %4583 = vmatpush1.xpose.msra.mxu0 0.0
        %4584 = vmatprep.subr.mxu0 0.0
        %4585 = vmatpush1.xpose.msra.mxu0 0.0
        %4586 = vmatprep.subr.mxu0 0.0
        %4587 = vmatpush1.xpose.msra.mxu0 0.0
        %4588 = vmatprep.subr.mxu0 0.0
        %4589 = vmatpush1.xpose.msra.mxu0 0.0
        %4590 = vmatprep.subr.mxu0 0.0
        %4591 = vmatpush1.xpose.msra.mxu0 0.0
        %4592 = vmatprep.subr.mxu0 0.0
        %4593 = vmatpush1.xpose.msra.mxu0 0.0
        %4594 = vmatprep.subr.mxu0 0.0
        %4595 = vmatpush1.xpose.msra.mxu0 0.0
        %4596 = vmatprep.subr.mxu0 0.0
        %4597 = vmatpush1.xpose.msra.mxu0 0.0
        %4598 = vmatprep.subr.mxu0 0.0
        %4599 = vmatpush1.xpose.msra.mxu0 0.0
        %4600 = vmatprep.subr.mxu0 0.0
        %4601 = vmatpush1.xpose.msra.mxu0 0.0
        %4602 = vmatprep.subr.mxu0 0.0
        %4603 = vmatpush1.xpose.msra.mxu0 0.0
        %4604 = vmatprep.subr.mxu0 0.0
        %4605 = vmatpush1.xpose.msra.mxu0 0.0
        %4606 = vmatprep.subr.mxu0 0.0
        %4607 = vmatpush1.xpose.msra.mxu0 0.0
        %4608 = vmatprep.subr.mxu0 0.0
        %4609 = vmatpush1.xpose.msra.mxu0 0.0
        %4610 = vmatprep.subr.mxu0 0.0
        %4611 = vmatpush1.xpose.msra.mxu0 0.0
        %4612 = vmatprep.subr.mxu0 0.0
        %4613 = vmatpush1.xpose.msra.mxu0 0.0
        %4614 = vmatprep.subr.mxu0 0.0
        %4615 = vmatpush1.xpose.msra.mxu0 0.0
        %4616 = vmatprep.subr.mxu0 0.0
        %4617 = vmatpush1.xpose.msra.mxu0 0.0
        %4618 = vmatprep.subr.mxu0 0.0
        %4619 = vmatpush1.xpose.msra.mxu0 0.0
        %4620 = vmatprep.subr.mxu0 0.0
        %4621 = vmatpush1.xpose.msra.mxu0 0.0
        %4622 = vmatprep.subr.mxu0 0.0
        %4623 = vmatpush1.xpose.msra.mxu0 0.0
        %4624 = vmatprep.subr.mxu0 0.0
        %4625 = vmatpush1.xpose.msra.mxu0 0.0
        %4626 = vmatprep.subr.mxu0 0.0
        %4627 = vmatpush1.xpose.msra.mxu0 0.0
        %4628 = vmatprep.subr.mxu0 0.0
        %4629 = vmatpush1.xpose.msra.mxu0 0.0
        %4630 = vmatprep.subr.mxu0 0.0
        %4631 = vmatpush1.xpose.msra.mxu0 0.0
        %4632 = vmatprep.subr.mxu0 0.0
        %4633 = vmatpush1.xpose.msra.mxu0 0.0
        %4634 = vmatprep.subr.mxu0 0.0
        %4635 = vmatpush1.xpose.msra.mxu0 0.0
        %4636 = vmatprep.subr.mxu0 0.0
        %4637 = vmatpush1.xpose.msra.mxu0 0.0
        %4638 = vmatprep.subr.mxu0 0.0
        %4639 = vmatpush1.xpose.msra.mxu0 0.0
        %4640 = vmatprep.subr.mxu0 0.0
        %4641 = vmatpush1.xpose.msra.mxu0 0.0
        %4642 = vmatprep.mubr.f32.mxu0 0.0
        %4643 = vmatmul.mubr.f32.gmra.mrb[0].mxu0 %v4570
        %v4644 = vpop.f32.mrb[0].mxu0
        %v4645 = vadd.f32 0.0, %v4644
        %v4646 = vpop.f32.mrb[0].mxu0
        %4647 = vmatprep.mubr.f32.mxu0 0.0
        %4648 = vmatmul.mubr.f32.gmra.mrb[0].mxu0 %v4573
        %v4649 = vpop.f32.mrb[0].mxu0
        %v4650 = vadd.f32 0.0, %v4649
        %v4651 = vpop.f32.mrb[0].mxu0
        %4652 = vdwg.mxu0
        %v4653 = vmul.f32 %v4645, 0.5
        %v4654 = vmul.f32 %v4650, 0.5
        %v4655 = vsel %vm4174, %v4653, -inf
        %4656 = vmax.xlane.f32.xlu0 %v4655
        %v4657 = vpop.xlane.xlu0 %4656
        %v4658 = vsel %vm4174, %v4654, -inf
        %4659 = vmax.xlane.f32.xlu0 %v4658
        %v4660 = vpop.xlane.xlu0 %4659
        %v4661 = vsub.f32 %v4653, %v4657
        %v4662 = vsub.f32 %v4654, %v4660
        %v4663 = vmul.f32 %v4661, 1.442695
        %v4664 = vpow.pop %v4663
        %v4665 = vmul.f32 %v4662, 1.442695
        %v4666 = vpow.pop %v4665
        %v4667 = vsel %vm4174, %v4664, 0.0
        %4668 = vadd.xlane.f32.xlu0 %v4667
        %v4669 = vpop.xlane.xlu0 %4668
        %v4670 = vsel %vm4174, %v4666, 0.0
        %4671 = vadd.xlane.f32.xlu0 %v4670
        %v4672 = vpop.xlane.xlu0 %4671
        %v4673 = vrcp.pop %v4669
        %v4674 = vrcp.pop %v4672
        %v4675 = vmul.f32 %v4664, %v4673
        %v4676 = vmul.f32 %v4666, %v4674
        %4677 = vrot.lane.b32.xlu0 %v4397, 96
        %v4678 = vpop.permute.xlu0 %4677
        %v4681 = vsel %vm4174, %v4675, 0
        %v4684 = vsel %vm4174, %v4676, 0
        %4686 = vmatprep.subr.mxu0 0.0
        %4687 = vmatpush1.msra.mxu0 %v4678
        %4688 = vmatprep.subr.mxu0 0.0
        %4689 = vmatpush1.msra.mxu0 0.0
        %4690 = vmatprep.subr.mxu0 0.0
        %4691 = vmatpush1.msra.mxu0 0.0
        %4692 = vmatprep.subr.mxu0 0.0
        %4693 = vmatpush1.msra.mxu0 0.0
        %4694 = vmatprep.subr.mxu0 0.0
        %4695 = vmatpush1.msra.mxu0 0.0
        %4696 = vmatprep.subr.mxu0 0.0
        %4697 = vmatpush1.msra.mxu0 0.0
        %4698 = vmatprep.subr.mxu0 0.0
        %4699 = vmatpush1.msra.mxu0 0.0
        %4700 = vmatprep.subr.mxu0 0.0
        %4701 = vmatpush1.msra.mxu0 0.0
        %4702 = vmatprep.subr.mxu0 0.0
        %4703 = vmatpush1.msra.mxu0 0.0
        %4704 = vmatprep.subr.mxu0 0.0
        %4705 = vmatpush1.msra.mxu0 0.0
        %4706 = vmatprep.subr.mxu0 0.0
        %4707 = vmatpush1.msra.mxu0 0.0
        %4708 = vmatprep.subr.mxu0 0.0
        %4709 = vmatpush1.msra.mxu0 0.0
        %4710 = vmatprep.subr.mxu0 0.0
        %4711 = vmatpush1.msra.mxu0 0.0
        %4712 = vmatprep.subr.mxu0 0.0
        %4713 = vmatpush1.msra.mxu0 0.0
        %4714 = vmatprep.subr.mxu0 0.0
        %4715 = vmatpush1.msra.mxu0 0.0
        %4716 = vmatprep.subr.mxu0 0.0
        %4717 = vmatpush1.msra.mxu0 0.0
        %4718 = vmatprep.subr.mxu0 0.0
        %4719 = vmatpush1.msra.mxu0 0.0
        %4720 = vmatprep.subr.mxu0 0.0
        %4721 = vmatpush1.msra.mxu0 0.0
        %4722 = vmatprep.subr.mxu0 0.0
        %4723 = vmatpush1.msra.mxu0 0.0
        %4724 = vmatprep.subr.mxu0 0.0
        %4725 = vmatpush1.msra.mxu0 0.0
        %4726 = vmatprep.subr.mxu0 0.0
        %4727 = vmatpush1.msra.mxu0 0.0
        %4728 = vmatprep.subr.mxu0 0.0
        %4729 = vmatpush1.msra.mxu0 0.0
        %4730 = vmatprep.subr.mxu0 0.0
        %4731 = vmatpush1.msra.mxu0 0.0
        %4732 = vmatprep.subr.mxu0 0.0
        %4733 = vmatpush1.msra.mxu0 0.0
        %4734 = vmatprep.subr.mxu0 0.0
        %4735 = vmatpush1.msra.mxu0 0.0
        %4736 = vmatprep.subr.mxu0 0.0
        %4737 = vmatpush1.msra.mxu0 0.0
        %4738 = vmatprep.subr.mxu0 0.0
        %4739 = vmatpush1.msra.mxu0 0.0
        %4740 = vmatprep.subr.mxu0 0.0
        %4741 = vmatpush1.msra.mxu0 0.0
        %4742 = vmatprep.subr.mxu0 0.0
        %4743 = vmatpush1.msra.mxu0 0.0
        %4744 = vmatprep.subr.mxu0 0.0
        %4745 = vmatpush1.msra.mxu0 0.0
        %4746 = vmatprep.subr.mxu0 0.0
        %4747 = vmatpush1.msra.mxu0 0.0
        %4748 = vmatprep.subr.mxu0 0.0
        %4749 = vmatpush1.msra.mxu0 0.0
        %4750 = vmatprep.mubr.f32.mxu0 0.0
        %4751 = vmatmul.mubr.f32.gmra.mrb[0].mxu0 %v4681
        %v4752 = vpop.f32.mrb[0].mxu0
        %v4753 = vadd.f32 0.0, %v4752
        %v4754 = vpop.f32.mrb[0].mxu0
        %4755 = vmatprep.mubr.f32.mxu0 0.0
        %4756 = vmatmul.mubr.f32.gmra.mrb[0].mxu0 %v4684
        %v4757 = vpop.f32.mrb[0].mxu0
        %v4758 = vadd.f32 0.0, %v4757
        %v4759 = vpop.f32.mrb[0].mxu0
        %4760 = vdwg.mxu0
        %4761 = vrot.lane.b32.xlu0 %v4476, 124
        %v4762 = vpop.permute.xlu0 %4761
        %4763 = vrot.lane.b32.xlu0 %v4481, 124
        %v4764 = vpop.permute.xlu0 %4763
        %4765 = vrot.lane.b32.xlu0 %v4397, 124
        %v4766 = vpop.permute.xlu0 %4765
        %v4767 = vsel %vm1356, %v4762, 0
        %v4769 = vsel %vm1356, %v4764, 0
        %v4771 = vsel %vm1356, %v4766, 0
        %4773 = vmatprep.subr.mxu0 0.0
        %4774 = vmatpush1.xpose.msra.mxu0 %v4771
        %4775 = vmatprep.subr.mxu0 0.0
        %4776 = vmatpush1.xpose.msra.mxu0 0.0
        %4777 = vmatprep.subr.mxu0 0.0
        %4778 = vmatpush1.xpose.msra.mxu0 0.0
        %4779 = vmatprep.subr.mxu0 0.0
        %4780 = vmatpush1.xpose.msra.mxu0 0.0
        %4781 = vmatprep.subr.mxu0 0.0
        %4782 = vmatpush1.xpose.msra.mxu0 0.0
        %4783 = vmatprep.subr.mxu0 0.0
        %4784 = vmatpush1.xpose.msra.mxu0 0.0
        %4785 = vmatprep.subr.mxu0 0.0
        %4786 = vmatpush1.xpose.msra.mxu0 0.0
        %4787 = vmatprep.subr.mxu0 0.0
        %4788 = vmatpush1.xpose.msra.mxu0 0.0
        %4789 = vmatprep.subr.mxu0 0.0
        %4790 = vmatpush1.xpose.msra.mxu0 0.0
        %4791 = vmatprep.subr.mxu0 0.0
        %4792 = vmatpush1.xpose.msra.mxu0 0.0
        %4793 = vmatprep.subr.mxu0 0.0
        %4794 = vmatpush1.xpose.msra.mxu0 0.0
        %4795 = vmatprep.subr.mxu0 0.0
        %4796 = vmatpush1.xpose.msra.mxu0 0.0
        %4797 = vmatprep.subr.mxu0 0.0
        %4798 = vmatpush1.xpose.msra.mxu0 0.0
        %4799 = vmatprep.subr.mxu0 0.0
        %4800 = vmatpush1.xpose.msra.mxu0 0.0
        %4801 = vmatprep.subr.mxu0 0.0
        %4802 = vmatpush1.xpose.msra.mxu0 0.0
        %4803 = vmatprep.subr.mxu0 0.0
        %4804 = vmatpush1.xpose.msra.mxu0 0.0
        %4805 = vmatprep.subr.mxu0 0.0
        %4806 = vmatpush1.xpose.msra.mxu0 0.0
        %4807 = vmatprep.subr.mxu0 0.0
        %4808 = vmatpush1.xpose.msra.mxu0 0.0
        %4809 = vmatprep.subr.mxu0 0.0
        %4810 = vmatpush1.xpose.msra.mxu0 0.0
        %4811 = vmatprep.subr.mxu0 0.0
        %4812 = vmatpush1.xpose.msra.mxu0 0.0
        %4813 = vmatprep.subr.mxu0 0.0
        %4814 = vmatpush1.xpose.msra.mxu0 0.0
        %4815 = vmatprep.subr.mxu0 0.0
        %4816 = vmatpush1.xpose.msra.mxu0 0.0
        %4817 = vmatprep.subr.mxu0 0.0
        %4818 = vmatpush1.xpose.msra.mxu0 0.0
        %4819 = vmatprep.subr.mxu0 0.0
        %4820 = vmatpush1.xpose.msra.mxu0 0.0
        %4821 = vmatprep.subr.mxu0 0.0
        %4822 = vmatpush1.xpose.msra.mxu0 0.0
        %4823 = vmatprep.subr.mxu0 0.0
        %4824 = vmatpush1.xpose.msra.mxu0 0.0
        %4825 = vmatprep.subr.mxu0 0.0
        %4826 = vmatpush1.xpose.msra.mxu0 0.0
        %4827 = vmatprep.subr.mxu0 0.0
        %4828 = vmatpush1.xpose.msra.mxu0 0.0
        %4829 = vmatprep.subr.mxu0 0.0
        %4830 = vmatpush1.xpose.msra.mxu0 0.0
        %4831 = vmatprep.subr.mxu0 0.0
        %4832 = vmatpush1.xpose.msra.mxu0 0.0
        %4833 = vmatprep.subr.mxu0 0.0
        %4834 = vmatpush1.xpose.msra.mxu0 0.0
        %4835 = vmatprep.subr.mxu0 0.0
        %4836 = vmatpush1.xpose.msra.mxu0 0.0
        %4837 = vmatprep.mubr.f32.mxu0 0.0
        %4838 = vmatmul.mubr.f32.gmra.mrb[0].mxu0 %v4767
        %v4839 = vpop.f32.mrb[0].mxu0
        %v4840 = vadd.f32 0.0, %v4839
        %v4841 = vpop.f32.mrb[0].mxu0
        %4842 = vmatprep.mubr.f32.mxu0 0.0
        %4843 = vmatmul.mubr.f32.gmra.mrb[0].mxu0 %v4769
        %v4844 = vpop.f32.mrb[0].mxu0
        %v4845 = vadd.f32 0.0, %v4844
        %v4846 = vpop.f32.mrb[0].mxu0
        %4847 = vdwg.mxu0
        %v4848 = vmul.f32 %v4840, 0.5
        %v4849 = vmul.f32 %v4845, 0.5
        %v4850 = vsel %vm4174, %v4848, -inf
        %4851 = vmax.xlane.f32.xlu0 %v4850
        %v4852 = vpop.xlane.xlu0 %4851
        %v4853 = vsel %vm4174, %v4849, -inf
        %4854 = vmax.xlane.f32.xlu0 %v4853
        %v4855 = vpop.xlane.xlu0 %4854
        %v4856 = vsub.f32 %v4848, %v4852
        %v4857 = vsub.f32 %v4849, %v4855
        %v4858 = vmul.f32 %v4856, 1.442695
        %v4859 = vpow.pop %v4858
        %v4860 = vmul.f32 %v4857, 1.442695
        %v4861 = vpow.pop %v4860
        %v4862 = vsel %vm4174, %v4859, 0.0
        %4863 = vadd.xlane.f32.xlu0 %v4862
        %v4864 = vpop.xlane.xlu0 %4863
        %v4865 = vsel %vm4174, %v4861, 0.0
        %4866 = vadd.xlane.f32.xlu0 %v4865
        %v4867 = vpop.xlane.xlu0 %4866
        %v4868 = vrcp.pop %v4864
        %v4869 = vrcp.pop %v4867
        %v4870 = vmul.f32 %v4859, %v4868
        %v4871 = vmul.f32 %v4861, %v4869
        %4872 = vrot.lane.b32.xlu0 %v4397, 92
        %v4873 = vpop.permute.xlu0 %4872
        %v4876 = vsel %vm4174, %v4870, 0
        %v4879 = vsel %vm4174, %v4871, 0
        %4881 = vmatprep.subr.mxu0 0.0
        %4882 = vmatpush1.msra.mxu0 %v4873
        %4883 = vmatprep.subr.mxu0 0.0
        %4884 = vmatpush1.msra.mxu0 0.0
        %4885 = vmatprep.subr.mxu0 0.0
        %4886 = vmatpush1.msra.mxu0 0.0
        %4887 = vmatprep.subr.mxu0 0.0
        %4888 = vmatpush1.msra.mxu0 0.0
        %4889 = vmatprep.subr.mxu0 0.0
        %4890 = vmatpush1.msra.mxu0 0.0
        %4891 = vmatprep.subr.mxu0 0.0
        %4892 = vmatpush1.msra.mxu0 0.0
        %4893 = vmatprep.subr.mxu0 0.0
        %4894 = vmatpush1.msra.mxu0 0.0
        %4895 = vmatprep.subr.mxu0 0.0
        %4896 = vmatpush1.msra.mxu0 0.0
        %4897 = vmatprep.subr.mxu0 0.0
        %4898 = vmatpush1.msra.mxu0 0.0
        %4899 = vmatprep.subr.mxu0 0.0
        %4900 = vmatpush1.msra.mxu0 0.0
        %4901 = vmatprep.subr.mxu0 0.0
        %4902 = vmatpush1.msra.mxu0 0.0
        %4903 = vmatprep.subr.mxu0 0.0
        %4904 = vmatpush1.msra.mxu0 0.0
        %4905 = vmatprep.subr.mxu0 0.0
        %4906 = vmatpush1.msra.mxu0 0.0
        %4907 = vmatprep.subr.mxu0 0.0
        %4908 = vmatpush1.msra.mxu0 0.0
        %4909 = vmatprep.subr.mxu0 0.0
        %4910 = vmatpush1.msra.mxu0 0.0
        %4911 = vmatprep.subr.mxu0 0.0
        %4912 = vmatpush1.msra.mxu0 0.0
        %4913 = vmatprep.subr.mxu0 0.0
        %4914 = vmatpush1.msra.mxu0 0.0
        %4915 = vmatprep.subr.mxu0 0.0
        %4916 = vmatpush1.msra.mxu0 0.0
        %4917 = vmatprep.subr.mxu0 0.0
        %4918 = vmatpush1.msra.mxu0 0.0
        %4919 = vmatprep.subr.mxu0 0.0
        %4920 = vmatpush1.msra.mxu0 0.0
        %4921 = vmatprep.subr.mxu0 0.0
        %4922 = vmatpush1.msra.mxu0 0.0
        %4923 = vmatprep.subr.mxu0 0.0
        %4924 = vmatpush1.msra.mxu0 0.0
        %4925 = vmatprep.subr.mxu0 0.0
        %4926 = vmatpush1.msra.mxu0 0.0
        %4927 = vmatprep.subr.mxu0 0.0
        %4928 = vmatpush1.msra.mxu0 0.0
        %4929 = vmatprep.subr.mxu0 0.0
        %4930 = vmatpush1.msra.mxu0 0.0
        %4931 = vmatprep.subr.mxu0 0.0
        %4932 = vmatpush1.msra.mxu0 0.0
        %4933 = vmatprep.subr.mxu0 0.0
        %4934 = vmatpush1.msra.mxu0 0.0
        %4935 = vmatprep.subr.mxu0 0.0
        %4936 = vmatpush1.msra.mxu0 0.0
        %4937 = vmatprep.subr.mxu0 0.0
        %4938 = vmatpush1.msra.mxu0 0.0
        %4939 = vmatprep.subr.mxu0 0.0
        %4940 = vmatpush1.msra.mxu0 0.0
        %4941 = vmatprep.subr.mxu0 0.0
        %4942 = vmatpush1.msra.mxu0 0.0
        %4943 = vmatprep.subr.mxu0 0.0
        %4944 = vmatpush1.msra.mxu0 0.0
        %4945 = vmatprep.mubr.f32.mxu0 0.0
        %4946 = vmatmul.mubr.f32.gmra.mrb[0].mxu0 %v4876
        %v4947 = vpop.f32.mrb[0].mxu0
        %v4948 = vadd.f32 0.0, %v4947
        %v4949 = vpop.f32.mrb[0].mxu0
        %4950 = vmatprep.mubr.f32.mxu0 0.0
        %4951 = vmatmul.mubr.f32.gmra.mrb[0].mxu0 %v4879
        %v4952 = vpop.f32.mrb[0].mxu0
        %v4953 = vadd.f32 0.0, %v4952
        %v4954 = vpop.f32.mrb[0].mxu0
        %4955 = vdwg.mxu0
        %4956 = vrot.lane.b32.xlu0 %v4476, 120
        %v4957 = vpop.permute.xlu0 %4956
        %4958 = vrot.lane.b32.xlu0 %v4481, 120
        %v4959 = vpop.permute.xlu0 %4958
        %4960 = vrot.lane.b32.xlu0 %v4397, 120
        %v4961 = vpop.permute.xlu0 %4960
        %v4962 = vsel %vm1356, %v4957, 0
        %v4964 = vsel %vm1356, %v4959, 0
        %v4966 = vsel %vm1356, %v4961, 0
        %4968 = vmatprep.subr.mxu0 0.0
        %4969 = vmatpush1.xpose.msra.mxu0 %v4966
        %4970 = vmatprep.subr.mxu0 0.0
        %4971 = vmatpush1.xpose.msra.mxu0 0.0
        %4972 = vmatprep.subr.mxu0 0.0
        %4973 = vmatpush1.xpose.msra.mxu0 0.0
        %4974 = vmatprep.subr.mxu0 0.0
        %4975 = vmatpush1.xpose.msra.mxu0 0.0
        %4976 = vmatprep.subr.mxu0 0.0
        %4977 = vmatpush1.xpose.msra.mxu0 0.0
        %4978 = vmatprep.subr.mxu0 0.0
        %4979 = vmatpush1.xpose.msra.mxu0 0.0
        %4980 = vmatprep.subr.mxu0 0.0
        %4981 = vmatpush1.xpose.msra.mxu0 0.0
        %4982 = vmatprep.subr.mxu0 0.0
        %4983 = vmatpush1.xpose.msra.mxu0 0.0
        %4984 = vmatprep.subr.mxu0 0.0
        %4985 = vmatpush1.xpose.msra.mxu0 0.0
        %4986 = vmatprep.subr.mxu0 0.0
        %4987 = vmatpush1.xpose.msra.mxu0 0.0
        %4988 = vmatprep.subr.mxu0 0.0
        %4989 = vmatpush1.xpose.msra.mxu0 0.0
        %4990 = vmatprep.subr.mxu0 0.0
        %4991 = vmatpush1.xpose.msra.mxu0 0.0
        %4992 = vmatprep.subr.mxu0 0.0
        %4993 = vmatpush1.xpose.msra.mxu0 0.0
        %4994 = vmatprep.subr.mxu0 0.0
        %4995 = vmatpush1.xpose.msra.mxu0 0.0
        %4996 = vmatprep.subr.mxu0 0.0
        %4997 = vmatpush1.xpose.msra.mxu0 0.0
        %4998 = vmatprep.subr.mxu0 0.0
        %4999 = vmatpush1.xpose.msra.mxu0 0.0
        %5000 = vmatprep.subr.mxu0 0.0
        %5001 = vmatpush1.xpose.msra.mxu0 0.0
        %5002 = vmatprep.subr.mxu0 0.0
        %5003 = vmatpush1.xpose.msra.mxu0 0.0
        %5004 = vmatprep.subr.mxu0 0.0
        %5005 = vmatpush1.xpose.msra.mxu0 0.0
        %5006 = vmatprep.subr.mxu0 0.0
        %5007 = vmatpush1.xpose.msra.mxu0 0.0
        %5008 = vmatprep.subr.mxu0 0.0
        %5009 = vmatpush1.xpose.msra.mxu0 0.0
        %5010 = vmatprep.subr.mxu0 0.0
        %5011 = vmatpush1.xpose.msra.mxu0 0.0
        %5012 = vmatprep.subr.mxu0 0.0
        %5013 = vmatpush1.xpose.msra.mxu0 0.0
        %5014 = vmatprep.subr.mxu0 0.0
        %5015 = vmatpush1.xpose.msra.mxu0 0.0
        %5016 = vmatprep.subr.mxu0 0.0
        %5017 = vmatpush1.xpose.msra.mxu0 0.0
        %5018 = vmatprep.subr.mxu0 0.0
        %5019 = vmatpush1.xpose.msra.mxu0 0.0
        %5020 = vmatprep.subr.mxu0 0.0
        %5021 = vmatpush1.xpose.msra.mxu0 0.0
        %5022 = vmatprep.subr.mxu0 0.0
        %5023 = vmatpush1.xpose.msra.mxu0 0.0
        %5024 = vmatprep.subr.mxu0 0.0
        %5025 = vmatpush1.xpose.msra.mxu0 0.0
        %5026 = vmatprep.subr.mxu0 0.0
        %5027 = vmatpush1.xpose.msra.mxu0 0.0
        %5028 = vmatprep.subr.mxu0 0.0
        %5029 = vmatpush1.xpose.msra.mxu0 0.0
        %5030 = vmatprep.subr.mxu0 0.0
        %5031 = vmatpush1.xpose.msra.mxu0 0.0
        %5032 = vmatprep.mubr.f32.mxu0 0.0
        %5033 = vmatmul.mubr.f32.gmra.mrb[0].mxu0 %v4962
        %v5034 = vpop.f32.mrb[0].mxu0
        %v5035 = vadd.f32 0.0, %v5034
        %v5036 = vpop.f32.mrb[0].mxu0
        %5037 = vmatprep.mubr.f32.mxu0 0.0
        %5038 = vmatmul.mubr.f32.gmra.mrb[0].mxu0 %v4964
        %v5039 = vpop.f32.mrb[0].mxu0
        %v5040 = vadd.f32 0.0, %v5039
        %v5041 = vpop.f32.mrb[0].mxu0
        %5042 = vdwg.mxu0
        %v5043 = vmul.f32 %v5035, 0.5
        %v5044 = vmul.f32 %v5040, 0.5
        %v5045 = vsel %vm4174, %v5043, -inf
        %5046 = vmax.xlane.f32.xlu0 %v5045
        %v5047 = vpop.xlane.xlu0 %5046
        %v5048 = vsel %vm4174, %v5044, -inf
        %5049 = vmax.xlane.f32.xlu0 %v5048
        %v5050 = vpop.xlane.xlu0 %5049
        %v5051 = vsub.f32 %v5043, %v5047
        %v5052 = vsub.f32 %v5044, %v5050
        %v5053 = vmul.f32 %v5051, 1.442695
        %v5054 = vpow.pop %v5053
        %v5055 = vmul.f32 %v5052, 1.442695
        %v5056 = vpow.pop %v5055
        %v5057 = vsel %vm4174, %v5054, 0.0
        %5058 = vadd.xlane.f32.xlu0 %v5057
        %v5059 = vpop.xlane.xlu0 %5058
        %v5060 = vsel %vm4174, %v5056, 0.0
        %5061 = vadd.xlane.f32.xlu0 %v5060
        %v5062 = vpop.xlane.xlu0 %5061
        %v5063 = vrcp.pop %v5059
        %v5064 = vrcp.pop %v5062
        %v5065 = vmul.f32 %v5054, %v5063
        %v5066 = vmul.f32 %v5056, %v5064
        %5067 = vrot.lane.b32.xlu0 %v4397, 88
        %v5068 = vpop.permute.xlu0 %5067
        %v5071 = vsel %vm4174, %v5065, 0
        %v5074 = vsel %vm4174, %v5066, 0
        %5076 = vmatprep.subr.mxu0 0.0
        %5077 = vmatpush1.msra.mxu0 %v5068
        %5078 = vmatprep.subr.mxu0 0.0
        %5079 = vmatpush1.msra.mxu0 0.0
        %5080 = vmatprep.subr.mxu0 0.0
        %5081 = vmatpush1.msra.mxu0 0.0
        %5082 = vmatprep.subr.mxu0 0.0
        %5083 = vmatpush1.msra.mxu0 0.0
        %5084 = vmatprep.subr.mxu0 0.0
        %5085 = vmatpush1.msra.mxu0 0.0
        %5086 = vmatprep.subr.mxu0 0.0
        %5087 = vmatpush1.msra.mxu0 0.0
        %5088 = vmatprep.subr.mxu0 0.0
        %5089 = vmatpush1.msra.mxu0 0.0
        %5090 = vmatprep.subr.mxu0 0.0
        %5091 = vmatpush1.msra.mxu0 0.0
        %5092 = vmatprep.subr.mxu0 0.0
        %5093 = vmatpush1.msra.mxu0 0.0
        %5094 = vmatprep.subr.mxu0 0.0
        %5095 = vmatpush1.msra.mxu0 0.0
        %5096 = vmatprep.subr.mxu0 0.0
        %5097 = vmatpush1.msra.mxu0 0.0
        %5098 = vmatprep.subr.mxu0 0.0
        %5099 = vmatpush1.msra.mxu0 0.0
        %5100 = vmatprep.subr.mxu0 0.0
        %5101 = vmatpush1.msra.mxu0 0.0
        %5102 = vmatprep.subr.mxu0 0.0
        %5103 = vmatpush1.msra.mxu0 0.0
        %5104 = vmatprep.subr.mxu0 0.0
        %5105 = vmatpush1.msra.mxu0 0.0
        %5106 = vmatprep.subr.mxu0 0.0
        %5107 = vmatpush1.msra.mxu0 0.0
        %5108 = vmatprep.subr.mxu0 0.0
        %5109 = vmatpush1.msra.mxu0 0.0
        %5110 = vmatprep.subr.mxu0 0.0
        %5111 = vmatpush1.msra.mxu0 0.0
        %5112 = vmatprep.subr.mxu0 0.0
        %5113 = vmatpush1.msra.mxu0 0.0
        %5114 = vmatprep.subr.mxu0 0.0
        %5115 = vmatpush1.msra.mxu0 0.0
        %5116 = vmatprep.subr.mxu0 0.0
        %5117 = vmatpush1.msra.mxu0 0.0
        %5118 = vmatprep.subr.mxu0 0.0
        %5119 = vmatpush1.msra.mxu0 0.0
        %5120 = vmatprep.subr.mxu0 0.0
        %5121 = vmatpush1.msra.mxu0 0.0
        %5122 = vmatprep.subr.mxu0 0.0
        %5123 = vmatpush1.msra.mxu0 0.0
        %5124 = vmatprep.subr.mxu0 0.0
        %5125 = vmatpush1.msra.mxu0 0.0
        %5126 = vmatprep.subr.mxu0 0.0
        %5127 = vmatpush1.msra.mxu0 0.0
        %5128 = vmatprep.subr.mxu0 0.0
        %5129 = vmatpush1.msra.mxu0 0.0
        %5130 = vmatprep.subr.mxu0 0.0
        %5131 = vmatpush1.msra.mxu0 0.0
        %5132 = vmatprep.subr.mxu0 0.0
        %5133 = vmatpush1.msra.mxu0 0.0
        %5134 = vmatprep.subr.mxu0 0.0
        %5135 = vmatpush1.msra.mxu0 0.0
        %5136 = vmatprep.subr.mxu0 0.0
        %5137 = vmatpush1.msra.mxu0 0.0
        %5138 = vmatprep.subr.mxu0 0.0
        %5139 = vmatpush1.msra.mxu0 0.0
        %5140 = vmatprep.mubr.f32.mxu0 0.0
        %5141 = vmatmul.mubr.f32.gmra.mrb[0].mxu0 %v5071
        %v5142 = vpop.f32.mrb[0].mxu0
        %v5143 = vadd.f32 0.0, %v5142
        %v5144 = vpop.f32.mrb[0].mxu0
        %5145 = vmatprep.mubr.f32.mxu0 0.0
        %5146 = vmatmul.mubr.f32.gmra.mrb[0].mxu0 %v5074
        %v5147 = vpop.f32.mrb[0].mxu0
        %v5148 = vadd.f32 0.0, %v5147
        %v5149 = vpop.f32.mrb[0].mxu0
        %5150 = vdwg.mxu0
        %5151 = vrot.lane.b32.xlu0 %v4476, 116
        %v5152 = vpop.permute.xlu0 %5151
        %5153 = vrot.lane.b32.xlu0 %v4481, 116
        %v5154 = vpop.permute.xlu0 %5153
        %5155 = vrot.lane.b32.xlu0 %v4397, 116
        %v5156 = vpop.permute.xlu0 %5155
        %v5157 = vsel %vm1356, %v5152, 0
        %v5159 = vsel %vm1356, %v5154, 0
        %v5161 = vsel %vm1356, %v5156, 0
        %5163 = vmatprep.subr.mxu0 0.0
        %5164 = vmatpush1.xpose.msra.mxu0 %v5161
        %5165 = vmatprep.subr.mxu0 0.0
        %5166 = vmatpush1.xpose.msra.mxu0 0.0
        %5167 = vmatprep.subr.mxu0 0.0
        %5168 = vmatpush1.xpose.msra.mxu0 0.0
        %5169 = vmatprep.subr.mxu0 0.0
        %5170 = vmatpush1.xpose.msra.mxu0 0.0
        %5171 = vmatprep.subr.mxu0 0.0
        %5172 = vmatpush1.xpose.msra.mxu0 0.0
        %5173 = vmatprep.subr.mxu0 0.0
        %5174 = vmatpush1.xpose.msra.mxu0 0.0
        %5175 = vmatprep.subr.mxu0 0.0
        %5176 = vmatpush1.xpose.msra.mxu0 0.0
        %5177 = vmatprep.subr.mxu0 0.0
        %5178 = vmatpush1.xpose.msra.mxu0 0.0
        %5179 = vmatprep.subr.mxu0 0.0
        %5180 = vmatpush1.xpose.msra.mxu0 0.0
        %5181 = vmatprep.subr.mxu0 0.0
        %5182 = vmatpush1.xpose.msra.mxu0 0.0
        %5183 = vmatprep.subr.mxu0 0.0
        %5184 = vmatpush1.xpose.msra.mxu0 0.0
        %5185 = vmatprep.subr.mxu0 0.0
        %5186 = vmatpush1.xpose.msra.mxu0 0.0
        %5187 = vmatprep.subr.mxu0 0.0
        %5188 = vmatpush1.xpose.msra.mxu0 0.0
        %5189 = vmatprep.subr.mxu0 0.0
        %5190 = vmatpush1.xpose.msra.mxu0 0.0
        %5191 = vmatprep.subr.mxu0 0.0
        %5192 = vmatpush1.xpose.msra.mxu0 0.0
        %5193 = vmatprep.subr.mxu0 0.0
        %5194 = vmatpush1.xpose.msra.mxu0 0.0
        %5195 = vmatprep.subr.mxu0 0.0
        %5196 = vmatpush1.xpose.msra.mxu0 0.0
        %5197 = vmatprep.subr.mxu0 0.0
        %5198 = vmatpush1.xpose.msra.mxu0 0.0
        %5199 = vmatprep.subr.mxu0 0.0
        %5200 = vmatpush1.xpose.msra.mxu0 0.0
        %5201 = vmatprep.subr.mxu0 0.0
        %5202 = vmatpush1.xpose.msra.mxu0 0.0
        %5203 = vmatprep.subr.mxu0 0.0
        %5204 = vmatpush1.xpose.msra.mxu0 0.0
        %5205 = vmatprep.subr.mxu0 0.0
        %5206 = vmatpush1.xpose.msra.mxu0 0.0
        %5207 = vmatprep.subr.mxu0 0.0
        %5208 = vmatpush1.xpose.msra.mxu0 0.0
        %5209 = vmatprep.subr.mxu0 0.0
        %5210 = vmatpush1.xpose.msra.mxu0 0.0
        %5211 = vmatprep.subr.mxu0 0.0
        %5212 = vmatpush1.xpose.msra.mxu0 0.0
        %5213 = vmatprep.subr.mxu0 0.0
        %5214 = vmatpush1.xpose.msra.mxu0 0.0
        %5215 = vmatprep.subr.mxu0 0.0
        %5216 = vmatpush1.xpose.msra.mxu0 0.0
        %5217 = vmatprep.subr.mxu0 0.0
        %5218 = vmatpush1.xpose.msra.mxu0 0.0
        %5219 = vmatprep.subr.mxu0 0.0
        %5220 = vmatpush1.xpose.msra.mxu0 0.0
        %5221 = vmatprep.subr.mxu0 0.0
        %5222 = vmatpush1.xpose.msra.mxu0 0.0
        %5223 = vmatprep.subr.mxu0 0.0
        %5224 = vmatpush1.xpose.msra.mxu0 0.0
        %5225 = vmatprep.subr.mxu0 0.0
        %5226 = vmatpush1.xpose.msra.mxu0 0.0
        %5227 = vmatprep.mubr.f32.mxu0 0.0
        %5228 = vmatmul.mubr.f32.gmra.mrb[0].mxu0 %v5157
        %v5229 = vpop.f32.mrb[0].mxu0
        %v5230 = vadd.f32 0.0, %v5229
        %v5231 = vpop.f32.mrb[0].mxu0
        %5232 = vmatprep.mubr.f32.mxu0 0.0
        %5233 = vmatmul.mubr.f32.gmra.mrb[0].mxu0 %v5159
        %v5234 = vpop.f32.mrb[0].mxu0
        %v5235 = vadd.f32 0.0, %v5234
        %v5236 = vpop.f32.mrb[0].mxu0
        %5237 = vdwg.mxu0
        %v5238 = vmul.f32 %v5230, 0.5
        %v5239 = vmul.f32 %v5235, 0.5
        %v5240 = vsel %vm4174, %v5238, -inf
        %5241 = vmax.xlane.f32.xlu0 %v5240
        %v5242 = vpop.xlane.xlu0 %5241
        %v5243 = vsel %vm4174, %v5239, -inf
        %5244 = vmax.xlane.f32.xlu0 %v5243
        %v5245 = vpop.xlane.xlu0 %5244
        %v5246 = vsub.f32 %v5238, %v5242
        %v5247 = vsub.f32 %v5239, %v5245
        %v5248 = vmul.f32 %v5246, 1.442695
        %v5249 = vpow.pop %v5248
        %v5250 = vmul.f32 %v5247, 1.442695
        %v5251 = vpow.pop %v5250
        %v5252 = vsel %vm4174, %v5249, 0.0
        %5253 = vadd.xlane.f32.xlu0 %v5252
        %v5254 = vpop.xlane.xlu0 %5253
        %v5255 = vsel %vm4174, %v5251, 0.0
        %5256 = vadd.xlane.f32.xlu0 %v5255
        %v5257 = vpop.xlane.xlu0 %5256
        %v5258 = vrcp.pop %v5254
        %v5259 = vrcp.pop %v5257
        %v5260 = vmul.f32 %v5249, %v5258
        %v5261 = vmul.f32 %v5251, %v5259
        %5262 = vrot.lane.b32.xlu0 %v4397, 84
        %v5263 = vpop.permute.xlu0 %5262
        %v5266 = vsel %vm4174, %v5260, 0
        %v5269 = vsel %vm4174, %v5261, 0
        %5271 = vmatprep.subr.mxu0 0.0
        %5272 = vmatpush1.msra.mxu0 %v5263
        %5273 = vmatprep.subr.mxu0 0.0
        %5274 = vmatpush1.msra.mxu0 0.0
        %5275 = vmatprep.subr.mxu0 0.0
        %5276 = vmatpush1.msra.mxu0 0.0
        %5277 = vmatprep.subr.mxu0 0.0
        %5278 = vmatpush1.msra.mxu0 0.0
        %5279 = vmatprep.subr.mxu0 0.0
        %5280 = vmatpush1.msra.mxu0 0.0
        %5281 = vmatprep.subr.mxu0 0.0
        %5282 = vmatpush1.msra.mxu0 0.0
        %5283 = vmatprep.subr.mxu0 0.0
        %5284 = vmatpush1.msra.mxu0 0.0
        %5285 = vmatprep.subr.mxu0 0.0
        %5286 = vmatpush1.msra.mxu0 0.0
        %5287 = vmatprep.subr.mxu0 0.0
        %5288 = vmatpush1.msra.mxu0 0.0
        %5289 = vmatprep.subr.mxu0 0.0
        %5290 = vmatpush1.msra.mxu0 0.0
        %5291 = vmatprep.subr.mxu0 0.0
        %5292 = vmatpush1.msra.mxu0 0.0
        %5293 = vmatprep.subr.mxu0 0.0
        %5294 = vmatpush1.msra.mxu0 0.0
        %5295 = vmatprep.subr.mxu0 0.0
        %5296 = vmatpush1.msra.mxu0 0.0
        %5297 = vmatprep.subr.mxu0 0.0
        %5298 = vmatpush1.msra.mxu0 0.0
        %5299 = vmatprep.subr.mxu0 0.0
        %5300 = vmatpush1.msra.mxu0 0.0
        %5301 = vmatprep.subr.mxu0 0.0
        %5302 = vmatpush1.msra.mxu0 0.0
        %5303 = vmatprep.subr.mxu0 0.0
        %5304 = vmatpush1.msra.mxu0 0.0
        %5305 = vmatprep.subr.mxu0 0.0
        %5306 = vmatpush1.msra.mxu0 0.0
        %5307 = vmatprep.subr.mxu0 0.0
        %5308 = vmatpush1.msra.mxu0 0.0
        %5309 = vmatprep.subr.mxu0 0.0
        %5310 = vmatpush1.msra.mxu0 0.0
        %5311 = vmatprep.subr.mxu0 0.0
        %5312 = vmatpush1.msra.mxu0 0.0
        %5313 = vmatprep.subr.mxu0 0.0
        %5314 = vmatpush1.msra.mxu0 0.0
        %5315 = vmatprep.subr.mxu0 0.0
        %5316 = vmatpush1.msra.mxu0 0.0
        %5317 = vmatprep.subr.mxu0 0.0
        %5318 = vmatpush1.msra.mxu0 0.0
        %5319 = vmatprep.subr.mxu0 0.0
        %5320 = vmatpush1.msra.mxu0 0.0
        %5321 = vmatprep.subr.mxu0 0.0
        %5322 = vmatpush1.msra.mxu0 0.0
        %5323 = vmatprep.subr.mxu0 0.0
        %5324 = vmatpush1.msra.mxu0 0.0
        %5325 = vmatprep.subr.mxu0 0.0
        %5326 = vmatpush1.msra.mxu0 0.0
        %5327 = vmatprep.subr.mxu0 0.0
        %5328 = vmatpush1.msra.mxu0 0.0
        %5329 = vmatprep.subr.mxu0 0.0
        %5330 = vmatpush1.msra.mxu0 0.0
        %5331 = vmatprep.subr.mxu0 0.0
        %5332 = vmatpush1.msra.mxu0 0.0
        %5333 = vmatprep.subr.mxu0 0.0
        %5334 = vmatpush1.msra.mxu0 0.0
        %5335 = vmatprep.mubr.f32.mxu0 0.0
        %5336 = vmatmul.mubr.f32.gmra.mrb[0].mxu0 %v5266
        %v5337 = vpop.f32.mrb[0].mxu0
        %v5338 = vadd.f32 0.0, %v5337
        %v5339 = vpop.f32.mrb[0].mxu0
        %5340 = vmatprep.mubr.f32.mxu0 0.0
        %5341 = vmatmul.mubr.f32.gmra.mrb[0].mxu0 %v5269
        %v5342 = vpop.f32.mrb[0].mxu0
        %v5343 = vadd.f32 0.0, %v5342
        %v5344 = vpop.f32.mrb[0].mxu0
        %5345 = vdwg.mxu0
        %5346 = vrot.lane.b32.xlu0 %v4476, 112
        %v5347 = vpop.permute.xlu0 %5346
        %5348 = vrot.lane.b32.xlu0 %v4481, 112
        %v5349 = vpop.permute.xlu0 %5348
        %5350 = vrot.lane.b32.xlu0 %v4397, 112
        %v5351 = vpop.permute.xlu0 %5350
        %v5352 = vsel %vm1356, %v5347, 0
        %v5354 = vsel %vm1356, %v5349, 0
        %v5356 = vsel %vm1356, %v5351, 0
        %5358 = vmatprep.subr.mxu0 0.0
        %5359 = vmatpush1.xpose.msra.mxu0 %v5356
        %5360 = vmatprep.subr.mxu0 0.0
        %5361 = vmatpush1.xpose.msra.mxu0 0.0
        %5362 = vmatprep.subr.mxu0 0.0
        %5363 = vmatpush1.xpose.msra.mxu0 0.0
        %5364 = vmatprep.subr.mxu0 0.0
        %5365 = vmatpush1.xpose.msra.mxu0 0.0
        %5366 = vmatprep.subr.mxu0 0.0
        %5367 = vmatpush1.xpose.msra.mxu0 0.0
        %5368 = vmatprep.subr.mxu0 0.0
        %5369 = vmatpush1.xpose.msra.mxu0 0.0
        %5370 = vmatprep.subr.mxu0 0.0
        %5371 = vmatpush1.xpose.msra.mxu0 0.0
        %5372 = vmatprep.subr.mxu0 0.0
        %5373 = vmatpush1.xpose.msra.mxu0 0.0
        %5374 = vmatprep.subr.mxu0 0.0
        %5375 = vmatpush1.xpose.msra.mxu0 0.0
        %5376 = vmatprep.subr.mxu0 0.0
        %5377 = vmatpush1.xpose.msra.mxu0 0.0
        %5378 = vmatprep.subr.mxu0 0.0
        %5379 = vmatpush1.xpose.msra.mxu0 0.0
        %5380 = vmatprep.subr.mxu0 0.0
        %5381 = vmatpush1.xpose.msra.mxu0 0.0
        %5382 = vmatprep.subr.mxu0 0.0
        %5383 = vmatpush1.xpose.msra.mxu0 0.0
        %5384 = vmatprep.subr.mxu0 0.0
        %5385 = vmatpush1.xpose.msra.mxu0 0.0
        %5386 = vmatprep.subr.mxu0 0.0
        %5387 = vmatpush1.xpose.msra.mxu0 0.0
        %5388 = vmatprep.subr.mxu0 0.0
        %5389 = vmatpush1.xpose.msra.mxu0 0.0
        %5390 = vmatprep.subr.mxu0 0.0
        %5391 = vmatpush1.xpose.msra.mxu0 0.0
        %5392 = vmatprep.subr.mxu0 0.0
        %5393 = vmatpush1.xpose.msra.mxu0 0.0
        %5394 = vmatprep.subr.mxu0 0.0
        %5395 = vmatpush1.xpose.msra.mxu0 0.0
        %5396 = vmatprep.subr.mxu0 0.0
        %5397 = vmatpush1.xpose.msra.mxu0 0.0
        %5398 = vmatprep.subr.mxu0 0.0
        %5399 = vmatpush1.xpose.msra.mxu0 0.0
        %5400 = vmatprep.subr.mxu0 0.0
        %5401 = vmatpush1.xpose.msra.mxu0 0.0
        %5402 = vmatprep.subr.mxu0 0.0
        %5403 = vmatpush1.xpose.msra.mxu0 0.0
        %5404 = vmatprep.subr.mxu0 0.0
        %5405 = vmatpush1.xpose.msra.mxu0 0.0
        %5406 = vmatprep.subr.mxu0 0.0
        %5407 = vmatpush1.xpose.msra.mxu0 0.0
        %5408 = vmatprep.subr.mxu0 0.0
        %5409 = vmatpush1.xpose.msra.mxu0 0.0
        %5410 = vmatprep.subr.mxu0 0.0
        %5411 = vmatpush1.xpose.msra.mxu0 0.0
        %5412 = vmatprep.subr.mxu0 0.0
        %5413 = vmatpush1.xpose.msra.mxu0 0.0
        %5414 = vmatprep.subr.mxu0 0.0
        %5415 = vmatpush1.xpose.msra.mxu0 0.0
        %5416 = vmatprep.subr.mxu0 0.0
        %5417 = vmatpush1.xpose.msra.mxu0 0.0
        %5418 = vmatprep.subr.mxu0 0.0
        %5419 = vmatpush1.xpose.msra.mxu0 0.0
        %5420 = vmatprep.subr.mxu0 0.0
        %5421 = vmatpush1.xpose.msra.mxu0 0.0
        %5422 = vmatprep.mubr.f32.mxu0 0.0
        %5423 = vmatmul.mubr.f32.gmra.mrb[0].mxu0 %v5352
        %v5424 = vpop.f32.mrb[0].mxu0
        %v5425 = vadd.f32 0.0, %v5424
        %v5426 = vpop.f32.mrb[0].mxu0
        %5427 = vmatprep.mubr.f32.mxu0 0.0
        %5428 = vmatmul.mubr.f32.gmra.mrb[0].mxu0 %v5354
        %v5429 = vpop.f32.mrb[0].mxu0
        %v5430 = vadd.f32 0.0, %v5429
        %v5431 = vpop.f32.mrb[0].mxu0
        %5432 = vdwg.mxu0
        %v5433 = vmul.f32 %v5425, 0.5
        %v5434 = vmul.f32 %v5430, 0.5
        %v5435 = vsel %vm4174, %v5433, -inf
        %5436 = vmax.xlane.f32.xlu0 %v5435
        %v5437 = vpop.xlane.xlu0 %5436
        %v5438 = vsel %vm4174, %v5434, -inf
        %5439 = vmax.xlane.f32.xlu0 %v5438
        %v5440 = vpop.xlane.xlu0 %5439
        %v5441 = vsub.f32 %v5433, %v5437
        %v5442 = vsub.f32 %v5434, %v5440
        %v5443 = vmul.f32 %v5441, 1.442695
        %v5444 = vpow.pop %v5443
        %v5445 = vmul.f32 %v5442, 1.442695
        %v5446 = vpow.pop %v5445
        %v5447 = vsel %vm4174, %v5444, 0.0
        %5448 = vadd.xlane.f32.xlu0 %v5447
        %v5449 = vpop.xlane.xlu0 %5448
        %v5450 = vsel %vm4174, %v5446, 0.0
        %5451 = vadd.xlane.f32.xlu0 %v5450
        %v5452 = vpop.xlane.xlu0 %5451
        %v5453 = vrcp.pop %v5449
        %v5454 = vrcp.pop %v5452
        %v5455 = vmul.f32 %v5444, %v5453
        %v5456 = vmul.f32 %v5446, %v5454
        %5457 = vrot.lane.b32.xlu0 %v4397, 80
        %v5458 = vpop.permute.xlu0 %5457
        %v5461 = vsel %vm4174, %v5455, 0
        %v5464 = vsel %vm4174, %v5456, 0
        %5466 = vmatprep.subr.mxu0 0.0
        %5467 = vmatpush1.msra.mxu0 %v5458
        %5468 = vmatprep.subr.mxu0 0.0
        %5469 = vmatpush1.msra.mxu0 0.0
        %5470 = vmatprep.subr.mxu0 0.0
        %5471 = vmatpush1.msra.mxu0 0.0
        %5472 = vmatprep.subr.mxu0 0.0
        %5473 = vmatpush1.msra.mxu0 0.0
        %5474 = vmatprep.subr.mxu0 0.0
        %5475 = vmatpush1.msra.mxu0 0.0
        %5476 = vmatprep.subr.mxu0 0.0
        %5477 = vmatpush1.msra.mxu0 0.0
        %5478 = vmatprep.subr.mxu0 0.0
        %5479 = vmatpush1.msra.mxu0 0.0
        %5480 = vmatprep.subr.mxu0 0.0
        %5481 = vmatpush1.msra.mxu0 0.0
        %5482 = vmatprep.subr.mxu0 0.0
        %5483 = vmatpush1.msra.mxu0 0.0
        %5484 = vmatprep.subr.mxu0 0.0
        %5485 = vmatpush1.msra.mxu0 0.0
        %5486 = vmatprep.subr.mxu0 0.0
        %5487 = vmatpush1.msra.mxu0 0.0
        %5488 = vmatprep.subr.mxu0 0.0
        %5489 = vmatpush1.msra.mxu0 0.0
        %5490 = vmatprep.subr.mxu0 0.0
        %5491 = vmatpush1.msra.mxu0 0.0
        %5492 = vmatprep.subr.mxu0 0.0
        %5493 = vmatpush1.msra.mxu0 0.0
        %5494 = vmatprep.subr.mxu0 0.0
        %5495 = vmatpush1.msra.mxu0 0.0
        %5496 = vmatprep.subr.mxu0 0.0
        %5497 = vmatpush1.msra.mxu0 0.0
        %5498 = vmatprep.subr.mxu0 0.0
        %5499 = vmatpush1.msra.mxu0 0.0
        %5500 = vmatprep.subr.mxu0 0.0
        %5501 = vmatpush1.msra.mxu0 0.0
        %5502 = vmatprep.subr.mxu0 0.0
        %5503 = vmatpush1.msra.mxu0 0.0
        %5504 = vmatprep.subr.mxu0 0.0
        %5505 = vmatpush1.msra.mxu0 0.0
        %5506 = vmatprep.subr.mxu0 0.0
        %5507 = vmatpush1.msra.mxu0 0.0
        %5508 = vmatprep.subr.mxu0 0.0
        %5509 = vmatpush1.msra.mxu0 0.0
        %5510 = vmatprep.subr.mxu0 0.0
        %5511 = vmatpush1.msra.mxu0 0.0
        %5512 = vmatprep.subr.mxu0 0.0
        %5513 = vmatpush1.msra.mxu0 0.0
        %5514 = vmatprep.subr.mxu0 0.0
        %5515 = vmatpush1.msra.mxu0 0.0
        %5516 = vmatprep.subr.mxu0 0.0
        %5517 = vmatpush1.msra.mxu0 0.0
        %5518 = vmatprep.subr.mxu0 0.0
        %5519 = vmatpush1.msra.mxu0 0.0
        %5520 = vmatprep.subr.mxu0 0.0
        %5521 = vmatpush1.msra.mxu0 0.0
        %5522 = vmatprep.subr.mxu0 0.0
        %5523 = vmatpush1.msra.mxu0 0.0
        %5524 = vmatprep.subr.mxu0 0.0
        %5525 = vmatpush1.msra.mxu0 0.0
        %5526 = vmatprep.subr.mxu0 0.0
        %5527 = vmatpush1.msra.mxu0 0.0
        %5528 = vmatprep.subr.mxu0 0.0
        %5529 = vmatpush1.msra.mxu0 0.0
        %5530 = vmatprep.mubr.f32.mxu0 0.0
        %5531 = vmatmul.mubr.f32.gmra.mrb[0].mxu0 %v5461
        %v5532 = vpop.f32.mrb[0].mxu0
        %v5533 = vadd.f32 0.0, %v5532
        %v5534 = vpop.f32.mrb[0].mxu0
        %5535 = vmatprep.mubr.f32.mxu0 0.0
        %5536 = vmatmul.mubr.f32.gmra.mrb[0].mxu0 %v5464
        %v5537 = vpop.f32.mrb[0].mxu0
        %v5538 = vadd.f32 0.0, %v5537
        %v5539 = vpop.f32.mrb[0].mxu0
        %5540 = vdwg.mxu0
        %5541 = vrot.lane.b32.xlu0 %v4476, 108
        %v5542 = vpop.permute.xlu0 %5541
        %5543 = vrot.lane.b32.xlu0 %v4481, 108
        %v5544 = vpop.permute.xlu0 %5543
        %5545 = vrot.lane.b32.xlu0 %v4397, 108
        %v5546 = vpop.permute.xlu0 %5545
        %v5547 = vsel %vm1356, %v5542, 0
        %v5549 = vsel %vm1356, %v5544, 0
        %v5551 = vsel %vm1356, %v5546, 0
        %5553 = vmatprep.subr.mxu0 0.0
        %5554 = vmatpush1.xpose.msra.mxu0 %v5551
        %5555 = vmatprep.subr.mxu0 0.0
        %5556 = vmatpush1.xpose.msra.mxu0 0.0
        %5557 = vmatprep.subr.mxu0 0.0
        %5558 = vmatpush1.xpose.msra.mxu0 0.0
        %5559 = vmatprep.subr.mxu0 0.0
        %5560 = vmatpush1.xpose.msra.mxu0 0.0
        %5561 = vmatprep.subr.mxu0 0.0
        %5562 = vmatpush1.xpose.msra.mxu0 0.0
        %5563 = vmatprep.subr.mxu0 0.0
        %5564 = vmatpush1.xpose.msra.mxu0 0.0
        %5565 = vmatprep.subr.mxu0 0.0
        %5566 = vmatpush1.xpose.msra.mxu0 0.0
        %5567 = vmatprep.subr.mxu0 0.0
        %5568 = vmatpush1.xpose.msra.mxu0 0.0
        %5569 = vmatprep.subr.mxu0 0.0
        %5570 = vmatpush1.xpose.msra.mxu0 0.0
        %5571 = vmatprep.subr.mxu0 0.0
        %5572 = vmatpush1.xpose.msra.mxu0 0.0
        %5573 = vmatprep.subr.mxu0 0.0
        %5574 = vmatpush1.xpose.msra.mxu0 0.0
        %5575 = vmatprep.subr.mxu0 0.0
        %5576 = vmatpush1.xpose.msra.mxu0 0.0
        %5577 = vmatprep.subr.mxu0 0.0
        %5578 = vmatpush1.xpose.msra.mxu0 0.0
        %5579 = vmatprep.subr.mxu0 0.0
        %5580 = vmatpush1.xpose.msra.mxu0 0.0
        %5581 = vmatprep.subr.mxu0 0.0
        %5582 = vmatpush1.xpose.msra.mxu0 0.0
        %5583 = vmatprep.subr.mxu0 0.0
        %5584 = vmatpush1.xpose.msra.mxu0 0.0
        %5585 = vmatprep.subr.mxu0 0.0
        %5586 = vmatpush1.xpose.msra.mxu0 0.0
        %5587 = vmatprep.subr.mxu0 0.0
        %5588 = vmatpush1.xpose.msra.mxu0 0.0
        %5589 = vmatprep.subr.mxu0 0.0
        %5590 = vmatpush1.xpose.msra.mxu0 0.0
        %5591 = vmatprep.subr.mxu0 0.0
        %5592 = vmatpush1.xpose.msra.mxu0 0.0
        %5593 = vmatprep.subr.mxu0 0.0
        %5594 = vmatpush1.xpose.msra.mxu0 0.0
        %5595 = vmatprep.subr.mxu0 0.0
        %5596 = vmatpush1.xpose.msra.mxu0 0.0
        %5597 = vmatprep.subr.mxu0 0.0
        %5598 = vmatpush1.xpose.msra.mxu0 0.0
        %5599 = vmatprep.subr.mxu0 0.0
        %5600 = vmatpush1.xpose.msra.mxu0 0.0
        %5601 = vmatprep.subr.mxu0 0.0
        %5602 = vmatpush1.xpose.msra.mxu0 0.0
        %5603 = vmatprep.subr.mxu0 0.0
        %5604 = vmatpush1.xpose.msra.mxu0 0.0
        %5605 = vmatprep.subr.mxu0 0.0
        %5606 = vmatpush1.xpose.msra.mxu0 0.0
        %5607 = vmatprep.subr.mxu0 0.0
        %5608 = vmatpush1.xpose.msra.mxu0 0.0
        %5609 = vmatprep.subr.mxu0 0.0
        %5610 = vmatpush1.xpose.msra.mxu0 0.0
        %5611 = vmatprep.subr.mxu0 0.0
        %5612 = vmatpush1.xpose.msra.mxu0 0.0
        %5613 = vmatprep.subr.mxu0 0.0
        %5614 = vmatpush1.xpose.msra.mxu0 0.0
        %5615 = vmatprep.subr.mxu0 0.0
        %5616 = vmatpush1.xpose.msra.mxu0 0.0
        %5617 = vmatprep.mubr.f32.mxu0 0.0
        %5618 = vmatmul.mubr.f32.gmra.mrb[0].mxu0 %v5547
        %v5619 = vpop.f32.mrb[0].mxu0
        %v5620 = vadd.f32 0.0, %v5619
        %v5621 = vpop.f32.mrb[0].mxu0
        %5622 = vmatprep.mubr.f32.mxu0 0.0
        %5623 = vmatmul.mubr.f32.gmra.mrb[0].mxu0 %v5549
        %v5624 = vpop.f32.mrb[0].mxu0
        %v5625 = vadd.f32 0.0, %v5624
        %v5626 = vpop.f32.mrb[0].mxu0
        %5627 = vdwg.mxu0
        %v5628 = vmul.f32 %v5620, 0.5
        %v5629 = vmul.f32 %v5625, 0.5
        %v5630 = vsel %vm4174, %v5628, -inf
        %5631 = vmax.xlane.f32.xlu0 %v5630
        %v5632 = vpop.xlane.xlu0 %5631
        %v5633 = vsel %vm4174, %v5629, -inf
        %5634 = vmax.xlane.f32.xlu0 %v5633
        %v5635 = vpop.xlane.xlu0 %5634
        %v5636 = vsub.f32 %v5628, %v5632
        %v5637 = vsub.f32 %v5629, %v5635
        %v5638 = vmul.f32 %v5636, 1.442695
        %v5639 = vpow.pop %v5638
        %v5640 = vmul.f32 %v5637, 1.442695
        %v5641 = vpow.pop %v5640
        %v5642 = vsel %vm4174, %v5639, 0.0
        %5643 = vadd.xlane.f32.xlu0 %v5642
        %v5644 = vpop.xlane.xlu0 %5643
        %v5645 = vsel %vm4174, %v5641, 0.0
        %5646 = vadd.xlane.f32.xlu0 %v5645
        %v5647 = vpop.xlane.xlu0 %5646
        %v5648 = vrcp.pop %v5644
        %v5649 = vrcp.pop %v5647
        %v5650 = vmul.f32 %v5639, %v5648
        %v5651 = vmul.f32 %v5641, %v5649
        %5652 = vrot.lane.b32.xlu0 %v4397, 76
        %v5653 = vpop.permute.xlu0 %5652
        %v5656 = vsel %vm4174, %v5650, 0
        %v5659 = vsel %vm4174, %v5651, 0
        %5661 = vmatprep.subr.mxu0 0.0
        %5662 = vmatpush1.msra.mxu0 %v5653
        %5663 = vmatprep.subr.mxu0 0.0
        %5664 = vmatpush1.msra.mxu0 0.0
        %5665 = vmatprep.subr.mxu0 0.0
        %5666 = vmatpush1.msra.mxu0 0.0
        %5667 = vmatprep.subr.mxu0 0.0
        %5668 = vmatpush1.msra.mxu0 0.0
        %5669 = vmatprep.subr.mxu0 0.0
        %5670 = vmatpush1.msra.mxu0 0.0
        %5671 = vmatprep.subr.mxu0 0.0
        %5672 = vmatpush1.msra.mxu0 0.0
        %5673 = vmatprep.subr.mxu0 0.0
        %5674 = vmatpush1.msra.mxu0 0.0
        %5675 = vmatprep.subr.mxu0 0.0
        %5676 = vmatpush1.msra.mxu0 0.0
        %5677 = vmatprep.subr.mxu0 0.0
        %5678 = vmatpush1.msra.mxu0 0.0
        %5679 = vmatprep.subr.mxu0 0.0
        %5680 = vmatpush1.msra.mxu0 0.0
        %5681 = vmatprep.subr.mxu0 0.0
        %5682 = vmatpush1.msra.mxu0 0.0
        %5683 = vmatprep.subr.mxu0 0.0
        %5684 = vmatpush1.msra.mxu0 0.0
        %5685 = vmatprep.subr.mxu0 0.0
        %5686 = vmatpush1.msra.mxu0 0.0
        %5687 = vmatprep.subr.mxu0 0.0
        %5688 = vmatpush1.msra.mxu0 0.0
        %5689 = vmatprep.subr.mxu0 0.0
        %5690 = vmatpush1.msra.mxu0 0.0
        %5691 = vmatprep.subr.mxu0 0.0
        %5692 = vmatpush1.msra.mxu0 0.0
        %5693 = vmatprep.subr.mxu0 0.0
        %5694 = vmatpush1.msra.mxu0 0.0
        %5695 = vmatprep.subr.mxu0 0.0
        %5696 = vmatpush1.msra.mxu0 0.0
        %5697 = vmatprep.subr.mxu0 0.0
        %5698 = vmatpush1.msra.mxu0 0.0
        %5699 = vmatprep.subr.mxu0 0.0
        %5700 = vmatpush1.msra.mxu0 0.0
        %5701 = vmatprep.subr.mxu0 0.0
        %5702 = vmatpush1.msra.mxu0 0.0
        %5703 = vmatprep.subr.mxu0 0.0
        %5704 = vmatpush1.msra.mxu0 0.0
        %5705 = vmatprep.subr.mxu0 0.0
        %5706 = vmatpush1.msra.mxu0 0.0
        %5707 = vmatprep.subr.mxu0 0.0
        %5708 = vmatpush1.msra.mxu0 0.0
        %5709 = vmatprep.subr.mxu0 0.0
        %5710 = vmatpush1.msra.mxu0 0.0
        %5711 = vmatprep.subr.mxu0 0.0
        %5712 = vmatpush1.msra.mxu0 0.0
        %5713 = vmatprep.subr.mxu0 0.0
        %5714 = vmatpush1.msra.mxu0 0.0
        %5715 = vmatprep.subr.mxu0 0.0
        %5716 = vmatpush1.msra.mxu0 0.0
        %5717 = vmatprep.subr.mxu0 0.0
        %5718 = vmatpush1.msra.mxu0 0.0
        %5719 = vmatprep.subr.mxu0 0.0
        %5720 = vmatpush1.msra.mxu0 0.0
        %5721 = vmatprep.subr.mxu0 0.0
        %5722 = vmatpush1.msra.mxu0 0.0
        %5723 = vmatprep.subr.mxu0 0.0
        %5724 = vmatpush1.msra.mxu0 0.0
        %5725 = vmatprep.mubr.f32.mxu0 0.0
        %5726 = vmatmul.mubr.f32.gmra.mrb[0].mxu0 %v5656
        %v5727 = vpop.f32.mrb[0].mxu0
        %v5728 = vadd.f32 0.0, %v5727
        %v5729 = vpop.f32.mrb[0].mxu0
        %5730 = vmatprep.mubr.f32.mxu0 0.0
        %5731 = vmatmul.mubr.f32.gmra.mrb[0].mxu0 %v5659
        %v5732 = vpop.f32.mrb[0].mxu0
        %v5733 = vadd.f32 0.0, %v5732
        %v5734 = vpop.f32.mrb[0].mxu0
        %5735 = vdwg.mxu0
        %5736 = vrot.lane.b32.xlu0 %v4476, 104
        %v5737 = vpop.permute.xlu0 %5736
        %5738 = vrot.lane.b32.xlu0 %v4481, 104
        %v5739 = vpop.permute.xlu0 %5738
        %5740 = vrot.lane.b32.xlu0 %v4397, 104
        %v5741 = vpop.permute.xlu0 %5740
        %v5742 = vsel %vm1356, %v5737, 0
        %v5744 = vsel %vm1356, %v5739, 0
        %v5746 = vsel %vm1356, %v5741, 0
        %5748 = vmatprep.subr.mxu0 0.0
        %5749 = vmatpush1.xpose.msra.mxu0 %v5746
        %5750 = vmatprep.subr.mxu0 0.0
        %5751 = vmatpush1.xpose.msra.mxu0 0.0
        %5752 = vmatprep.subr.mxu0 0.0
        %5753 = vmatpush1.xpose.msra.mxu0 0.0
        %5754 = vmatprep.subr.mxu0 0.0
        %5755 = vmatpush1.xpose.msra.mxu0 0.0
        %5756 = vmatprep.subr.mxu0 0.0
        %5757 = vmatpush1.xpose.msra.mxu0 0.0
        %5758 = vmatprep.subr.mxu0 0.0
        %5759 = vmatpush1.xpose.msra.mxu0 0.0
        %5760 = vmatprep.subr.mxu0 0.0
        %5761 = vmatpush1.xpose.msra.mxu0 0.0
        %5762 = vmatprep.subr.mxu0 0.0
        %5763 = vmatpush1.xpose.msra.mxu0 0.0
        %5764 = vmatprep.subr.mxu0 0.0
        %5765 = vmatpush1.xpose.msra.mxu0 0.0
        %5766 = vmatprep.subr.mxu0 0.0
        %5767 = vmatpush1.xpose.msra.mxu0 0.0
        %5768 = vmatprep.subr.mxu0 0.0
        %5769 = vmatpush1.xpose.msra.mxu0 0.0
        %5770 = vmatprep.subr.mxu0 0.0
        %5771 = vmatpush1.xpose.msra.mxu0 0.0
        %5772 = vmatprep.subr.mxu0 0.0
        %5773 = vmatpush1.xpose.msra.mxu0 0.0
        %5774 = vmatprep.subr.mxu0 0.0
        %5775 = vmatpush1.xpose.msra.mxu0 0.0
        %5776 = vmatprep.subr.mxu0 0.0
        %5777 = vmatpush1.xpose.msra.mxu0 0.0
        %5778 = vmatprep.subr.mxu0 0.0
        %5779 = vmatpush1.xpose.msra.mxu0 0.0
        %5780 = vmatprep.subr.mxu0 0.0
        %5781 = vmatpush1.xpose.msra.mxu0 0.0
        %5782 = vmatprep.subr.mxu0 0.0
        %5783 = vmatpush1.xpose.msra.mxu0 0.0
        %5784 = vmatprep.subr.mxu0 0.0
        %5785 = vmatpush1.xpose.msra.mxu0 0.0
        %5786 = vmatprep.subr.mxu0 0.0
        %5787 = vmatpush1.xpose.msra.mxu0 0.0
        %5788 = vmatprep.subr.mxu0 0.0
        %5789 = vmatpush1.xpose.msra.mxu0 0.0
        %5790 = vmatprep.subr.mxu0 0.0
        %5791 = vmatpush1.xpose.msra.mxu0 0.0
        %5792 = vmatprep.subr.mxu0 0.0
        %5793 = vmatpush1.xpose.msra.mxu0 0.0
        %5794 = vmatprep.subr.mxu0 0.0
        %5795 = vmatpush1.xpose.msra.mxu0 0.0
        %5796 = vmatprep.subr.mxu0 0.0
        %5797 = vmatpush1.xpose.msra.mxu0 0.0
        %5798 = vmatprep.subr.mxu0 0.0
        %5799 = vmatpush1.xpose.msra.mxu0 0.0
        %5800 = vmatprep.subr.mxu0 0.0
        %5801 = vmatpush1.xpose.msra.mxu0 0.0
        %5802 = vmatprep.subr.mxu0 0.0
        %5803 = vmatpush1.xpose.msra.mxu0 0.0
        %5804 = vmatprep.subr.mxu0 0.0
        %5805 = vmatpush1.xpose.msra.mxu0 0.0
        %5806 = vmatprep.subr.mxu0 0.0
        %5807 = vmatpush1.xpose.msra.mxu0 0.0
        %5808 = vmatprep.subr.mxu0 0.0
        %5809 = vmatpush1.xpose.msra.mxu0 0.0
        %5810 = vmatprep.subr.mxu0 0.0
        %5811 = vmatpush1.xpose.msra.mxu0 0.0
        %5812 = vmatprep.mubr.f32.mxu0 0.0
        %5813 = vmatmul.mubr.f32.gmra.mrb[0].mxu0 %v5742
        %v5814 = vpop.f32.mrb[0].mxu0
        %v5815 = vadd.f32 0.0, %v5814
        %v5816 = vpop.f32.mrb[0].mxu0
        %5817 = vmatprep.mubr.f32.mxu0 0.0
        %5818 = vmatmul.mubr.f32.gmra.mrb[0].mxu0 %v5744
        %v5819 = vpop.f32.mrb[0].mxu0
        %v5820 = vadd.f32 0.0, %v5819
        %v5821 = vpop.f32.mrb[0].mxu0
        %5822 = vdwg.mxu0
        %v5823 = vmul.f32 %v5815, 0.5
        %v5824 = vmul.f32 %v5820, 0.5
        %v5825 = vsel %vm4174, %v5823, -inf
        %5826 = vmax.xlane.f32.xlu0 %v5825
        %v5827 = vpop.xlane.xlu0 %5826
        %v5828 = vsel %vm4174, %v5824, -inf
        %5829 = vmax.xlane.f32.xlu0 %v5828
        %v5830 = vpop.xlane.xlu0 %5829
        %v5831 = vsub.f32 %v5823, %v5827
        %v5832 = vsub.f32 %v5824, %v5830
        %v5833 = vmul.f32 %v5831, 1.442695
        %v5834 = vpow.pop %v5833
        %v5835 = vmul.f32 %v5832, 1.442695
        %v5836 = vpow.pop %v5835
        %v5837 = vsel %vm4174, %v5834, 0.0
        %5838 = vadd.xlane.f32.xlu0 %v5837
        %v5839 = vpop.xlane.xlu0 %5838
        %v5840 = vsel %vm4174, %v5836, 0.0
        %5841 = vadd.xlane.f32.xlu0 %v5840
        %v5842 = vpop.xlane.xlu0 %5841
        %v5843 = vrcp.pop %v5839
        %v5844 = vrcp.pop %v5842
        %v5845 = vmul.f32 %v5834, %v5843
        %v5846 = vmul.f32 %v5836, %v5844
        %5847 = vrot.lane.b32.xlu0 %v4397, 72
        %v5848 = vpop.permute.xlu0 %5847
        %v5851 = vsel %vm4174, %v5845, 0
        %v5854 = vsel %vm4174, %v5846, 0
        %5856 = vmatprep.subr.mxu0 0.0
        %5857 = vmatpush1.msra.mxu0 %v5848
        %5858 = vmatprep.subr.mxu0 0.0
        %5859 = vmatpush1.msra.mxu0 0.0
        %5860 = vmatprep.subr.mxu0 0.0
        %5861 = vmatpush1.msra.mxu0 0.0
        %5862 = vmatprep.subr.mxu0 0.0
        %5863 = vmatpush1.msra.mxu0 0.0
        %5864 = vmatprep.subr.mxu0 0.0
        %5865 = vmatpush1.msra.mxu0 0.0
        %5866 = vmatprep.subr.mxu0 0.0
        %5867 = vmatpush1.msra.mxu0 0.0
        %5868 = vmatprep.subr.mxu0 0.0
        %5869 = vmatpush1.msra.mxu0 0.0
        %5870 = vmatprep.subr.mxu0 0.0
        %5871 = vmatpush1.msra.mxu0 0.0
        %5872 = vmatprep.subr.mxu0 0.0
        %5873 = vmatpush1.msra.mxu0 0.0
        %5874 = vmatprep.subr.mxu0 0.0
        %5875 = vmatpush1.msra.mxu0 0.0
        %5876 = vmatprep.subr.mxu0 0.0
        %5877 = vmatpush1.msra.mxu0 0.0
        %5878 = vmatprep.subr.mxu0 0.0
        %5879 = vmatpush1.msra.mxu0 0.0
        %5880 = vmatprep.subr.mxu0 0.0
        %5881 = vmatpush1.msra.mxu0 0.0
        %5882 = vmatprep.subr.mxu0 0.0
        %5883 = vmatpush1.msra.mxu0 0.0
        %5884 = vmatprep.subr.mxu0 0.0
        %5885 = vmatpush1.msra.mxu0 0.0
        %5886 = vmatprep.subr.mxu0 0.0
        %5887 = vmatpush1.msra.mxu0 0.0
        %5888 = vmatprep.subr.mxu0 0.0
        %5889 = vmatpush1.msra.mxu0 0.0
        %5890 = vmatprep.subr.mxu0 0.0
        %5891 = vmatpush1.msra.mxu0 0.0
        %5892 = vmatprep.subr.mxu0 0.0
        %5893 = vmatpush1.msra.mxu0 0.0
        %5894 = vmatprep.subr.mxu0 0.0
        %5895 = vmatpush1.msra.mxu0 0.0
        %5896 = vmatprep.subr.mxu0 0.0
        %5897 = vmatpush1.msra.mxu0 0.0
        %5898 = vmatprep.subr.mxu0 0.0
        %5899 = vmatpush1.msra.mxu0 0.0
        %5900 = vmatprep.subr.mxu0 0.0
        %5901 = vmatpush1.msra.mxu0 0.0
        %5902 = vmatprep.subr.mxu0 0.0
        %5903 = vmatpush1.msra.mxu0 0.0
        %5904 = vmatprep.subr.mxu0 0.0
        %5905 = vmatpush1.msra.mxu0 0.0
        %5906 = vmatprep.subr.mxu0 0.0
        %5907 = vmatpush1.msra.mxu0 0.0
        %5908 = vmatprep.subr.mxu0 0.0
        %5909 = vmatpush1.msra.mxu0 0.0
        %5910 = vmatprep.subr.mxu0 0.0
        %5911 = vmatpush1.msra.mxu0 0.0
        %5912 = vmatprep.subr.mxu0 0.0
        %5913 = vmatpush1.msra.mxu0 0.0
        %5914 = vmatprep.subr.mxu0 0.0
        %5915 = vmatpush1.msra.mxu0 0.0
        %5916 = vmatprep.subr.mxu0 0.0
        %5917 = vmatpush1.msra.mxu0 0.0
        %5918 = vmatprep.subr.mxu0 0.0
        %5919 = vmatpush1.msra.mxu0 0.0
        %5920 = vmatprep.mubr.f32.mxu0 0.0
        %5921 = vmatmul.mubr.f32.gmra.mrb[0].mxu0 %v5851
        %v5922 = vpop.f32.mrb[0].mxu0
        %v5923 = vadd.f32 0.0, %v5922
        %v5924 = vpop.f32.mrb[0].mxu0
        %5925 = vmatprep.mubr.f32.mxu0 0.0
        %5926 = vmatmul.mubr.f32.gmra.mrb[0].mxu0 %v5854
        %v5927 = vpop.f32.mrb[0].mxu0
        %v5928 = vadd.f32 0.0, %v5927
        %v5929 = vpop.f32.mrb[0].mxu0
        %5930 = vdwg.mxu0
        %5931 = vrot.lane.b32.xlu0 %v4476, 100
        %v5932 = vpop.permute.xlu0 %5931
        %5933 = vrot.lane.b32.xlu0 %v4481, 100
        %v5934 = vpop.permute.xlu0 %5933
        %5935 = vrot.lane.b32.xlu0 %v4397, 100
        %v5936 = vpop.permute.xlu0 %5935
        %v5937 = vsel %vm1356, %v5932, 0
        %v5939 = vsel %vm1356, %v5934, 0
        %v5941 = vsel %vm1356, %v5936, 0
        %5943 = vmatprep.subr.mxu0 0.0
        %5944 = vmatpush1.xpose.msra.mxu0 %v5941
        %5945 = vmatprep.subr.mxu0 0.0
        %5946 = vmatpush1.xpose.msra.mxu0 0.0
        %5947 = vmatprep.subr.mxu0 0.0
        %5948 = vmatpush1.xpose.msra.mxu0 0.0
        %5949 = vmatprep.subr.mxu0 0.0
        %5950 = vmatpush1.xpose.msra.mxu0 0.0
        %5951 = vmatprep.subr.mxu0 0.0
        %5952 = vmatpush1.xpose.msra.mxu0 0.0
        %5953 = vmatprep.subr.mxu0 0.0
        %5954 = vmatpush1.xpose.msra.mxu0 0.0
        %5955 = vmatprep.subr.mxu0 0.0
        %5956 = vmatpush1.xpose.msra.mxu0 0.0
        %5957 = vmatprep.subr.mxu0 0.0
        %5958 = vmatpush1.xpose.msra.mxu0 0.0
        %5959 = vmatprep.subr.mxu0 0.0
        %5960 = vmatpush1.xpose.msra.mxu0 0.0
        %5961 = vmatprep.subr.mxu0 0.0
        %5962 = vmatpush1.xpose.msra.mxu0 0.0
        %5963 = vmatprep.subr.mxu0 0.0
        %5964 = vmatpush1.xpose.msra.mxu0 0.0
        %5965 = vmatprep.subr.mxu0 0.0
        %5966 = vmatpush1.xpose.msra.mxu0 0.0
        %5967 = vmatprep.subr.mxu0 0.0
        %5968 = vmatpush1.xpose.msra.mxu0 0.0
        %5969 = vmatprep.subr.mxu0 0.0
        %5970 = vmatpush1.xpose.msra.mxu0 0.0
        %5971 = vmatprep.subr.mxu0 0.0
        %5972 = vmatpush1.xpose.msra.mxu0 0.0
        %5973 = vmatprep.subr.mxu0 0.0
        %5974 = vmatpush1.xpose.msra.mxu0 0.0
        %5975 = vmatprep.subr.mxu0 0.0
        %5976 = vmatpush1.xpose.msra.mxu0 0.0
        %5977 = vmatprep.subr.mxu0 0.0
        %5978 = vmatpush1.xpose.msra.mxu0 0.0
        %5979 = vmatprep.subr.mxu0 0.0
        %5980 = vmatpush1.xpose.msra.mxu0 0.0
        %5981 = vmatprep.subr.mxu0 0.0
        %5982 = vmatpush1.xpose.msra.mxu0 0.0
        %5983 = vmatprep.subr.mxu0 0.0
        %5984 = vmatpush1.xpose.msra.mxu0 0.0
        %5985 = vmatprep.subr.mxu0 0.0
        %5986 = vmatpush1.xpose.msra.mxu0 0.0
        %5987 = vmatprep.subr.mxu0 0.0
        %5988 = vmatpush1.xpose.msra.mxu0 0.0
        %5989 = vmatprep.subr.mxu0 0.0
        %5990 = vmatpush1.xpose.msra.mxu0 0.0
        %5991 = vmatprep.subr.mxu0 0.0
        %5992 = vmatpush1.xpose.msra.mxu0 0.0
        %5993 = vmatprep.subr.mxu0 0.0
        %5994 = vmatpush1.xpose.msra.mxu0 0.0
        %5995 = vmatprep.subr.mxu0 0.0
        %5996 = vmatpush1.xpose.msra.mxu0 0.0
        %5997 = vmatprep.subr.mxu0 0.0
        %5998 = vmatpush1.xpose.msra.mxu0 0.0
        %5999 = vmatprep.subr.mxu0 0.0
        %6000 = vmatpush1.xpose.msra.mxu0 0.0
        %6001 = vmatprep.subr.mxu0 0.0
        %6002 = vmatpush1.xpose.msra.mxu0 0.0
        %6003 = vmatprep.subr.mxu0 0.0
        %6004 = vmatpush1.xpose.msra.mxu0 0.0
        %6005 = vmatprep.subr.mxu0 0.0
        %6006 = vmatpush1.xpose.msra.mxu0 0.0
        %6007 = vmatprep.mubr.f32.mxu0 0.0
        %6008 = vmatmul.mubr.f32.gmra.mrb[0].mxu0 %v5937
        %v6009 = vpop.f32.mrb[0].mxu0
        %v6010 = vadd.f32 0.0, %v6009
        %v6011 = vpop.f32.mrb[0].mxu0
        %6012 = vmatprep.mubr.f32.mxu0 0.0
        %6013 = vmatmul.mubr.f32.gmra.mrb[0].mxu0 %v5939
        %v6014 = vpop.f32.mrb[0].mxu0
        %v6015 = vadd.f32 0.0, %v6014
        %v6016 = vpop.f32.mrb[0].mxu0
        %6017 = vdwg.mxu0
        %v6018 = vmul.f32 %v6010, 0.5
        %v6019 = vmul.f32 %v6015, 0.5
        %v6020 = vsel %vm4174, %v6018, -inf
        %6021 = vmax.xlane.f32.xlu0 %v6020
        %v6022 = vpop.xlane.xlu0 %6021
        %v6023 = vsel %vm4174, %v6019, -inf
        %6024 = vmax.xlane.f32.xlu0 %v6023
        %v6025 = vpop.xlane.xlu0 %6024
        %v6026 = vsub.f32 %v6018, %v6022
        %v6027 = vsub.f32 %v6019, %v6025
        %v6028 = vmul.f32 %v6026, 1.442695
        %v6029 = vpow.pop %v6028
        %v6030 = vmul.f32 %v6027, 1.442695
        %v6031 = vpow.pop %v6030
        %v6032 = vsel %vm4174, %v6029, 0.0
        %6033 = vadd.xlane.f32.xlu0 %v6032
        %v6034 = vpop.xlane.xlu0 %6033
        %v6035 = vsel %vm4174, %v6031, 0.0
        %6036 = vadd.xlane.f32.xlu0 %v6035
        %v6037 = vpop.xlane.xlu0 %6036
        %v6038 = vrcp.pop %v6034
        %v6039 = vrcp.pop %v6037
        %v6040 = vmul.f32 %v6029, %v6038
        %v6041 = vmul.f32 %v6031, %v6039
        %6042 = vrot.lane.b32.xlu0 %v4397, 68
        %v6043 = vpop.permute.xlu0 %6042
        %v6046 = vsel %vm4174, %v6040, 0
        %v6049 = vsel %vm4174, %v6041, 0
        %6051 = vmatprep.subr.mxu0 0.0
        %6052 = vmatpush1.msra.mxu0 %v6043
        %6053 = vmatprep.subr.mxu0 0.0
        %6054 = vmatpush1.msra.mxu0 0.0
        %6055 = vmatprep.subr.mxu0 0.0
        %6056 = vmatpush1.msra.mxu0 0.0
        %6057 = vmatprep.subr.mxu0 0.0
        %6058 = vmatpush1.msra.mxu0 0.0
        %6059 = vmatprep.subr.mxu0 0.0
        %6060 = vmatpush1.msra.mxu0 0.0
        %6061 = vmatprep.subr.mxu0 0.0
        %6062 = vmatpush1.msra.mxu0 0.0
        %6063 = vmatprep.subr.mxu0 0.0
        %6064 = vmatpush1.msra.mxu0 0.0
        %6065 = vmatprep.subr.mxu0 0.0
        %6066 = vmatpush1.msra.mxu0 0.0
        %6067 = vmatprep.subr.mxu0 0.0
        %6068 = vmatpush1.msra.mxu0 0.0
        %6069 = vmatprep.subr.mxu0 0.0
        %6070 = vmatpush1.msra.mxu0 0.0
        %6071 = vmatprep.subr.mxu0 0.0
        %6072 = vmatpush1.msra.mxu0 0.0
        %6073 = vmatprep.subr.mxu0 0.0
        %6074 = vmatpush1.msra.mxu0 0.0
        %6075 = vmatprep.subr.mxu0 0.0
        %6076 = vmatpush1.msra.mxu0 0.0
        %6077 = vmatprep.subr.mxu0 0.0
        %6078 = vmatpush1.msra.mxu0 0.0
        %6079 = vmatprep.subr.mxu0 0.0
        %6080 = vmatpush1.msra.mxu0 0.0
        %6081 = vmatprep.subr.mxu0 0.0
        %6082 = vmatpush1.msra.mxu0 0.0
        %6083 = vmatprep.subr.mxu0 0.0
        %6084 = vmatpush1.msra.mxu0 0.0
        %6085 = vmatprep.subr.mxu0 0.0
        %6086 = vmatpush1.msra.mxu0 0.0
        %6087 = vmatprep.subr.mxu0 0.0
        %6088 = vmatpush1.msra.mxu0 0.0
        %6089 = vmatprep.subr.mxu0 0.0
        %6090 = vmatpush1.msra.mxu0 0.0
        %6091 = vmatprep.subr.mxu0 0.0
        %6092 = vmatpush1.msra.mxu0 0.0
        %6093 = vmatprep.subr.mxu0 0.0
        %6094 = vmatpush1.msra.mxu0 0.0
        %6095 = vmatprep.subr.mxu0 0.0
        %6096 = vmatpush1.msra.mxu0 0.0
        %6097 = vmatprep.subr.mxu0 0.0
        %6098 = vmatpush1.msra.mxu0 0.0
        %6099 = vmatprep.subr.mxu0 0.0
        %6100 = vmatpush1.msra.mxu0 0.0
        %6101 = vmatprep.subr.mxu0 0.0
        %6102 = vmatpush1.msra.mxu0 0.0
        %6103 = vmatprep.subr.mxu0 0.0
        %6104 = vmatpush1.msra.mxu0 0.0
        %6105 = vmatprep.subr.mxu0 0.0
        %6106 = vmatpush1.msra.mxu0 0.0
        %6107 = vmatprep.subr.mxu0 0.0
        %6108 = vmatpush1.msra.mxu0 0.0
        %6109 = vmatprep.subr.mxu0 0.0
        %6110 = vmatpush1.msra.mxu0 0.0
        %6111 = vmatprep.subr.mxu0 0.0
        %6112 = vmatpush1.msra.mxu0 0.0
        %6113 = vmatprep.subr.mxu0 0.0
        %6114 = vmatpush1.msra.mxu0 0.0
        %6115 = vmatprep.mubr.f32.mxu0 0.0
        %6116 = vmatmul.mubr.f32.gmra.mrb[0].mxu0 %v6046
        %v6117 = vpop.f32.mrb[0].mxu0
        %v6118 = vadd.f32 0.0, %v6117
        %v6119 = vpop.f32.mrb[0].mxu0
        %6120 = vmatprep.mubr.f32.mxu0 0.0
        %6121 = vmatmul.mubr.f32.gmra.mrb[0].mxu0 %v6049
        %v6122 = vpop.f32.mrb[0].mxu0
        %v6123 = vadd.f32 0.0, %v6122
        %v6124 = vpop.f32.mrb[0].mxu0
        %6125 = vdwg.mxu0
        %6128 = vrot.lane.b32.xlu0 %v4948, 4
        %v6129 = vpop.permute.xlu0 %6128
        %6130 = vrot.lane.b32.xlu0 %v4953, 4
        %v6131 = vpop.permute.xlu0 %6130
        %6136 = vrot.lane.b32.xlu0 %v5143, 8
        %v6137 = vpop.permute.xlu0 %6136
        %6138 = vrot.lane.b32.xlu0 %v5148, 8
        %v6139 = vpop.permute.xlu0 %6138
        %6144 = vrot.lane.b32.xlu0 %v5338, 12
        %v6145 = vpop.permute.xlu0 %6144
        %6146 = vrot.lane.b32.xlu0 %v5343, 12
        %v6147 = vpop.permute.xlu0 %6146
        %6152 = vrot.lane.b32.xlu0 %v5533, 16
        %v6153 = vpop.permute.xlu0 %6152
        %6154 = vrot.lane.b32.xlu0 %v5538, 16
        %v6155 = vpop.permute.xlu0 %6154
        %6160 = vrot.lane.b32.xlu0 %v5728, 20
        %v6161 = vpop.permute.xlu0 %6160
        %6162 = vrot.lane.b32.xlu0 %v5733, 20
        %v6163 = vpop.permute.xlu0 %6162
        %6168 = vrot.lane.b32.xlu0 %v5923, 24
        %v6169 = vpop.permute.xlu0 %6168
        %6170 = vrot.lane.b32.xlu0 %v5928, 24
        %v6171 = vpop.permute.xlu0 %6170
        %6176 = vrot.lane.b32.xlu0 %v6118, 28
        %v6177 = vpop.permute.xlu0 %6176
        %6178 = vrot.lane.b32.xlu0 %v6123, 28
        %v6179 = vpop.permute.xlu0 %6178
        %v6182 = vsel %vm1356, %v4753, %v6129
        %v6183 = vsel %vm1356, %v4758, %v6131
        %v6184 = vsel %vm4174, %v6182, %v6137
        %v6185 = vsel %vm4174, %v6183, %v6139
        %v6186 = vsel %vm4176, %v6184, %v6145
        %v6187 = vsel %vm4176, %v6185, %v6147
        %v6188 = vsel %vm1437, %v6186, %v6153
        %v6189 = vsel %vm1437, %v6187, %v6155
        %v6190 = vsel %vm4179, %v6188, %v6161
        %v6191 = vsel %vm4179, %v6189, %v6163
        %v6192 = vsel %vm4181, %v6190, %v6169
        %v6193 = vsel %vm4181, %v6191, %v6171
        %v6194 = vsel %vm4183, %v6192, %v6177
        %v6195 = vsel %vm4183, %v6193, %v6179
        %6196 = vrot.lane.b32.xlu0 %v4397, 64
        %v6197 = vpop.permute.xlu0 %6196
        %v6199 = vsel %vm1356, %v4561, 0
        %v6202 = vsel %vm1356, %v4566, 0
        %v6204 = vsel %vm1356, %v6197, 0
        %6206 = vmatprep.subr.mxu0 0.0
        %6207 = vmatpush1.xpose.msra.mxu0 %v6204
        %6208 = vmatprep.subr.mxu0 0.0
        %6209 = vmatpush1.xpose.msra.mxu0 0.0
        %6210 = vmatprep.subr.mxu0 0.0
        %6211 = vmatpush1.xpose.msra.mxu0 0.0
        %6212 = vmatprep.subr.mxu0 0.0
        %6213 = vmatpush1.xpose.msra.mxu0 0.0
        %6214 = vmatprep.subr.mxu0 0.0
        %6215 = vmatpush1.xpose.msra.mxu0 0.0
        %6216 = vmatprep.subr.mxu0 0.0
        %6217 = vmatpush1.xpose.msra.mxu0 0.0
        %6218 = vmatprep.subr.mxu0 0.0
        %6219 = vmatpush1.xpose.msra.mxu0 0.0
        %6220 = vmatprep.subr.mxu0 0.0
        %6221 = vmatpush1.xpose.msra.mxu0 0.0
        %6222 = vmatprep.subr.mxu0 0.0
        %6223 = vmatpush1.xpose.msra.mxu0 0.0
        %6224 = vmatprep.subr.mxu0 0.0
        %6225 = vmatpush1.xpose.msra.mxu0 0.0
        %6226 = vmatprep.subr.mxu0 0.0
        %6227 = vmatpush1.xpose.msra.mxu0 0.0
        %6228 = vmatprep.subr.mxu0 0.0
        %6229 = vmatpush1.xpose.msra.mxu0 0.0
        %6230 = vmatprep.subr.mxu0 0.0
        %6231 = vmatpush1.xpose.msra.mxu0 0.0
        %6232 = vmatprep.subr.mxu0 0.0
        %6233 = vmatpush1.xpose.msra.mxu0 0.0
        %6234 = vmatprep.subr.mxu0 0.0
        %6235 = vmatpush1.xpose.msra.mxu0 0.0
        %6236 = vmatprep.subr.mxu0 0.0
        %6237 = vmatpush1.xpose.msra.mxu0 0.0
        %6238 = vmatprep.subr.mxu0 0.0
        %6239 = vmatpush1.xpose.msra.mxu0 0.0
        %6240 = vmatprep.subr.mxu0 0.0
        %6241 = vmatpush1.xpose.msra.mxu0 0.0
        %6242 = vmatprep.subr.mxu0 0.0
        %6243 = vmatpush1.xpose.msra.mxu0 0.0
        %6244 = vmatprep.subr.mxu0 0.0
        %6245 = vmatpush1.xpose.msra.mxu0 0.0
        %6246 = vmatprep.subr.mxu0 0.0
        %6247 = vmatpush1.xpose.msra.mxu0 0.0
        %6248 = vmatprep.subr.mxu0 0.0
        %6249 = vmatpush1.xpose.msra.mxu0 0.0
        %6250 = vmatprep.subr.mxu0 0.0
        %6251 = vmatpush1.xpose.msra.mxu0 0.0
        %6252 = vmatprep.subr.mxu0 0.0
        %6253 = vmatpush1.xpose.msra.mxu0 0.0
        %6254 = vmatprep.subr.mxu0 0.0
        %6255 = vmatpush1.xpose.msra.mxu0 0.0
        %6256 = vmatprep.subr.mxu0 0.0
        %6257 = vmatpush1.xpose.msra.mxu0 0.0
        %6258 = vmatprep.subr.mxu0 0.0
        %6259 = vmatpush1.xpose.msra.mxu0 0.0
        %6260 = vmatprep.subr.mxu0 0.0
        %6261 = vmatpush1.xpose.msra.mxu0 0.0
        %6262 = vmatprep.subr.mxu0 0.0
        %6263 = vmatpush1.xpose.msra.mxu0 0.0
        %6264 = vmatprep.subr.mxu0 0.0
        %6265 = vmatpush1.xpose.msra.mxu0 0.0
        %6266 = vmatprep.subr.mxu0 0.0
        %6267 = vmatpush1.xpose.msra.mxu0 0.0
        %6268 = vmatprep.subr.mxu0 0.0
        %6269 = vmatpush1.xpose.msra.mxu0 0.0
        %6270 = vmatprep.mubr.f32.mxu0 0.0
        %6271 = vmatmul.mubr.f32.gmra.mrb[0].mxu0 %v6199
        %v6272 = vpop.f32.mrb[0].mxu0
        %v6273 = vadd.f32 0.0, %v6272
        %v6274 = vpop.f32.mrb[0].mxu0
        %6275 = vmatprep.mubr.f32.mxu0 0.0
        %6276 = vmatmul.mubr.f32.gmra.mrb[0].mxu0 %v6202
        %v6277 = vpop.f32.mrb[0].mxu0
        %v6278 = vadd.f32 0.0, %v6277
        %v6279 = vpop.f32.mrb[0].mxu0
        %6280 = vdwg.mxu0
        %v6281 = vmul.f32 %v6273, 0.5
        %v6282 = vmul.f32 %v6278, 0.5
        %v6283 = vsel %vm4174, %v6281, -inf
        %6284 = vmax.xlane.f32.xlu0 %v6283
        %v6285 = vpop.xlane.xlu0 %6284
        %v6286 = vsel %vm4174, %v6282, -inf
        %6287 = vmax.xlane.f32.xlu0 %v6286
        %v6288 = vpop.xlane.xlu0 %6287
        %v6289 = vsub.f32 %v6281, %v6285
        %v6290 = vsub.f32 %v6282, %v6288
        %v6291 = vmul.f32 %v6289, 1.442695
        %v6292 = vpow.pop %v6291
        %v6293 = vmul.f32 %v6290, 1.442695
        %v6294 = vpow.pop %v6293
        %v6295 = vsel %vm4174, %v6292, 0.0
        %6296 = vadd.xlane.f32.xlu0 %v6295
        %v6297 = vpop.xlane.xlu0 %6296
        %v6298 = vsel %vm4174, %v6294, 0.0
        %6299 = vadd.xlane.f32.xlu0 %v6298
        %v6300 = vpop.xlane.xlu0 %6299
        %v6301 = vrcp.pop %v6297
        %v6302 = vrcp.pop %v6300
        %v6303 = vmul.f32 %v6292, %v6301
        %v6304 = vmul.f32 %v6294, %v6302
        %6305 = vrot.lane.b32.xlu0 %v4397, 32
        %v6306 = vpop.permute.xlu0 %6305
        %v6309 = vsel %vm4174, %v6303, 0
        %v6312 = vsel %vm4174, %v6304, 0
        %6314 = vmatprep.subr.mxu0 0.0
        %6315 = vmatpush1.msra.mxu0 %v6306
        %6316 = vmatprep.subr.mxu0 0.0
        %6317 = vmatpush1.msra.mxu0 0.0
        %6318 = vmatprep.subr.mxu0 0.0
        %6319 = vmatpush1.msra.mxu0 0.0
        %6320 = vmatprep.subr.mxu0 0.0
        %6321 = vmatpush1.msra.mxu0 0.0
        %6322 = vmatprep.subr.mxu0 0.0
        %6323 = vmatpush1.msra.mxu0 0.0
        %6324 = vmatprep.subr.mxu0 0.0
        %6325 = vmatpush1.msra.mxu0 0.0
        %6326 = vmatprep.subr.mxu0 0.0
        %6327 = vmatpush1.msra.mxu0 0.0
        %6328 = vmatprep.subr.mxu0 0.0
        %6329 = vmatpush1.msra.mxu0 0.0
        %6330 = vmatprep.subr.mxu0 0.0
        %6331 = vmatpush1.msra.mxu0 0.0
        %6332 = vmatprep.subr.mxu0 0.0
        %6333 = vmatpush1.msra.mxu0 0.0
        %6334 = vmatprep.subr.mxu0 0.0
        %6335 = vmatpush1.msra.mxu0 0.0
        %6336 = vmatprep.subr.mxu0 0.0
        %6337 = vmatpush1.msra.mxu0 0.0
        %6338 = vmatprep.subr.mxu0 0.0
        %6339 = vmatpush1.msra.mxu0 0.0
        %6340 = vmatprep.subr.mxu0 0.0
        %6341 = vmatpush1.msra.mxu0 0.0
        %6342 = vmatprep.subr.mxu0 0.0
        %6343 = vmatpush1.msra.mxu0 0.0
        %6344 = vmatprep.subr.mxu0 0.0
        %6345 = vmatpush1.msra.mxu0 0.0
        %6346 = vmatprep.subr.mxu0 0.0
        %6347 = vmatpush1.msra.mxu0 0.0
        %6348 = vmatprep.subr.mxu0 0.0
        %6349 = vmatpush1.msra.mxu0 0.0
        %6350 = vmatprep.subr.mxu0 0.0
        %6351 = vmatpush1.msra.mxu0 0.0
        %6352 = vmatprep.subr.mxu0 0.0
        %6353 = vmatpush1.msra.mxu0 0.0
        %6354 = vmatprep.subr.mxu0 0.0
        %6355 = vmatpush1.msra.mxu0 0.0
        %6356 = vmatprep.subr.mxu0 0.0
        %6357 = vmatpush1.msra.mxu0 0.0
        %6358 = vmatprep.subr.mxu0 0.0
        %6359 = vmatpush1.msra.mxu0 0.0
        %6360 = vmatprep.subr.mxu0 0.0
        %6361 = vmatpush1.msra.mxu0 0.0
        %6362 = vmatprep.subr.mxu0 0.0
        %6363 = vmatpush1.msra.mxu0 0.0
        %6364 = vmatprep.subr.mxu0 0.0
        %6365 = vmatpush1.msra.mxu0 0.0
        %6366 = vmatprep.subr.mxu0 0.0
        %6367 = vmatpush1.msra.mxu0 0.0
        %6368 = vmatprep.subr.mxu0 0.0
        %6369 = vmatpush1.msra.mxu0 0.0
        %6370 = vmatprep.subr.mxu0 0.0
        %6371 = vmatpush1.msra.mxu0 0.0
        %6372 = vmatprep.subr.mxu0 0.0
        %6373 = vmatpush1.msra.mxu0 0.0
        %6374 = vmatprep.subr.mxu0 0.0
        %6375 = vmatpush1.msra.mxu0 0.0
        %6376 = vmatprep.subr.mxu0 0.0
        %6377 = vmatpush1.msra.mxu0 0.0
        %6378 = vmatprep.mubr.f32.mxu0 0.0
        %6379 = vmatmul.mubr.f32.gmra.mrb[0].mxu0 %v6309
        %v6380 = vpop.f32.mrb[0].mxu0
        %v6381 = vadd.f32 0.0, %v6380
        %v6382 = vpop.f32.mrb[0].mxu0
        %6383 = vmatprep.mubr.f32.mxu0 0.0
        %6384 = vmatmul.mubr.f32.gmra.mrb[0].mxu0 %v6312
        %v6385 = vpop.f32.mrb[0].mxu0
        %v6386 = vadd.f32 0.0, %v6385
        %v6387 = vpop.f32.mrb[0].mxu0
        %6388 = vdwg.mxu0
        %6389 = vrot.lane.b32.xlu0 %v4561, 124
        %v6390 = vpop.permute.xlu0 %6389
        %6391 = vrot.lane.b32.xlu0 %v4566, 124
        %v6392 = vpop.permute.xlu0 %6391
        %6393 = vrot.lane.b32.xlu0 %v4397, 60
        %v6394 = vpop.permute.xlu0 %6393
        %v6395 = vsel %vm1356, %v6390, 0
        %v6397 = vsel %vm1356, %v6392, 0
        %v6399 = vsel %vm1356, %v6394, 0
        %6401 = vmatprep.subr.mxu0 0.0
        %6402 = vmatpush1.xpose.msra.mxu0 %v6399
        %6403 = vmatprep.subr.mxu0 0.0
        %6404 = vmatpush1.xpose.msra.mxu0 0.0
        %6405 = vmatprep.subr.mxu0 0.0
        %6406 = vmatpush1.xpose.msra.mxu0 0.0
        %6407 = vmatprep.subr.mxu0 0.0
        %6408 = vmatpush1.xpose.msra.mxu0 0.0
        %6409 = vmatprep.subr.mxu0 0.0
        %6410 = vmatpush1.xpose.msra.mxu0 0.0
        %6411 = vmatprep.subr.mxu0 0.0
        %6412 = vmatpush1.xpose.msra.mxu0 0.0
        %6413 = vmatprep.subr.mxu0 0.0
        %6414 = vmatpush1.xpose.msra.mxu0 0.0
        %6415 = vmatprep.subr.mxu0 0.0
        %6416 = vmatpush1.xpose.msra.mxu0 0.0
        %6417 = vmatprep.subr.mxu0 0.0
        %6418 = vmatpush1.xpose.msra.mxu0 0.0
        %6419 = vmatprep.subr.mxu0 0.0
        %6420 = vmatpush1.xpose.msra.mxu0 0.0
        %6421 = vmatprep.subr.mxu0 0.0
        %6422 = vmatpush1.xpose.msra.mxu0 0.0
        %6423 = vmatprep.subr.mxu0 0.0
        %6424 = vmatpush1.xpose.msra.mxu0 0.0
        %6425 = vmatprep.subr.mxu0 0.0
        %6426 = vmatpush1.xpose.msra.mxu0 0.0
        %6427 = vmatprep.subr.mxu0 0.0
        %6428 = vmatpush1.xpose.msra.mxu0 0.0
        %6429 = vmatprep.subr.mxu0 0.0
        %6430 = vmatpush1.xpose.msra.mxu0 0.0
        %6431 = vmatprep.subr.mxu0 0.0
        %6432 = vmatpush1.xpose.msra.mxu0 0.0
        %6433 = vmatprep.subr.mxu0 0.0
        %6434 = vmatpush1.xpose.msra.mxu0 0.0
        %6435 = vmatprep.subr.mxu0 0.0
        %6436 = vmatpush1.xpose.msra.mxu0 0.0
        %6437 = vmatprep.subr.mxu0 0.0
        %6438 = vmatpush1.xpose.msra.mxu0 0.0
        %6439 = vmatprep.subr.mxu0 0.0
        %6440 = vmatpush1.xpose.msra.mxu0 0.0
        %6441 = vmatprep.subr.mxu0 0.0
        %6442 = vmatpush1.xpose.msra.mxu0 0.0
        %6443 = vmatprep.subr.mxu0 0.0
        %6444 = vmatpush1.xpose.msra.mxu0 0.0
        %6445 = vmatprep.subr.mxu0 0.0
        %6446 = vmatpush1.xpose.msra.mxu0 0.0
        %6447 = vmatprep.subr.mxu0 0.0
        %6448 = vmatpush1.xpose.msra.mxu0 0.0
        %6449 = vmatprep.subr.mxu0 0.0
        %6450 = vmatpush1.xpose.msra.mxu0 0.0
        %6451 = vmatprep.subr.mxu0 0.0
        %6452 = vmatpush1.xpose.msra.mxu0 0.0
        %6453 = vmatprep.subr.mxu0 0.0
        %6454 = vmatpush1.xpose.msra.mxu0 0.0
        %6455 = vmatprep.subr.mxu0 0.0
        %6456 = vmatpush1.xpose.msra.mxu0 0.0
        %6457 = vmatprep.subr.mxu0 0.0
        %6458 = vmatpush1.xpose.msra.mxu0 0.0
        %6459 = vmatprep.subr.mxu0 0.0
        %6460 = vmatpush1.xpose.msra.mxu0 0.0
        %6461 = vmatprep.subr.mxu0 0.0
        %6462 = vmatpush1.xpose.msra.mxu0 0.0
        %6463 = vmatprep.subr.mxu0 0.0
        %6464 = vmatpush1.xpose.msra.mxu0 0.0
        %6465 = vmatprep.mubr.f32.mxu0 0.0
        %6466 = vmatmul.mubr.f32.gmra.mrb[0].mxu0 %v6395
        %v6467 = vpop.f32.mrb[0].mxu0
        %v6468 = vadd.f32 0.0, %v6467
        %v6469 = vpop.f32.mrb[0].mxu0
        %6470 = vmatprep.mubr.f32.mxu0 0.0
        %6471 = vmatmul.mubr.f32.gmra.mrb[0].mxu0 %v6397
        %v6472 = vpop.f32.mrb[0].mxu0
        %v6473 = vadd.f32 0.0, %v6472
        %v6474 = vpop.f32.mrb[0].mxu0
        %6475 = vdwg.mxu0
        %v6476 = vmul.f32 %v6468, 0.5
        %v6477 = vmul.f32 %v6473, 0.5
        %v6478 = vsel %vm4174, %v6476, -inf
        %6479 = vmax.xlane.f32.xlu0 %v6478
        %v6480 = vpop.xlane.xlu0 %6479
        %v6481 = vsel %vm4174, %v6477, -inf
        %6482 = vmax.xlane.f32.xlu0 %v6481
        %v6483 = vpop.xlane.xlu0 %6482
        %v6484 = vsub.f32 %v6476, %v6480
        %v6485 = vsub.f32 %v6477, %v6483
        %v6486 = vmul.f32 %v6484, 1.442695
        %v6487 = vpow.pop %v6486
        %v6488 = vmul.f32 %v6485, 1.442695
        %v6489 = vpow.pop %v6488
        %v6490 = vsel %vm4174, %v6487, 0.0
        %6491 = vadd.xlane.f32.xlu0 %v6490
        %v6492 = vpop.xlane.xlu0 %6491
        %v6493 = vsel %vm4174, %v6489, 0.0
        %6494 = vadd.xlane.f32.xlu0 %v6493
        %v6495 = vpop.xlane.xlu0 %6494
        %v6496 = vrcp.pop %v6492
        %v6497 = vrcp.pop %v6495
        %v6498 = vmul.f32 %v6487, %v6496
        %v6499 = vmul.f32 %v6489, %v6497
        %6500 = vrot.lane.b32.xlu0 %v4397, 28
        %v6501 = vpop.permute.xlu0 %6500
        %v6504 = vsel %vm4174, %v6498, 0
        %v6507 = vsel %vm4174, %v6499, 0
        %6509 = vmatprep.subr.mxu0 0.0
        %6510 = vmatpush1.msra.mxu0 %v6501
        %6511 = vmatprep.subr.mxu0 0.0
        %6512 = vmatpush1.msra.mxu0 0.0
        %6513 = vmatprep.subr.mxu0 0.0
        %6514 = vmatpush1.msra.mxu0 0.0
        %6515 = vmatprep.subr.mxu0 0.0
        %6516 = vmatpush1.msra.mxu0 0.0
        %6517 = vmatprep.subr.mxu0 0.0
        %6518 = vmatpush1.msra.mxu0 0.0
        %6519 = vmatprep.subr.mxu0 0.0
        %6520 = vmatpush1.msra.mxu0 0.0
        %6521 = vmatprep.subr.mxu0 0.0
        %6522 = vmatpush1.msra.mxu0 0.0
        %6523 = vmatprep.subr.mxu0 0.0
        %6524 = vmatpush1.msra.mxu0 0.0
        %6525 = vmatprep.subr.mxu0 0.0
        %6526 = vmatpush1.msra.mxu0 0.0
        %6527 = vmatprep.subr.mxu0 0.0
        %6528 = vmatpush1.msra.mxu0 0.0
        %6529 = vmatprep.subr.mxu0 0.0
        %6530 = vmatpush1.msra.mxu0 0.0
        %6531 = vmatprep.subr.mxu0 0.0
        %6532 = vmatpush1.msra.mxu0 0.0
        %6533 = vmatprep.subr.mxu0 0.0
        %6534 = vmatpush1.msra.mxu0 0.0
        %6535 = vmatprep.subr.mxu0 0.0
        %6536 = vmatpush1.msra.mxu0 0.0
        %6537 = vmatprep.subr.mxu0 0.0
        %6538 = vmatpush1.msra.mxu0 0.0
        %6539 = vmatprep.subr.mxu0 0.0
        %6540 = vmatpush1.msra.mxu0 0.0
        %6541 = vmatprep.subr.mxu0 0.0
        %6542 = vmatpush1.msra.mxu0 0.0
        %6543 = vmatprep.subr.mxu0 0.0
        %6544 = vmatpush1.msra.mxu0 0.0
        %6545 = vmatprep.subr.mxu0 0.0
        %6546 = vmatpush1.msra.mxu0 0.0
        %6547 = vmatprep.subr.mxu0 0.0
        %6548 = vmatpush1.msra.mxu0 0.0
        %6549 = vmatprep.subr.mxu0 0.0
        %6550 = vmatpush1.msra.mxu0 0.0
        %6551 = vmatprep.subr.mxu0 0.0
        %6552 = vmatpush1.msra.mxu0 0.0
        %6553 = vmatprep.subr.mxu0 0.0
        %6554 = vmatpush1.msra.mxu0 0.0
        %6555 = vmatprep.subr.mxu0 0.0
        %6556 = vmatpush1.msra.mxu0 0.0
        %6557 = vmatprep.subr.mxu0 0.0
        %6558 = vmatpush1.msra.mxu0 0.0
        %6559 = vmatprep.subr.mxu0 0.0
        %6560 = vmatpush1.msra.mxu0 0.0
        %6561 = vmatprep.subr.mxu0 0.0
        %6562 = vmatpush1.msra.mxu0 0.0
        %6563 = vmatprep.subr.mxu0 0.0
        %6564 = vmatpush1.msra.mxu0 0.0
        %6565 = vmatprep.subr.mxu0 0.0
        %6566 = vmatpush1.msra.mxu0 0.0
        %6567 = vmatprep.subr.mxu0 0.0
        %6568 = vmatpush1.msra.mxu0 0.0
        %6569 = vmatprep.subr.mxu0 0.0
        %6570 = vmatpush1.msra.mxu0 0.0
        %6571 = vmatprep.subr.mxu0 0.0
        %6572 = vmatpush1.msra.mxu0 0.0
        %6573 = vmatprep.mubr.f32.mxu0 0.0
        %6574 = vmatmul.mubr.f32.gmra.mrb[0].mxu0 %v6504
        %v6575 = vpop.f32.mrb[0].mxu0
        %v6576 = vadd.f32 0.0, %v6575
        %v6577 = vpop.f32.mrb[0].mxu0
        %6578 = vmatprep.mubr.f32.mxu0 0.0
        %6579 = vmatmul.mubr.f32.gmra.mrb[0].mxu0 %v6507
        %v6580 = vpop.f32.mrb[0].mxu0
        %v6581 = vadd.f32 0.0, %v6580
        %v6582 = vpop.f32.mrb[0].mxu0
        %6583 = vdwg.mxu0
        %6584 = vrot.lane.b32.xlu0 %v4561, 120
        %v6585 = vpop.permute.xlu0 %6584
        %6586 = vrot.lane.b32.xlu0 %v4566, 120
        %v6587 = vpop.permute.xlu0 %6586
        %6588 = vrot.lane.b32.xlu0 %v4397, 56
        %v6589 = vpop.permute.xlu0 %6588
        %v6590 = vsel %vm1356, %v6585, 0
        %v6592 = vsel %vm1356, %v6587, 0
        %v6594 = vsel %vm1356, %v6589, 0
        %6596 = vmatprep.subr.mxu0 0.0
        %6597 = vmatpush1.xpose.msra.mxu0 %v6594
        %6598 = vmatprep.subr.mxu0 0.0
        %6599 = vmatpush1.xpose.msra.mxu0 0.0
        %6600 = vmatprep.subr.mxu0 0.0
        %6601 = vmatpush1.xpose.msra.mxu0 0.0
        %6602 = vmatprep.subr.mxu0 0.0
        %6603 = vmatpush1.xpose.msra.mxu0 0.0
        %6604 = vmatprep.subr.mxu0 0.0
        %6605 = vmatpush1.xpose.msra.mxu0 0.0
        %6606 = vmatprep.subr.mxu0 0.0
        %6607 = vmatpush1.xpose.msra.mxu0 0.0
        %6608 = vmatprep.subr.mxu0 0.0
        %6609 = vmatpush1.xpose.msra.mxu0 0.0
        %6610 = vmatprep.subr.mxu0 0.0
        %6611 = vmatpush1.xpose.msra.mxu0 0.0
        %6612 = vmatprep.subr.mxu0 0.0
        %6613 = vmatpush1.xpose.msra.mxu0 0.0
        %6614 = vmatprep.subr.mxu0 0.0
        %6615 = vmatpush1.xpose.msra.mxu0 0.0
        %6616 = vmatprep.subr.mxu0 0.0
        %6617 = vmatpush1.xpose.msra.mxu0 0.0
        %6618 = vmatprep.subr.mxu0 0.0
        %6619 = vmatpush1.xpose.msra.mxu0 0.0
        %6620 = vmatprep.subr.mxu0 0.0
        %6621 = vmatpush1.xpose.msra.mxu0 0.0
        %6622 = vmatprep.subr.mxu0 0.0
        %6623 = vmatpush1.xpose.msra.mxu0 0.0
        %6624 = vmatprep.subr.mxu0 0.0
        %6625 = vmatpush1.xpose.msra.mxu0 0.0
        %6626 = vmatprep.subr.mxu0 0.0
        %6627 = vmatpush1.xpose.msra.mxu0 0.0
        %6628 = vmatprep.subr.mxu0 0.0
        %6629 = vmatpush1.xpose.msra.mxu0 0.0
        %6630 = vmatprep.subr.mxu0 0.0
        %6631 = vmatpush1.xpose.msra.mxu0 0.0
        %6632 = vmatprep.subr.mxu0 0.0
        %6633 = vmatpush1.xpose.msra.mxu0 0.0
        %6634 = vmatprep.subr.mxu0 0.0
        %6635 = vmatpush1.xpose.msra.mxu0 0.0
        %6636 = vmatprep.subr.mxu0 0.0
        %6637 = vmatpush1.xpose.msra.mxu0 0.0
        %6638 = vmatprep.subr.mxu0 0.0
        %6639 = vmatpush1.xpose.msra.mxu0 0.0
        %6640 = vmatprep.subr.mxu0 0.0
        %6641 = vmatpush1.xpose.msra.mxu0 0.0
        %6642 = vmatprep.subr.mxu0 0.0
        %6643 = vmatpush1.xpose.msra.mxu0 0.0
        %6644 = vmatprep.subr.mxu0 0.0
        %6645 = vmatpush1.xpose.msra.mxu0 0.0
        %6646 = vmatprep.subr.mxu0 0.0
        %6647 = vmatpush1.xpose.msra.mxu0 0.0
        %6648 = vmatprep.subr.mxu0 0.0
        %6649 = vmatpush1.xpose.msra.mxu0 0.0
        %6650 = vmatprep.subr.mxu0 0.0
        %6651 = vmatpush1.xpose.msra.mxu0 0.0
        %6652 = vmatprep.subr.mxu0 0.0
        %6653 = vmatpush1.xpose.msra.mxu0 0.0
        %6654 = vmatprep.subr.mxu0 0.0
        %6655 = vmatpush1.xpose.msra.mxu0 0.0
        %6656 = vmatprep.subr.mxu0 0.0
        %6657 = vmatpush1.xpose.msra.mxu0 0.0
        %6658 = vmatprep.subr.mxu0 0.0
        %6659 = vmatpush1.xpose.msra.mxu0 0.0
        %6660 = vmatprep.mubr.f32.mxu0 0.0
        %6661 = vmatmul.mubr.f32.gmra.mrb[0].mxu0 %v6590
        %v6662 = vpop.f32.mrb[0].mxu0
        %v6663 = vadd.f32 0.0, %v6662
        %v6664 = vpop.f32.mrb[0].mxu0
        %6665 = vmatprep.mubr.f32.mxu0 0.0
        %6666 = vmatmul.mubr.f32.gmra.mrb[0].mxu0 %v6592
        %v6667 = vpop.f32.mrb[0].mxu0
        %v6668 = vadd.f32 0.0, %v6667
        %v6669 = vpop.f32.mrb[0].mxu0
        %6670 = vdwg.mxu0
        %v6671 = vmul.f32 %v6663, 0.5
        %v6672 = vmul.f32 %v6668, 0.5
        %v6673 = vsel %vm4174, %v6671, -inf
        %6674 = vmax.xlane.f32.xlu0 %v6673
        %v6675 = vpop.xlane.xlu0 %6674
        %v6676 = vsel %vm4174, %v6672, -inf
        %6677 = vmax.xlane.f32.xlu0 %v6676
        %v6678 = vpop.xlane.xlu0 %6677
        %v6679 = vsub.f32 %v6671, %v6675
        %v6680 = vsub.f32 %v6672, %v6678
        %v6681 = vmul.f32 %v6679, 1.442695
        %v6682 = vpow.pop %v6681
        %v6683 = vmul.f32 %v6680, 1.442695
        %v6684 = vpow.pop %v6683
        %v6685 = vsel %vm4174, %v6682, 0.0
        %6686 = vadd.xlane.f32.xlu0 %v6685
        %v6687 = vpop.xlane.xlu0 %6686
        %v6688 = vsel %vm4174, %v6684, 0.0
        %6689 = vadd.xlane.f32.xlu0 %v6688
        %v6690 = vpop.xlane.xlu0 %6689
        %v6691 = vrcp.pop %v6687
        %v6692 = vrcp.pop %v6690
        %v6693 = vmul.f32 %v6682, %v6691
        %v6694 = vmul.f32 %v6684, %v6692
        %6695 = vrot.lane.b32.xlu0 %v4397, 24
        %v6696 = vpop.permute.xlu0 %6695
        %v6699 = vsel %vm4174, %v6693, 0
        %v6702 = vsel %vm4174, %v6694, 0
        %6704 = vmatprep.subr.mxu0 0.0
        %6705 = vmatpush1.msra.mxu0 %v6696
        %6706 = vmatprep.subr.mxu0 0.0
        %6707 = vmatpush1.msra.mxu0 0.0
        %6708 = vmatprep.subr.mxu0 0.0
        %6709 = vmatpush1.msra.mxu0 0.0
        %6710 = vmatprep.subr.mxu0 0.0
        %6711 = vmatpush1.msra.mxu0 0.0
        %6712 = vmatprep.subr.mxu0 0.0
        %6713 = vmatpush1.msra.mxu0 0.0
        %6714 = vmatprep.subr.mxu0 0.0
        %6715 = vmatpush1.msra.mxu0 0.0
        %6716 = vmatprep.subr.mxu0 0.0
        %6717 = vmatpush1.msra.mxu0 0.0
        %6718 = vmatprep.subr.mxu0 0.0
        %6719 = vmatpush1.msra.mxu0 0.0
        %6720 = vmatprep.subr.mxu0 0.0
        %6721 = vmatpush1.msra.mxu0 0.0
        %6722 = vmatprep.subr.mxu0 0.0
        %6723 = vmatpush1.msra.mxu0 0.0
        %6724 = vmatprep.subr.mxu0 0.0
        %6725 = vmatpush1.msra.mxu0 0.0
        %6726 = vmatprep.subr.mxu0 0.0
        %6727 = vmatpush1.msra.mxu0 0.0
        %6728 = vmatprep.subr.mxu0 0.0
        %6729 = vmatpush1.msra.mxu0 0.0
        %6730 = vmatprep.subr.mxu0 0.0
        %6731 = vmatpush1.msra.mxu0 0.0
        %6732 = vmatprep.subr.mxu0 0.0
        %6733 = vmatpush1.msra.mxu0 0.0
        %6734 = vmatprep.subr.mxu0 0.0
        %6735 = vmatpush1.msra.mxu0 0.0
        %6736 = vmatprep.subr.mxu0 0.0
        %6737 = vmatpush1.msra.mxu0 0.0
        %6738 = vmatprep.subr.mxu0 0.0
        %6739 = vmatpush1.msra.mxu0 0.0
        %6740 = vmatprep.subr.mxu0 0.0
        %6741 = vmatpush1.msra.mxu0 0.0
        %6742 = vmatprep.subr.mxu0 0.0
        %6743 = vmatpush1.msra.mxu0 0.0
        %6744 = vmatprep.subr.mxu0 0.0
        %6745 = vmatpush1.msra.mxu0 0.0
        %6746 = vmatprep.subr.mxu0 0.0
        %6747 = vmatpush1.msra.mxu0 0.0
        %6748 = vmatprep.subr.mxu0 0.0
        %6749 = vmatpush1.msra.mxu0 0.0
        %6750 = vmatprep.subr.mxu0 0.0
        %6751 = vmatpush1.msra.mxu0 0.0
        %6752 = vmatprep.subr.mxu0 0.0
        %6753 = vmatpush1.msra.mxu0 0.0
        %6754 = vmatprep.subr.mxu0 0.0
        %6755 = vmatpush1.msra.mxu0 0.0
        %6756 = vmatprep.subr.mxu0 0.0
        %6757 = vmatpush1.msra.mxu0 0.0
        %6758 = vmatprep.subr.mxu0 0.0
        %6759 = vmatpush1.msra.mxu0 0.0
        %6760 = vmatprep.subr.mxu0 0.0
        %6761 = vmatpush1.msra.mxu0 0.0
        %6762 = vmatprep.subr.mxu0 0.0
        %6763 = vmatpush1.msra.mxu0 0.0
        %6764 = vmatprep.subr.mxu0 0.0
        %6765 = vmatpush1.msra.mxu0 0.0
        %6766 = vmatprep.subr.mxu0 0.0
        %6767 = vmatpush1.msra.mxu0 0.0
        %6768 = vmatprep.mubr.f32.mxu0 0.0
        %6769 = vmatmul.mubr.f32.gmra.mrb[0].mxu0 %v6699
        %v6770 = vpop.f32.mrb[0].mxu0
        %v6771 = vadd.f32 0.0, %v6770
        %v6772 = vpop.f32.mrb[0].mxu0
        %6773 = vmatprep.mubr.f32.mxu0 0.0
        %6774 = vmatmul.mubr.f32.gmra.mrb[0].mxu0 %v6702
        %v6775 = vpop.f32.mrb[0].mxu0
        %v6776 = vadd.f32 0.0, %v6775
        %v6777 = vpop.f32.mrb[0].mxu0
        %6778 = vdwg.mxu0
        %6779 = vrot.lane.b32.xlu0 %v4561, 116
        %v6780 = vpop.permute.xlu0 %6779
        %6781 = vrot.lane.b32.xlu0 %v4566, 116
        %v6782 = vpop.permute.xlu0 %6781
        %6783 = vrot.lane.b32.xlu0 %v4397, 52
        %v6784 = vpop.permute.xlu0 %6783
        %v6785 = vsel %vm1356, %v6780, 0
        %v6787 = vsel %vm1356, %v6782, 0
        %v6789 = vsel %vm1356, %v6784, 0
        %6791 = vmatprep.subr.mxu0 0.0
        %6792 = vmatpush1.xpose.msra.mxu0 %v6789
        %6793 = vmatprep.subr.mxu0 0.0
        %6794 = vmatpush1.xpose.msra.mxu0 0.0
        %6795 = vmatprep.subr.mxu0 0.0
        %6796 = vmatpush1.xpose.msra.mxu0 0.0
        %6797 = vmatprep.subr.mxu0 0.0
        %6798 = vmatpush1.xpose.msra.mxu0 0.0
        %6799 = vmatprep.subr.mxu0 0.0
        %6800 = vmatpush1.xpose.msra.mxu0 0.0
        %6801 = vmatprep.subr.mxu0 0.0
        %6802 = vmatpush1.xpose.msra.mxu0 0.0
        %6803 = vmatprep.subr.mxu0 0.0
        %6804 = vmatpush1.xpose.msra.mxu0 0.0
        %6805 = vmatprep.subr.mxu0 0.0
        %6806 = vmatpush1.xpose.msra.mxu0 0.0
        %6807 = vmatprep.subr.mxu0 0.0
        %6808 = vmatpush1.xpose.msra.mxu0 0.0
        %6809 = vmatprep.subr.mxu0 0.0
        %6810 = vmatpush1.xpose.msra.mxu0 0.0
        %6811 = vmatprep.subr.mxu0 0.0
        %6812 = vmatpush1.xpose.msra.mxu0 0.0
        %6813 = vmatprep.subr.mxu0 0.0
        %6814 = vmatpush1.xpose.msra.mxu0 0.0
        %6815 = vmatprep.subr.mxu0 0.0
        %6816 = vmatpush1.xpose.msra.mxu0 0.0
        %6817 = vmatprep.subr.mxu0 0.0
        %6818 = vmatpush1.xpose.msra.mxu0 0.0
        %6819 = vmatprep.subr.mxu0 0.0
        %6820 = vmatpush1.xpose.msra.mxu0 0.0
        %6821 = vmatprep.subr.mxu0 0.0
        %6822 = vmatpush1.xpose.msra.mxu0 0.0
        %6823 = vmatprep.subr.mxu0 0.0
        %6824 = vmatpush1.xpose.msra.mxu0 0.0
        %6825 = vmatprep.subr.mxu0 0.0
        %6826 = vmatpush1.xpose.msra.mxu0 0.0
        %6827 = vmatprep.subr.mxu0 0.0
        %6828 = vmatpush1.xpose.msra.mxu0 0.0
        %6829 = vmatprep.subr.mxu0 0.0
        %6830 = vmatpush1.xpose.msra.mxu0 0.0
        %6831 = vmatprep.subr.mxu0 0.0
        %6832 = vmatpush1.xpose.msra.mxu0 0.0
        %6833 = vmatprep.subr.mxu0 0.0
        %6834 = vmatpush1.xpose.msra.mxu0 0.0
        %6835 = vmatprep.subr.mxu0 0.0
        %6836 = vmatpush1.xpose.msra.mxu0 0.0
        %6837 = vmatprep.subr.mxu0 0.0
        %6838 = vmatpush1.xpose.msra.mxu0 0.0
        %6839 = vmatprep.subr.mxu0 0.0
        %6840 = vmatpush1.xpose.msra.mxu0 0.0
        %6841 = vmatprep.subr.mxu0 0.0
        %6842 = vmatpush1.xpose.msra.mxu0 0.0
        %6843 = vmatprep.subr.mxu0 0.0
        %6844 = vmatpush1.xpose.msra.mxu0 0.0
        %6845 = vmatprep.subr.mxu0 0.0
        %6846 = vmatpush1.xpose.msra.mxu0 0.0
        %6847 = vmatprep.subr.mxu0 0.0
        %6848 = vmatpush1.xpose.msra.mxu0 0.0
        %6849 = vmatprep.subr.mxu0 0.0
        %6850 = vmatpush1.xpose.msra.mxu0 0.0
        %6851 = vmatprep.subr.mxu0 0.0
        %6852 = vmatpush1.xpose.msra.mxu0 0.0
        %6853 = vmatprep.subr.mxu0 0.0
        %6854 = vmatpush1.xpose.msra.mxu0 0.0
        %6855 = vmatprep.mubr.f32.mxu0 0.0
        %6856 = vmatmul.mubr.f32.gmra.mrb[0].mxu0 %v6785
        %v6857 = vpop.f32.mrb[0].mxu0
        %v6858 = vadd.f32 0.0, %v6857
        %v6859 = vpop.f32.mrb[0].mxu0
        %6860 = vmatprep.mubr.f32.mxu0 0.0
        %6861 = vmatmul.mubr.f32.gmra.mrb[0].mxu0 %v6787
        %v6862 = vpop.f32.mrb[0].mxu0
        %v6863 = vadd.f32 0.0, %v6862
        %v6864 = vpop.f32.mrb[0].mxu0
        %6865 = vdwg.mxu0
        %v6866 = vmul.f32 %v6858, 0.5
        %v6867 = vmul.f32 %v6863, 0.5
        %v6868 = vsel %vm4174, %v6866, -inf
        %6869 = vmax.xlane.f32.xlu0 %v6868
        %v6870 = vpop.xlane.xlu0 %6869
        %v6871 = vsel %vm4174, %v6867, -inf
        %6872 = vmax.xlane.f32.xlu0 %v6871
        %v6873 = vpop.xlane.xlu0 %6872
        %v6874 = vsub.f32 %v6866, %v6870
        %v6875 = vsub.f32 %v6867, %v6873
        %v6876 = vmul.f32 %v6874, 1.442695
        %v6877 = vpow.pop %v6876
        %v6878 = vmul.f32 %v6875, 1.442695
        %v6879 = vpow.pop %v6878
        %v6880 = vsel %vm4174, %v6877, 0.0
        %6881 = vadd.xlane.f32.xlu0 %v6880
        %v6882 = vpop.xlane.xlu0 %6881
        %v6883 = vsel %vm4174, %v6879, 0.0
        %6884 = vadd.xlane.f32.xlu0 %v6883
        %v6885 = vpop.xlane.xlu0 %6884
        %v6886 = vrcp.pop %v6882
        %v6887 = vrcp.pop %v6885
        %v6888 = vmul.f32 %v6877, %v6886
        %v6889 = vmul.f32 %v6879, %v6887
        %6890 = vrot.lane.b32.xlu0 %v4397, 20
        %v6891 = vpop.permute.xlu0 %6890
        %v6894 = vsel %vm4174, %v6888, 0
        %v6897 = vsel %vm4174, %v6889, 0
        %6899 = vmatprep.subr.mxu0 0.0
        %6900 = vmatpush1.msra.mxu0 %v6891
        %6901 = vmatprep.subr.mxu0 0.0
        %6902 = vmatpush1.msra.mxu0 0.0
        %6903 = vmatprep.subr.mxu0 0.0
        %6904 = vmatpush1.msra.mxu0 0.0
        %6905 = vmatprep.subr.mxu0 0.0
        %6906 = vmatpush1.msra.mxu0 0.0
        %6907 = vmatprep.subr.mxu0 0.0
        %6908 = vmatpush1.msra.mxu0 0.0
        %6909 = vmatprep.subr.mxu0 0.0
        %6910 = vmatpush1.msra.mxu0 0.0
        %6911 = vmatprep.subr.mxu0 0.0
        %6912 = vmatpush1.msra.mxu0 0.0
        %6913 = vmatprep.subr.mxu0 0.0
        %6914 = vmatpush1.msra.mxu0 0.0
        %6915 = vmatprep.subr.mxu0 0.0
        %6916 = vmatpush1.msra.mxu0 0.0
        %6917 = vmatprep.subr.mxu0 0.0
        %6918 = vmatpush1.msra.mxu0 0.0
        %6919 = vmatprep.subr.mxu0 0.0
        %6920 = vmatpush1.msra.mxu0 0.0
        %6921 = vmatprep.subr.mxu0 0.0
        %6922 = vmatpush1.msra.mxu0 0.0
        %6923 = vmatprep.subr.mxu0 0.0
        %6924 = vmatpush1.msra.mxu0 0.0
        %6925 = vmatprep.subr.mxu0 0.0
        %6926 = vmatpush1.msra.mxu0 0.0
        %6927 = vmatprep.subr.mxu0 0.0
        %6928 = vmatpush1.msra.mxu0 0.0
        %6929 = vmatprep.subr.mxu0 0.0
        %6930 = vmatpush1.msra.mxu0 0.0
        %6931 = vmatprep.subr.mxu0 0.0
        %6932 = vmatpush1.msra.mxu0 0.0
        %6933 = vmatprep.subr.mxu0 0.0
        %6934 = vmatpush1.msra.mxu0 0.0
        %6935 = vmatprep.subr.mxu0 0.0
        %6936 = vmatpush1.msra.mxu0 0.0
        %6937 = vmatprep.subr.mxu0 0.0
        %6938 = vmatpush1.msra.mxu0 0.0
        %6939 = vmatprep.subr.mxu0 0.0
        %6940 = vmatpush1.msra.mxu0 0.0
        %6941 = vmatprep.subr.mxu0 0.0
        %6942 = vmatpush1.msra.mxu0 0.0
        %6943 = vmatprep.subr.mxu0 0.0
        %6944 = vmatpush1.msra.mxu0 0.0
        %6945 = vmatprep.subr.mxu0 0.0
        %6946 = vmatpush1.msra.mxu0 0.0
        %6947 = vmatprep.subr.mxu0 0.0
        %6948 = vmatpush1.msra.mxu0 0.0
        %6949 = vmatprep.subr.mxu0 0.0
        %6950 = vmatpush1.msra.mxu0 0.0
        %6951 = vmatprep.subr.mxu0 0.0
        %6952 = vmatpush1.msra.mxu0 0.0
        %6953 = vmatprep.subr.mxu0 0.0
        %6954 = vmatpush1.msra.mxu0 0.0
        %6955 = vmatprep.subr.mxu0 0.0
        %6956 = vmatpush1.msra.mxu0 0.0
        %6957 = vmatprep.subr.mxu0 0.0
        %6958 = vmatpush1.msra.mxu0 0.0
        %6959 = vmatprep.subr.mxu0 0.0
        %6960 = vmatpush1.msra.mxu0 0.0
        %6961 = vmatprep.subr.mxu0 0.0
        %6962 = vmatpush1.msra.mxu0 0.0
        %6963 = vmatprep.mubr.f32.mxu0 0.0
        %6964 = vmatmul.mubr.f32.gmra.mrb[0].mxu0 %v6894
        %v6965 = vpop.f32.mrb[0].mxu0
        %v6966 = vadd.f32 0.0, %v6965
        %v6967 = vpop.f32.mrb[0].mxu0
        %6968 = vmatprep.mubr.f32.mxu0 0.0
        %6969 = vmatmul.mubr.f32.gmra.mrb[0].mxu0 %v6897
        %v6970 = vpop.f32.mrb[0].mxu0
        %v6971 = vadd.f32 0.0, %v6970
        %v6972 = vpop.f32.mrb[0].mxu0
        %6973 = vdwg.mxu0
        %6974 = vrot.lane.b32.xlu0 %v4561, 112
        %v6975 = vpop.permute.xlu0 %6974
        %6976 = vrot.lane.b32.xlu0 %v4566, 112
        %v6977 = vpop.permute.xlu0 %6976
        %6978 = vrot.lane.b32.xlu0 %v4397, 48
        %v6979 = vpop.permute.xlu0 %6978
        %v6980 = vsel %vm1356, %v6975, 0
        %v6982 = vsel %vm1356, %v6977, 0
        %v6984 = vsel %vm1356, %v6979, 0
        %6986 = vmatprep.subr.mxu0 0.0
        %6987 = vmatpush1.xpose.msra.mxu0 %v6984
        %6988 = vmatprep.subr.mxu0 0.0
        %6989 = vmatpush1.xpose.msra.mxu0 0.0
        %6990 = vmatprep.subr.mxu0 0.0
        %6991 = vmatpush1.xpose.msra.mxu0 0.0
        %6992 = vmatprep.subr.mxu0 0.0
        %6993 = vmatpush1.xpose.msra.mxu0 0.0
        %6994 = vmatprep.subr.mxu0 0.0
        %6995 = vmatpush1.xpose.msra.mxu0 0.0
        %6996 = vmatprep.subr.mxu0 0.0
        %6997 = vmatpush1.xpose.msra.mxu0 0.0
        %6998 = vmatprep.subr.mxu0 0.0
        %6999 = vmatpush1.xpose.msra.mxu0 0.0
        %7000 = vmatprep.subr.mxu0 0.0
        %7001 = vmatpush1.xpose.msra.mxu0 0.0
        %7002 = vmatprep.subr.mxu0 0.0
        %7003 = vmatpush1.xpose.msra.mxu0 0.0
        %7004 = vmatprep.subr.mxu0 0.0
        %7005 = vmatpush1.xpose.msra.mxu0 0.0
        %7006 = vmatprep.subr.mxu0 0.0
        %7007 = vmatpush1.xpose.msra.mxu0 0.0
        %7008 = vmatprep.subr.mxu0 0.0
        %7009 = vmatpush1.xpose.msra.mxu0 0.0
        %7010 = vmatprep.subr.mxu0 0.0
        %7011 = vmatpush1.xpose.msra.mxu0 0.0
        %7012 = vmatprep.subr.mxu0 0.0
        %7013 = vmatpush1.xpose.msra.mxu0 0.0
        %7014 = vmatprep.subr.mxu0 0.0
        %7015 = vmatpush1.xpose.msra.mxu0 0.0
        %7016 = vmatprep.subr.mxu0 0.0
        %7017 = vmatpush1.xpose.msra.mxu0 0.0
        %7018 = vmatprep.subr.mxu0 0.0
        %7019 = vmatpush1.xpose.msra.mxu0 0.0
        %7020 = vmatprep.subr.mxu0 0.0
        %7021 = vmatpush1.xpose.msra.mxu0 0.0
        %7022 = vmatprep.subr.mxu0 0.0
        %7023 = vmatpush1.xpose.msra.mxu0 0.0
        %7024 = vmatprep.subr.mxu0 0.0
        %7025 = vmatpush1.xpose.msra.mxu0 0.0
        %7026 = vmatprep.subr.mxu0 0.0
        %7027 = vmatpush1.xpose.msra.mxu0 0.0
        %7028 = vmatprep.subr.mxu0 0.0
        %7029 = vmatpush1.xpose.msra.mxu0 0.0
        %7030 = vmatprep.subr.mxu0 0.0
        %7031 = vmatpush1.xpose.msra.mxu0 0.0
        %7032 = vmatprep.subr.mxu0 0.0
        %7033 = vmatpush1.xpose.msra.mxu0 0.0
        %7034 = vmatprep.subr.mxu0 0.0
        %7035 = vmatpush1.xpose.msra.mxu0 0.0
        %7036 = vmatprep.subr.mxu0 0.0
        %7037 = vmatpush1.xpose.msra.mxu0 0.0
        %7038 = vmatprep.subr.mxu0 0.0
        %7039 = vmatpush1.xpose.msra.mxu0 0.0
        %7040 = vmatprep.subr.mxu0 0.0
        %7041 = vmatpush1.xpose.msra.mxu0 0.0
        %7042 = vmatprep.subr.mxu0 0.0
        %7043 = vmatpush1.xpose.msra.mxu0 0.0
        %7044 = vmatprep.subr.mxu0 0.0
        %7045 = vmatpush1.xpose.msra.mxu0 0.0
        %7046 = vmatprep.subr.mxu0 0.0
        %7047 = vmatpush1.xpose.msra.mxu0 0.0
        %7048 = vmatprep.subr.mxu0 0.0
        %7049 = vmatpush1.xpose.msra.mxu0 0.0
        %7050 = vmatprep.mubr.f32.mxu0 0.0
        %7051 = vmatmul.mubr.f32.gmra.mrb[0].mxu0 %v6980
        %v7052 = vpop.f32.mrb[0].mxu0
        %v7053 = vadd.f32 0.0, %v7052
        %v7054 = vpop.f32.mrb[0].mxu0
        %7055 = vmatprep.mubr.f32.mxu0 0.0
        %7056 = vmatmul.mubr.f32.gmra.mrb[0].mxu0 %v6982
        %v7057 = vpop.f32.mrb[0].mxu0
        %v7058 = vadd.f32 0.0, %v7057
        %v7059 = vpop.f32.mrb[0].mxu0
        %7060 = vdwg.mxu0
        %v7061 = vmul.f32 %v7053, 0.5
        %v7062 = vmul.f32 %v7058, 0.5
        %v7063 = vsel %vm4174, %v7061, -inf
        %7064 = vmax.xlane.f32.xlu0 %v7063
        %v7065 = vpop.xlane.xlu0 %7064
        %v7066 = vsel %vm4174, %v7062, -inf
        %7067 = vmax.xlane.f32.xlu0 %v7066
        %v7068 = vpop.xlane.xlu0 %7067
        %v7069 = vsub.f32 %v7061, %v7065
        %v7070 = vsub.f32 %v7062, %v7068
        %v7071 = vmul.f32 %v7069, 1.442695
        %v7072 = vpow.pop %v7071
        %v7073 = vmul.f32 %v7070, 1.442695
        %v7074 = vpow.pop %v7073
        %v7075 = vsel %vm4174, %v7072, 0.0
        %7076 = vadd.xlane.f32.xlu0 %v7075
        %v7077 = vpop.xlane.xlu0 %7076
        %v7078 = vsel %vm4174, %v7074, 0.0
        %7079 = vadd.xlane.f32.xlu0 %v7078
        %v7080 = vpop.xlane.xlu0 %7079
        %v7081 = vrcp.pop %v7077
        %v7082 = vrcp.pop %v7080
        %v7083 = vmul.f32 %v7072, %v7081
        %v7084 = vmul.f32 %v7074, %v7082
        %7085 = vrot.lane.b32.xlu0 %v4397, 16
        %v7086 = vpop.permute.xlu0 %7085
        %v7089 = vsel %vm4174, %v7083, 0
        %v7092 = vsel %vm4174, %v7084, 0
        %7094 = vmatprep.subr.mxu0 0.0
        %7095 = vmatpush1.msra.mxu0 %v7086
        %7096 = vmatprep.subr.mxu0 0.0
        %7097 = vmatpush1.msra.mxu0 0.0
        %7098 = vmatprep.subr.mxu0 0.0
        %7099 = vmatpush1.msra.mxu0 0.0
        %7100 = vmatprep.subr.mxu0 0.0
        %7101 = vmatpush1.msra.mxu0 0.0
        %7102 = vmatprep.subr.mxu0 0.0
        %7103 = vmatpush1.msra.mxu0 0.0
        %7104 = vmatprep.subr.mxu0 0.0
        %7105 = vmatpush1.msra.mxu0 0.0
        %7106 = vmatprep.subr.mxu0 0.0
        %7107 = vmatpush1.msra.mxu0 0.0
        %7108 = vmatprep.subr.mxu0 0.0
        %7109 = vmatpush1.msra.mxu0 0.0
        %7110 = vmatprep.subr.mxu0 0.0
        %7111 = vmatpush1.msra.mxu0 0.0
        %7112 = vmatprep.subr.mxu0 0.0
        %7113 = vmatpush1.msra.mxu0 0.0
        %7114 = vmatprep.subr.mxu0 0.0
        %7115 = vmatpush1.msra.mxu0 0.0
        %7116 = vmatprep.subr.mxu0 0.0
        %7117 = vmatpush1.msra.mxu0 0.0
        %7118 = vmatprep.subr.mxu0 0.0
        %7119 = vmatpush1.msra.mxu0 0.0
        %7120 = vmatprep.subr.mxu0 0.0
        %7121 = vmatpush1.msra.mxu0 0.0
        %7122 = vmatprep.subr.mxu0 0.0
        %7123 = vmatpush1.msra.mxu0 0.0
        %7124 = vmatprep.subr.mxu0 0.0
        %7125 = vmatpush1.msra.mxu0 0.0
        %7126 = vmatprep.subr.mxu0 0.0
        %7127 = vmatpush1.msra.mxu0 0.0
        %7128 = vmatprep.subr.mxu0 0.0
        %7129 = vmatpush1.msra.mxu0 0.0
        %7130 = vmatprep.subr.mxu0 0.0
        %7131 = vmatpush1.msra.mxu0 0.0
        %7132 = vmatprep.subr.mxu0 0.0
        %7133 = vmatpush1.msra.mxu0 0.0
        %7134 = vmatprep.subr.mxu0 0.0
        %7135 = vmatpush1.msra.mxu0 0.0
        %7136 = vmatprep.subr.mxu0 0.0
        %7137 = vmatpush1.msra.mxu0 0.0
        %7138 = vmatprep.subr.mxu0 0.0
        %7139 = vmatpush1.msra.mxu0 0.0
        %7140 = vmatprep.subr.mxu0 0.0
        %7141 = vmatpush1.msra.mxu0 0.0
        %7142 = vmatprep.subr.mxu0 0.0
        %7143 = vmatpush1.msra.mxu0 0.0
        %7144 = vmatprep.subr.mxu0 0.0
        %7145 = vmatpush1.msra.mxu0 0.0
        %7146 = vmatprep.subr.mxu0 0.0
        %7147 = vmatpush1.msra.mxu0 0.0
        %7148 = vmatprep.subr.mxu0 0.0
        %7149 = vmatpush1.msra.mxu0 0.0
        %7150 = vmatprep.subr.mxu0 0.0
        %7151 = vmatpush1.msra.mxu0 0.0
        %7152 = vmatprep.subr.mxu0 0.0
        %7153 = vmatpush1.msra.mxu0 0.0
        %7154 = vmatprep.subr.mxu0 0.0
        %7155 = vmatpush1.msra.mxu0 0.0
        %7156 = vmatprep.subr.mxu0 0.0
        %7157 = vmatpush1.msra.mxu0 0.0
        %7158 = vmatprep.mubr.f32.mxu0 0.0
        %7159 = vmatmul.mubr.f32.gmra.mrb[0].mxu0 %v7089
        %v7160 = vpop.f32.mrb[0].mxu0
        %v7161 = vadd.f32 0.0, %v7160
        %v7162 = vpop.f32.mrb[0].mxu0
        %7163 = vmatprep.mubr.f32.mxu0 0.0
        %7164 = vmatmul.mubr.f32.gmra.mrb[0].mxu0 %v7092
        %v7165 = vpop.f32.mrb[0].mxu0
        %v7166 = vadd.f32 0.0, %v7165
        %v7167 = vpop.f32.mrb[0].mxu0
        %7168 = vdwg.mxu0
        %7169 = vrot.lane.b32.xlu0 %v4561, 108
        %v7170 = vpop.permute.xlu0 %7169
        %7171 = vrot.lane.b32.xlu0 %v4566, 108
        %v7172 = vpop.permute.xlu0 %7171
        %7173 = vrot.lane.b32.xlu0 %v4397, 44
        %v7174 = vpop.permute.xlu0 %7173
        %v7175 = vsel %vm1356, %v7170, 0
        %v7177 = vsel %vm1356, %v7172, 0
        %v7179 = vsel %vm1356, %v7174, 0
        %7181 = vmatprep.subr.mxu0 0.0
        %7182 = vmatpush1.xpose.msra.mxu0 %v7179
        %7183 = vmatprep.subr.mxu0 0.0
        %7184 = vmatpush1.xpose.msra.mxu0 0.0
        %7185 = vmatprep.subr.mxu0 0.0
        %7186 = vmatpush1.xpose.msra.mxu0 0.0
        %7187 = vmatprep.subr.mxu0 0.0
        %7188 = vmatpush1.xpose.msra.mxu0 0.0
        %7189 = vmatprep.subr.mxu0 0.0
        %7190 = vmatpush1.xpose.msra.mxu0 0.0
        %7191 = vmatprep.subr.mxu0 0.0
        %7192 = vmatpush1.xpose.msra.mxu0 0.0
        %7193 = vmatprep.subr.mxu0 0.0
        %7194 = vmatpush1.xpose.msra.mxu0 0.0
        %7195 = vmatprep.subr.mxu0 0.0
        %7196 = vmatpush1.xpose.msra.mxu0 0.0
        %7197 = vmatprep.subr.mxu0 0.0
        %7198 = vmatpush1.xpose.msra.mxu0 0.0
        %7199 = vmatprep.subr.mxu0 0.0
        %7200 = vmatpush1.xpose.msra.mxu0 0.0
        %7201 = vmatprep.subr.mxu0 0.0
        %7202 = vmatpush1.xpose.msra.mxu0 0.0
        %7203 = vmatprep.subr.mxu0 0.0
        %7204 = vmatpush1.xpose.msra.mxu0 0.0
        %7205 = vmatprep.subr.mxu0 0.0
        %7206 = vmatpush1.xpose.msra.mxu0 0.0
        %7207 = vmatprep.subr.mxu0 0.0
        %7208 = vmatpush1.xpose.msra.mxu0 0.0
        %7209 = vmatprep.subr.mxu0 0.0
        %7210 = vmatpush1.xpose.msra.mxu0 0.0
        %7211 = vmatprep.subr.mxu0 0.0
        %7212 = vmatpush1.xpose.msra.mxu0 0.0
        %7213 = vmatprep.subr.mxu0 0.0
        %7214 = vmatpush1.xpose.msra.mxu0 0.0
        %7215 = vmatprep.subr.mxu0 0.0
        %7216 = vmatpush1.xpose.msra.mxu0 0.0
        %7217 = vmatprep.subr.mxu0 0.0
        %7218 = vmatpush1.xpose.msra.mxu0 0.0
        %7219 = vmatprep.subr.mxu0 0.0
        %7220 = vmatpush1.xpose.msra.mxu0 0.0
        %7221 = vmatprep.subr.mxu0 0.0
        %7222 = vmatpush1.xpose.msra.mxu0 0.0
        %7223 = vmatprep.subr.mxu0 0.0
        %7224 = vmatpush1.xpose.msra.mxu0 0.0
        %7225 = vmatprep.subr.mxu0 0.0
        %7226 = vmatpush1.xpose.msra.mxu0 0.0
        %7227 = vmatprep.subr.mxu0 0.0
        %7228 = vmatpush1.xpose.msra.mxu0 0.0
        %7229 = vmatprep.subr.mxu0 0.0
        %7230 = vmatpush1.xpose.msra.mxu0 0.0
        %7231 = vmatprep.subr.mxu0 0.0
        %7232 = vmatpush1.xpose.msra.mxu0 0.0
        %7233 = vmatprep.subr.mxu0 0.0
        %7234 = vmatpush1.xpose.msra.mxu0 0.0
        %7235 = vmatprep.subr.mxu0 0.0
        %7236 = vmatpush1.xpose.msra.mxu0 0.0
        %7237 = vmatprep.subr.mxu0 0.0
        %7238 = vmatpush1.xpose.msra.mxu0 0.0
        %7239 = vmatprep.subr.mxu0 0.0
        %7240 = vmatpush1.xpose.msra.mxu0 0.0
        %7241 = vmatprep.subr.mxu0 0.0
        %7242 = vmatpush1.xpose.msra.mxu0 0.0
        %7243 = vmatprep.subr.mxu0 0.0
        %7244 = vmatpush1.xpose.msra.mxu0 0.0
        %7245 = vmatprep.mubr.f32.mxu0 0.0
        %7246 = vmatmul.mubr.f32.gmra.mrb[0].mxu0 %v7175
        %v7247 = vpop.f32.mrb[0].mxu0
        %v7248 = vadd.f32 0.0, %v7247
        %v7249 = vpop.f32.mrb[0].mxu0
        %7250 = vmatprep.mubr.f32.mxu0 0.0
        %7251 = vmatmul.mubr.f32.gmra.mrb[0].mxu0 %v7177
        %v7252 = vpop.f32.mrb[0].mxu0
        %v7253 = vadd.f32 0.0, %v7252
        %v7254 = vpop.f32.mrb[0].mxu0
        %7255 = vdwg.mxu0
        %v7256 = vmul.f32 %v7248, 0.5
        %v7257 = vmul.f32 %v7253, 0.5
        %v7258 = vsel %vm4174, %v7256, -inf
        %7259 = vmax.xlane.f32.xlu0 %v7258
        %v7260 = vpop.xlane.xlu0 %7259
        %v7261 = vsel %vm4174, %v7257, -inf
        %7262 = vmax.xlane.f32.xlu0 %v7261
        %v7263 = vpop.xlane.xlu0 %7262
        %v7264 = vsub.f32 %v7256, %v7260
        %v7265 = vsub.f32 %v7257, %v7263
        %v7266 = vmul.f32 %v7264, 1.442695
        %v7267 = vpow.pop %v7266
        %v7268 = vmul.f32 %v7265, 1.442695
        %v7269 = vpow.pop %v7268
        %v7270 = vsel %vm4174, %v7267, 0.0
        %7271 = vadd.xlane.f32.xlu0 %v7270
        %v7272 = vpop.xlane.xlu0 %7271
        %v7273 = vsel %vm4174, %v7269, 0.0
        %7274 = vadd.xlane.f32.xlu0 %v7273
        %v7275 = vpop.xlane.xlu0 %7274
        %v7276 = vrcp.pop %v7272
        %v7277 = vrcp.pop %v7275
        %v7278 = vmul.f32 %v7267, %v7276
        %v7279 = vmul.f32 %v7269, %v7277
        %7280 = vrot.lane.b32.xlu0 %v4397, 12
        %v7281 = vpop.permute.xlu0 %7280
        %v7284 = vsel %vm4174, %v7278, 0
        %v7287 = vsel %vm4174, %v7279, 0
        %7289 = vmatprep.subr.mxu0 0.0
        %7290 = vmatpush1.msra.mxu0 %v7281
        %7291 = vmatprep.subr.mxu0 0.0
        %7292 = vmatpush1.msra.mxu0 0.0
        %7293 = vmatprep.subr.mxu0 0.0
        %7294 = vmatpush1.msra.mxu0 0.0
        %7295 = vmatprep.subr.mxu0 0.0
        %7296 = vmatpush1.msra.mxu0 0.0
        %7297 = vmatprep.subr.mxu0 0.0
        %7298 = vmatpush1.msra.mxu0 0.0
        %7299 = vmatprep.subr.mxu0 0.0
        %7300 = vmatpush1.msra.mxu0 0.0
        %7301 = vmatprep.subr.mxu0 0.0
        %7302 = vmatpush1.msra.mxu0 0.0
        %7303 = vmatprep.subr.mxu0 0.0
        %7304 = vmatpush1.msra.mxu0 0.0
        %7305 = vmatprep.subr.mxu0 0.0
        %7306 = vmatpush1.msra.mxu0 0.0
        %7307 = vmatprep.subr.mxu0 0.0
        %7308 = vmatpush1.msra.mxu0 0.0
        %7309 = vmatprep.subr.mxu0 0.0
        %7310 = vmatpush1.msra.mxu0 0.0
        %7311 = vmatprep.subr.mxu0 0.0
        %7312 = vmatpush1.msra.mxu0 0.0
        %7313 = vmatprep.subr.mxu0 0.0
        %7314 = vmatpush1.msra.mxu0 0.0
        %7315 = vmatprep.subr.mxu0 0.0
        %7316 = vmatpush1.msra.mxu0 0.0
        %7317 = vmatprep.subr.mxu0 0.0
        %7318 = vmatpush1.msra.mxu0 0.0
        %7319 = vmatprep.subr.mxu0 0.0
        %7320 = vmatpush1.msra.mxu0 0.0
        %7321 = vmatprep.subr.mxu0 0.0
        %7322 = vmatpush1.msra.mxu0 0.0
        %7323 = vmatprep.subr.mxu0 0.0
        %7324 = vmatpush1.msra.mxu0 0.0
        %7325 = vmatprep.subr.mxu0 0.0
        %7326 = vmatpush1.msra.mxu0 0.0
        %7327 = vmatprep.subr.mxu0 0.0
        %7328 = vmatpush1.msra.mxu0 0.0
        %7329 = vmatprep.subr.mxu0 0.0
        %7330 = vmatpush1.msra.mxu0 0.0
        %7331 = vmatprep.subr.mxu0 0.0
        %7332 = vmatpush1.msra.mxu0 0.0
        %7333 = vmatprep.subr.mxu0 0.0
        %7334 = vmatpush1.msra.mxu0 0.0
        %7335 = vmatprep.subr.mxu0 0.0
        %7336 = vmatpush1.msra.mxu0 0.0
        %7337 = vmatprep.subr.mxu0 0.0
        %7338 = vmatpush1.msra.mxu0 0.0
        %7339 = vmatprep.subr.mxu0 0.0
        %7340 = vmatpush1.msra.mxu0 0.0
        %7341 = vmatprep.subr.mxu0 0.0
        %7342 = vmatpush1.msra.mxu0 0.0
        %7343 = vmatprep.subr.mxu0 0.0
        %7344 = vmatpush1.msra.mxu0 0.0
        %7345 = vmatprep.subr.mxu0 0.0
        %7346 = vmatpush1.msra.mxu0 0.0
        %7347 = vmatprep.subr.mxu0 0.0
        %7348 = vmatpush1.msra.mxu0 0.0
        %7349 = vmatprep.subr.mxu0 0.0
        %7350 = vmatpush1.msra.mxu0 0.0
        %7351 = vmatprep.subr.mxu0 0.0
        %7352 = vmatpush1.msra.mxu0 0.0
        %7353 = vmatprep.mubr.f32.mxu0 0.0
        %7354 = vmatmul.mubr.f32.gmra.mrb[0].mxu0 %v7284
        %v7355 = vpop.f32.mrb[0].mxu0
        %v7356 = vadd.f32 0.0, %v7355
        %v7357 = vpop.f32.mrb[0].mxu0
        %7358 = vmatprep.mubr.f32.mxu0 0.0
        %7359 = vmatmul.mubr.f32.gmra.mrb[0].mxu0 %v7287
        %v7360 = vpop.f32.mrb[0].mxu0
        %v7361 = vadd.f32 0.0, %v7360
        %v7362 = vpop.f32.mrb[0].mxu0
        %7363 = vdwg.mxu0
        %7364 = vrot.lane.b32.xlu0 %v4561, 104
        %v7365 = vpop.permute.xlu0 %7364
        %7366 = vrot.lane.b32.xlu0 %v4566, 104
        %v7367 = vpop.permute.xlu0 %7366
        %7368 = vrot.lane.b32.xlu0 %v4397, 40
        %v7369 = vpop.permute.xlu0 %7368
        %v7370 = vsel %vm1356, %v7365, 0
        %v7372 = vsel %vm1356, %v7367, 0
        %v7374 = vsel %vm1356, %v7369, 0
        %7376 = vmatprep.subr.mxu0 0.0
        %7377 = vmatpush1.xpose.msra.mxu0 %v7374
        %7378 = vmatprep.subr.mxu0 0.0
        %7379 = vmatpush1.xpose.msra.mxu0 0.0
        %7380 = vmatprep.subr.mxu0 0.0
        %7381 = vmatpush1.xpose.msra.mxu0 0.0
        %7382 = vmatprep.subr.mxu0 0.0
        %7383 = vmatpush1.xpose.msra.mxu0 0.0
        %7384 = vmatprep.subr.mxu0 0.0
        %7385 = vmatpush1.xpose.msra.mxu0 0.0
        %7386 = vmatprep.subr.mxu0 0.0
        %7387 = vmatpush1.xpose.msra.mxu0 0.0
        %7388 = vmatprep.subr.mxu0 0.0
        %7389 = vmatpush1.xpose.msra.mxu0 0.0
        %7390 = vmatprep.subr.mxu0 0.0
        %7391 = vmatpush1.xpose.msra.mxu0 0.0
        %7392 = vmatprep.subr.mxu0 0.0
        %7393 = vmatpush1.xpose.msra.mxu0 0.0
        %7394 = vmatprep.subr.mxu0 0.0
        %7395 = vmatpush1.xpose.msra.mxu0 0.0
        %7396 = vmatprep.subr.mxu0 0.0
        %7397 = vmatpush1.xpose.msra.mxu0 0.0
        %7398 = vmatprep.subr.mxu0 0.0
        %7399 = vmatpush1.xpose.msra.mxu0 0.0
        %7400 = vmatprep.subr.mxu0 0.0
        %7401 = vmatpush1.xpose.msra.mxu0 0.0
        %7402 = vmatprep.subr.mxu0 0.0
        %7403 = vmatpush1.xpose.msra.mxu0 0.0
        %7404 = vmatprep.subr.mxu0 0.0
        %7405 = vmatpush1.xpose.msra.mxu0 0.0
        %7406 = vmatprep.subr.mxu0 0.0
        %7407 = vmatpush1.xpose.msra.mxu0 0.0
        %7408 = vmatprep.subr.mxu0 0.0
        %7409 = vmatpush1.xpose.msra.mxu0 0.0
        %7410 = vmatprep.subr.mxu0 0.0
        %7411 = vmatpush1.xpose.msra.mxu0 0.0
        %7412 = vmatprep.subr.mxu0 0.0
        %7413 = vmatpush1.xpose.msra.mxu0 0.0
        %7414 = vmatprep.subr.mxu0 0.0
        %7415 = vmatpush1.xpose.msra.mxu0 0.0
        %7416 = vmatprep.subr.mxu0 0.0
        %7417 = vmatpush1.xpose.msra.mxu0 0.0
        %7418 = vmatprep.subr.mxu0 0.0
        %7419 = vmatpush1.xpose.msra.mxu0 0.0
        %7420 = vmatprep.subr.mxu0 0.0
        %7421 = vmatpush1.xpose.msra.mxu0 0.0
        %7422 = vmatprep.subr.mxu0 0.0
        %7423 = vmatpush1.xpose.msra.mxu0 0.0
        %7424 = vmatprep.subr.mxu0 0.0
        %7425 = vmatpush1.xpose.msra.mxu0 0.0
        %7426 = vmatprep.subr.mxu0 0.0
        %7427 = vmatpush1.xpose.msra.mxu0 0.0
        %7428 = vmatprep.subr.mxu0 0.0
        %7429 = vmatpush1.xpose.msra.mxu0 0.0
        %7430 = vmatprep.subr.mxu0 0.0
        %7431 = vmatpush1.xpose.msra.mxu0 0.0
        %7432 = vmatprep.subr.mxu0 0.0
        %7433 = vmatpush1.xpose.msra.mxu0 0.0
        %7434 = vmatprep.subr.mxu0 0.0
        %7435 = vmatpush1.xpose.msra.mxu0 0.0
        %7436 = vmatprep.subr.mxu0 0.0
        %7437 = vmatpush1.xpose.msra.mxu0 0.0
        %7438 = vmatprep.subr.mxu0 0.0
        %7439 = vmatpush1.xpose.msra.mxu0 0.0
        %7440 = vmatprep.mubr.f32.mxu0 0.0
        %7441 = vmatmul.mubr.f32.gmra.mrb[0].mxu0 %v7370
        %v7442 = vpop.f32.mrb[0].mxu0
        %v7443 = vadd.f32 0.0, %v7442
        %v7444 = vpop.f32.mrb[0].mxu0
        %7445 = vmatprep.mubr.f32.mxu0 0.0
        %7446 = vmatmul.mubr.f32.gmra.mrb[0].mxu0 %v7372
        %v7447 = vpop.f32.mrb[0].mxu0
        %v7448 = vadd.f32 0.0, %v7447
        %v7449 = vpop.f32.mrb[0].mxu0
        %7450 = vdwg.mxu0
        %v7451 = vmul.f32 %v7443, 0.5
        %v7452 = vmul.f32 %v7448, 0.5
        %v7453 = vsel %vm4174, %v7451, -inf
        %7454 = vmax.xlane.f32.xlu0 %v7453
        %v7455 = vpop.xlane.xlu0 %7454
        %v7456 = vsel %vm4174, %v7452, -inf
        %7457 = vmax.xlane.f32.xlu0 %v7456
        %v7458 = vpop.xlane.xlu0 %7457
        %v7459 = vsub.f32 %v7451, %v7455
        %v7460 = vsub.f32 %v7452, %v7458
        %v7461 = vmul.f32 %v7459, 1.442695
        %v7462 = vpow.pop %v7461
        %v7463 = vmul.f32 %v7460, 1.442695
        %v7464 = vpow.pop %v7463
        %v7465 = vsel %vm4174, %v7462, 0.0
        %7466 = vadd.xlane.f32.xlu0 %v7465
        %v7467 = vpop.xlane.xlu0 %7466
        %v7468 = vsel %vm4174, %v7464, 0.0
        %7469 = vadd.xlane.f32.xlu0 %v7468
        %v7470 = vpop.xlane.xlu0 %7469
        %v7471 = vrcp.pop %v7467
        %v7472 = vrcp.pop %v7470
        %v7473 = vmul.f32 %v7462, %v7471
        %v7474 = vmul.f32 %v7464, %v7472
        %7475 = vrot.lane.b32.xlu0 %v4397, 8
        %v7476 = vpop.permute.xlu0 %7475
        %v7479 = vsel %vm4174, %v7473, 0
        %v7482 = vsel %vm4174, %v7474, 0
        %7484 = vmatprep.subr.mxu0 0.0
        %7485 = vmatpush1.msra.mxu0 %v7476
        %7486 = vmatprep.subr.mxu0 0.0
        %7487 = vmatpush1.msra.mxu0 0.0
        %7488 = vmatprep.subr.mxu0 0.0
        %7489 = vmatpush1.msra.mxu0 0.0
        %7490 = vmatprep.subr.mxu0 0.0
        %7491 = vmatpush1.msra.mxu0 0.0
        %7492 = vmatprep.subr.mxu0 0.0
        %7493 = vmatpush1.msra.mxu0 0.0
        %7494 = vmatprep.subr.mxu0 0.0
        %7495 = vmatpush1.msra.mxu0 0.0
        %7496 = vmatprep.subr.mxu0 0.0
        %7497 = vmatpush1.msra.mxu0 0.0
        %7498 = vmatprep.subr.mxu0 0.0
        %7499 = vmatpush1.msra.mxu0 0.0
        %7500 = vmatprep.subr.mxu0 0.0
        %7501 = vmatpush1.msra.mxu0 0.0
        %7502 = vmatprep.subr.mxu0 0.0
        %7503 = vmatpush1.msra.mxu0 0.0
        %7504 = vmatprep.subr.mxu0 0.0
        %7505 = vmatpush1.msra.mxu0 0.0
        %7506 = vmatprep.subr.mxu0 0.0
        %7507 = vmatpush1.msra.mxu0 0.0
        %7508 = vmatprep.subr.mxu0 0.0
        %7509 = vmatpush1.msra.mxu0 0.0
        %7510 = vmatprep.subr.mxu0 0.0
        %7511 = vmatpush1.msra.mxu0 0.0
        %7512 = vmatprep.subr.mxu0 0.0
        %7513 = vmatpush1.msra.mxu0 0.0
        %7514 = vmatprep.subr.mxu0 0.0
        %7515 = vmatpush1.msra.mxu0 0.0
        %7516 = vmatprep.subr.mxu0 0.0
        %7517 = vmatpush1.msra.mxu0 0.0
        %7518 = vmatprep.subr.mxu0 0.0
        %7519 = vmatpush1.msra.mxu0 0.0
        %7520 = vmatprep.subr.mxu0 0.0
        %7521 = vmatpush1.msra.mxu0 0.0
        %7522 = vmatprep.subr.mxu0 0.0
        %7523 = vmatpush1.msra.mxu0 0.0
        %7524 = vmatprep.subr.mxu0 0.0
        %7525 = vmatpush1.msra.mxu0 0.0
        %7526 = vmatprep.subr.mxu0 0.0
        %7527 = vmatpush1.msra.mxu0 0.0
        %7528 = vmatprep.subr.mxu0 0.0
        %7529 = vmatpush1.msra.mxu0 0.0
        %7530 = vmatprep.subr.mxu0 0.0
        %7531 = vmatpush1.msra.mxu0 0.0
        %7532 = vmatprep.subr.mxu0 0.0
        %7533 = vmatpush1.msra.mxu0 0.0
        %7534 = vmatprep.subr.mxu0 0.0
        %7535 = vmatpush1.msra.mxu0 0.0
        %7536 = vmatprep.subr.mxu0 0.0
        %7537 = vmatpush1.msra.mxu0 0.0
        %7538 = vmatprep.subr.mxu0 0.0
        %7539 = vmatpush1.msra.mxu0 0.0
        %7540 = vmatprep.subr.mxu0 0.0
        %7541 = vmatpush1.msra.mxu0 0.0
        %7542 = vmatprep.subr.mxu0 0.0
        %7543 = vmatpush1.msra.mxu0 0.0
        %7544 = vmatprep.subr.mxu0 0.0
        %7545 = vmatpush1.msra.mxu0 0.0
        %7546 = vmatprep.subr.mxu0 0.0
        %7547 = vmatpush1.msra.mxu0 0.0
        %7548 = vmatprep.mubr.f32.mxu0 0.0
        %7549 = vmatmul.mubr.f32.gmra.mrb[0].mxu0 %v7479
        %v7550 = vpop.f32.mrb[0].mxu0
        %v7551 = vadd.f32 0.0, %v7550
        %v7552 = vpop.f32.mrb[0].mxu0
        %7553 = vmatprep.mubr.f32.mxu0 0.0
        %7554 = vmatmul.mubr.f32.gmra.mrb[0].mxu0 %v7482
        %v7555 = vpop.f32.mrb[0].mxu0
        %v7556 = vadd.f32 0.0, %v7555
        %v7557 = vpop.f32.mrb[0].mxu0
        %7558 = vdwg.mxu0
        %7559 = vrot.lane.b32.xlu0 %v4561, 100
        %v7560 = vpop.permute.xlu0 %7559
        %7561 = vrot.lane.b32.xlu0 %v4566, 100
        %v7562 = vpop.permute.xlu0 %7561
        %7563 = vrot.lane.b32.xlu0 %v4397, 36
        %v7564 = vpop.permute.xlu0 %7563
        %v7565 = vsel %vm1356, %v7560, 0
        %v7567 = vsel %vm1356, %v7562, 0
        %v7569 = vsel %vm1356, %v7564, 0
        %7571 = vmatprep.subr.mxu0 0.0
        %7572 = vmatpush1.xpose.msra.mxu0 %v7569
        %7573 = vmatprep.subr.mxu0 0.0
        %7574 = vmatpush1.xpose.msra.mxu0 0.0
        %7575 = vmatprep.subr.mxu0 0.0
        %7576 = vmatpush1.xpose.msra.mxu0 0.0
        %7577 = vmatprep.subr.mxu0 0.0
        %7578 = vmatpush1.xpose.msra.mxu0 0.0
        %7579 = vmatprep.subr.mxu0 0.0
        %7580 = vmatpush1.xpose.msra.mxu0 0.0
        %7581 = vmatprep.subr.mxu0 0.0
        %7582 = vmatpush1.xpose.msra.mxu0 0.0
        %7583 = vmatprep.subr.mxu0 0.0
        %7584 = vmatpush1.xpose.msra.mxu0 0.0
        %7585 = vmatprep.subr.mxu0 0.0
        %7586 = vmatpush1.xpose.msra.mxu0 0.0
        %7587 = vmatprep.subr.mxu0 0.0
        %7588 = vmatpush1.xpose.msra.mxu0 0.0
        %7589 = vmatprep.subr.mxu0 0.0
        %7590 = vmatpush1.xpose.msra.mxu0 0.0
        %7591 = vmatprep.subr.mxu0 0.0
        %7592 = vmatpush1.xpose.msra.mxu0 0.0
        %7593 = vmatprep.subr.mxu0 0.0
        %7594 = vmatpush1.xpose.msra.mxu0 0.0
        %7595 = vmatprep.subr.mxu0 0.0
        %7596 = vmatpush1.xpose.msra.mxu0 0.0
        %7597 = vmatprep.subr.mxu0 0.0
        %7598 = vmatpush1.xpose.msra.mxu0 0.0
        %7599 = vmatprep.subr.mxu0 0.0
        %7600 = vmatpush1.xpose.msra.mxu0 0.0
        %7601 = vmatprep.subr.mxu0 0.0
        %7602 = vmatpush1.xpose.msra.mxu0 0.0
        %7603 = vmatprep.subr.mxu0 0.0
        %7604 = vmatpush1.xpose.msra.mxu0 0.0
        %7605 = vmatprep.subr.mxu0 0.0
        %7606 = vmatpush1.xpose.msra.mxu0 0.0
        %7607 = vmatprep.subr.mxu0 0.0
        %7608 = vmatpush1.xpose.msra.mxu0 0.0
        %7609 = vmatprep.subr.mxu0 0.0
        %7610 = vmatpush1.xpose.msra.mxu0 0.0
        %7611 = vmatprep.subr.mxu0 0.0
        %7612 = vmatpush1.xpose.msra.mxu0 0.0
        %7613 = vmatprep.subr.mxu0 0.0
        %7614 = vmatpush1.xpose.msra.mxu0 0.0
        %7615 = vmatprep.subr.mxu0 0.0
        %7616 = vmatpush1.xpose.msra.mxu0 0.0
        %7617 = vmatprep.subr.mxu0 0.0
        %7618 = vmatpush1.xpose.msra.mxu0 0.0
        %7619 = vmatprep.subr.mxu0 0.0
        %7620 = vmatpush1.xpose.msra.mxu0 0.0
        %7621 = vmatprep.subr.mxu0 0.0
        %7622 = vmatpush1.xpose.msra.mxu0 0.0
        %7623 = vmatprep.subr.mxu0 0.0
        %7624 = vmatpush1.xpose.msra.mxu0 0.0
        %7625 = vmatprep.subr.mxu0 0.0
        %7626 = vmatpush1.xpose.msra.mxu0 0.0
        %7627 = vmatprep.subr.mxu0 0.0
        %7628 = vmatpush1.xpose.msra.mxu0 0.0
        %7629 = vmatprep.subr.mxu0 0.0
        %7630 = vmatpush1.xpose.msra.mxu0 0.0
        %7631 = vmatprep.subr.mxu0 0.0
        %7632 = vmatpush1.xpose.msra.mxu0 0.0
        %7633 = vmatprep.subr.mxu0 0.0
        %7634 = vmatpush1.xpose.msra.mxu0 0.0
        %7635 = vmatprep.mubr.f32.mxu0 0.0
        %7636 = vmatmul.mubr.f32.gmra.mrb[0].mxu0 %v7565
        %v7637 = vpop.f32.mrb[0].mxu0
        %v7638 = vadd.f32 0.0, %v7637
        %v7639 = vpop.f32.mrb[0].mxu0
        %7640 = vmatprep.mubr.f32.mxu0 0.0
        %7641 = vmatmul.mubr.f32.gmra.mrb[0].mxu0 %v7567
        %v7642 = vpop.f32.mrb[0].mxu0
        %v7643 = vadd.f32 0.0, %v7642
        %v7644 = vpop.f32.mrb[0].mxu0
        %7645 = vdwg.mxu0
        %v7646 = vmul.f32 %v7638, 0.5
        %v7647 = vmul.f32 %v7643, 0.5
        %v7648 = vsel %vm4174, %v7646, -inf
        %7649 = vmax.xlane.f32.xlu0 %v7648
        %v7650 = vpop.xlane.xlu0 %7649
        %v7651 = vsel %vm4174, %v7647, -inf
        %7652 = vmax.xlane.f32.xlu0 %v7651
        %v7653 = vpop.xlane.xlu0 %7652
        %v7654 = vsub.f32 %v7646, %v7650
        %v7655 = vsub.f32 %v7647, %v7653
        %v7656 = vmul.f32 %v7654, 1.442695
        %v7657 = vpow.pop %v7656
        %v7658 = vmul.f32 %v7655, 1.442695
        %v7659 = vpow.pop %v7658
        %v7660 = vsel %vm4174, %v7657, 0.0
        %7661 = vadd.xlane.f32.xlu0 %v7660
        %v7662 = vpop.xlane.xlu0 %7661
        %v7663 = vsel %vm4174, %v7659, 0.0
        %7664 = vadd.xlane.f32.xlu0 %v7663
        %v7665 = vpop.xlane.xlu0 %7664
        %v7666 = vrcp.pop %v7662
        %v7667 = vrcp.pop %v7665
        %v7668 = vmul.f32 %v7657, %v7666
        %v7669 = vmul.f32 %v7659, %v7667
        %7670 = vrot.lane.b32.xlu0 %v4397, 4
        %v7671 = vpop.permute.xlu0 %7670
        %v7674 = vsel %vm4174, %v7668, 0
        %v7677 = vsel %vm4174, %v7669, 0
        %7679 = vmatprep.subr.mxu0 0.0
        %7680 = vmatpush1.msra.mxu0 %v7671
        %7681 = vmatprep.subr.mxu0 0.0
        %7682 = vmatpush1.msra.mxu0 0.0
        %7683 = vmatprep.subr.mxu0 0.0
        %7684 = vmatpush1.msra.mxu0 0.0
        %7685 = vmatprep.subr.mxu0 0.0
        %7686 = vmatpush1.msra.mxu0 0.0
        %7687 = vmatprep.subr.mxu0 0.0
        %7688 = vmatpush1.msra.mxu0 0.0
        %7689 = vmatprep.subr.mxu0 0.0
        %7690 = vmatpush1.msra.mxu0 0.0
        %7691 = vmatprep.subr.mxu0 0.0
        %7692 = vmatpush1.msra.mxu0 0.0
        %7693 = vmatprep.subr.mxu0 0.0
        %7694 = vmatpush1.msra.mxu0 0.0
        %7695 = vmatprep.subr.mxu0 0.0
        %7696 = vmatpush1.msra.mxu0 0.0
        %7697 = vmatprep.subr.mxu0 0.0
        %7698 = vmatpush1.msra.mxu0 0.0
        %7699 = vmatprep.subr.mxu0 0.0
        %7700 = vmatpush1.msra.mxu0 0.0
        %7701 = vmatprep.subr.mxu0 0.0
        %7702 = vmatpush1.msra.mxu0 0.0
        %7703 = vmatprep.subr.mxu0 0.0
        %7704 = vmatpush1.msra.mxu0 0.0
        %7705 = vmatprep.subr.mxu0 0.0
        %7706 = vmatpush1.msra.mxu0 0.0
        %7707 = vmatprep.subr.mxu0 0.0
        %7708 = vmatpush1.msra.mxu0 0.0
        %7709 = vmatprep.subr.mxu0 0.0
        %7710 = vmatpush1.msra.mxu0 0.0
        %7711 = vmatprep.subr.mxu0 0.0
        %7712 = vmatpush1.msra.mxu0 0.0
        %7713 = vmatprep.subr.mxu0 0.0
        %7714 = vmatpush1.msra.mxu0 0.0
        %7715 = vmatprep.subr.mxu0 0.0
        %7716 = vmatpush1.msra.mxu0 0.0
        %7717 = vmatprep.subr.mxu0 0.0
        %7718 = vmatpush1.msra.mxu0 0.0
        %7719 = vmatprep.subr.mxu0 0.0
        %7720 = vmatpush1.msra.mxu0 0.0
        %7721 = vmatprep.subr.mxu0 0.0
        %7722 = vmatpush1.msra.mxu0 0.0
        %7723 = vmatprep.subr.mxu0 0.0
        %7724 = vmatpush1.msra.mxu0 0.0
        %7725 = vmatprep.subr.mxu0 0.0
        %7726 = vmatpush1.msra.mxu0 0.0
        %7727 = vmatprep.subr.mxu0 0.0
        %7728 = vmatpush1.msra.mxu0 0.0
        %7729 = vmatprep.subr.mxu0 0.0
        %7730 = vmatpush1.msra.mxu0 0.0
        %7731 = vmatprep.subr.mxu0 0.0
        %7732 = vmatpush1.msra.mxu0 0.0
        %7733 = vmatprep.subr.mxu0 0.0
        %7734 = vmatpush1.msra.mxu0 0.0
        %7735 = vmatprep.subr.mxu0 0.0
        %7736 = vmatpush1.msra.mxu0 0.0
        %7737 = vmatprep.subr.mxu0 0.0
        %7738 = vmatpush1.msra.mxu0 0.0
        %7739 = vmatprep.subr.mxu0 0.0
        %7740 = vmatpush1.msra.mxu0 0.0
        %7741 = vmatprep.subr.mxu0 0.0
        %7742 = vmatpush1.msra.mxu0 0.0
        %7743 = vmatprep.mubr.f32.mxu0 0.0
        %7744 = vmatmul.mubr.f32.gmra.mrb[0].mxu0 %v7674
        %v7745 = vpop.f32.mrb[0].mxu0
        %v7746 = vadd.f32 0.0, %v7745
        %v7747 = vpop.f32.mrb[0].mxu0
        %7748 = vmatprep.mubr.f32.mxu0 0.0
        %7749 = vmatmul.mubr.f32.gmra.mrb[0].mxu0 %v7677
        %v7750 = vpop.f32.mrb[0].mxu0
        %v7751 = vadd.f32 0.0, %v7750
        %v7752 = vpop.f32.mrb[0].mxu0
        %7753 = vdwg.mxu0
        %7756 = vrot.lane.b32.xlu0 %v6576, 4
        %v7757 = vpop.permute.xlu0 %7756
        %7758 = vrot.lane.b32.xlu0 %v6581, 4
        %v7759 = vpop.permute.xlu0 %7758
        %7764 = vrot.lane.b32.xlu0 %v6771, 8
        %v7765 = vpop.permute.xlu0 %7764
        %7766 = vrot.lane.b32.xlu0 %v6776, 8
        %v7767 = vpop.permute.xlu0 %7766
        %7772 = vrot.lane.b32.xlu0 %v6966, 12
        %v7773 = vpop.permute.xlu0 %7772
        %7774 = vrot.lane.b32.xlu0 %v6971, 12
        %v7775 = vpop.permute.xlu0 %7774
        %7780 = vrot.lane.b32.xlu0 %v7161, 16
        %v7781 = vpop.permute.xlu0 %7780
        %7782 = vrot.lane.b32.xlu0 %v7166, 16
        %v7783 = vpop.permute.xlu0 %7782
        %7788 = vrot.lane.b32.xlu0 %v7356, 20
        %v7789 = vpop.permute.xlu0 %7788
        %7790 = vrot.lane.b32.xlu0 %v7361, 20
        %v7791 = vpop.permute.xlu0 %7790
        %7796 = vrot.lane.b32.xlu0 %v7551, 24
        %v7797 = vpop.permute.xlu0 %7796
        %7798 = vrot.lane.b32.xlu0 %v7556, 24
        %v7799 = vpop.permute.xlu0 %7798
        %7804 = vrot.lane.b32.xlu0 %v7746, 28
        %v7805 = vpop.permute.xlu0 %7804
        %7806 = vrot.lane.b32.xlu0 %v7751, 28
        %v7807 = vpop.permute.xlu0 %7806
        %v7810 = vsel %vm1356, %v6381, %v7757
        %v7811 = vsel %vm1356, %v6386, %v7759
        %v7812 = vsel %vm4174, %v7810, %v7765
        %v7813 = vsel %vm4174, %v7811, %v7767
        %v7814 = vsel %vm4176, %v7812, %v7773
        %v7815 = vsel %vm4176, %v7813, %v7775
        %v7816 = vsel %vm1437, %v7814, %v7781
        %v7817 = vsel %vm1437, %v7815, %v7783
        %v7818 = vsel %vm4179, %v7816, %v7789
        %v7819 = vsel %vm4179, %v7817, %v7791
        %v7820 = vsel %vm4181, %v7818, %v7797
        %v7821 = vsel %vm4181, %v7819, %v7799
        %v7822 = vsel %vm4183, %v7820, %v7805
        %v7823 = vsel %vm4183, %v7821, %v7807
        %v7824 = vld [vmem:[%s16] sm:$0xff]
        %v7825 = vld [vmem:[%s16 + $0x8] sm:$0xff]
        %v7826 = vld [vmem:[%s16 + $0x10] sm:$0xff]
        %v7827 = vld [vmem:[%s16 + $0x18] sm:$0xff]
        %v7829 = vsel %vm798, %v6194, 0
        %v7832 = vsel %vm798, %v6195, 0
        %7834 = vmatprep.subr.mxu0 0.0
        %7835 = vmatpush1.msra.mxu0 %v7824
        %7836 = vmatprep.subr.mxu0 0.0
        %7837 = vmatpush1.msra.mxu0 %v7825
        %7838 = vmatprep.subr.mxu0 0.0
        %7839 = vmatpush1.msra.mxu0 %v7826
        %7840 = vmatprep.subr.mxu0 0.0
        %7841 = vmatpush1.msra.mxu0 %v7827
        %7842 = vmatprep.subr.mxu0 0.0
        %7843 = vmatpush1.msra.mxu0 0.0
        %7844 = vmatprep.subr.mxu0 0.0
        %7845 = vmatpush1.msra.mxu0 0.0
        %7846 = vmatprep.subr.mxu0 0.0
        %7847 = vmatpush1.msra.mxu0 0.0
        %7848 = vmatprep.subr.mxu0 0.0
        %7849 = vmatpush1.msra.mxu0 0.0
        %7850 = vmatprep.subr.mxu0 0.0
        %7851 = vmatpush1.msra.mxu0 0.0
        %7852 = vmatprep.subr.mxu0 0.0
        %7853 = vmatpush1.msra.mxu0 0.0
        %7854 = vmatprep.subr.mxu0 0.0
        %7855 = vmatpush1.msra.mxu0 0.0
        %7856 = vmatprep.subr.mxu0 0.0
        %7857 = vmatpush1.msra.mxu0 0.0
        %7858 = vmatprep.subr.mxu0 0.0
        %7859 = vmatpush1.msra.mxu0 0.0
        %7860 = vmatprep.subr.mxu0 0.0
        %7861 = vmatpush1.msra.mxu0 0.0
        %7862 = vmatprep.subr.mxu0 0.0
        %7863 = vmatpush1.msra.mxu0 0.0
        %7864 = vmatprep.subr.mxu0 0.0
        %7865 = vmatpush1.msra.mxu0 0.0
        %7866 = vmatprep.subr.mxu0 0.0
        %7867 = vmatpush1.msra.mxu0 0.0
        %7868 = vmatprep.subr.mxu0 0.0
        %7869 = vmatpush1.msra.mxu0 0.0
        %7870 = vmatprep.subr.mxu0 0.0
        %7871 = vmatpush1.msra.mxu0 0.0
        %7872 = vmatprep.subr.mxu0 0.0
        %7873 = vmatpush1.msra.mxu0 0.0
        %7874 = vmatprep.subr.mxu0 0.0
        %7875 = vmatpush1.msra.mxu0 0.0
        %7876 = vmatprep.subr.mxu0 0.0
        %7877 = vmatpush1.msra.mxu0 0.0
        %7878 = vmatprep.subr.mxu0 0.0
        %7879 = vmatpush1.msra.mxu0 0.0
        %7880 = vmatprep.subr.mxu0 0.0
        %7881 = vmatpush1.msra.mxu0 0.0
        %7882 = vmatprep.subr.mxu0 0.0
        %7883 = vmatpush1.msra.mxu0 0.0
        %7884 = vmatprep.subr.mxu0 0.0
        %7885 = vmatpush1.msra.mxu0 0.0
        %7886 = vmatprep.subr.mxu0 0.0
        %7887 = vmatpush1.msra.mxu0 0.0
        %7888 = vmatprep.subr.mxu0 0.0
        %7889 = vmatpush1.msra.mxu0 0.0
        %7890 = vmatprep.subr.mxu0 0.0
        %7891 = vmatpush1.msra.mxu0 0.0
        %7892 = vmatprep.subr.mxu0 0.0
        %7893 = vmatpush1.msra.mxu0 0.0
        %7894 = vmatprep.subr.mxu0 0.0
        %7895 = vmatpush1.msra.mxu0 0.0
        %7896 = vmatprep.subr.mxu0 0.0
        %7897 = vmatpush1.msra.mxu0 0.0
        %7898 = vmatprep.mubr.f32.mxu0 0.0
        %7899 = vmatmul.mubr.f32.gmra.mrb[0].mxu0 %v7829
        %v7900 = vpop.f32.mrb[0].mxu0
        %v7901 = vadd.f32 0.0, %v7900
        %v7902 = vpop.f32.mrb[0].mxu0
        %7903 = vmatprep.mubr.f32.mxu0 0.0
        %7904 = vmatmul.mubr.f32.gmra.mrb[0].mxu0 %v7832
        %v7905 = vpop.f32.mrb[0].mxu0
        %v7906 = vadd.f32 0.0, %v7905
        %v7907 = vpop.f32.mrb[0].mxu0
        %7908 = vdwg.mxu0
        %v7909 = vadd.f32 %v791, %v7901
        %v7910 = vadd.f32 %v792, %v7906
        %v7911 = vld [vmem:[%s17] sm:$0x1]
        %v7912 = vlaneseq
        %v7913 = vshrl.u32 %v7912, 7
        %v7914 = vsub.s32 0, %v7913
        %v7915 = vrot.slane %v7911, %v7914
        %v7916 = vadd.f32 %v7909, %v7915
        %v7917 = vadd.f32 %v7910, %v7915
        %s7918 = scalar_lea.vmem %s16, 32
        %v7919 = vld [vmem:[%s7918] sm:$0xff]
        %v7920 = vld [vmem:[%s7918 + $0x8] sm:$0xff]
        %v7921 = vld [vmem:[%s7918 + $0x10] sm:$0xff]
        %v7922 = vld [vmem:[%s7918 + $0x18] sm:$0xff]
        %v7924 = vsel %vm798, %v7822, 0
        %v7927 = vsel %vm798, %v7823, 0
        %7929 = vmatprep.subr.mxu0 0.0
        %7930 = vmatpush1.msra.mxu0 %v7919
        %7931 = vmatprep.subr.mxu0 0.0
        %7932 = vmatpush1.msra.mxu0 %v7920
        %7933 = vmatprep.subr.mxu0 0.0
        %7934 = vmatpush1.msra.mxu0 %v7921
        %7935 = vmatprep.subr.mxu0 0.0
        %7936 = vmatpush1.msra.mxu0 %v7922
        %7937 = vmatprep.subr.mxu0 0.0
        %7938 = vmatpush1.msra.mxu0 0.0
        %7939 = vmatprep.subr.mxu0 0.0
        %7940 = vmatpush1.msra.mxu0 0.0
        %7941 = vmatprep.subr.mxu0 0.0
        %7942 = vmatpush1.msra.mxu0 0.0
        %7943 = vmatprep.subr.mxu0 0.0
        %7944 = vmatpush1.msra.mxu0 0.0
        %7945 = vmatprep.subr.mxu0 0.0
        %7946 = vmatpush1.msra.mxu0 0.0
        %7947 = vmatprep.subr.mxu0 0.0
        %7948 = vmatpush1.msra.mxu0 0.0
        %7949 = vmatprep.subr.mxu0 0.0
        %7950 = vmatpush1.msra.mxu0 0.0
        %7951 = vmatprep.subr.mxu0 0.0
        %7952 = vmatpush1.msra.mxu0 0.0
        %7953 = vmatprep.subr.mxu0 0.0
        %7954 = vmatpush1.msra.mxu0 0.0
        %7955 = vmatprep.subr.mxu0 0.0
        %7956 = vmatpush1.msra.mxu0 0.0
        %7957 = vmatprep.subr.mxu0 0.0
        %7958 = vmatpush1.msra.mxu0 0.0
        %7959 = vmatprep.subr.mxu0 0.0
        %7960 = vmatpush1.msra.mxu0 0.0
        %7961 = vmatprep.subr.mxu0 0.0
        %7962 = vmatpush1.msra.mxu0 0.0
        %7963 = vmatprep.subr.mxu0 0.0
        %7964 = vmatpush1.msra.mxu0 0.0
        %7965 = vmatprep.subr.mxu0 0.0
        %7966 = vmatpush1.msra.mxu0 0.0
        %7967 = vmatprep.subr.mxu0 0.0
        %7968 = vmatpush1.msra.mxu0 0.0
        %7969 = vmatprep.subr.mxu0 0.0
        %7970 = vmatpush1.msra.mxu0 0.0
        %7971 = vmatprep.subr.mxu0 0.0
        %7972 = vmatpush1.msra.mxu0 0.0
        %7973 = vmatprep.subr.mxu0 0.0
        %7974 = vmatpush1.msra.mxu0 0.0
        %7975 = vmatprep.subr.mxu0 0.0
        %7976 = vmatpush1.msra.mxu0 0.0
        %7977 = vmatprep.subr.mxu0 0.0
        %7978 = vmatpush1.msra.mxu0 0.0
        %7979 = vmatprep.subr.mxu0 0.0
        %7980 = vmatpush1.msra.mxu0 0.0
        %7981 = vmatprep.subr.mxu0 0.0
        %7982 = vmatpush1.msra.mxu0 0.0
        %7983 = vmatprep.subr.mxu0 0.0
        %7984 = vmatpush1.msra.mxu0 0.0
        %7985 = vmatprep.subr.mxu0 0.0
        %7986 = vmatpush1.msra.mxu0 0.0
        %7987 = vmatprep.subr.mxu0 0.0
        %7988 = vmatpush1.msra.mxu0 0.0
        %7989 = vmatprep.subr.mxu0 0.0
        %7990 = vmatpush1.msra.mxu0 0.0
        %7991 = vmatprep.subr.mxu0 0.0
        %7992 = vmatpush1.msra.mxu0 0.0
        %7993 = vmatprep.mubr.f32.mxu0 0.0
        %7994 = vmatmul.mubr.f32.gmra.mrb[0].mxu0 %v7924
        %v7995 = vpop.f32.mrb[0].mxu0
        %v7996 = vadd.f32 0.0, %v7995
        %v7997 = vpop.f32.mrb[0].mxu0
        %7998 = vmatprep.mubr.f32.mxu0 0.0
        %7999 = vmatmul.mubr.f32.gmra.mrb[0].mxu0 %v7927
        %v8000 = vpop.f32.mrb[0].mxu0
        %v8001 = vadd.f32 0.0, %v8000
        %v8002 = vpop.f32.mrb[0].mxu0
        %8003 = vdwg.mxu0
        %v8004 = vadd.f32 %v793, %v7996
        %v8005 = vadd.f32 %v794, %v8001
        %v8006 = vld [vmem:[%s17 + $0x1] sm:$0x1]
        %v8007 = vlaneseq
        %v8008 = vshrl.u32 %v8007, 7
        %v8009 = vsub.s32 0, %v8008
        %v8010 = vrot.slane %v8006, %v8009
        %v8011 = vadd.f32 %v8004, %v8010
        %v8012 = vadd.f32 %v8005, %v8010
        %v8013 = vsel %vm798, %v7916, 0.0
        %8014 = vadd.xlane.f32.xlu0 %v8013
        %v8015 = vpop.xlane.xlu0 %8014
        %v8016 = vsel %vm798, %v7917, 0.0
        %8017 = vadd.xlane.f32.xlu0 %v8016
        %v8018 = vpop.xlane.xlu0 %8017
        %v8019 = vmul.f32 %v8015, %v805
        %v8020 = vmul.f32 %v8018, %v805
        %v8021 = vsub.f32 %v7916, %v8019
        %v8022 = vsub.f32 %v7917, %v8020
        %v8023 = vmul.f32 %v8021, %v8021
        %v8024 = vmul.f32 %v8022, %v8022
        %v8025 = vsel %vm798, %v8023, 0.0
        %8026 = vadd.xlane.f32.xlu0 %v8025
        %v8027 = vpop.xlane.xlu0 %8026
        %v8028 = vsel %vm798, %v8024, 0.0
        %8029 = vadd.xlane.f32.xlu0 %v8028
        %v8030 = vpop.xlane.xlu0 %8029
        %v8031 = vmul.f32 %v8027, %v805
        %v8032 = vmul.f32 %v8030, %v805
        %v8033 = vadd.f32 %v8031, 1e-05
        %v8034 = vadd.f32 %v8032, 1e-05
        %v8035 = vrsqrt.pop %v8033
        %v8036 = vrsqrt.pop %v8034
        %v8037 = vmul.f32 %v8021, %v8035
        %v8038 = vmul.f32 %v8022, %v8036
        %v8039 = vld [vmem:[%s4 + $0x4] sm:$0x1]
        %v8040 = vlaneseq
        %v8041 = vshrl.u32 %v8040, 7
        %v8042 = vsub.s32 0, %v8041
        %v8043 = vrot.slane %v8039, %v8042
        %v8044 = vmul.f32 %v8037, %v8043
        %v8045 = vmul.f32 %v8038, %v8043
        %v8046 = vld [vmem:[%s5 + $0x4] sm:$0x1]
        %v8047 = vlaneseq
        %v8048 = vshrl.u32 %v8047, 7
        %v8049 = vsub.s32 0, %v8048
        %v8050 = vrot.slane %v8046, %v8049
        %v8051 = vadd.f32 %v8044, %v8050
        %v8052 = vadd.f32 %v8045, %v8050
        %v8053 = vsel %vm798, %v8011, 0.0
        %8054 = vadd.xlane.f32.xlu0 %v8053
        %v8055 = vpop.xlane.xlu0 %8054
        %v8056 = vsel %vm798, %v8012, 0.0
        %8057 = vadd.xlane.f32.xlu0 %v8056
        %v8058 = vpop.xlane.xlu0 %8057
        %v8059 = vmul.f32 %v8055, %v805
        %v8060 = vmul.f32 %v8058, %v805
        %v8061 = vsub.f32 %v8011, %v8059
        %v8062 = vsub.f32 %v8012, %v8060
        %v8063 = vmul.f32 %v8061, %v8061
        %v8064 = vmul.f32 %v8062, %v8062
        %v8065 = vsel %vm798, %v8063, 0.0
        %8066 = vadd.xlane.f32.xlu0 %v8065
        %v8067 = vpop.xlane.xlu0 %8066
        %v8068 = vsel %vm798, %v8064, 0.0
        %8069 = vadd.xlane.f32.xlu0 %v8068
        %v8070 = vpop.xlane.xlu0 %8069
        %v8071 = vmul.f32 %v8067, %v805
        %v8072 = vmul.f32 %v8070, %v805
        %v8073 = vadd.f32 %v8071, 1e-05
        %v8074 = vadd.f32 %v8072, 1e-05
        %v8075 = vrsqrt.pop %v8073
        %v8076 = vrsqrt.pop %v8074
        %v8077 = vmul.f32 %v8061, %v8075
        %v8078 = vmul.f32 %v8062, %v8076
        %v8079 = vld [vmem:[%s4 + $0x5] sm:$0x1]
        %v8080 = vlaneseq
        %v8081 = vshrl.u32 %v8080, 7
        %v8082 = vsub.s32 0, %v8081
        %v8083 = vrot.slane %v8079, %v8082
        %v8084 = vmul.f32 %v8077, %v8083
        %v8085 = vmul.f32 %v8078, %v8083
        %v8086 = vld [vmem:[%s5 + $0x5] sm:$0x1]
        %v8087 = vlaneseq
        %v8088 = vshrl.u32 %v8087, 7
        %v8089 = vsub.s32 0, %v8088
        %v8090 = vrot.slane %v8086, %v8089
        %v8091 = vadd.f32 %v8084, %v8090
        %v8092 = vadd.f32 %v8085, %v8090
        %v8093 = vld [vmem:[%s18] sm:$0xff]
        %v8094 = vld [vmem:[%s18 + $0x8] sm:$0xff]
        %v8095 = vld [vmem:[%s18 + $0x10] sm:$0xff]
        %v8096 = vld [vmem:[%s18 + $0x18] sm:$0xff]
        %v8097 = vld [vmem:[%s19] sm:$0x1]
        %v8098 = vlaneseq
        %v8099 = vshrl.u32 %v8098, 7
        %v8100 = vsub.s32 0, %v8099
        %v8101 = vrot.slane %v8097, %v8100
        %v8103 = vsel %vm798, %v8051, 0
        %v8106 = vsel %vm798, %v8052, 0
        %8108 = vmatprep.subr.mxu0 0.0
        %8109 = vmatpush1.msra.mxu0 %v8093
        %8110 = vmatprep.subr.mxu0 0.0
        %8111 = vmatpush1.msra.mxu0 %v8094
        %8112 = vmatprep.subr.mxu0 0.0
        %8113 = vmatpush1.msra.mxu0 %v8095
        %8114 = vmatprep.subr.mxu0 0.0
        %8115 = vmatpush1.msra.mxu0 %v8096
        %8116 = vmatprep.subr.mxu0 0.0
        %8117 = vmatpush1.msra.mxu0 0.0
        %8118 = vmatprep.subr.mxu0 0.0
        %8119 = vmatpush1.msra.mxu0 0.0
        %8120 = vmatprep.subr.mxu0 0.0
        %8121 = vmatpush1.msra.mxu0 0.0
        %8122 = vmatprep.subr.mxu0 0.0
        %8123 = vmatpush1.msra.mxu0 0.0
        %8124 = vmatprep.subr.mxu0 0.0
        %8125 = vmatpush1.msra.mxu0 0.0
        %8126 = vmatprep.subr.mxu0 0.0
        %8127 = vmatpush1.msra.mxu0 0.0
        %8128 = vmatprep.subr.mxu0 0.0
        %8129 = vmatpush1.msra.mxu0 0.0
        %8130 = vmatprep.subr.mxu0 0.0
        %8131 = vmatpush1.msra.mxu0 0.0
        %8132 = vmatprep.subr.mxu0 0.0
        %8133 = vmatpush1.msra.mxu0 0.0
        %8134 = vmatprep.subr.mxu0 0.0
        %8135 = vmatpush1.msra.mxu0 0.0
        %8136 = vmatprep.subr.mxu0 0.0
        %8137 = vmatpush1.msra.mxu0 0.0
        %8138 = vmatprep.subr.mxu0 0.0
        %8139 = vmatpush1.msra.mxu0 0.0
        %8140 = vmatprep.subr.mxu0 0.0
        %8141 = vmatpush1.msra.mxu0 0.0
        %8142 = vmatprep.subr.mxu0 0.0
        %8143 = vmatpush1.msra.mxu0 0.0
        %8144 = vmatprep.subr.mxu0 0.0
        %8145 = vmatpush1.msra.mxu0 0.0
        %8146 = vmatprep.subr.mxu0 0.0
        %8147 = vmatpush1.msra.mxu0 0.0
        %8148 = vmatprep.subr.mxu0 0.0
        %8149 = vmatpush1.msra.mxu0 0.0
        %8150 = vmatprep.subr.mxu0 0.0
        %8151 = vmatpush1.msra.mxu0 0.0
        %8152 = vmatprep.subr.mxu0 0.0
        %8153 = vmatpush1.msra.mxu0 0.0
        %8154 = vmatprep.subr.mxu0 0.0
        %8155 = vmatpush1.msra.mxu0 0.0
        %8156 = vmatprep.subr.mxu0 0.0
        %8157 = vmatpush1.msra.mxu0 0.0
        %8158 = vmatprep.subr.mxu0 0.0
        %8159 = vmatpush1.msra.mxu0 0.0
        %8160 = vmatprep.subr.mxu0 0.0
        %8161 = vmatpush1.msra.mxu0 0.0
        %8162 = vmatprep.subr.mxu0 0.0
        %8163 = vmatpush1.msra.mxu0 0.0
        %8164 = vmatprep.subr.mxu0 0.0
        %8165 = vmatpush1.msra.mxu0 0.0
        %8166 = vmatprep.subr.mxu0 0.0
        %8167 = vmatpush1.msra.mxu0 0.0
        %8168 = vmatprep.subr.mxu0 0.0
        %8169 = vmatpush1.msra.mxu0 0.0
        %8170 = vmatprep.subr.mxu0 0.0
        %8171 = vmatpush1.msra.mxu0 0.0
        %8172 = vmatprep.mubr.f32.mxu0 0.0
        %8173 = vmatmul.mubr.f32.gmra.mrb[0].mxu0 %v8103
        %v8174 = vpop.f32.mrb[0].mxu0
        %v8175 = vadd.f32 %v8101, %v8174
        %v8176 = vpop.f32.mrb[0].mxu0
        %8177 = vmatprep.mubr.f32.mxu0 0.0
        %8178 = vmatmul.mubr.f32.gmra.mrb[0].mxu0 %v8106
        %v8179 = vpop.f32.mrb[0].mxu0
        %v8180 = vadd.f32 %v8101, %v8179
        %v8181 = vpop.f32.mrb[0].mxu0
        %8182 = vdwg.mxu0
        %v8183 = vmax.f32 %v8175, 0.0
        %v8184 = vmax.f32 %v8180, 0.0
        %v8185 = vld [vmem:[%s20] sm:$0xff]
        %v8186 = vld [vmem:[%s20 + $0x8] sm:$0xff]
        %v8187 = vld [vmem:[%s20 + $0x10] sm:$0xff]
        %v8188 = vld [vmem:[%s20 + $0x18] sm:$0xff]
        %v8189 = vld [vmem:[%s20 + $0x20] sm:$0xff]
        %v8190 = vld [vmem:[%s20 + $0x28] sm:$0xff]
        %v8191 = vld [vmem:[%s20 + $0x30] sm:$0xff]
        %v8192 = vld [vmem:[%s20 + $0x38] sm:$0xff]
        %v8193 = vld [vmem:[%s20 + $0x40] sm:$0xff]
        %v8194 = vld [vmem:[%s20 + $0x48] sm:$0xff]
        %v8195 = vld [vmem:[%s20 + $0x50] sm:$0xff]
        %v8196 = vld [vmem:[%s20 + $0x58] sm:$0xff]
        %v8197 = vld [vmem:[%s20 + $0x60] sm:$0xff]
        %v8198 = vld [vmem:[%s20 + $0x68] sm:$0xff]
        %v8199 = vld [vmem:[%s20 + $0x70] sm:$0xff]
        %v8200 = vld [vmem:[%s20 + $0x78] sm:$0xff]
        %8201 = vmatprep.subr.mxu0 0.0
        %8202 = vmatpush1.msra.mxu0 %v8185
        %8203 = vmatprep.subr.mxu0 0.0
        %8204 = vmatpush1.msra.mxu0 %v8186
        %8205 = vmatprep.subr.mxu0 0.0
        %8206 = vmatpush1.msra.mxu0 %v8187
        %8207 = vmatprep.subr.mxu0 0.0
        %8208 = vmatpush1.msra.mxu0 %v8188
        %8209 = vmatprep.subr.mxu0 0.0
        %8210 = vmatpush1.msra.mxu0 %v8189
        %8211 = vmatprep.subr.mxu0 0.0
        %8212 = vmatpush1.msra.mxu0 %v8190
        %8213 = vmatprep.subr.mxu0 0.0
        %8214 = vmatpush1.msra.mxu0 %v8191
        %8215 = vmatprep.subr.mxu0 0.0
        %8216 = vmatpush1.msra.mxu0 %v8192
        %8217 = vmatprep.subr.mxu0 0.0
        %8218 = vmatpush1.msra.mxu0 %v8193
        %8219 = vmatprep.subr.mxu0 0.0
        %8220 = vmatpush1.msra.mxu0 %v8194
        %8221 = vmatprep.subr.mxu0 0.0
        %8222 = vmatpush1.msra.mxu0 %v8195
        %8223 = vmatprep.subr.mxu0 0.0
        %8224 = vmatpush1.msra.mxu0 %v8196
        %8225 = vmatprep.subr.mxu0 0.0
        %8226 = vmatpush1.msra.mxu0 %v8197
        %8227 = vmatprep.subr.mxu0 0.0
        %8228 = vmatpush1.msra.mxu0 %v8198
        %8229 = vmatprep.subr.mxu0 0.0
        %8230 = vmatpush1.msra.mxu0 %v8199
        %8231 = vmatprep.subr.mxu0 0.0
        %8232 = vmatpush1.msra.mxu0 %v8200
        %8233 = vmatprep.subr.mxu0 0.0
        %8234 = vmatpush1.msra.mxu0 0.0
        %8235 = vmatprep.subr.mxu0 0.0
        %8236 = vmatpush1.msra.mxu0 0.0
        %8237 = vmatprep.subr.mxu0 0.0
        %8238 = vmatpush1.msra.mxu0 0.0
        %8239 = vmatprep.subr.mxu0 0.0
        %8240 = vmatpush1.msra.mxu0 0.0
        %8241 = vmatprep.subr.mxu0 0.0
        %8242 = vmatpush1.msra.mxu0 0.0
        %8243 = vmatprep.subr.mxu0 0.0
        %8244 = vmatpush1.msra.mxu0 0.0
        %8245 = vmatprep.subr.mxu0 0.0
        %8246 = vmatpush1.msra.mxu0 0.0
        %8247 = vmatprep.subr.mxu0 0.0
        %8248 = vmatpush1.msra.mxu0 0.0
        %8249 = vmatprep.subr.mxu0 0.0
        %8250 = vmatpush1.msra.mxu0 0.0
        %8251 = vmatprep.subr.mxu0 0.0
        %8252 = vmatpush1.msra.mxu0 0.0
        %8253 = vmatprep.subr.mxu0 0.0
        %8254 = vmatpush1.msra.mxu0 0.0
        %8255 = vmatprep.subr.mxu0 0.0
        %8256 = vmatpush1.msra.mxu0 0.0
        %8257 = vmatprep.subr.mxu0 0.0
        %8258 = vmatpush1.msra.mxu0 0.0
        %8259 = vmatprep.subr.mxu0 0.0
        %8260 = vmatpush1.msra.mxu0 0.0
        %8261 = vmatprep.subr.mxu0 0.0
        %8262 = vmatpush1.msra.mxu0 0.0
        %8263 = vmatprep.subr.mxu0 0.0
        %8264 = vmatpush1.msra.mxu0 0.0
        %8265 = vmatprep.mubr.f32.mxu0 0.0
        %8266 = vmatmul.mubr.f32.gmra.mrb[0].mxu0 %v8183
        %v8267 = vpop.f32.mrb[0].mxu0
        %v8268 = vadd.f32 0.0, %v8267
        %v8269 = vpop.f32.mrb[0].mxu0
        %8270 = vmatprep.mubr.f32.mxu0 0.0
        %8271 = vmatmul.mubr.f32.gmra.mrb[0].mxu0 %v8184
        %v8272 = vpop.f32.mrb[0].mxu0
        %v8273 = vadd.f32 0.0, %v8272
        %v8274 = vpop.f32.mrb[0].mxu0
        %8275 = vdwg.mxu0
        %v8276 = vadd.f32 %v7916, %v8268
        %v8277 = vadd.f32 %v7917, %v8273
        %v8278 = vld [vmem:[%s21] sm:$0x1]
        %v8279 = vlaneseq
        %v8280 = vshrl.u32 %v8279, 7
        %v8281 = vsub.s32 0, %v8280
        %v8282 = vrot.slane %v8278, %v8281
        %v8283 = vadd.f32 %v8276, %v8282
        %v8284 = vadd.f32 %v8277, %v8282
        %s8285 = scalar_lea.vmem %s18, 32
        %v8286 = vld [vmem:[%s8285] sm:$0xff]
        %v8287 = vld [vmem:[%s8285 + $0x8] sm:$0xff]
        %v8288 = vld [vmem:[%s8285 + $0x10] sm:$0xff]
        %v8289 = vld [vmem:[%s8285 + $0x18] sm:$0xff]
        %v8290 = vld [vmem:[%s19 + $0x1] sm:$0x1]
        %v8291 = vlaneseq
        %v8292 = vshrl.u32 %v8291, 7
        %v8293 = vsub.s32 0, %v8292
        %v8294 = vrot.slane %v8290, %v8293
        %v8296 = vsel %vm798, %v8091, 0
        %v8299 = vsel %vm798, %v8092, 0
        %8301 = vmatprep.subr.mxu0 0.0
        %8302 = vmatpush1.msra.mxu0 %v8286
        %8303 = vmatprep.subr.mxu0 0.0
        %8304 = vmatpush1.msra.mxu0 %v8287
        %8305 = vmatprep.subr.mxu0 0.0
        %8306 = vmatpush1.msra.mxu0 %v8288
        %8307 = vmatprep.subr.mxu0 0.0
        %8308 = vmatpush1.msra.mxu0 %v8289
        %8309 = vmatprep.subr.mxu0 0.0
        %8310 = vmatpush1.msra.mxu0 0.0
        %8311 = vmatprep.subr.mxu0 0.0
        %8312 = vmatpush1.msra.mxu0 0.0
        %8313 = vmatprep.subr.mxu0 0.0
        %8314 = vmatpush1.msra.mxu0 0.0
        %8315 = vmatprep.subr.mxu0 0.0
        %8316 = vmatpush1.msra.mxu0 0.0
        %8317 = vmatprep.subr.mxu0 0.0
        %8318 = vmatpush1.msra.mxu0 0.0
        %8319 = vmatprep.subr.mxu0 0.0
        %8320 = vmatpush1.msra.mxu0 0.0
        %8321 = vmatprep.subr.mxu0 0.0
        %8322 = vmatpush1.msra.mxu0 0.0
        %8323 = vmatprep.subr.mxu0 0.0
        %8324 = vmatpush1.msra.mxu0 0.0
        %8325 = vmatprep.subr.mxu0 0.0
        %8326 = vmatpush1.msra.mxu0 0.0
        %8327 = vmatprep.subr.mxu0 0.0
        %8328 = vmatpush1.msra.mxu0 0.0
        %8329 = vmatprep.subr.mxu0 0.0
        %8330 = vmatpush1.msra.mxu0 0.0
        %8331 = vmatprep.subr.mxu0 0.0
        %8332 = vmatpush1.msra.mxu0 0.0
        %8333 = vmatprep.subr.mxu0 0.0
        %8334 = vmatpush1.msra.mxu0 0.0
        %8335 = vmatprep.subr.mxu0 0.0
        %8336 = vmatpush1.msra.mxu0 0.0
        %8337 = vmatprep.subr.mxu0 0.0
        %8338 = vmatpush1.msra.mxu0 0.0
        %8339 = vmatprep.subr.mxu0 0.0
        %8340 = vmatpush1.msra.mxu0 0.0
        %8341 = vmatprep.subr.mxu0 0.0
        %8342 = vmatpush1.msra.mxu0 0.0
        %8343 = vmatprep.subr.mxu0 0.0
        %8344 = vmatpush1.msra.mxu0 0.0
        %8345 = vmatprep.subr.mxu0 0.0
        %8346 = vmatpush1.msra.mxu0 0.0
        %8347 = vmatprep.subr.mxu0 0.0
        %8348 = vmatpush1.msra.mxu0 0.0
        %8349 = vmatprep.subr.mxu0 0.0
        %8350 = vmatpush1.msra.mxu0 0.0
        %8351 = vmatprep.subr.mxu0 0.0
        %8352 = vmatpush1.msra.mxu0 0.0
        %8353 = vmatprep.subr.mxu0 0.0
        %8354 = vmatpush1.msra.mxu0 0.0
        %8355 = vmatprep.subr.mxu0 0.0
        %8356 = vmatpush1.msra.mxu0 0.0
        %8357 = vmatprep.subr.mxu0 0.0
        %8358 = vmatpush1.msra.mxu0 0.0
        %8359 = vmatprep.subr.mxu0 0.0
        %8360 = vmatpush1.msra.mxu0 0.0
        %8361 = vmatprep.subr.mxu0 0.0
        %8362 = vmatpush1.msra.mxu0 0.0
        %8363 = vmatprep.subr.mxu0 0.0
        %8364 = vmatpush1.msra.mxu0 0.0
        %8365 = vmatprep.mubr.f32.mxu0 0.0
        %8366 = vmatmul.mubr.f32.gmra.mrb[0].mxu0 %v8296
        %v8367 = vpop.f32.mrb[0].mxu0
        %v8368 = vadd.f32 %v8294, %v8367
        %v8369 = vpop.f32.mrb[0].mxu0
        %8370 = vmatprep.mubr.f32.mxu0 0.0
        %8371 = vmatmul.mubr.f32.gmra.mrb[0].mxu0 %v8299
        %v8372 = vpop.f32.mrb[0].mxu0
        %v8373 = vadd.f32 %v8294, %v8372
        %v8374 = vpop.f32.mrb[0].mxu0
        %8375 = vdwg.mxu0
        %v8376 = vmax.f32 %v8368, 0.0
        %v8377 = vmax.f32 %v8373, 0.0
        %s8378 = scalar_lea.vmem %s20, 128
        %v8379 = vld [vmem:[%s8378] sm:$0xff]
        %v8380 = vld [vmem:[%s8378 + $0x8] sm:$0xff]
        %v8381 = vld [vmem:[%s8378 + $0x10] sm:$0xff]
        %v8382 = vld [vmem:[%s8378 + $0x18] sm:$0xff]
        %v8383 = vld [vmem:[%s8378 + $0x20] sm:$0xff]
        %v8384 = vld [vmem:[%s8378 + $0x28] sm:$0xff]
        %v8385 = vld [vmem:[%s8378 + $0x30] sm:$0xff]
        %v8386 = vld [vmem:[%s8378 + $0x38] sm:$0xff]
        %v8387 = vld [vmem:[%s8378 + $0x40] sm:$0xff]
        %v8388 = vld [vmem:[%s8378 + $0x48] sm:$0xff]
        %v8389 = vld [vmem:[%s8378 + $0x50] sm:$0xff]
        %v8390 = vld [vmem:[%s8378 + $0x58] sm:$0xff]
        %v8391 = vld [vmem:[%s8378 + $0x60] sm:$0xff]
        %v8392 = vld [vmem:[%s8378 + $0x68] sm:$0xff]
        %v8393 = vld [vmem:[%s8378 + $0x70] sm:$0xff]
        %v8394 = vld [vmem:[%s8378 + $0x78] sm:$0xff]
        %8395 = vmatprep.subr.mxu0 0.0
        %8396 = vmatpush1.msra.mxu0 %v8379
        %8397 = vmatprep.subr.mxu0 0.0
        %8398 = vmatpush1.msra.mxu0 %v8380
        %8399 = vmatprep.subr.mxu0 0.0
        %8400 = vmatpush1.msra.mxu0 %v8381
        %8401 = vmatprep.subr.mxu0 0.0
        %8402 = vmatpush1.msra.mxu0 %v8382
        %8403 = vmatprep.subr.mxu0 0.0
        %8404 = vmatpush1.msra.mxu0 %v8383
        %8405 = vmatprep.subr.mxu0 0.0
        %8406 = vmatpush1.msra.mxu0 %v8384
        %8407 = vmatprep.subr.mxu0 0.0
        %8408 = vmatpush1.msra.mxu0 %v8385
        %8409 = vmatprep.subr.mxu0 0.0
        %8410 = vmatpush1.msra.mxu0 %v8386
        %8411 = vmatprep.subr.mxu0 0.0
        %8412 = vmatpush1.msra.mxu0 %v8387
        %8413 = vmatprep.subr.mxu0 0.0
        %8414 = vmatpush1.msra.mxu0 %v8388
        %8415 = vmatprep.subr.mxu0 0.0
        %8416 = vmatpush1.msra.mxu0 %v8389
        %8417 = vmatprep.subr.mxu0 0.0
        %8418 = vmatpush1.msra.mxu0 %v8390
        %8419 = vmatprep.subr.mxu0 0.0
        %8420 = vmatpush1.msra.mxu0 %v8391
        %8421 = vmatprep.subr.mxu0 0.0
        %8422 = vmatpush1.msra.mxu0 %v8392
        %8423 = vmatprep.subr.mxu0 0.0
        %8424 = vmatpush1.msra.mxu0 %v8393
        %8425 = vmatprep.subr.mxu0 0.0
        %8426 = vmatpush1.msra.mxu0 %v8394
        %8427 = vmatprep.subr.mxu0 0.0
        %8428 = vmatpush1.msra.mxu0 0.0
        %8429 = vmatprep.subr.mxu0 0.0
        %8430 = vmatpush1.msra.mxu0 0.0
        %8431 = vmatprep.subr.mxu0 0.0
        %8432 = vmatpush1.msra.mxu0 0.0
        %8433 = vmatprep.subr.mxu0 0.0
        %8434 = vmatpush1.msra.mxu0 0.0
        %8435 = vmatprep.subr.mxu0 0.0
        %8436 = vmatpush1.msra.mxu0 0.0
        %8437 = vmatprep.subr.mxu0 0.0
        %8438 = vmatpush1.msra.mxu0 0.0
        %8439 = vmatprep.subr.mxu0 0.0
        %8440 = vmatpush1.msra.mxu0 0.0
        %8441 = vmatprep.subr.mxu0 0.0
        %8442 = vmatpush1.msra.mxu0 0.0
        %8443 = vmatprep.subr.mxu0 0.0
        %8444 = vmatpush1.msra.mxu0 0.0
        %8445 = vmatprep.subr.mxu0 0.0
        %8446 = vmatpush1.msra.mxu0 0.0
        %8447 = vmatprep.subr.mxu0 0.0
        %8448 = vmatpush1.msra.mxu0 0.0
        %8449 = vmatprep.subr.mxu0 0.0
        %8450 = vmatpush1.msra.mxu0 0.0
        %8451 = vmatprep.subr.mxu0 0.0
        %8452 = vmatpush1.msra.mxu0 0.0
        %8453 = vmatprep.subr.mxu0 0.0
        %8454 = vmatpush1.msra.mxu0 0.0
        %8455 = vmatprep.subr.mxu0 0.0
        %8456 = vmatpush1.msra.mxu0 0.0
        %8457 = vmatprep.subr.mxu0 0.0
        %8458 = vmatpush1.msra.mxu0 0.0
        %8459 = vmatprep.mubr.f32.mxu0 0.0
        %8460 = vmatmul.mubr.f32.gmra.mrb[0].mxu0 %v8376
        %v8461 = vpop.f32.mrb[0].mxu0
        %v8462 = vadd.f32 0.0, %v8461
        %v8463 = vpop.f32.mrb[0].mxu0
        %8464 = vmatprep.mubr.f32.mxu0 0.0
        %8465 = vmatmul.mubr.f32.gmra.mrb[0].mxu0 %v8377
        %v8466 = vpop.f32.mrb[0].mxu0
        %v8467 = vadd.f32 0.0, %v8466
        %v8468 = vpop.f32.mrb[0].mxu0
        %8469 = vdwg.mxu0
        %v8470 = vadd.f32 %v8011, %v8462
        %v8471 = vadd.f32 %v8012, %v8467
        %v8472 = vld [vmem:[%s21 + $0x1] sm:$0x1]
        %v8473 = vlaneseq
        %v8474 = vshrl.u32 %v8473, 7
        %v8475 = vsub.s32 0, %v8474
        %v8476 = vrot.slane %v8472, %v8475
        %v8477 = vadd.f32 %v8470, %v8476
        %v8478 = vadd.f32 %v8471, %v8476
        %8479 = vst.msk [vmem:[%s762] sm:$0xff] %vm798, %v8283
        %8480 = vst.msk [vmem:[%s762 + $0x8] sm:$0xff] %vm798, %v8284
        %8481 = vst.msk [vmem:[%s769] sm:$0xff] %vm798, %v8477
        %8482 = vst.msk [vmem:[%s769 + $0x8] sm:$0xff] %vm798, %v8478
        %8483 = vst.msk [vmem:[%s776] sm:$0xff] %vm798, %v4290
        %s8484 = sand.u32 %s527, 1
        %s8485 = scalar_lea.sflag [#allocation3], %s8484
        %s8486 = sand.u32 %s527, 1
        %s8487 = smul.addr %s8486, 16
        %s8488 = scalar_lea.vmem [#allocation2], %s8487
        %s8489 = sand.u32 %s42, 1
        %s8490 = scalar_lea.sflag [#allocation5], %s8489
        %s8491 = sand.u32 %s553, 1
        %s8492 = smul.addr %s8491, 16
        %s8493 = scalar_lea.vmem [#allocation4], %s8492
        %s8494 = sand.u32 %s42, 1
        %s8495 = scalar_lea.sflag [#allocation5], %s8494
        %s8496 = sand.u32 %s579, 1
        %s8497 = smul.addr %s8496, 8
        %s8498 = scalar_lea.vmem [#allocation6], %s8497
        // Predicated region
        $region109: #{bottleneck_transformer_layer.1} parent=107 // pred_check
          %p8499 = pneg %p537
        $region110: #{bottleneck_transformer_layer.1} parent=107 // pred_check_branch
          %8501 = sbr.rel (%p8499) target = $region112
        $region111: #{bottleneck_transformer_layer.1} parent=107 // pred_region
          %s8503 = ssub.s32 256, 256
          %8504 = vsyncadd %s8485, %s8503
          %s8505 = smul.addr %s42, 2
          %s8506 = smul.addr %s8505, 128
          %s8507 = scalar_lea.hbm %s22, %s8506
          %s8508 = sshll.u32 %s8488, 4
          %s8509 = int_to_ptr.vmem [resolvable:$true] %s8508
          %8514 = dma.vmem_to_hbm [thread:$0]  %s8509, 256, %s8507, %s8485, 128, 128, 8
        $region112: #{bottleneck_transformer_layer.1} parent=107 // pred_fallthru
          _
        // Predicated region
        $region113: #{bottleneck_transformer_layer.1} parent=107 // pred_check
          %p8515 = pneg %p563
        $region114: #{bottleneck_transformer_layer.1} parent=107 // pred_check_branch
          %8517 = sbr.rel (%p8515) target = $region116
        $region115: #{bottleneck_transformer_layer.1} parent=107 // pred_region
          %s8519 = ssub.s32 256, 256
          %8520 = vsyncadd %s8490, %s8519
          %s8521 = smul.addr %s42, 2
          %s8522 = smul.addr %s8521, 128
          %s8523 = scalar_lea.hbm %s23, %s8522
          %s8524 = sshll.u32 %s8493, 4
          %s8525 = int_to_ptr.vmem [resolvable:$true] %s8524
          %8530 = dma.vmem_to_hbm [thread:$0]  %s8525, 256, %s8523, %s8490, 128, 128, 8
        $region116: #{bottleneck_transformer_layer.1} parent=107 // pred_fallthru
          _
        // Predicated region
        $region117: #{bottleneck_transformer_layer.1} parent=107 // pred_check
          %p8531 = pneg %p589
        $region118: #{bottleneck_transformer_layer.1} parent=107 // pred_check_branch
          %8533 = sbr.rel (%p8531) target = $region120
        $region119: #{bottleneck_transformer_layer.1} parent=107 // pred_region
          %s8535 = ssub.s32 128, 128
          %8536 = vsyncadd %s8495, %s8535
          %s8537 = smul.addr %s42, 128
          %s8538 = scalar_lea.hbm %s24, %s8537
          %s8540 = sshll.u32 %s8498, 4
          %s8541 = int_to_ptr.vmem [resolvable:$true] %s8540
          %8543 = dma.vmem_to_hbm [thread:$0]  %s8541, 128, %s8538, %s8495
        $region120: #{bottleneck_transformer_layer.1} parent=107 // pred_fallthru
          _
      $region108: #{bottleneck_transformer_layer.1} parent=5 // pred_fallthru
        _
      %p8544 = scmp.le.s32.totalorder 2, %s37
      // Predicated region
      $region121: #{bottleneck_transformer_layer.1} parent=5 // pred_check
        %p8545 = pneg %p8544
      $region122: #{bottleneck_transformer_layer.1} parent=5 // pred_check_branch
        %8547 = sbr.rel (%p8545) target = $region124
      $region123: #{bottleneck_transformer_layer.1} parent=5 // pred_region
        %s8548 = ssub.s32 %s37, 2
        // Predicated region
        $region125: #{bottleneck_transformer_layer.1} parent=123 // pred_check
          %p8549 = pneg %p543
        $region126: #{bottleneck_transformer_layer.1} parent=123 // pred_check_branch
          %8551 = sbr.rel (%p8549) target = $region128
        $region127: #{bottleneck_transformer_layer.1} parent=123 // pred_region
          %s8552 = sand.u32 %s528, 1
          %s8553 = scalar_lea.sflag [#allocation3], %s8552
          %s8554 = sand.u32 %s528, 1
          %s8555 = smul.addr %s8554, 16
          %s8556 = scalar_lea.vmem [#allocation2], %s8555
          %8557 = dma.done %s8553, 256
        $region128: #{bottleneck_transformer_layer.1} parent=123 // pred_fallthru
          _
        // Predicated region
        $region129: #{bottleneck_transformer_layer.1} parent=123 // pred_check
          %p8558 = pneg %p569
        $region130: #{bottleneck_transformer_layer.1} parent=123 // pred_check_branch
          %8560 = sbr.rel (%p8558) target = $region132
        $region131: #{bottleneck_transformer_layer.1} parent=123 // pred_region
          %s8561 = sand.u32 %s43, 1
          %s8562 = scalar_lea.sflag [#allocation5], %s8561
          %s8563 = sand.u32 %s554, 1
          %s8564 = smul.addr %s8563, 16
          %s8565 = scalar_lea.vmem [#allocation4], %s8564
          %8566 = dma.done %s8562, 256
        $region132: #{bottleneck_transformer_layer.1} parent=123 // pred_fallthru
          _
        // Predicated region
        $region133: #{bottleneck_transformer_layer.1} parent=123 // pred_check
          %p8567 = pneg %p595
        $region134: #{bottleneck_transformer_layer.1} parent=123 // pred_check_branch
          %8569 = sbr.rel (%p8567) target = $region136
        $region135: #{bottleneck_transformer_layer.1} parent=123 // pred_region
          %s8570 = sand.u32 %s43, 1
          %s8571 = scalar_lea.sflag [#allocation5], %s8570
          %s8572 = sand.u32 %s580, 1
          %s8573 = smul.addr %s8572, 8
          %s8574 = scalar_lea.vmem [#allocation6], %s8573
          %8575 = dma.done %s8571, 128
        $region136: #{bottleneck_transformer_layer.1} parent=123 // pred_fallthru
          _
      $region124: #{bottleneck_transformer_layer.1} parent=5 // pred_fallthru
        _
    $region6: #{bottleneck_transformer_layer.1} parent=1 // loop_footer
      %s41 = sadd.s32 1, %s37
    $region7: #{bottleneck_transformer_layer.1} parent=1 // loop_footer_branch
      %36 = sbr.rel target = $region3
    $region8: #{bottleneck_transformer_layer.1} parent=1 // loop_exit
      _
    %8576 = vsyncpa [#allocation3], 1
    %s8577 = scalar_lea.sflag [#allocation3], 1
    %8578 = vsyncpa %s8577, 1
    %8579 = vsyncpa [#allocation5], 1
    %s8580 = scalar_lea.sflag [#allocation5], 1
    %8581 = vsyncpa %s8580, 1

</llo_original>
